<compile_context>
chip_gen: v5e
topology: v5e:2x2
jax: 0.10.0
libtpu: 0.0.40
codegen_flags: <defaults>
</compile_context>

<pallas_src>
import math
import functools

import jax
import jax.numpy as jnp
import numpy as np
from jax import lax
from jax.experimental import pallas as pl
from jax.experimental.pallas import tpu as pltpu


def _round_up(x, m):
    return ((x + m - 1) // m) * m


def _spatial_lstm_kernel(
    # inputs
    x_ref,      # (Tc, Bc, Dp)   bf16 time-chunk of inputs (zero padded)
    wa_ref,     # (Dp, Dp)       bf16 attention input weight Wa
    uah_ref,    # (Hp, Dp)       bf16 attention h weight  (Ua[:H])
    uac_ref,    # (Hp, Dp)       bf16 attention c weight  (Ua[H:])
    ba_ref,     # (1, Dp)        f32  attention bias
    va_ref,     # (Dp, Dp)       bf16 attention projection Va
    w_ref,      # (Dp, 4*Hp)     bf16 gate input weight (per-gate lane padded)
    u_ref,      # (Hp, 4*Hp)     bf16 gate recurrent weight
    b_ref,      # (1, 4*Hp)      f32  gate bias
    # outputs
    hseq_ref,   # (Tc, Bc, Hp)   f32  hidden sequence chunk
    alpha_ref,  # (Tc, Bc, Dp)   bf16 attention weights chunk
    hout_ref,   # (Bc, Hp)       f32  recurrent carry / final h
    cout_ref,   # (Bc, Hp)       f32  recurrent carry / final c
    # scratch
    xa_ref,     # (Tc, Bc, Dp)   f32  hoisted x@Wa + ba for this chunk
    *,
    t_chunk,
    seq_len,
    mask_tail,
    input_dim,
    input_pad,
    hidden_pad,
    unroll,
):
    # Initialize the recurrent carry at the start of each batch-chunk's time
    # sweep.  hout/cout have a constant index over the (inner) time grid axis,
    # so they stay VMEM-resident across chunks and double as the carry.
    @pl.when(pl.program_id(1) == 0)
    def _():
        hout_ref[...] = jnp.zeros_like(hout_ref)
        cout_ref[...] = jnp.zeros_like(cout_ref)

    Dp, Hp = input_pad, hidden_pad
    Bc = x_ref.shape[1]

    wa = wa_ref[...]
    uah = uah_ref[...]
    uac = uac_ref[...]
    va = va_ref[...]
    w = w_ref[...]
    u = u_ref[...]

    # ---- hoisted big-M GEMM:  xa[t] = x[t] @ Wa + ba  for the whole chunk ---
    # (Bc is a multiple of 8, so the leading-dim collapse is tile-aligned.)
    x_all = x_ref[...].reshape(t_chunk * Bc, Dp)
    xa = jnp.dot(x_all, wa, preferred_element_type=jnp.float32) + ba_ref[...]
    xa_ref[...] = xa.reshape(t_chunk, Bc, Dp)

    # ---- loop-invariant broadcasts hoisted out of the unrolled time loop ----
    bias_b = jnp.broadcast_to(b_ref[...], (Bc, 4 * Hp))
    if Dp > input_dim:
        lane = lax.broadcasted_iota(jnp.int32, (1, Dp), 1)
        neg_b = jnp.broadcast_to(
            jnp.where(lane < input_dim, 0.0, -1e30).astype(jnp.float32),
            (Bc, Dp))
    else:
        neg_b = None

    t0 = pl.program_id(1) * t_chunk

    def step(t, carry):
        h_t, c_t = carry                               # f32 (Bc, Hp)
        h_b = h_t.astype(jnp.bfloat16)
        c_b = c_t.astype(jnp.bfloat16)
        x_t = x_ref[t]                                 # bf16 (Bc, Dp)

        # a_t = tanh( (x@Wa + ba)  +  h@Ua_h + c@Ua_c ) @ Va   (summed dots)
        pre = jnp.tanh(
            xa_ref[t]
            + jnp.dot(h_b, uah, preferred_element_type=jnp.float32)
            + jnp.dot(c_b, uac, preferred_element_type=jnp.float32))
        a_t = jnp.dot(pre.astype(jnp.bfloat16), va,
                      preferred_element_type=jnp.float32)
        if neg_b is not None:
            a_t = a_t + neg_b                          # mask padded lanes

        # Softmax over the feature dimension (torch dim=1).
        a_max = jnp.max(a_t, axis=1, keepdims=True)
        e = jnp.exp(a_t - a_max)
        denom = jnp.sum(e, axis=1, keepdims=True)
        r = pl.reciprocal(denom, approx=True)          # EUP slot
        r = r * (2.0 - denom * r)                      # 1 Newton step -> exact-ish
        alpha_t = e * r
        alpha_ref[t] = alpha_t.astype(alpha_ref.dtype)

        # gates = (alpha*x)@W + h@U + bias             (summed dots, no concat)
        ax = (alpha_t * x_t).astype(jnp.bfloat16)
        gates = (jnp.dot(ax, w, preferred_element_type=jnp.float32)
                 + jnp.dot(h_b, u, preferred_element_type=jnp.float32)
                 + bias_b)

        # 128-lane-aligned gate slices (free views).
        i_t = jax.nn.sigmoid(gates[:, 0 * Hp:1 * Hp])
        f_t = jax.nn.sigmoid(gates[:, 1 * Hp:2 * Hp])
        g_t = jnp.tanh(gates[:, 2 * Hp:3 * Hp])
        o_t = jax.nn.sigmoid(gates[:, 3 * Hp:4 * Hp])

        c_n = f_t * c_t + i_t * g_t
        h_n = o_t * jnp.tanh(c_n)

        if mask_tail:
            # Padded timesteps (global t >= seq_len) must not advance the carry.
            keep = (t0 + t < seq_len).astype(jnp.float32)   # scalar 0/1
            h_n = h_t + keep * (h_n - h_t)
            c_n = c_t + keep * (c_n - c_t)

        hseq_ref[t] = h_n.astype(hseq_ref.dtype)
        return (h_n, c_n)

    h_f, c_f = lax.fori_loop(0, t_chunk, step,
                             (hout_ref[...], cout_ref[...]), unroll=unroll)
    hout_ref[...] = h_f
    cout_ref[...] = c_f


def spatial_lstm_forward(X, params, *, max_time_chunk=16, num_batch_splits=1,
                         weight_dtype=jnp.bfloat16):
    """X: (batch, seq_len, input_dim) float32.
    Returns (hidden_seq (B,T,H), (h_t, c_t), alphas (T,B,D))."""
    B, T, D = X.shape
    H = params["U"].shape[0]

    Dp = _round_up(D, 128)
    Hp = _round_up(H, 128)
    Bp = _round_up(B, 8)           # sublane alignment; padded rows sliced off

    # ---- wrapper-side lane padding + bf16 cast (zero pads are inert) --------
    wa = jnp.pad(params["Wa"], ((0, Dp - D), (0, Dp - D))).astype(weight_dtype)
    uah = jnp.pad(params["Ua"][:H], ((0, Hp - H), (0, Dp - D))).astype(weight_dtype)
    uac = jnp.pad(params["Ua"][H:], ((0, Hp - H), (0, Dp - D))).astype(weight_dtype)
    ba = jnp.pad(params["ba"].reshape(1, D),
                 ((0, 0), (0, Dp - D))).astype(jnp.float32)
    va = jnp.pad(params["Va"], ((0, Dp - D), (0, Dp - D))).astype(weight_dtype)
    # Gate weights: pad each of the i/f/g/o column blocks to Hp lanes.
    w = jnp.pad(params["W"].reshape(D, 4, H),
                ((0, Dp - D), (0, 0), (0, Hp - H))
                ).reshape(Dp, 4 * Hp).astype(weight_dtype)
    u = jnp.pad(params["U"].reshape(H, 4, H),
                ((0, Hp - H), (0, 0), (0, Hp - H))
                ).reshape(Hp, 4 * Hp).astype(weight_dtype)
    bias = jnp.pad(params["bias"].reshape(4, H),
                   ((0, 0), (0, Hp - H))).reshape(1, 4 * Hp).astype(jnp.float32)

    # ---- time-major, zero-padded, bf16 input; T padded to a Tc multiple -----
    # VMEM budget per chunk (double-buffered I/O): 2*Tc*Bc*(2*Dp*2 + Hp*4) B
    # plus single-buffered bf16 weights + the f32 xa scratch.
    Tc = min(max_time_chunk, T)
    Tp = _round_up(T, Tc)
    x_tm = jnp.pad(jnp.transpose(X, (1, 0, 2)).astype(weight_dtype),
                   ((0, Tp - T), (0, Bp - B), (0, Dp - D)))   # (Tp, Bp, Dp)

    # Batch split only pays off on 2-TensorCore chips (v7x). Default = no split
    # so the per-step GEMM M stays maximal on single-TC v5e/v6e.
    n_b = num_batch_splits if (Bp % (8 * num_batch_splits) == 0) else 1
    Bc = Bp // n_b
    n_t = Tp // Tc
    unroll = True if Tc <= 8 else 8   # partial unroll once chunks get long

    kernel = functools.partial(
        _spatial_lstm_kernel,
        t_chunk=Tc, seq_len=T, mask_tail=(Tp != T),
        input_dim=D, input_pad=Dp, hidden_pad=Hp, unroll=unroll)

    out_shape = (
        jax.ShapeDtypeStruct((Tp, Bp, Hp), jnp.float32),   # hidden_seq
        jax.ShapeDtypeStruct((Tp, Bp, Dp), jnp.bfloat16),  # alphas (bf16 writeback)
        jax.ShapeDtypeStruct((Bp, Hp), jnp.float32),       # final h
        jax.ShapeDtypeStruct((Bp, Hp), jnp.float32),       # final c
    )
    out_specs = [
        pl.BlockSpec((Tc, Bc, Hp), lambda b, t: (t, b, 0)),
        pl.BlockSpec((Tc, Bc, Dp), lambda b, t: (t, b, 0)),
        pl.BlockSpec((Bc, Hp), lambda b, t: (b, 0)),       # carry (constant in t)
        pl.BlockSpec((Bc, Hp), lambda b, t: (b, 0)),       # carry (constant in t)
    ]

    def build(buffer_weights):
        def wspec(shape):
            # Grid-invariant weights: single-buffer to save VMEM (v7x: 64 MiB).
            if buffer_weights:
                return pl.BlockSpec(shape, lambda b, t: (0, 0),
                                    pipeline_mode=pl.Buffered(1))
            return pl.BlockSpec(shape, lambda b, t: (0, 0))

        return pl.pallas_call(
            kernel,
            out_shape=out_shape,
            grid_spec=pltpu.PrefetchScalarGridSpec(
                num_scalar_prefetch=0,
                grid=(n_b, n_t),
                in_specs=[
                    pl.BlockSpec((Tc, Bc, Dp), lambda b, t: (t, b, 0)),  # x
                    wspec((Dp, Dp)),        # Wa
                    wspec((Hp, Dp)),        # Ua_h
                    wspec((Hp, Dp)),        # Ua_c
                    wspec((1, Dp)),         # ba
                    wspec((Dp, Dp)),        # Va
                    wspec((Dp, 4 * Hp)),    # W
                    wspec((Hp, 4 * Hp)),    # U
                    wspec((1, 4 * Hp)),     # bias
                ],
                out_specs=out_specs,
                scratch_shapes=[pltpu.VMEM((Tc, Bc, Dp), jnp.float32)],  # xa
            ),
            compiler_params=pltpu.CompilerParams(
                # batch chunks are independent recurrences; time is sequential
                dimension_semantics=("parallel", "arbitrary"),
                vmem_limit_bytes=48 * 1024 * 1024,   # headroom under v7x 64 MiB
            ),
        )

    args = (x_tm, wa, uah, uac, ba, va, w, u, bias)
    try:
        hseq, alphas, h_fin, c_fin = build(buffer_weights=True)(*args)
    except Exception:
        # pipeline_mode=pl.Buffered(1) unsupported on this JAX build: fall back
        # to default double-buffering (correctness identical).
        hseq, alphas, h_fin, c_fin = build(buffer_weights=False)(*args)

    hidden_seq = jnp.transpose(hseq[:T, :B, :H], (1, 0, 2))   # (B, T, H)
    alphas = alphas[:T, :B, :D].astype(jnp.float32)           # (T, B, D)
    return hidden_seq, (h_fin[:B, :H], c_fin[:B, :H]), alphas


def init_params(key, input_dim, hidden_dim):
    stdv = 1.0 / math.sqrt(hidden_dim)
    keys = jax.random.split(key, 7)
    u = lambda k, shape: jax.random.uniform(
        k, shape, minval=-stdv, maxval=stdv, dtype=jnp.float32)
    return {
        "W": u(keys[0], (input_dim, hidden_dim * 4)),
        "U": u(keys[1], (hidden_dim, hidden_dim * 4)),
        "bias": u(keys[2], (hidden_dim * 4,)),
        "Wa": u(keys[3], (input_dim, input_dim)),
        "Ua": u(keys[4], (hidden_dim * 2, input_dim)),
        "ba": u(keys[5], (input_dim,)),
        "Va": u(keys[6], (input_dim, input_dim)),
    }


def reference_forward(X, p):
    """Pure-JAX f32 reference mirroring the PyTorch loop (for validation)."""
    B, T, D = X.shape
    H = p["U"].shape[0]

    def step(carry, x_t):
        h_t, c_t = carry
        a_t = jnp.tanh(x_t @ p["Wa"]
                       + jnp.concatenate([h_t, c_t], axis=1) @ p["Ua"]
                       + p["ba"]) @ p["Va"]
        alpha_t = jax.nn.softmax(a_t, axis=1)
        xg = alpha_t * x_t
        gates = xg @ p["W"] + h_t @ p["U"] + p["bias"]
        i_t = jax.nn.sigmoid(gates[:, :H])
        f_t = jax.nn.sigmoid(gates[:, H:2 * H])
        g_t = jnp.tanh(gates[:, 2 * H:3 * H])
        o_t = jax.nn.sigmoid(gates[:, 3 * H:])
        c_n = f_t * c_t + i_t * g_t
        h_n = o_t * jnp.tanh(c_n)
        return (h_n, c_n), (h_n, alpha_t)

    h0 = jnp.zeros((B, H), jnp.float32)
    c0 = jnp.zeros((B, H), jnp.float32)
    (h_f, c_f), (hs, alphas) = jax.lax.scan(
        step, (h0, c0), jnp.transpose(X, (1, 0, 2)))
    return jnp.transpose(hs, (1, 0, 2)), (h_f, c_f), alphas


if __name__ == "__main__":
    key = jax.random.PRNGKey(0)
    k_param, k_x1, k_x2 = jax.random.split(key, 3)

    batch, seq_len, input_dim, hidden_dim = 4, 8, 16, 32
    params = init_params(k_param, input_dim, hidden_dim)
    X = jax.random.normal(k_x1, (batch, seq_len, input_dim), dtype=jnp.float32)

    hidden_seq, (h_t, c_t), alphas = spatial_lstm_forward(X, params)
    jax.block_until_ready((hidden_seq, h_t, c_t, alphas))

    # Tolerance accounts for bf16 weights/inputs (f32 accumulation): a few 1e-3
    # absolute deviation vs. the pure-f32 reference.
    tol = dict(rtol=2e-2, atol=2e-2)
    hs_ref, (h_ref, c_ref), a_ref = reference_forward(X, params)
    np.testing.assert_allclose(np.asarray(hidden_seq), np.asarray(hs_ref), **tol)
    np.testing.assert_allclose(np.asarray(h_t), np.asarray(h_ref), **tol)
    np.testing.assert_allclose(np.asarray(c_t), np.asarray(c_ref), **tol)
    np.testing.assert_allclose(np.asarray(alphas), np.asarray(a_ref), **tol)

    # Second config: ragged T (not a multiple of the chunk) to exercise the
    # padded-tail masking path.
    X2 = jax.random.normal(k_x2, (batch, 10, input_dim), dtype=jnp.float32)
    hs2, (h2, c2), a2 = spatial_lstm_forward(X2, params, max_time_chunk=8)
    jax.block_until_ready((hs2, h2, c2, a2))
    hs2_r, (h2_r, c2_r), a2_r = reference_forward(X2, params)
    np.testing.assert_allclose(np.asarray(hs2), np.asarray(hs2_r), **tol)
    np.testing.assert_allclose(np.asarray(h2), np.asarray(h2_r), **tol)
    np.testing.assert_allclose(np.asarray(c2), np.asarray(c2_r), **tol)
    np.testing.assert_allclose(np.asarray(a2), np.asarray(a2_r), **tol)

    print("KERNEL_OK")
</pallas_src>

<mosaic_0001>
module attributes {stable_mosaic.version = 11 : i64} {
  func.func @_spatial_lstm_kernel(%arg0: i32, %arg1: i32, %arg2: memref<8x8x128xbf16, #tpu.memory_space<vmem>>, %arg3: memref<128x128xbf16, #tpu.memory_space<vmem>>, %arg4: memref<128x128xbf16, #tpu.memory_space<vmem>>, %arg5: memref<128x128xbf16, #tpu.memory_space<vmem>>, %arg6: memref<1x128xf32, #tpu.memory_space<vmem>>, %arg7: memref<128x128xbf16, #tpu.memory_space<vmem>>, %arg8: memref<128x512xbf16, #tpu.memory_space<vmem>>, %arg9: memref<128x512xbf16, #tpu.memory_space<vmem>>, %arg10: memref<1x512xf32, #tpu.memory_space<vmem>>, %arg11: memref<8x8x128xf32, #tpu.memory_space<vmem>>, %arg12: memref<8x8x128xbf16, #tpu.memory_space<vmem>>, %arg13: memref<8x128xf32, #tpu.memory_space<vmem>>, %arg14: memref<8x128xf32, #tpu.memory_space<vmem>>, %arg15: memref<8x8x128xf32, #tpu.memory_space<vmem>>) attributes {dimension_semantics = [#tpu.dimension_semantics<parallel>, #tpu.dimension_semantics<arbitrary>], iteration_bounds = array<i64: 1, 1>, scalar_prefetch = 0 : i64, scratch_operands = 1 : i64, tpu.core_type = #tpu.core_type<tc>, window_params = [{transform_indices = @transform_0, window_bounds = array<i64: 8, 8, 128>}, {pipeline_mode = #tpu.pipeline_mode<synchronous>, transform_indices = @transform_1, window_bounds = array<i64: 128, 128>}, {pipeline_mode = #tpu.pipeline_mode<synchronous>, transform_indices = @transform_2, window_bounds = array<i64: 128, 128>}, {pipeline_mode = #tpu.pipeline_mode<synchronous>, transform_indices = @transform_3, window_bounds = array<i64: 128, 128>}, {pipeline_mode = #tpu.pipeline_mode<synchronous>, transform_indices = @transform_4, window_bounds = array<i64: 1, 128>}, {pipeline_mode = #tpu.pipeline_mode<synchronous>, transform_indices = @transform_5, window_bounds = array<i64: 128, 128>}, {pipeline_mode = #tpu.pipeline_mode<synchronous>, transform_indices = @transform_6, window_bounds = array<i64: 128, 512>}, {pipeline_mode = #tpu.pipeline_mode<synchronous>, transform_indices = @transform_7, window_bounds = array<i64: 128, 512>}, {pipeline_mode = #tpu.pipeline_mode<synchronous>, transform_indices = @transform_8, window_bounds = array<i64: 1, 512>}, {transform_indices = @transform_9, window_bounds = array<i64: 8, 8, 128>}, {transform_indices = @transform_10, window_bounds = array<i64: 8, 8, 128>}, {transform_indices = @transform_11, window_bounds = array<i64: 8, 128>}, {transform_indices = @transform_12, window_bounds = array<i64: 8, 128>}]} {
    %c0_i32 = arith.constant 0 : i32
    %0 = arith.cmpi eq, %arg1, %c0_i32 : i32
    %1 = arith.extui %0 : i1 to i32
    %c0_i32_0 = arith.constant 0 : i32
    %2 = arith.cmpi ne, %1, %c0_i32_0 : i32
    scf.if %2 {
      %cst_185 = arith.constant 0.000000e+00 : f32
      %600 = vector.broadcast %cst_185 : f32 to vector<8x128xf32>
      %c0_186 = arith.constant 0 : index
      %c0_187 = arith.constant 0 : index
      %601 = vector.load %arg13[%c0_186, %c0_187] : memref<8x128xf32, #tpu.memory_space<vmem>>, vector<8x128xf32>
      tpu.vector_store %arg13[%c0_186, %c0_187], %600 {strides = array<i32>} : memref<8x128xf32, #tpu.memory_space<vmem>>, vector<8x128xf32>,
      %cst_188 = arith.constant 0.000000e+00 : f32
      %602 = vector.broadcast %cst_188 : f32 to vector<8x128xf32>
      %c0_189 = arith.constant 0 : index
      %c0_190 = arith.constant 0 : index
      %603 = vector.load %arg14[%c0_189, %c0_190] : memref<8x128xf32, #tpu.memory_space<vmem>>, vector<8x128xf32>
      tpu.vector_store %arg14[%c0_189, %c0_190], %602 {strides = array<i32>} : memref<8x128xf32, #tpu.memory_space<vmem>>, vector<8x128xf32>,
    } else {
    }
    %c0 = arith.constant 0 : index
    %c0_1 = arith.constant 0 : index
    %3 = vector.load %arg3[%c0, %c0_1] : memref<128x128xbf16, #tpu.memory_space<vmem>>, vector<128x128xbf16>
    %c0_2 = arith.constant 0 : index
    %c0_3 = arith.constant 0 : index
    %4 = vector.load %arg4[%c0_2, %c0_3] : memref<128x128xbf16, #tpu.memory_space<vmem>>, vector<128x128xbf16>
    %c0_4 = arith.constant 0 : index
    %c0_5 = arith.constant 0 : index
    %5 = vector.load %arg5[%c0_4, %c0_5] : memref<128x128xbf16, #tpu.memory_space<vmem>>, vector<128x128xbf16>
    %c0_6 = arith.constant 0 : index
    %c0_7 = arith.constant 0 : index
    %6 = vector.load %arg7[%c0_6, %c0_7] : memref<128x128xbf16, #tpu.memory_space<vmem>>, vector<128x128xbf16>
    %c0_8 = arith.constant 0 : index
    %c0_9 = arith.constant 0 : index
    %7 = vector.load %arg8[%c0_8, %c0_9] : memref<128x512xbf16, #tpu.memory_space<vmem>>, vector<128x512xbf16>
    %c0_10 = arith.constant 0 : index
    %c0_11 = arith.constant 0 : index
    %8 = vector.load %arg9[%c0_10, %c0_11] : memref<128x512xbf16, #tpu.memory_space<vmem>>, vector<128x512xbf16>
    %c0_12 = arith.constant 0 : index
    %c0_13 = arith.constant 0 : index
    %c0_14 = arith.constant 0 : index
    %9 = vector.load %arg2[%c0_12, %c0_13, %c0_14] : memref<8x8x128xbf16, #tpu.memory_space<vmem>>, vector<8x8x128xbf16>
    %10 = vector.shape_cast %9 : vector<8x8x128xbf16> to vector<64x128xbf16>
    %cst = arith.constant dense<0.000000e+00> : vector<64x128xf32>
    %11 = tpu.matmul %10, %3, %cst {dimension_numbers = #tpu.dot_dimension_numbers<[1], [0], [0], [1], [0, 0, 1, 1], [], []>} : vector<64x128xbf16>, vector<128x128xbf16>, vector<64x128xf32> -> vector<64x128xf32>
    %c0_15 = arith.constant 0 : index
    %c0_16 = arith.constant 0 : index
    %12 = vector.load %arg6[%c0_15, %c0_16] : memref<1x128xf32, #tpu.memory_space<vmem>>, vector<1x128xf32>
    %13 = vector.broadcast %12 : vector<1x128xf32> to vector<64x128xf32>
    %14 = arith.addf %11, %13 : vector<64x128xf32>
    %15 = vector.shape_cast %14 : vector<64x128xf32> to vector<8x8x128xf32>
    %c0_17 = arith.constant 0 : index
    %c0_18 = arith.constant 0 : index
    %c0_19 = arith.constant 0 : index
    %16 = vector.load %arg15[%c0_17, %c0_18, %c0_19] : memref<8x8x128xf32, #tpu.memory_space<vmem>>, vector<8x8x128xf32>
    tpu.vector_store %arg15[%c0_17, %c0_18, %c0_19], %15 {strides = array<i32>} : memref<8x8x128xf32, #tpu.memory_space<vmem>>, vector<8x8x128xf32>,
    %c0_20 = arith.constant 0 : index
    %c0_21 = arith.constant 0 : index
    %17 = vector.load %arg10[%c0_20, %c0_21] : memref<1x512xf32, #tpu.memory_space<vmem>>, vector<1x512xf32>
    %18 = vector.shape_cast %17 : vector<1x512xf32> to vector<1x512xf32>
    %19 = vector.broadcast %18 : vector<1x512xf32> to vector<8x512xf32>
    %20 = tpu.iota {dimensions = array<i32: 1>} : vector<1x128xi32>
    %c16_i32 = arith.constant 16 : i32
    %21 = vector.broadcast %c16_i32 : i32 to vector<1x128xi32>
    %22 = arith.cmpi slt, %20, %21 : vector<1x128xi32>
    %cst_22 = arith.constant 0.000000e+00 : f32
    %cst_23 = arith.constant -1.000000e+30 : f32
    %23 = vector.broadcast %cst_22 : f32 to vector<1x128xf32>
    %24 = vector.broadcast %cst_23 : f32 to vector<1x128xf32>
    %25 = arith.select %22, %23, %24 : vector<1x128xi1>, vector<1x128xf32>
    %26 = vector.shape_cast %25 : vector<1x128xf32> to vector<1x128xf32>
    %27 = vector.broadcast %26 : vector<1x128xf32> to vector<8x128xf32>
    %c0_24 = arith.constant 0 : index
    %c0_25 = arith.constant 0 : index
    %28 = vector.load %arg13[%c0_24, %c0_25] : memref<8x128xf32, #tpu.memory_space<vmem>>, vector<8x128xf32>
    %c0_26 = arith.constant 0 : index
    %c0_27 = arith.constant 0 : index
    %29 = vector.load %arg14[%c0_26, %c0_27] : memref<8x128xf32, #tpu.memory_space<vmem>>, vector<8x128xf32>
    %c0_i32_28 = arith.constant 0 : i32
    %30 = arith.truncf %28 : vector<8x128xf32> to vector<8x128xbf16>
    %31 = arith.truncf %29 : vector<8x128xf32> to vector<8x128xbf16>
    %32 = arith.index_cast %c0_i32_28 : i32 to index
    %c0_29 = arith.constant 0 : index
    %c0_30 = arith.constant 0 : index
    %33 = vector.load %arg2[%32, %c0_29, %c0_30] : memref<8x8x128xbf16, #tpu.memory_space<vmem>>, vector<1x8x128xbf16>
    %34 = vector.shape_cast %33 : vector<1x8x128xbf16> to vector<8x128xbf16>
    %35 = arith.index_cast %c0_i32_28 : i32 to index
    %c0_31 = arith.constant 0 : index
    %c0_32 = arith.constant 0 : index
    %36 = vector.load %arg15[%35, %c0_31, %c0_32] : memref<8x8x128xf32, #tpu.memory_space<vmem>>, vector<1x8x128xf32>
    %37 = vector.shape_cast %36 : vector<1x8x128xf32> to vector<8x128xf32>
    %cst_33 = arith.constant dense<0.000000e+00> : vector<8x128xf32>
    %38 = tpu.matmul %30, %4, %cst_33 {dimension_numbers = #tpu.dot_dimension_numbers<[1], [0], [0], [1], [0, 0, 1, 1], [], []>} : vector<8x128xbf16>, vector<128x128xbf16>, vector<8x128xf32> -> vector<8x128xf32>
    %39 = arith.addf %37, %38 : vector<8x128xf32>
    %cst_34 = arith.constant dense<0.000000e+00> : vector<8x128xf32>
    %40 = tpu.matmul %31, %5, %cst_34 {dimension_numbers = #tpu.dot_dimension_numbers<[1], [0], [0], [1], [0, 0, 1, 1], [], []>} : vector<8x128xbf16>, vector<128x128xbf16>, vector<8x128xf32> -> vector<8x128xf32>
    %41 = arith.addf %39, %40 : vector<8x128xf32>
    %42 = math.tanh %41 : vector<8x128xf32>
    %43 = arith.truncf %42 : vector<8x128xf32> to vector<8x128xbf16>
    %cst_35 = arith.constant dense<0.000000e+00> : vector<8x128xf32>
    %44 = tpu.matmul %43, %6, %cst_35 {dimension_numbers = #tpu.dot_dimension_numbers<[1], [0], [0], [1], [0, 0, 1, 1], [], []>} : vector<8x128xbf16>, vector<128x128xbf16>, vector<8x128xf32> -> vector<8x128xf32>
    %45 = arith.addf %44, %27 : vector<8x128xf32>
    %cst_36 = arith.constant dense<0xFF800000> : vector<8xf32>
    %46 = vector.multi_reduction <maximumf>, %45, %cst_36 [1] : vector<8x128xf32> to vector<8xf32>
    %47 = vector.shape_cast %46 : vector<8xf32> to vector<8x1xf32>
    %48 = vector.broadcast %47 : vector<8x1xf32> to vector<8x128xf32>
    %49 = arith.subf %45, %48 : vector<8x128xf32>
    %50 = math.exp %49 : vector<8x128xf32>
    %cst_37 = arith.constant dense<0.000000e+00> : vector<8xf32>
    %51 = vector.multi_reduction <add>, %50, %cst_37 [1] : vector<8x128xf32> to vector<8xf32>
    %52 = vector.shape_cast %51 : vector<8xf32> to vector<8x1xf32>
    %53 = tpu.reciprocal %52 {approx = true} : vector<8x1xf32> -> vector<8x1xf32>
    %54 = arith.mulf %52, %53 : vector<8x1xf32>
    %cst_38 = arith.constant 2.000000e+00 : f32
    %55 = vector.broadcast %cst_38 : f32 to vector<8x1xf32>
    %56 = arith.subf %55, %54 : vector<8x1xf32>
    %57 = arith.mulf %53, %56 : vector<8x1xf32>
    %58 = vector.broadcast %57 : vector<8x1xf32> to vector<8x128xf32>
    %59 = arith.mulf %50, %58 : vector<8x128xf32>
    %60 = arith.truncf %59 : vector<8x128xf32> to vector<8x128xbf16>
    %61 = arith.index_cast %c0_i32_28 : i32 to index
    %c0_39 = arith.constant 0 : index
    %c0_40 = arith.constant 0 : index
    %62 = vector.load %arg12[%61, %c0_39, %c0_40] : memref<8x8x128xbf16, #tpu.memory_space<vmem>>, vector<1x8x128xbf16>
    %63 = vector.shape_cast %62 : vector<1x8x128xbf16> to vector<8x128xbf16>
    %64 = vector.shape_cast %60 : vector<8x128xbf16> to vector<1x8x128xbf16>
    tpu.vector_store %arg12[%61, %c0_39, %c0_40], %64 {strides = array<i32>} : memref<8x8x128xbf16, #tpu.memory_space<vmem>>, vector<1x8x128xbf16>,
    %65 = arith.extf %34 : vector<8x128xbf16> to vector<8x128xf32>
    %66 = arith.mulf %59, %65 : vector<8x128xf32>
    %67 = arith.truncf %66 : vector<8x128xf32> to vector<8x128xbf16>
    %cst_41 = arith.constant dense<0.000000e+00> : vector<8x512xf32>
    %68 = tpu.matmul %67, %7, %cst_41 {dimension_numbers = #tpu.dot_dimension_numbers<[1], [0], [0], [1], [0, 0, 1, 1], [], []>} : vector<8x128xbf16>, vector<128x512xbf16>, vector<8x512xf32> -> vector<8x512xf32>
    %cst_42 = arith.constant dense<0.000000e+00> : vector<8x512xf32>
    %69 = tpu.matmul %30, %8, %cst_42 {dimension_numbers = #tpu.dot_dimension_numbers<[1], [0], [0], [1], [0, 0, 1, 1], [], []>} : vector<8x128xbf16>, vector<128x512xbf16>, vector<8x512xf32> -> vector<8x512xf32>
    %70 = arith.addf %68, %69 : vector<8x512xf32>
    %71 = arith.addf %70, %19 : vector<8x512xf32>
    %72 = vector.extract_strided_slice %71 {offsets = [0, 0], sizes = [8, 128], strides = [1, 1]} : vector<8x512xf32> to vector<8x128xf32>
    %73 = arith.negf %72 : vector<8x128xf32>
    %74 = math.exp %73 : vector<8x128xf32>
    %cst_43 = arith.constant 1.000000e+00 : f32
    %75 = vector.broadcast %cst_43 : f32 to vector<8x128xf32>
    %76 = arith.addf %75, %74 : vector<8x128xf32>
    %77 = arith.divf %75, %76 : vector<8x128xf32>
    %78 = vector.extract_strided_slice %71 {offsets = [0, 128], sizes = [8, 128], strides = [1, 1]} : vector<8x512xf32> to vector<8x128xf32>
    %79 = arith.negf %78 : vector<8x128xf32>
    %80 = math.exp %79 : vector<8x128xf32>
    %cst_44 = arith.constant 1.000000e+00 : f32
    %81 = vector.broadcast %cst_44 : f32 to vector<8x128xf32>
    %82 = arith.addf %81, %80 : vector<8x128xf32>
    %83 = arith.divf %81, %82 : vector<8x128xf32>
    %84 = vector.extract_strided_slice %71 {offsets = [0, 256], sizes = [8, 128], strides = [1, 1]} : vector<8x512xf32> to vector<8x128xf32>
    %85 = math.tanh %84 : vector<8x128xf32>
    %86 = vector.extract_strided_slice %71 {offsets = [0, 384], sizes = [8, 128], strides = [1, 1]} : vector<8x512xf32> to vector<8x128xf32>
    %87 = arith.negf %86 : vector<8x128xf32>
    %88 = math.exp %87 : vector<8x128xf32>
    %cst_45 = arith.constant 1.000000e+00 : f32
    %89 = vector.broadcast %cst_45 : f32 to vector<8x128xf32>
    %90 = arith.addf %89, %88 : vector<8x128xf32>
    %91 = arith.divf %89, %90 : vector<8x128xf32>
    %92 = arith.mulf %83, %29 : vector<8x128xf32>
    %93 = arith.mulf %77, %85 : vector<8x128xf32>
    %94 = arith.addf %92, %93 : vector<8x128xf32>
    %95 = math.tanh %94 : vector<8x128xf32>
    %96 = arith.mulf %91, %95 : vector<8x128xf32>
    %97 = arith.index_cast %c0_i32_28 : i32 to index
    %c0_46 = arith.constant 0 : index
    %c0_47 = arith.constant 0 : index
    %98 = vector.load %arg11[%97, %c0_46, %c0_47] : memref<8x8x128xf32, #tpu.memory_space<vmem>>, vector<1x8x128xf32>
    %99 = vector.shape_cast %98 : vector<1x8x128xf32> to vector<8x128xf32>
    %100 = vector.shape_cast %96 : vector<8x128xf32> to vector<1x8x128xf32>
    tpu.vector_store %arg11[%97, %c0_46, %c0_47], %100 {strides = array<i32>} : memref<8x8x128xf32, #tpu.memory_space<vmem>>, vector<1x8x128xf32>,
    %c1_i32 = arith.constant 1 : i32
    %101 = arith.truncf %96 : vector<8x128xf32> to vector<8x128xbf16>
    %102 = arith.truncf %94 : vector<8x128xf32> to vector<8x128xbf16>
    %103 = arith.index_cast %c1_i32 : i32 to index
    %c0_48 = arith.constant 0 : index
    %c0_49 = arith.constant 0 : index
    %104 = vector.load %arg2[%103, %c0_48, %c0_49] : memref<8x8x128xbf16, #tpu.memory_space<vmem>>, vector<1x8x128xbf16>
    %105 = vector.shape_cast %104 : vector<1x8x128xbf16> to vector<8x128xbf16>
    %106 = arith.index_cast %c1_i32 : i32 to index
    %c0_50 = arith.constant 0 : index
    %c0_51 = arith.constant 0 : index
    %107 = vector.load %arg15[%106, %c0_50, %c0_51] : memref<8x8x128xf32, #tpu.memory_space<vmem>>, vector<1x8x128xf32>
    %108 = vector.shape_cast %107 : vector<1x8x128xf32> to vector<8x128xf32>
    %cst_52 = arith.constant dense<0.000000e+00> : vector<8x128xf32>
    %109 = tpu.matmul %101, %4, %cst_52 {dimension_numbers = #tpu.dot_dimension_numbers<[1], [0], [0], [1], [0, 0, 1, 1], [], []>} : vector<8x128xbf16>, vector<128x128xbf16>, vector<8x128xf32> -> vector<8x128xf32>
    %110 = arith.addf %108, %109 : vector<8x128xf32>
    %cst_53 = arith.constant dense<0.000000e+00> : vector<8x128xf32>
    %111 = tpu.matmul %102, %5, %cst_53 {dimension_numbers = #tpu.dot_dimension_numbers<[1], [0], [0], [1], [0, 0, 1, 1], [], []>} : vector<8x128xbf16>, vector<128x128xbf16>, vector<8x128xf32> -> vector<8x128xf32>
    %112 = arith.addf %110, %111 : vector<8x128xf32>
    %113 = math.tanh %112 : vector<8x128xf32>
    %114 = arith.truncf %113 : vector<8x128xf32> to vector<8x128xbf16>
    %cst_54 = arith.constant dense<0.000000e+00> : vector<8x128xf32>
    %115 = tpu.matmul %114, %6, %cst_54 {dimension_numbers = #tpu.dot_dimension_numbers<[1], [0], [0], [1], [0, 0, 1, 1], [], []>} : vector<8x128xbf16>, vector<128x128xbf16>, vector<8x128xf32> -> vector<8x128xf32>
    %116 = arith.addf %115, %27 : vector<8x128xf32>
    %cst_55 = arith.constant dense<0xFF800000> : vector<8xf32>
    %117 = vector.multi_reduction <maximumf>, %116, %cst_55 [1] : vector<8x128xf32> to vector<8xf32>
    %118 = vector.shape_cast %117 : vector<8xf32> to vector<8x1xf32>
    %119 = vector.broadcast %118 : vector<8x1xf32> to vector<8x128xf32>
    %120 = arith.subf %116, %119 : vector<8x128xf32>
    %121 = math.exp %120 : vector<8x128xf32>
    %cst_56 = arith.constant dense<0.000000e+00> : vector<8xf32>
    %122 = vector.multi_reduction <add>, %121, %cst_56 [1] : vector<8x128xf32> to vector<8xf32>
    %123 = vector.shape_cast %122 : vector<8xf32> to vector<8x1xf32>
    %124 = tpu.reciprocal %123 {approx = true} : vector<8x1xf32> -> vector<8x1xf32>
    %125 = arith.mulf %123, %124 : vector<8x1xf32>
    %cst_57 = arith.constant 2.000000e+00 : f32
    %126 = vector.broadcast %cst_57 : f32 to vector<8x1xf32>
    %127 = arith.subf %126, %125 : vector<8x1xf32>
    %128 = arith.mulf %124, %127 : vector<8x1xf32>
    %129 = vector.broadcast %128 : vector<8x1xf32> to vector<8x128xf32>
    %130 = arith.mulf %121, %129 : vector<8x128xf32>
    %131 = arith.truncf %130 : vector<8x128xf32> to vector<8x128xbf16>
    %132 = arith.index_cast %c1_i32 : i32 to index
    %c0_58 = arith.constant 0 : index
    %c0_59 = arith.constant 0 : index
    %133 = vector.load %arg12[%132, %c0_58, %c0_59] : memref<8x8x128xbf16, #tpu.memory_space<vmem>>, vector<1x8x128xbf16>
    %134 = vector.shape_cast %133 : vector<1x8x128xbf16> to vector<8x128xbf16>
    %135 = vector.shape_cast %131 : vector<8x128xbf16> to vector<1x8x128xbf16>
    tpu.vector_store %arg12[%132, %c0_58, %c0_59], %135 {strides = array<i32>} : memref<8x8x128xbf16, #tpu.memory_space<vmem>>, vector<1x8x128xbf16>,
    %136 = arith.extf %105 : vector<8x128xbf16> to vector<8x128xf32>
    %137 = arith.mulf %130, %136 : vector<8x128xf32>
    %138 = arith.truncf %137 : vector<8x128xf32> to vector<8x128xbf16>
    %cst_60 = arith.constant dense<0.000000e+00> : vector<8x512xf32>
    %139 = tpu.matmul %138, %7, %cst_60 {dimension_numbers = #tpu.dot_dimension_numbers<[1], [0], [0], [1], [0, 0, 1, 1], [], []>} : vector<8x128xbf16>, vector<128x512xbf16>, vector<8x512xf32> -> vector<8x512xf32>
    %cst_61 = arith.constant dense<0.000000e+00> : vector<8x512xf32>
    %140 = tpu.matmul %101, %8, %cst_61 {dimension_numbers = #tpu.dot_dimension_numbers<[1], [0], [0], [1], [0, 0, 1, 1], [], []>} : vector<8x128xbf16>, vector<128x512xbf16>, vector<8x512xf32> -> vector<8x512xf32>
    %141 = arith.addf %139, %140 : vector<8x512xf32>
    %142 = arith.addf %141, %19 : vector<8x512xf32>
    %143 = vector.extract_strided_slice %142 {offsets = [0, 0], sizes = [8, 128], strides = [1, 1]} : vector<8x512xf32> to vector<8x128xf32>
    %144 = arith.negf %143 : vector<8x128xf32>
    %145 = math.exp %144 : vector<8x128xf32>
    %cst_62 = arith.constant 1.000000e+00 : f32
    %146 = vector.broadcast %cst_62 : f32 to vector<8x128xf32>
    %147 = arith.addf %146, %145 : vector<8x128xf32>
    %148 = arith.divf %146, %147 : vector<8x128xf32>
    %149 = vector.extract_strided_slice %142 {offsets = [0, 128], sizes = [8, 128], strides = [1, 1]} : vector<8x512xf32> to vector<8x128xf32>
    %150 = arith.negf %149 : vector<8x128xf32>
    %151 = math.exp %150 : vector<8x128xf32>
    %cst_63 = arith.constant 1.000000e+00 : f32
    %152 = vector.broadcast %cst_63 : f32 to vector<8x128xf32>
    %153 = arith.addf %152, %151 : vector<8x128xf32>
    %154 = arith.divf %152, %153 : vector<8x128xf32>
    %155 = vector.extract_strided_slice %142 {offsets = [0, 256], sizes = [8, 128], strides = [1, 1]} : vector<8x512xf32> to vector<8x128xf32>
    %156 = math.tanh %155 : vector<8x128xf32>
    %157 = vector.extract_strided_slice %142 {offsets = [0, 384], sizes = [8, 128], strides = [1, 1]} : vector<8x512xf32> to vector<8x128xf32>
    %158 = arith.negf %157 : vector<8x128xf32>
    %159 = math.exp %158 : vector<8x128xf32>
    %cst_64 = arith.constant 1.000000e+00 : f32
    %160 = vector.broadcast %cst_64 : f32 to vector<8x128xf32>
    %161 = arith.addf %160, %159 : vector<8x128xf32>
    %162 = arith.divf %160, %161 : vector<8x128xf32>
    %163 = arith.mulf %154, %94 : vector<8x128xf32>
    %164 = arith.mulf %148, %156 : vector<8x128xf32>
    %165 = arith.addf %163, %164 : vector<8x128xf32>
    %166 = math.tanh %165 : vector<8x128xf32>
    %167 = arith.mulf %162, %166 : vector<8x128xf32>
    %168 = arith.index_cast %c1_i32 : i32 to index
    %c0_65 = arith.constant 0 : index
    %c0_66 = arith.constant 0 : index
    %169 = vector.load %arg11[%168, %c0_65, %c0_66] : memref<8x8x128xf32, #tpu.memory_space<vmem>>, vector<1x8x128xf32>
    %170 = vector.shape_cast %169 : vector<1x8x128xf32> to vector<8x128xf32>
    %171 = vector.shape_cast %167 : vector<8x128xf32> to vector<1x8x128xf32>
    tpu.vector_store %arg11[%168, %c0_65, %c0_66], %171 {strides = array<i32>} : memref<8x8x128xf32, #tpu.memory_space<vmem>>, vector<1x8x128xf32>,
    %c2_i32 = arith.constant 2 : i32
    %172 = arith.truncf %167 : vector<8x128xf32> to vector<8x128xbf16>
    %173 = arith.truncf %165 : vector<8x128xf32> to vector<8x128xbf16>
    %174 = arith.index_cast %c2_i32 : i32 to index
    %c0_67 = arith.constant 0 : index
    %c0_68 = arith.constant 0 : index
    %175 = vector.load %arg2[%174, %c0_67, %c0_68] : memref<8x8x128xbf16, #tpu.memory_space<vmem>>, vector<1x8x128xbf16>
    %176 = vector.shape_cast %175 : vector<1x8x128xbf16> to vector<8x128xbf16>
    %177 = arith.index_cast %c2_i32 : i32 to index
    %c0_69 = arith.constant 0 : index
    %c0_70 = arith.constant 0 : index
    %178 = vector.load %arg15[%177, %c0_69, %c0_70] : memref<8x8x128xf32, #tpu.memory_space<vmem>>, vector<1x8x128xf32>
    %179 = vector.shape_cast %178 : vector<1x8x128xf32> to vector<8x128xf32>
    %cst_71 = arith.constant dense<0.000000e+00> : vector<8x128xf32>
    %180 = tpu.matmul %172, %4, %cst_71 {dimension_numbers = #tpu.dot_dimension_numbers<[1], [0], [0], [1], [0, 0, 1, 1], [], []>} : vector<8x128xbf16>, vector<128x128xbf16>, vector<8x128xf32> -> vector<8x128xf32>
    %181 = arith.addf %179, %180 : vector<8x128xf32>
    %cst_72 = arith.constant dense<0.000000e+00> : vector<8x128xf32>
    %182 = tpu.matmul %173, %5, %cst_72 {dimension_numbers = #tpu.dot_dimension_numbers<[1], [0], [0], [1], [0, 0, 1, 1], [], []>} : vector<8x128xbf16>, vector<128x128xbf16>, vector<8x128xf32> -> vector<8x128xf32>
    %183 = arith.addf %181, %182 : vector<8x128xf32>
    %184 = math.tanh %183 : vector<8x128xf32>
    %185 = arith.truncf %184 : vector<8x128xf32> to vector<8x128xbf16>
    %cst_73 = arith.constant dense<0.000000e+00> : vector<8x128xf32>
    %186 = tpu.matmul %185, %6, %cst_73 {dimension_numbers = #tpu.dot_dimension_numbers<[1], [0], [0], [1], [0, 0, 1, 1], [], []>} : vector<8x128xbf16>, vector<128x128xbf16>, vector<8x128xf32> -> vector<8x128xf32>
    %187 = arith.addf %186, %27 : vector<8x128xf32>
    %cst_74 = arith.constant dense<0xFF800000> : vector<8xf32>
    %188 = vector.multi_reduction <maximumf>, %187, %cst_74 [1] : vector<8x128xf32> to vector<8xf32>
    %189 = vector.shape_cast %188 : vector<8xf32> to vector<8x1xf32>
    %190 = vector.broadcast %189 : vector<8x1xf32> to vector<8x128xf32>
    %191 = arith.subf %187, %190 : vector<8x128xf32>
    %192 = math.exp %191 : vector<8x128xf32>
    %cst_75 = arith.constant dense<0.000000e+00> : vector<8xf32>
    %193 = vector.multi_reduction <add>, %192, %cst_75 [1] : vector<8x128xf32> to vector<8xf32>
    %194 = vector.shape_cast %193 : vector<8xf32> to vector<8x1xf32>
    %195 = tpu.reciprocal %194 {approx = true} : vector<8x1xf32> -> vector<8x1xf32>
    %196 = arith.mulf %194, %195 : vector<8x1xf32>
    %cst_76 = arith.constant 2.000000e+00 : f32
    %197 = vector.broadcast %cst_76 : f32 to vector<8x1xf32>
    %198 = arith.subf %197, %196 : vector<8x1xf32>
    %199 = arith.mulf %195, %198 : vector<8x1xf32>
    %200 = vector.broadcast %199 : vector<8x1xf32> to vector<8x128xf32>
    %201 = arith.mulf %192, %200 : vector<8x128xf32>
    %202 = arith.truncf %201 : vector<8x128xf32> to vector<8x128xbf16>
    %203 = arith.index_cast %c2_i32 : i32 to index
    %c0_77 = arith.constant 0 : index
    %c0_78 = arith.constant 0 : index
    %204 = vector.load %arg12[%203, %c0_77, %c0_78] : memref<8x8x128xbf16, #tpu.memory_space<vmem>>, vector<1x8x128xbf16>
    %205 = vector.shape_cast %204 : vector<1x8x128xbf16> to vector<8x128xbf16>
    %206 = vector.shape_cast %202 : vector<8x128xbf16> to vector<1x8x128xbf16>
    tpu.vector_store %arg12[%203, %c0_77, %c0_78], %206 {strides = array<i32>} : memref<8x8x128xbf16, #tpu.memory_space<vmem>>, vector<1x8x128xbf16>,
    %207 = arith.extf %176 : vector<8x128xbf16> to vector<8x128xf32>
    %208 = arith.mulf %201, %207 : vector<8x128xf32>
    %209 = arith.truncf %208 : vector<8x128xf32> to vector<8x128xbf16>
    %cst_79 = arith.constant dense<0.000000e+00> : vector<8x512xf32>
    %210 = tpu.matmul %209, %7, %cst_79 {dimension_numbers = #tpu.dot_dimension_numbers<[1], [0], [0], [1], [0, 0, 1, 1], [], []>} : vector<8x128xbf16>, vector<128x512xbf16>, vector<8x512xf32> -> vector<8x512xf32>
    %cst_80 = arith.constant dense<0.000000e+00> : vector<8x512xf32>
    %211 = tpu.matmul %172, %8, %cst_80 {dimension_numbers = #tpu.dot_dimension_numbers<[1], [0], [0], [1], [0, 0, 1, 1], [], []>} : vector<8x128xbf16>, vector<128x512xbf16>, vector<8x512xf32> -> vector<8x512xf32>
    %212 = arith.addf %210, %211 : vector<8x512xf32>
    %213 = arith.addf %212, %19 : vector<8x512xf32>
    %214 = vector.extract_strided_slice %213 {offsets = [0, 0], sizes = [8, 128], strides = [1, 1]} : vector<8x512xf32> to vector<8x128xf32>
    %215 = arith.negf %214 : vector<8x128xf32>
    %216 = math.exp %215 : vector<8x128xf32>
    %cst_81 = arith.constant 1.000000e+00 : f32
    %217 = vector.broadcast %cst_81 : f32 to vector<8x128xf32>
    %218 = arith.addf %217, %216 : vector<8x128xf32>
    %219 = arith.divf %217, %218 : vector<8x128xf32>
    %220 = vector.extract_strided_slice %213 {offsets = [0, 128], sizes = [8, 128], strides = [1, 1]} : vector<8x512xf32> to vector<8x128xf32>
    %221 = arith.negf %220 : vector<8x128xf32>
    %222 = math.exp %221 : vector<8x128xf32>
    %cst_82 = arith.constant 1.000000e+00 : f32
    %223 = vector.broadcast %cst_82 : f32 to vector<8x128xf32>
    %224 = arith.addf %223, %222 : vector<8x128xf32>
    %225 = arith.divf %223, %224 : vector<8x128xf32>
    %226 = vector.extract_strided_slice %213 {offsets = [0, 256], sizes = [8, 128], strides = [1, 1]} : vector<8x512xf32> to vector<8x128xf32>
    %227 = math.tanh %226 : vector<8x128xf32>
    %228 = vector.extract_strided_slice %213 {offsets = [0, 384], sizes = [8, 128], strides = [1, 1]} : vector<8x512xf32> to vector<8x128xf32>
    %229 = arith.negf %228 : vector<8x128xf32>
    %230 = math.exp %229 : vector<8x128xf32>
    %cst_83 = arith.constant 1.000000e+00 : f32
    %231 = vector.broadcast %cst_83 : f32 to vector<8x128xf32>
    %232 = arith.addf %231, %230 : vector<8x128xf32>
    %233 = arith.divf %231, %232 : vector<8x128xf32>
    %234 = arith.mulf %225, %165 : vector<8x128xf32>
    %235 = arith.mulf %219, %227 : vector<8x128xf32>
    %236 = arith.addf %234, %235 : vector<8x128xf32>
    %237 = math.tanh %236 : vector<8x128xf32>
    %238 = arith.mulf %233, %237 : vector<8x128xf32>
    %239 = arith.index_cast %c2_i32 : i32 to index
    %c0_84 = arith.constant 0 : index
    %c0_85 = arith.constant 0 : index
    %240 = vector.load %arg11[%239, %c0_84, %c0_85] : memref<8x8x128xf32, #tpu.memory_space<vmem>>, vector<1x8x128xf32>
    %241 = vector.shape_cast %240 : vector<1x8x128xf32> to vector<8x128xf32>
    %242 = vector.shape_cast %238 : vector<8x128xf32> to vector<1x8x128xf32>
    tpu.vector_store %arg11[%239, %c0_84, %c0_85], %242 {strides = array<i32>} : memref<8x8x128xf32, #tpu.memory_space<vmem>>, vector<1x8x128xf32>,
    %c3_i32 = arith.constant 3 : i32
    %243 = arith.truncf %238 : vector<8x128xf32> to vector<8x128xbf16>
    %244 = arith.truncf %236 : vector<8x128xf32> to vector<8x128xbf16>
    %245 = arith.index_cast %c3_i32 : i32 to index
    %c0_86 = arith.constant 0 : index
    %c0_87 = arith.constant 0 : index
    %246 = vector.load %arg2[%245, %c0_86, %c0_87] : memref<8x8x128xbf16, #tpu.memory_space<vmem>>, vector<1x8x128xbf16>
    %247 = vector.shape_cast %246 : vector<1x8x128xbf16> to vector<8x128xbf16>
    %248 = arith.index_cast %c3_i32 : i32 to index
    %c0_88 = arith.constant 0 : index
    %c0_89 = arith.constant 0 : index
    %249 = vector.load %arg15[%248, %c0_88, %c0_89] : memref<8x8x128xf32, #tpu.memory_space<vmem>>, vector<1x8x128xf32>
    %250 = vector.shape_cast %249 : vector<1x8x128xf32> to vector<8x128xf32>
    %cst_90 = arith.constant dense<0.000000e+00> : vector<8x128xf32>
    %251 = tpu.matmul %243, %4, %cst_90 {dimension_numbers = #tpu.dot_dimension_numbers<[1], [0], [0], [1], [0, 0, 1, 1], [], []>} : vector<8x128xbf16>, vector<128x128xbf16>, vector<8x128xf32> -> vector<8x128xf32>
    %252 = arith.addf %250, %251 : vector<8x128xf32>
    %cst_91 = arith.constant dense<0.000000e+00> : vector<8x128xf32>
    %253 = tpu.matmul %244, %5, %cst_91 {dimension_numbers = #tpu.dot_dimension_numbers<[1], [0], [0], [1], [0, 0, 1, 1], [], []>} : vector<8x128xbf16>, vector<128x128xbf16>, vector<8x128xf32> -> vector<8x128xf32>
    %254 = arith.addf %252, %253 : vector<8x128xf32>
    %255 = math.tanh %254 : vector<8x128xf32>
    %256 = arith.truncf %255 : vector<8x128xf32> to vector<8x128xbf16>
    %cst_92 = arith.constant dense<0.000000e+00> : vector<8x128xf32>
    %257 = tpu.matmul %256, %6, %cst_92 {dimension_numbers = #tpu.dot_dimension_numbers<[1], [0], [0], [1], [0, 0, 1, 1], [], []>} : vector<8x128xbf16>, vector<128x128xbf16>, vector<8x128xf32> -> vector<8x128xf32>
    %258 = arith.addf %257, %27 : vector<8x128xf32>
    %cst_93 = arith.constant dense<0xFF800000> : vector<8xf32>
    %259 = vector.multi_reduction <maximumf>, %258, %cst_93 [1] : vector<8x128xf32> to vector<8xf32>
    %260 = vector.shape_cast %259 : vector<8xf32> to vector<8x1xf32>
    %261 = vector.broadcast %260 : vector<8x1xf32> to vector<8x128xf32>
    %262 = arith.subf %258, %261 : vector<8x128xf32>
    %263 = math.exp %262 : vector<8x128xf32>
    %cst_94 = arith.constant dense<0.000000e+00> : vector<8xf32>
    %264 = vector.multi_reduction <add>, %263, %cst_94 [1] : vector<8x128xf32> to vector<8xf32>
    %265 = vector.shape_cast %264 : vector<8xf32> to vector<8x1xf32>
    %266 = tpu.reciprocal %265 {approx = true} : vector<8x1xf32> -> vector<8x1xf32>
    %267 = arith.mulf %265, %266 : vector<8x1xf32>
    %cst_95 = arith.constant 2.000000e+00 : f32
    %268 = vector.broadcast %cst_95 : f32 to vector<8x1xf32>
    %269 = arith.subf %268, %267 : vector<8x1xf32>
    %270 = arith.mulf %266, %269 : vector<8x1xf32>
    %271 = vector.broadcast %270 : vector<8x1xf32> to vector<8x128xf32>
    %272 = arith.mulf %263, %271 : vector<8x128xf32>
    %273 = arith.truncf %272 : vector<8x128xf32> to vector<8x128xbf16>
    %274 = arith.index_cast %c3_i32 : i32 to index
    %c0_96 = arith.constant 0 : index
    %c0_97 = arith.constant 0 : index
    %275 = vector.load %arg12[%274, %c0_96, %c0_97] : memref<8x8x128xbf16, #tpu.memory_space<vmem>>, vector<1x8x128xbf16>
    %276 = vector.shape_cast %275 : vector<1x8x128xbf16> to vector<8x128xbf16>
    %277 = vector.shape_cast %273 : vector<8x128xbf16> to vector<1x8x128xbf16>
    tpu.vector_store %arg12[%274, %c0_96, %c0_97], %277 {strides = array<i32>} : memref<8x8x128xbf16, #tpu.memory_space<vmem>>, vector<1x8x128xbf16>,
    %278 = arith.extf %247 : vector<8x128xbf16> to vector<8x128xf32>
    %279 = arith.mulf %272, %278 : vector<8x128xf32>
    %280 = arith.truncf %279 : vector<8x128xf32> to vector<8x128xbf16>
    %cst_98 = arith.constant dense<0.000000e+00> : vector<8x512xf32>
    %281 = tpu.matmul %280, %7, %cst_98 {dimension_numbers = #tpu.dot_dimension_numbers<[1], [0], [0], [1], [0, 0, 1, 1], [], []>} : vector<8x128xbf16>, vector<128x512xbf16>, vector<8x512xf32> -> vector<8x512xf32>
    %cst_99 = arith.constant dense<0.000000e+00> : vector<8x512xf32>
    %282 = tpu.matmul %243, %8, %cst_99 {dimension_numbers = #tpu.dot_dimension_numbers<[1], [0], [0], [1], [0, 0, 1, 1], [], []>} : vector<8x128xbf16>, vector<128x512xbf16>, vector<8x512xf32> -> vector<8x512xf32>
    %283 = arith.addf %281, %282 : vector<8x512xf32>
    %284 = arith.addf %283, %19 : vector<8x512xf32>
    %285 = vector.extract_strided_slice %284 {offsets = [0, 0], sizes = [8, 128], strides = [1, 1]} : vector<8x512xf32> to vector<8x128xf32>
    %286 = arith.negf %285 : vector<8x128xf32>
    %287 = math.exp %286 : vector<8x128xf32>
    %cst_100 = arith.constant 1.000000e+00 : f32
    %288 = vector.broadcast %cst_100 : f32 to vector<8x128xf32>
    %289 = arith.addf %288, %287 : vector<8x128xf32>
    %290 = arith.divf %288, %289 : vector<8x128xf32>
    %291 = vector.extract_strided_slice %284 {offsets = [0, 128], sizes = [8, 128], strides = [1, 1]} : vector<8x512xf32> to vector<8x128xf32>
    %292 = arith.negf %291 : vector<8x128xf32>
    %293 = math.exp %292 : vector<8x128xf32>
    %cst_101 = arith.constant 1.000000e+00 : f32
    %294 = vector.broadcast %cst_101 : f32 to vector<8x128xf32>
    %295 = arith.addf %294, %293 : vector<8x128xf32>
    %296 = arith.divf %294, %295 : vector<8x128xf32>
    %297 = vector.extract_strided_slice %284 {offsets = [0, 256], sizes = [8, 128], strides = [1, 1]} : vector<8x512xf32> to vector<8x128xf32>
    %298 = math.tanh %297 : vector<8x128xf32>
    %299 = vector.extract_strided_slice %284 {offsets = [0, 384], sizes = [8, 128], strides = [1, 1]} : vector<8x512xf32> to vector<8x128xf32>
    %300 = arith.negf %299 : vector<8x128xf32>
    %301 = math.exp %300 : vector<8x128xf32>
    %cst_102 = arith.constant 1.000000e+00 : f32
    %302 = vector.broadcast %cst_102 : f32 to vector<8x128xf32>
    %303 = arith.addf %302, %301 : vector<8x128xf32>
    %304 = arith.divf %302, %303 : vector<8x128xf32>
    %305 = arith.mulf %296, %236 : vector<8x128xf32>
    %306 = arith.mulf %290, %298 : vector<8x128xf32>
    %307 = arith.addf %305, %306 : vector<8x128xf32>
    %308 = math.tanh %307 : vector<8x128xf32>
    %309 = arith.mulf %304, %308 : vector<8x128xf32>
    %310 = arith.index_cast %c3_i32 : i32 to index
    %c0_103 = arith.constant 0 : index
    %c0_104 = arith.constant 0 : index
    %311 = vector.load %arg11[%310, %c0_103, %c0_104] : memref<8x8x128xf32, #tpu.memory_space<vmem>>, vector<1x8x128xf32>
    %312 = vector.shape_cast %311 : vector<1x8x128xf32> to vector<8x128xf32>
    %313 = vector.shape_cast %309 : vector<8x128xf32> to vector<1x8x128xf32>
    tpu.vector_store %arg11[%310, %c0_103, %c0_104], %313 {strides = array<i32>} : memref<8x8x128xf32, #tpu.memory_space<vmem>>, vector<1x8x128xf32>,
    %c4_i32 = arith.constant 4 : i32
    %314 = arith.truncf %309 : vector<8x128xf32> to vector<8x128xbf16>
    %315 = arith.truncf %307 : vector<8x128xf32> to vector<8x128xbf16>
    %316 = arith.index_cast %c4_i32 : i32 to index
    %c0_105 = arith.constant 0 : index
    %c0_106 = arith.constant 0 : index
    %317 = vector.load %arg2[%316, %c0_105, %c0_106] : memref<8x8x128xbf16, #tpu.memory_space<vmem>>, vector<1x8x128xbf16>
    %318 = vector.shape_cast %317 : vector<1x8x128xbf16> to vector<8x128xbf16>
    %319 = arith.index_cast %c4_i32 : i32 to index
    %c0_107 = arith.constant 0 : index
    %c0_108 = arith.constant 0 : index
    %320 = vector.load %arg15[%319, %c0_107, %c0_108] : memref<8x8x128xf32, #tpu.memory_space<vmem>>, vector<1x8x128xf32>
    %321 = vector.shape_cast %320 : vector<1x8x128xf32> to vector<8x128xf32>
    %cst_109 = arith.constant dense<0.000000e+00> : vector<8x128xf32>
    %322 = tpu.matmul %314, %4, %cst_109 {dimension_numbers = #tpu.dot_dimension_numbers<[1], [0], [0], [1], [0, 0, 1, 1], [], []>} : vector<8x128xbf16>, vector<128x128xbf16>, vector<8x128xf32> -> vector<8x128xf32>
    %323 = arith.addf %321, %322 : vector<8x128xf32>
    %cst_110 = arith.constant dense<0.000000e+00> : vector<8x128xf32>
    %324 = tpu.matmul %315, %5, %cst_110 {dimension_numbers = #tpu.dot_dimension_numbers<[1], [0], [0], [1], [0, 0, 1, 1], [], []>} : vector<8x128xbf16>, vector<128x128xbf16>, vector<8x128xf32> -> vector<8x128xf32>
    %325 = arith.addf %323, %324 : vector<8x128xf32>
    %326 = math.tanh %325 : vector<8x128xf32>
    %327 = arith.truncf %326 : vector<8x128xf32> to vector<8x128xbf16>
    %cst_111 = arith.constant dense<0.000000e+00> : vector<8x128xf32>
    %328 = tpu.matmul %327, %6, %cst_111 {dimension_numbers = #tpu.dot_dimension_numbers<[1], [0], [0], [1], [0, 0, 1, 1], [], []>} : vector<8x128xbf16>, vector<128x128xbf16>, vector<8x128xf32> -> vector<8x128xf32>
    %329 = arith.addf %328, %27 : vector<8x128xf32>
    %cst_112 = arith.constant dense<0xFF800000> : vector<8xf32>
    %330 = vector.multi_reduction <maximumf>, %329, %cst_112 [1] : vector<8x128xf32> to vector<8xf32>
    %331 = vector.shape_cast %330 : vector<8xf32> to vector<8x1xf32>
    %332 = vector.broadcast %331 : vector<8x1xf32> to vector<8x128xf32>
    %333 = arith.subf %329, %332 : vector<8x128xf32>
    %334 = math.exp %333 : vector<8x128xf32>
    %cst_113 = arith.constant dense<0.000000e+00> : vector<8xf32>
    %335 = vector.multi_reduction <add>, %334, %cst_113 [1] : vector<8x128xf32> to vector<8xf32>
    %336 = vector.shape_cast %335 : vector<8xf32> to vector<8x1xf32>
    %337 = tpu.reciprocal %336 {approx = true} : vector<8x1xf32> -> vector<8x1xf32>
    %338 = arith.mulf %336, %337 : vector<8x1xf32>
    %cst_114 = arith.constant 2.000000e+00 : f32
    %339 = vector.broadcast %cst_114 : f32 to vector<8x1xf32>
    %340 = arith.subf %339, %338 : vector<8x1xf32>
    %341 = arith.mulf %337, %340 : vector<8x1xf32>
    %342 = vector.broadcast %341 : vector<8x1xf32> to vector<8x128xf32>
    %343 = arith.mulf %334, %342 : vector<8x128xf32>
    %344 = arith.truncf %343 : vector<8x128xf32> to vector<8x128xbf16>
    %345 = arith.index_cast %c4_i32 : i32 to index
    %c0_115 = arith.constant 0 : index
    %c0_116 = arith.constant 0 : index
    %346 = vector.load %arg12[%345, %c0_115, %c0_116] : memref<8x8x128xbf16, #tpu.memory_space<vmem>>, vector<1x8x128xbf16>
    %347 = vector.shape_cast %346 : vector<1x8x128xbf16> to vector<8x128xbf16>
    %348 = vector.shape_cast %344 : vector<8x128xbf16> to vector<1x8x128xbf16>
    tpu.vector_store %arg12[%345, %c0_115, %c0_116], %348 {strides = array<i32>} : memref<8x8x128xbf16, #tpu.memory_space<vmem>>, vector<1x8x128xbf16>,
    %349 = arith.extf %318 : vector<8x128xbf16> to vector<8x128xf32>
    %350 = arith.mulf %343, %349 : vector<8x128xf32>
    %351 = arith.truncf %350 : vector<8x128xf32> to vector<8x128xbf16>
    %cst_117 = arith.constant dense<0.000000e+00> : vector<8x512xf32>
    %352 = tpu.matmul %351, %7, %cst_117 {dimension_numbers = #tpu.dot_dimension_numbers<[1], [0], [0], [1], [0, 0, 1, 1], [], []>} : vector<8x128xbf16>, vector<128x512xbf16>, vector<8x512xf32> -> vector<8x512xf32>
    %cst_118 = arith.constant dense<0.000000e+00> : vector<8x512xf32>
    %353 = tpu.matmul %314, %8, %cst_118 {dimension_numbers = #tpu.dot_dimension_numbers<[1], [0], [0], [1], [0, 0, 1, 1], [], []>} : vector<8x128xbf16>, vector<128x512xbf16>, vector<8x512xf32> -> vector<8x512xf32>
    %354 = arith.addf %352, %353 : vector<8x512xf32>
    %355 = arith.addf %354, %19 : vector<8x512xf32>
    %356 = vector.extract_strided_slice %355 {offsets = [0, 0], sizes = [8, 128], strides = [1, 1]} : vector<8x512xf32> to vector<8x128xf32>
    %357 = arith.negf %356 : vector<8x128xf32>
    %358 = math.exp %357 : vector<8x128xf32>
    %cst_119 = arith.constant 1.000000e+00 : f32
    %359 = vector.broadcast %cst_119 : f32 to vector<8x128xf32>
    %360 = arith.addf %359, %358 : vector<8x128xf32>
    %361 = arith.divf %359, %360 : vector<8x128xf32>
    %362 = vector.extract_strided_slice %355 {offsets = [0, 128], sizes = [8, 128], strides = [1, 1]} : vector<8x512xf32> to vector<8x128xf32>
    %363 = arith.negf %362 : vector<8x128xf32>
    %364 = math.exp %363 : vector<8x128xf32>
    %cst_120 = arith.constant 1.000000e+00 : f32
    %365 = vector.broadcast %cst_120 : f32 to vector<8x128xf32>
    %366 = arith.addf %365, %364 : vector<8x128xf32>
    %367 = arith.divf %365, %366 : vector<8x128xf32>
    %368 = vector.extract_strided_slice %355 {offsets = [0, 256], sizes = [8, 128], strides = [1, 1]} : vector<8x512xf32> to vector<8x128xf32>
    %369 = math.tanh %368 : vector<8x128xf32>
    %370 = vector.extract_strided_slice %355 {offsets = [0, 384], sizes = [8, 128], strides = [1, 1]} : vector<8x512xf32> to vector<8x128xf32>
    %371 = arith.negf %370 : vector<8x128xf32>
    %372 = math.exp %371 : vector<8x128xf32>
    %cst_121 = arith.constant 1.000000e+00 : f32
    %373 = vector.broadcast %cst_121 : f32 to vector<8x128xf32>
    %374 = arith.addf %373, %372 : vector<8x128xf32>
    %375 = arith.divf %373, %374 : vector<8x128xf32>
    %376 = arith.mulf %367, %307 : vector<8x128xf32>
    %377 = arith.mulf %361, %369 : vector<8x128xf32>
    %378 = arith.addf %376, %377 : vector<8x128xf32>
    %379 = math.tanh %378 : vector<8x128xf32>
    %380 = arith.mulf %375, %379 : vector<8x128xf32>
    %381 = arith.index_cast %c4_i32 : i32 to index
    %c0_122 = arith.constant 0 : index
    %c0_123 = arith.constant 0 : index
    %382 = vector.load %arg11[%381, %c0_122, %c0_123] : memref<8x8x128xf32, #tpu.memory_space<vmem>>, vector<1x8x128xf32>
    %383 = vector.shape_cast %382 : vector<1x8x128xf32> to vector<8x128xf32>
    %384 = vector.shape_cast %380 : vector<8x128xf32> to vector<1x8x128xf32>
    tpu.vector_store %arg11[%381, %c0_122, %c0_123], %384 {strides = array<i32>} : memref<8x8x128xf32, #tpu.memory_space<vmem>>, vector<1x8x128xf32>,
    %c5_i32 = arith.constant 5 : i32
    %385 = arith.truncf %380 : vector<8x128xf32> to vector<8x128xbf16>
    %386 = arith.truncf %378 : vector<8x128xf32> to vector<8x128xbf16>
    %387 = arith.index_cast %c5_i32 : i32 to index
    %c0_124 = arith.constant 0 : index
    %c0_125 = arith.constant 0 : index
    %388 = vector.load %arg2[%387, %c0_124, %c0_125] : memref<8x8x128xbf16, #tpu.memory_space<vmem>>, vector<1x8x128xbf16>
    %389 = vector.shape_cast %388 : vector<1x8x128xbf16> to vector<8x128xbf16>
    %390 = arith.index_cast %c5_i32 : i32 to index
    %c0_126 = arith.constant 0 : index
    %c0_127 = arith.constant 0 : index
    %391 = vector.load %arg15[%390, %c0_126, %c0_127] : memref<8x8x128xf32, #tpu.memory_space<vmem>>, vector<1x8x128xf32>
    %392 = vector.shape_cast %391 : vector<1x8x128xf32> to vector<8x128xf32>
    %cst_128 = arith.constant dense<0.000000e+00> : vector<8x128xf32>
    %393 = tpu.matmul %385, %4, %cst_128 {dimension_numbers = #tpu.dot_dimension_numbers<[1], [0], [0], [1], [0, 0, 1, 1], [], []>} : vector<8x128xbf16>, vector<128x128xbf16>, vector<8x128xf32> -> vector<8x128xf32>
    %394 = arith.addf %392, %393 : vector<8x128xf32>
    %cst_129 = arith.constant dense<0.000000e+00> : vector<8x128xf32>
    %395 = tpu.matmul %386, %5, %cst_129 {dimension_numbers = #tpu.dot_dimension_numbers<[1], [0], [0], [1], [0, 0, 1, 1], [], []>} : vector<8x128xbf16>, vector<128x128xbf16>, vector<8x128xf32> -> vector<8x128xf32>
    %396 = arith.addf %394, %395 : vector<8x128xf32>
    %397 = math.tanh %396 : vector<8x128xf32>
    %398 = arith.truncf %397 : vector<8x128xf32> to vector<8x128xbf16>
    %cst_130 = arith.constant dense<0.000000e+00> : vector<8x128xf32>
    %399 = tpu.matmul %398, %6, %cst_130 {dimension_numbers = #tpu.dot_dimension_numbers<[1], [0], [0], [1], [0, 0, 1, 1], [], []>} : vector<8x128xbf16>, vector<128x128xbf16>, vector<8x128xf32> -> vector<8x128xf32>
    %400 = arith.addf %399, %27 : vector<8x128xf32>
    %cst_131 = arith.constant dense<0xFF800000> : vector<8xf32>
    %401 = vector.multi_reduction <maximumf>, %400, %cst_131 [1] : vector<8x128xf32> to vector<8xf32>
    %402 = vector.shape_cast %401 : vector<8xf32> to vector<8x1xf32>
    %403 = vector.broadcast %402 : vector<8x1xf32> to vector<8x128xf32>
    %404 = arith.subf %400, %403 : vector<8x128xf32>
    %405 = math.exp %404 : vector<8x128xf32>
    %cst_132 = arith.constant dense<0.000000e+00> : vector<8xf32>
    %406 = vector.multi_reduction <add>, %405, %cst_132 [1] : vector<8x128xf32> to vector<8xf32>
    %407 = vector.shape_cast %406 : vector<8xf32> to vector<8x1xf32>
    %408 = tpu.reciprocal %407 {approx = true} : vector<8x1xf32> -> vector<8x1xf32>
    %409 = arith.mulf %407, %408 : vector<8x1xf32>
    %cst_133 = arith.constant 2.000000e+00 : f32
    %410 = vector.broadcast %cst_133 : f32 to vector<8x1xf32>
    %411 = arith.subf %410, %409 : vector<8x1xf32>
    %412 = arith.mulf %408, %411 : vector<8x1xf32>
    %413 = vector.broadcast %412 : vector<8x1xf32> to vector<8x128xf32>
    %414 = arith.mulf %405, %413 : vector<8x128xf32>
    %415 = arith.truncf %414 : vector<8x128xf32> to vector<8x128xbf16>
    %416 = arith.index_cast %c5_i32 : i32 to index
    %c0_134 = arith.constant 0 : index
    %c0_135 = arith.constant 0 : index
    %417 = vector.load %arg12[%416, %c0_134, %c0_135] : memref<8x8x128xbf16, #tpu.memory_space<vmem>>, vector<1x8x128xbf16>
    %418 = vector.shape_cast %417 : vector<1x8x128xbf16> to vector<8x128xbf16>
    %419 = vector.shape_cast %415 : vector<8x128xbf16> to vector<1x8x128xbf16>
    tpu.vector_store %arg12[%416, %c0_134, %c0_135], %419 {strides = array<i32>} : memref<8x8x128xbf16, #tpu.memory_space<vmem>>, vector<1x8x128xbf16>,
    %420 = arith.extf %389 : vector<8x128xbf16> to vector<8x128xf32>
    %421 = arith.mulf %414, %420 : vector<8x128xf32>
    %422 = arith.truncf %421 : vector<8x128xf32> to vector<8x128xbf16>
    %cst_136 = arith.constant dense<0.000000e+00> : vector<8x512xf32>
    %423 = tpu.matmul %422, %7, %cst_136 {dimension_numbers = #tpu.dot_dimension_numbers<[1], [0], [0], [1], [0, 0, 1, 1], [], []>} : vector<8x128xbf16>, vector<128x512xbf16>, vector<8x512xf32> -> vector<8x512xf32>
    %cst_137 = arith.constant dense<0.000000e+00> : vector<8x512xf32>
    %424 = tpu.matmul %385, %8, %cst_137 {dimension_numbers = #tpu.dot_dimension_numbers<[1], [0], [0], [1], [0, 0, 1, 1], [], []>} : vector<8x128xbf16>, vector<128x512xbf16>, vector<8x512xf32> -> vector<8x512xf32>
    %425 = arith.addf %423, %424 : vector<8x512xf32>
    %426 = arith.addf %425, %19 : vector<8x512xf32>
    %427 = vector.extract_strided_slice %426 {offsets = [0, 0], sizes = [8, 128], strides = [1, 1]} : vector<8x512xf32> to vector<8x128xf32>
    %428 = arith.negf %427 : vector<8x128xf32>
    %429 = math.exp %428 : vector<8x128xf32>
    %cst_138 = arith.constant 1.000000e+00 : f32
    %430 = vector.broadcast %cst_138 : f32 to vector<8x128xf32>
    %431 = arith.addf %430, %429 : vector<8x128xf32>
    %432 = arith.divf %430, %431 : vector<8x128xf32>
    %433 = vector.extract_strided_slice %426 {offsets = [0, 128], sizes = [8, 128], strides = [1, 1]} : vector<8x512xf32> to vector<8x128xf32>
    %434 = arith.negf %433 : vector<8x128xf32>
    %435 = math.exp %434 : vector<8x128xf32>
    %cst_139 = arith.constant 1.000000e+00 : f32
    %436 = vector.broadcast %cst_139 : f32 to vector<8x128xf32>
    %437 = arith.addf %436, %435 : vector<8x128xf32>
    %438 = arith.divf %436, %437 : vector<8x128xf32>
    %439 = vector.extract_strided_slice %426 {offsets = [0, 256], sizes = [8, 128], strides = [1, 1]} : vector<8x512xf32> to vector<8x128xf32>
    %440 = math.tanh %439 : vector<8x128xf32>
    %441 = vector.extract_strided_slice %426 {offsets = [0, 384], sizes = [8, 128], strides = [1, 1]} : vector<8x512xf32> to vector<8x128xf32>
    %442 = arith.negf %441 : vector<8x128xf32>
    %443 = math.exp %442 : vector<8x128xf32>
    %cst_140 = arith.constant 1.000000e+00 : f32
    %444 = vector.broadcast %cst_140 : f32 to vector<8x128xf32>
    %445 = arith.addf %444, %443 : vector<8x128xf32>
    %446 = arith.divf %444, %445 : vector<8x128xf32>
    %447 = arith.mulf %438, %378 : vector<8x128xf32>
    %448 = arith.mulf %432, %440 : vector<8x128xf32>
    %449 = arith.addf %447, %448 : vector<8x128xf32>
    %450 = math.tanh %449 : vector<8x128xf32>
    %451 = arith.mulf %446, %450 : vector<8x128xf32>
    %452 = arith.index_cast %c5_i32 : i32 to index
    %c0_141 = arith.constant 0 : index
    %c0_142 = arith.constant 0 : index
    %453 = vector.load %arg11[%452, %c0_141, %c0_142] : memref<8x8x128xf32, #tpu.memory_space<vmem>>, vector<1x8x128xf32>
    %454 = vector.shape_cast %453 : vector<1x8x128xf32> to vector<8x128xf32>
    %455 = vector.shape_cast %451 : vector<8x128xf32> to vector<1x8x128xf32>
    tpu.vector_store %arg11[%452, %c0_141, %c0_142], %455 {strides = array<i32>} : memref<8x8x128xf32, #tpu.memory_space<vmem>>, vector<1x8x128xf32>,
    %c6_i32 = arith.constant 6 : i32
    %456 = arith.truncf %451 : vector<8x128xf32> to vector<8x128xbf16>
    %457 = arith.truncf %449 : vector<8x128xf32> to vector<8x128xbf16>
    %458 = arith.index_cast %c6_i32 : i32 to index
    %c0_143 = arith.constant 0 : index
    %c0_144 = arith.constant 0 : index
    %459 = vector.load %arg2[%458, %c0_143, %c0_144] : memref<8x8x128xbf16, #tpu.memory_space<vmem>>, vector<1x8x128xbf16>
    %460 = vector.shape_cast %459 : vector<1x8x128xbf16> to vector<8x128xbf16>
    %461 = arith.index_cast %c6_i32 : i32 to index
    %c0_145 = arith.constant 0 : index
    %c0_146 = arith.constant 0 : index
    %462 = vector.load %arg15[%461, %c0_145, %c0_146] : memref<8x8x128xf32, #tpu.memory_space<vmem>>, vector<1x8x128xf32>
    %463 = vector.shape_cast %462 : vector<1x8x128xf32> to vector<8x128xf32>
    %cst_147 = arith.constant dense<0.000000e+00> : vector<8x128xf32>
    %464 = tpu.matmul %456, %4, %cst_147 {dimension_numbers = #tpu.dot_dimension_numbers<[1], [0], [0], [1], [0, 0, 1, 1], [], []>} : vector<8x128xbf16>, vector<128x128xbf16>, vector<8x128xf32> -> vector<8x128xf32>
    %465 = arith.addf %463, %464 : vector<8x128xf32>
    %cst_148 = arith.constant dense<0.000000e+00> : vector<8x128xf32>
    %466 = tpu.matmul %457, %5, %cst_148 {dimension_numbers = #tpu.dot_dimension_numbers<[1], [0], [0], [1], [0, 0, 1, 1], [], []>} : vector<8x128xbf16>, vector<128x128xbf16>, vector<8x128xf32> -> vector<8x128xf32>
    %467 = arith.addf %465, %466 : vector<8x128xf32>
    %468 = math.tanh %467 : vector<8x128xf32>
    %469 = arith.truncf %468 : vector<8x128xf32> to vector<8x128xbf16>
    %cst_149 = arith.constant dense<0.000000e+00> : vector<8x128xf32>
    %470 = tpu.matmul %469, %6, %cst_149 {dimension_numbers = #tpu.dot_dimension_numbers<[1], [0], [0], [1], [0, 0, 1, 1], [], []>} : vector<8x128xbf16>, vector<128x128xbf16>, vector<8x128xf32> -> vector<8x128xf32>
    %471 = arith.addf %470, %27 : vector<8x128xf32>
    %cst_150 = arith.constant dense<0xFF800000> : vector<8xf32>
    %472 = vector.multi_reduction <maximumf>, %471, %cst_150 [1] : vector<8x128xf32> to vector<8xf32>
    %473 = vector.shape_cast %472 : vector<8xf32> to vector<8x1xf32>
    %474 = vector.broadcast %473 : vector<8x1xf32> to vector<8x128xf32>
    %475 = arith.subf %471, %474 : vector<8x128xf32>
    %476 = math.exp %475 : vector<8x128xf32>
    %cst_151 = arith.constant dense<0.000000e+00> : vector<8xf32>
    %477 = vector.multi_reduction <add>, %476, %cst_151 [1] : vector<8x128xf32> to vector<8xf32>
    %478 = vector.shape_cast %477 : vector<8xf32> to vector<8x1xf32>
    %479 = tpu.reciprocal %478 {approx = true} : vector<8x1xf32> -> vector<8x1xf32>
    %480 = arith.mulf %478, %479 : vector<8x1xf32>
    %cst_152 = arith.constant 2.000000e+00 : f32
    %481 = vector.broadcast %cst_152 : f32 to vector<8x1xf32>
    %482 = arith.subf %481, %480 : vector<8x1xf32>
    %483 = arith.mulf %479, %482 : vector<8x1xf32>
    %484 = vector.broadcast %483 : vector<8x1xf32> to vector<8x128xf32>
    %485 = arith.mulf %476, %484 : vector<8x128xf32>
    %486 = arith.truncf %485 : vector<8x128xf32> to vector<8x128xbf16>
    %487 = arith.index_cast %c6_i32 : i32 to index
    %c0_153 = arith.constant 0 : index
    %c0_154 = arith.constant 0 : index
    %488 = vector.load %arg12[%487, %c0_153, %c0_154] : memref<8x8x128xbf16, #tpu.memory_space<vmem>>, vector<1x8x128xbf16>
    %489 = vector.shape_cast %488 : vector<1x8x128xbf16> to vector<8x128xbf16>
    %490 = vector.shape_cast %486 : vector<8x128xbf16> to vector<1x8x128xbf16>
    tpu.vector_store %arg12[%487, %c0_153, %c0_154], %490 {strides = array<i32>} : memref<8x8x128xbf16, #tpu.memory_space<vmem>>, vector<1x8x128xbf16>,
    %491 = arith.extf %460 : vector<8x128xbf16> to vector<8x128xf32>
    %492 = arith.mulf %485, %491 : vector<8x128xf32>
    %493 = arith.truncf %492 : vector<8x128xf32> to vector<8x128xbf16>
    %cst_155 = arith.constant dense<0.000000e+00> : vector<8x512xf32>
    %494 = tpu.matmul %493, %7, %cst_155 {dimension_numbers = #tpu.dot_dimension_numbers<[1], [0], [0], [1], [0, 0, 1, 1], [], []>} : vector<8x128xbf16>, vector<128x512xbf16>, vector<8x512xf32> -> vector<8x512xf32>
    %cst_156 = arith.constant dense<0.000000e+00> : vector<8x512xf32>
    %495 = tpu.matmul %456, %8, %cst_156 {dimension_numbers = #tpu.dot_dimension_numbers<[1], [0], [0], [1], [0, 0, 1, 1], [], []>} : vector<8x128xbf16>, vector<128x512xbf16>, vector<8x512xf32> -> vector<8x512xf32>
    %496 = arith.addf %494, %495 : vector<8x512xf32>
    %497 = arith.addf %496, %19 : vector<8x512xf32>
    %498 = vector.extract_strided_slice %497 {offsets = [0, 0], sizes = [8, 128], strides = [1, 1]} : vector<8x512xf32> to vector<8x128xf32>
    %499 = arith.negf %498 : vector<8x128xf32>
    %500 = math.exp %499 : vector<8x128xf32>
    %cst_157 = arith.constant 1.000000e+00 : f32
    %501 = vector.broadcast %cst_157 : f32 to vector<8x128xf32>
    %502 = arith.addf %501, %500 : vector<8x128xf32>
    %503 = arith.divf %501, %502 : vector<8x128xf32>
    %504 = vector.extract_strided_slice %497 {offsets = [0, 128], sizes = [8, 128], strides = [1, 1]} : vector<8x512xf32> to vector<8x128xf32>
    %505 = arith.negf %504 : vector<8x128xf32>
    %506 = math.exp %505 : vector<8x128xf32>
    %cst_158 = arith.constant 1.000000e+00 : f32
    %507 = vector.broadcast %cst_158 : f32 to vector<8x128xf32>
    %508 = arith.addf %507, %506 : vector<8x128xf32>
    %509 = arith.divf %507, %508 : vector<8x128xf32>
    %510 = vector.extract_strided_slice %497 {offsets = [0, 256], sizes = [8, 128], strides = [1, 1]} : vector<8x512xf32> to vector<8x128xf32>
    %511 = math.tanh %510 : vector<8x128xf32>
    %512 = vector.extract_strided_slice %497 {offsets = [0, 384], sizes = [8, 128], strides = [1, 1]} : vector<8x512xf32> to vector<8x128xf32>
    %513 = arith.negf %512 : vector<8x128xf32>
    %514 = math.exp %513 : vector<8x128xf32>
    %cst_159 = arith.constant 1.000000e+00 : f32
    %515 = vector.broadcast %cst_159 : f32 to vector<8x128xf32>
    %516 = arith.addf %515, %514 : vector<8x128xf32>
    %517 = arith.divf %515, %516 : vector<8x128xf32>
    %518 = arith.mulf %509, %449 : vector<8x128xf32>
    %519 = arith.mulf %503, %511 : vector<8x128xf32>
    %520 = arith.addf %518, %519 : vector<8x128xf32>
    %521 = math.tanh %520 : vector<8x128xf32>
    %522 = arith.mulf %517, %521 : vector<8x128xf32>
    %523 = arith.index_cast %c6_i32 : i32 to index
    %c0_160 = arith.constant 0 : index
    %c0_161 = arith.constant 0 : index
    %524 = vector.load %arg11[%523, %c0_160, %c0_161] : memref<8x8x128xf32, #tpu.memory_space<vmem>>, vector<1x8x128xf32>
    %525 = vector.shape_cast %524 : vector<1x8x128xf32> to vector<8x128xf32>
    %526 = vector.shape_cast %522 : vector<8x128xf32> to vector<1x8x128xf32>
    tpu.vector_store %arg11[%523, %c0_160, %c0_161], %526 {strides = array<i32>} : memref<8x8x128xf32, #tpu.memory_space<vmem>>, vector<1x8x128xf32>,
    %c7_i32 = arith.constant 7 : i32
    %527 = arith.truncf %522 : vector<8x128xf32> to vector<8x128xbf16>
    %528 = arith.truncf %520 : vector<8x128xf32> to vector<8x128xbf16>
    %529 = arith.index_cast %c7_i32 : i32 to index
    %c0_162 = arith.constant 0 : index
    %c0_163 = arith.constant 0 : index
    %530 = vector.load %arg2[%529, %c0_162, %c0_163] : memref<8x8x128xbf16, #tpu.memory_space<vmem>>, vector<1x8x128xbf16>
    %531 = vector.shape_cast %530 : vector<1x8x128xbf16> to vector<8x128xbf16>
    %532 = arith.index_cast %c7_i32 : i32 to index
    %c0_164 = arith.constant 0 : index
    %c0_165 = arith.constant 0 : index
    %533 = vector.load %arg15[%532, %c0_164, %c0_165] : memref<8x8x128xf32, #tpu.memory_space<vmem>>, vector<1x8x128xf32>
    %534 = vector.shape_cast %533 : vector<1x8x128xf32> to vector<8x128xf32>
    %cst_166 = arith.constant dense<0.000000e+00> : vector<8x128xf32>
    %535 = tpu.matmul %527, %4, %cst_166 {dimension_numbers = #tpu.dot_dimension_numbers<[1], [0], [0], [1], [0, 0, 1, 1], [], []>} : vector<8x128xbf16>, vector<128x128xbf16>, vector<8x128xf32> -> vector<8x128xf32>
    %536 = arith.addf %534, %535 : vector<8x128xf32>
    %cst_167 = arith.constant dense<0.000000e+00> : vector<8x128xf32>
    %537 = tpu.matmul %528, %5, %cst_167 {dimension_numbers = #tpu.dot_dimension_numbers<[1], [0], [0], [1], [0, 0, 1, 1], [], []>} : vector<8x128xbf16>, vector<128x128xbf16>, vector<8x128xf32> -> vector<8x128xf32>
    %538 = arith.addf %536, %537 : vector<8x128xf32>
    %539 = math.tanh %538 : vector<8x128xf32>
    %540 = arith.truncf %539 : vector<8x128xf32> to vector<8x128xbf16>
    %cst_168 = arith.constant dense<0.000000e+00> : vector<8x128xf32>
    %541 = tpu.matmul %540, %6, %cst_168 {dimension_numbers = #tpu.dot_dimension_numbers<[1], [0], [0], [1], [0, 0, 1, 1], [], []>} : vector<8x128xbf16>, vector<128x128xbf16>, vector<8x128xf32> -> vector<8x128xf32>
    %542 = arith.addf %541, %27 : vector<8x128xf32>
    %cst_169 = arith.constant dense<0xFF800000> : vector<8xf32>
    %543 = vector.multi_reduction <maximumf>, %542, %cst_169 [1] : vector<8x128xf32> to vector<8xf32>
    %544 = vector.shape_cast %543 : vector<8xf32> to vector<8x1xf32>
    %545 = vector.broadcast %544 : vector<8x1xf32> to vector<8x128xf32>
    %546 = arith.subf %542, %545 : vector<8x128xf32>
    %547 = math.exp %546 : vector<8x128xf32>
    %cst_170 = arith.constant dense<0.000000e+00> : vector<8xf32>
    %548 = vector.multi_reduction <add>, %547, %cst_170 [1] : vector<8x128xf32> to vector<8xf32>
    %549 = vector.shape_cast %548 : vector<8xf32> to vector<8x1xf32>
    %550 = tpu.reciprocal %549 {approx = true} : vector<8x1xf32> -> vector<8x1xf32>
    %551 = arith.mulf %549, %550 : vector<8x1xf32>
    %cst_171 = arith.constant 2.000000e+00 : f32
    %552 = vector.broadcast %cst_171 : f32 to vector<8x1xf32>
    %553 = arith.subf %552, %551 : vector<8x1xf32>
    %554 = arith.mulf %550, %553 : vector<8x1xf32>
    %555 = vector.broadcast %554 : vector<8x1xf32> to vector<8x128xf32>
    %556 = arith.mulf %547, %555 : vector<8x128xf32>
    %557 = arith.truncf %556 : vector<8x128xf32> to vector<8x128xbf16>
    %558 = arith.index_cast %c7_i32 : i32 to index
    %c0_172 = arith.constant 0 : index
    %c0_173 = arith.constant 0 : index
    %559 = vector.load %arg12[%558, %c0_172, %c0_173] : memref<8x8x128xbf16, #tpu.memory_space<vmem>>, vector<1x8x128xbf16>
    %560 = vector.shape_cast %559 : vector<1x8x128xbf16> to vector<8x128xbf16>
    %561 = vector.shape_cast %557 : vector<8x128xbf16> to vector<1x8x128xbf16>
    tpu.vector_store %arg12[%558, %c0_172, %c0_173], %561 {strides = array<i32>} : memref<8x8x128xbf16, #tpu.memory_space<vmem>>, vector<1x8x128xbf16>,
    %562 = arith.extf %531 : vector<8x128xbf16> to vector<8x128xf32>
    %563 = arith.mulf %556, %562 : vector<8x128xf32>
    %564 = arith.truncf %563 : vector<8x128xf32> to vector<8x128xbf16>
    %cst_174 = arith.constant dense<0.000000e+00> : vector<8x512xf32>
    %565 = tpu.matmul %564, %7, %cst_174 {dimension_numbers = #tpu.dot_dimension_numbers<[1], [0], [0], [1], [0, 0, 1, 1], [], []>} : vector<8x128xbf16>, vector<128x512xbf16>, vector<8x512xf32> -> vector<8x512xf32>
    %cst_175 = arith.constant dense<0.000000e+00> : vector<8x512xf32>
    %566 = tpu.matmul %527, %8, %cst_175 {dimension_numbers = #tpu.dot_dimension_numbers<[1], [0], [0], [1], [0, 0, 1, 1], [], []>} : vector<8x128xbf16>, vector<128x512xbf16>, vector<8x512xf32> -> vector<8x512xf32>
    %567 = arith.addf %565, %566 : vector<8x512xf32>
    %568 = arith.addf %567, %19 : vector<8x512xf32>
    %569 = vector.extract_strided_slice %568 {offsets = [0, 0], sizes = [8, 128], strides = [1, 1]} : vector<8x512xf32> to vector<8x128xf32>
    %570 = arith.negf %569 : vector<8x128xf32>
    %571 = math.exp %570 : vector<8x128xf32>
    %cst_176 = arith.constant 1.000000e+00 : f32
    %572 = vector.broadcast %cst_176 : f32 to vector<8x128xf32>
    %573 = arith.addf %572, %571 : vector<8x128xf32>
    %574 = arith.divf %572, %573 : vector<8x128xf32>
    %575 = vector.extract_strided_slice %568 {offsets = [0, 128], sizes = [8, 128], strides = [1, 1]} : vector<8x512xf32> to vector<8x128xf32>
    %576 = arith.negf %575 : vector<8x128xf32>
    %577 = math.exp %576 : vector<8x128xf32>
    %cst_177 = arith.constant 1.000000e+00 : f32
    %578 = vector.broadcast %cst_177 : f32 to vector<8x128xf32>
    %579 = arith.addf %578, %577 : vector<8x128xf32>
    %580 = arith.divf %578, %579 : vector<8x128xf32>
    %581 = vector.extract_strided_slice %568 {offsets = [0, 256], sizes = [8, 128], strides = [1, 1]} : vector<8x512xf32> to vector<8x128xf32>
    %582 = math.tanh %581 : vector<8x128xf32>
    %583 = vector.extract_strided_slice %568 {offsets = [0, 384], sizes = [8, 128], strides = [1, 1]} : vector<8x512xf32> to vector<8x128xf32>
    %584 = arith.negf %583 : vector<8x128xf32>
    %585 = math.exp %584 : vector<8x128xf32>
    %cst_178 = arith.constant 1.000000e+00 : f32
    %586 = vector.broadcast %cst_178 : f32 to vector<8x128xf32>
    %587 = arith.addf %586, %585 : vector<8x128xf32>
    %588 = arith.divf %586, %587 : vector<8x128xf32>
    %589 = arith.mulf %580, %520 : vector<8x128xf32>
    %590 = arith.mulf %574, %582 : vector<8x128xf32>
    %591 = arith.addf %589, %590 : vector<8x128xf32>
    %592 = math.tanh %591 : vector<8x128xf32>
    %593 = arith.mulf %588, %592 : vector<8x128xf32>
    %594 = arith.index_cast %c7_i32 : i32 to index
    %c0_179 = arith.constant 0 : index
    %c0_180 = arith.constant 0 : index
    %595 = vector.load %arg11[%594, %c0_179, %c0_180] : memref<8x8x128xf32, #tpu.memory_space<vmem>>, vector<1x8x128xf32>
    %596 = vector.shape_cast %595 : vector<1x8x128xf32> to vector<8x128xf32>
    %597 = vector.shape_cast %593 : vector<8x128xf32> to vector<1x8x128xf32>
    tpu.vector_store %arg11[%594, %c0_179, %c0_180], %597 {strides = array<i32>} : memref<8x8x128xf32, #tpu.memory_space<vmem>>, vector<1x8x128xf32>,
    %c8_i32 = arith.constant 8 : i32
    %c0_181 = arith.constant 0 : index
    %c0_182 = arith.constant 0 : index
    %598 = vector.load %arg13[%c0_181, %c0_182] : memref<8x128xf32, #tpu.memory_space<vmem>>, vector<8x128xf32>
    tpu.vector_store %arg13[%c0_181, %c0_182], %593 {strides = array<i32>} : memref<8x128xf32, #tpu.memory_space<vmem>>, vector<8x128xf32>,
    %c0_183 = arith.constant 0 : index
    %c0_184 = arith.constant 0 : index
    %599 = vector.load %arg14[%c0_183, %c0_184] : memref<8x128xf32, #tpu.memory_space<vmem>>, vector<8x128xf32>
    tpu.vector_store %arg14[%c0_183, %c0_184], %591 {strides = array<i32>} : memref<8x128xf32, #tpu.memory_space<vmem>>, vector<8x128xf32>,
    return
  }
  func.func @transform_0(%arg0: i32, %arg1: i32) -> (i32, i32, i32) {
    %c0_i32 = arith.constant 0 : i32
    %c0_i32_0 = arith.constant 0 : i32
    return %arg1, %arg0, %c0_i32 : i32, i32, i32
  }
  func.func @transform_1(%arg0: i32, %arg1: i32) -> (i32, i32) {
    %c0_i32 = arith.constant 0 : i32
    %c0_i32_0 = arith.constant 0 : i32
    %c0_i32_1 = arith.constant 0 : i32
    return %c0_i32, %c0_i32_0 : i32, i32
  }
  func.func @transform_2(%arg0: i32, %arg1: i32) -> (i32, i32) {
    %c0_i32 = arith.constant 0 : i32
    %c0_i32_0 = arith.constant 0 : i32
    %c0_i32_1 = arith.constant 0 : i32
    return %c0_i32, %c0_i32_0 : i32, i32
  }
  func.func @transform_3(%arg0: i32, %arg1: i32) -> (i32, i32) {
    %c0_i32 = arith.constant 0 : i32
    %c0_i32_0 = arith.constant 0 : i32
    %c0_i32_1 = arith.constant 0 : i32
    return %c0_i32, %c0_i32_0 : i32, i32
  }
  func.func @transform_4(%arg0: i32, %arg1: i32) -> (i32, i32) {
    %c0_i32 = arith.constant 0 : i32
    %c0_i32_0 = arith.constant 0 : i32
    %c0_i32_1 = arith.constant 0 : i32
    return %c0_i32, %c0_i32_0 : i32, i32
  }
  func.func @transform_5(%arg0: i32, %arg1: i32) -> (i32, i32) {
    %c0_i32 = arith.constant 0 : i32
    %c0_i32_0 = arith.constant 0 : i32
    %c0_i32_1 = arith.constant 0 : i32
    return %c0_i32, %c0_i32_0 : i32, i32
  }
  func.func @transform_6(%arg0: i32, %arg1: i32) -> (i32, i32) {
    %c0_i32 = arith.constant 0 : i32
    %c0_i32_0 = arith.constant 0 : i32
    %c0_i32_1 = arith.constant 0 : i32
    return %c0_i32, %c0_i32_0 : i32, i32
  }
  func.func @transform_7(%arg0: i32, %arg1: i32) -> (i32, i32) {
    %c0_i32 = arith.constant 0 : i32
    %c0_i32_0 = arith.constant 0 : i32
    %c0_i32_1 = arith.constant 0 : i32
    return %c0_i32, %c0_i32_0 : i32, i32
  }
  func.func @transform_8(%arg0: i32, %arg1: i32) -> (i32, i32) {
    %c0_i32 = arith.constant 0 : i32
    %c0_i32_0 = arith.constant 0 : i32
    %c0_i32_1 = arith.constant 0 : i32
    return %c0_i32, %c0_i32_0 : i32, i32
  }
  func.func @transform_9(%arg0: i32, %arg1: i32) -> (i32, i32, i32) {
    %c0_i32 = arith.constant 0 : i32
    %c0_i32_0 = arith.constant 0 : i32
    return %arg1, %arg0, %c0_i32 : i32, i32, i32
  }
  func.func @transform_10(%arg0: i32, %arg1: i32) -> (i32, i32, i32) {
    %c0_i32 = arith.constant 0 : i32
    %c0_i32_0 = arith.constant 0 : i32
    return %arg1, %arg0, %c0_i32 : i32, i32, i32
  }
  func.func @transform_11(%arg0: i32, %arg1: i32) -> (i32, i32) {
    %c0_i32 = arith.constant 0 : i32
    %c0_i32_0 = arith.constant 0 : i32
    return %arg0, %c0_i32 : i32, i32
  }
  func.func @transform_12(%arg0: i32, %arg1: i32) -> (i32, i32) {
    %c0_i32 = arith.constant 0 : i32
    %c0_i32_0 = arith.constant 0 : i32
    return %arg0, %c0_i32 : i32, i32
  }
}

module attributes {stable_mosaic.version = 11 : i64} {
  func.func @_spatial_lstm_kernel(%arg0: i32, %arg1: i32, %arg2: memref<8x8x128xbf16, #tpu.memory_space<vmem>>, %arg3: memref<128x128xbf16, #tpu.memory_space<vmem>>, %arg4: memref<128x128xbf16, #tpu.memory_space<vmem>>, %arg5: memref<128x128xbf16, #tpu.memory_space<vmem>>, %arg6: memref<1x128xf32, #tpu.memory_space<vmem>>, %arg7: memref<128x128xbf16, #tpu.memory_space<vmem>>, %arg8: memref<128x512xbf16, #tpu.memory_space<vmem>>, %arg9: memref<128x512xbf16, #tpu.memory_space<vmem>>, %arg10: memref<1x512xf32, #tpu.memory_space<vmem>>, %arg11: memref<8x8x128xf32, #tpu.memory_space<vmem>>, %arg12: memref<8x8x128xbf16, #tpu.memory_space<vmem>>, %arg13: memref<8x128xf32, #tpu.memory_space<vmem>>, %arg14: memref<8x128xf32, #tpu.memory_space<vmem>>, %arg15: memref<8x8x128xf32, #tpu.memory_space<vmem>>) attributes {dimension_semantics = [#tpu.dimension_semantics<parallel>, #tpu.dimension_semantics<arbitrary>], iteration_bounds = array<i64: 1, 1>, scalar_prefetch = 0 : i64, scratch_operands = 1 : i64, tpu.core_type = #tpu.core_type<tc>, window_params = [{transform_indices = @transform_0, window_bounds = array<i64: 8, 8, 128>}, {pipeline_mode = #tpu.pipeline_mode<synchronous>, transform_indices = @transform_1, window_bounds = array<i64: 128, 128>}, {pipeline_mode = #tpu.pipeline_mode<synchronous>, transform_indices = @transform_2, window_bounds = array<i64: 128, 128>}, {pipeline_mode = #tpu.pipeline_mode<synchronous>, transform_indices = @transform_3, window_bounds = array<i64: 128, 128>}, {pipeline_mode = #tpu.pipeline_mode<synchronous>, transform_indices = @transform_4, window_bounds = array<i64: 1, 128>}, {pipeline_mode = #tpu.pipeline_mode<synchronous>, transform_indices = @transform_5, window_bounds = array<i64: 128, 128>}, {pipeline_mode = #tpu.pipeline_mode<synchronous>, transform_indices = @transform_6, window_bounds = array<i64: 128, 512>}, {pipeline_mode = #tpu.pipeline_mode<synchronous>, transform_indices = @transform_7, window_bounds = array<i64: 128, 512>}, {pipeline_mode = #tpu.pipeline_mode<synchronous>, transform_indices = @transform_8, window_bounds = array<i64: 1, 512>}, {transform_indices = @transform_9, window_bounds = array<i64: 8, 8, 128>}, {transform_indices = @transform_10, window_bounds = array<i64: 8, 8, 128>}, {transform_indices = @transform_11, window_bounds = array<i64: 8, 128>}, {transform_indices = @transform_12, window_bounds = array<i64: 8, 128>}]} {
    %c0_i32 = arith.constant 0 : i32
    %0 = arith.cmpi eq, %arg1, %c0_i32 : i32
    %1 = arith.extui %0 : i1 to i32
    %c0_i32_0 = arith.constant 0 : i32
    %2 = arith.cmpi ne, %1, %c0_i32_0 : i32
    scf.if %2 {
      %cst_185 = arith.constant 0.000000e+00 : f32
      %600 = vector.broadcast %cst_185 : f32 to vector<8x128xf32>
      %c0_186 = arith.constant 0 : index
      %c0_187 = arith.constant 0 : index
      %601 = vector.load %arg13[%c0_186, %c0_187] : memref<8x128xf32, #tpu.memory_space<vmem>>, vector<8x128xf32>
      tpu.vector_store %arg13[%c0_186, %c0_187], %600 {strides = array<i32>} : memref<8x128xf32, #tpu.memory_space<vmem>>, vector<8x128xf32>,
      %cst_188 = arith.constant 0.000000e+00 : f32
      %602 = vector.broadcast %cst_188 : f32 to vector<8x128xf32>
      %c0_189 = arith.constant 0 : index
      %c0_190 = arith.constant 0 : index
      %603 = vector.load %arg14[%c0_189, %c0_190] : memref<8x128xf32, #tpu.memory_space<vmem>>, vector<8x128xf32>
      tpu.vector_store %arg14[%c0_189, %c0_190], %602 {strides = array<i32>} : memref<8x128xf32, #tpu.memory_space<vmem>>, vector<8x128xf32>,
    } else {
    }
    %c0 = arith.constant 0 : index
    %c0_1 = arith.constant 0 : index
    %3 = vector.load %arg3[%c0, %c0_1] : memref<128x128xbf16, #tpu.memory_space<vmem>>, vector<128x128xbf16>
    %c0_2 = arith.constant 0 : index
    %c0_3 = arith.constant 0 : index
    %4 = vector.load %arg4[%c0_2, %c0_3] : memref<128x128xbf16, #tpu.memory_space<vmem>>, vector<128x128xbf16>
    %c0_4 = arith.constant 0 : index
    %c0_5 = arith.constant 0 : index
    %5 = vector.load %arg5[%c0_4, %c0_5] : memref<128x128xbf16, #tpu.memory_space<vmem>>, vector<128x128xbf16>
    %c0_6 = arith.constant 0 : index
    %c0_7 = arith.constant 0 : index
    %6 = vector.load %arg7[%c0_6, %c0_7] : memref<128x128xbf16, #tpu.memory_space<vmem>>, vector<128x128xbf16>
    %c0_8 = arith.constant 0 : index
    %c0_9 = arith.constant 0 : index
    %7 = vector.load %arg8[%c0_8, %c0_9] : memref<128x512xbf16, #tpu.memory_space<vmem>>, vector<128x512xbf16>
    %c0_10 = arith.constant 0 : index
    %c0_11 = arith.constant 0 : index
    %8 = vector.load %arg9[%c0_10, %c0_11] : memref<128x512xbf16, #tpu.memory_space<vmem>>, vector<128x512xbf16>
    %c0_12 = arith.constant 0 : index
    %c0_13 = arith.constant 0 : index
    %c0_14 = arith.constant 0 : index
    %9 = vector.load %arg2[%c0_12, %c0_13, %c0_14] : memref<8x8x128xbf16, #tpu.memory_space<vmem>>, vector<8x8x128xbf16>
    %10 = vector.shape_cast %9 : vector<8x8x128xbf16> to vector<64x128xbf16>
    %cst = arith.constant dense<0.000000e+00> : vector<64x128xf32>
    %11 = tpu.matmul %10, %3, %cst {dimension_numbers = #tpu.dot_dimension_numbers<[1], [0], [0], [1], [0, 0, 1, 1], [], []>} : vector<64x128xbf16>, vector<128x128xbf16>, vector<64x128xf32> -> vector<64x128xf32>
    %c0_15 = arith.constant 0 : index
    %c0_16 = arith.constant 0 : index
    %12 = vector.load %arg6[%c0_15, %c0_16] : memref<1x128xf32, #tpu.memory_space<vmem>>, vector<1x128xf32>
    %13 = vector.broadcast %12 : vector<1x128xf32> to vector<64x128xf32>
    %14 = arith.addf %11, %13 : vector<64x128xf32>
    %15 = vector.shape_cast %14 : vector<64x128xf32> to vector<8x8x128xf32>
    %c0_17 = arith.constant 0 : index
    %c0_18 = arith.constant 0 : index
    %c0_19 = arith.constant 0 : index
    %16 = vector.load %arg15[%c0_17, %c0_18, %c0_19] : memref<8x8x128xf32, #tpu.memory_space<vmem>>, vector<8x8x128xf32>
    tpu.vector_store %arg15[%c0_17, %c0_18, %c0_19], %15 {strides = array<i32>} : memref<8x8x128xf32, #tpu.memory_space<vmem>>, vector<8x8x128xf32>,
    %c0_20 = arith.constant 0 : index
    %c0_21 = arith.constant 0 : index
    %17 = vector.load %arg10[%c0_20, %c0_21] : memref<1x512xf32, #tpu.memory_space<vmem>>, vector<1x512xf32>
    %18 = vector.shape_cast %17 : vector<1x512xf32> to vector<1x512xf32>
    %19 = vector.broadcast %18 : vector<1x512xf32> to vector<8x512xf32>
    %20 = tpu.iota {dimensions = array<i32: 1>} : vector<1x128xi32>
    %c16_i32 = arith.constant 16 : i32
    %21 = vector.broadcast %c16_i32 : i32 to vector<1x128xi32>
    %22 = arith.cmpi slt, %20, %21 : vector<1x128xi32>
    %cst_22 = arith.constant 0.000000e+00 : f32
    %cst_23 = arith.constant -1.000000e+30 : f32
    %23 = vector.broadcast %cst_22 : f32 to vector<1x128xf32>
    %24 = vector.broadcast %cst_23 : f32 to vector<1x128xf32>
    %25 = arith.select %22, %23, %24 : vector<1x128xi1>, vector<1x128xf32>
    %26 = vector.shape_cast %25 : vector<1x128xf32> to vector<1x128xf32>
    %27 = vector.broadcast %26 : vector<1x128xf32> to vector<8x128xf32>
    %c0_24 = arith.constant 0 : index
    %c0_25 = arith.constant 0 : index
    %28 = vector.load %arg13[%c0_24, %c0_25] : memref<8x128xf32, #tpu.memory_space<vmem>>, vector<8x128xf32>
    %c0_26 = arith.constant 0 : index
    %c0_27 = arith.constant 0 : index
    %29 = vector.load %arg14[%c0_26, %c0_27] : memref<8x128xf32, #tpu.memory_space<vmem>>, vector<8x128xf32>
    %c0_i32_28 = arith.constant 0 : i32
    %30 = arith.truncf %28 : vector<8x128xf32> to vector<8x128xbf16>
    %31 = arith.truncf %29 : vector<8x128xf32> to vector<8x128xbf16>
    %32 = arith.index_cast %c0_i32_28 : i32 to index
    %c0_29 = arith.constant 0 : index
    %c0_30 = arith.constant 0 : index
    %33 = vector.load %arg2[%32, %c0_29, %c0_30] : memref<8x8x128xbf16, #tpu.memory_space<vmem>>, vector<1x8x128xbf16>
    %34 = vector.shape_cast %33 : vector<1x8x128xbf16> to vector<8x128xbf16>
    %35 = arith.index_cast %c0_i32_28 : i32 to index
    %c0_31 = arith.constant 0 : index
    %c0_32 = arith.constant 0 : index
    %36 = vector.load %arg15[%35, %c0_31, %c0_32] : memref<8x8x128xf32, #tpu.memory_space<vmem>>, vector<1x8x128xf32>
    %37 = vector.shape_cast %36 : vector<1x8x128xf32> to vector<8x128xf32>
    %cst_33 = arith.constant dense<0.000000e+00> : vector<8x128xf32>
    %38 = tpu.matmul %30, %4, %cst_33 {dimension_numbers = #tpu.dot_dimension_numbers<[1], [0], [0], [1], [0, 0, 1, 1], [], []>} : vector<8x128xbf16>, vector<128x128xbf16>, vector<8x128xf32> -> vector<8x128xf32>
    %39 = arith.addf %37, %38 : vector<8x128xf32>
    %cst_34 = arith.constant dense<0.000000e+00> : vector<8x128xf32>
    %40 = tpu.matmul %31, %5, %cst_34 {dimension_numbers = #tpu.dot_dimension_numbers<[1], [0], [0], [1], [0, 0, 1, 1], [], []>} : vector<8x128xbf16>, vector<128x128xbf16>, vector<8x128xf32> -> vector<8x128xf32>
    %41 = arith.addf %39, %40 : vector<8x128xf32>
    %42 = math.tanh %41 : vector<8x128xf32>
    %43 = arith.truncf %42 : vector<8x128xf32> to vector<8x128xbf16>
    %cst_35 = arith.constant dense<0.000000e+00> : vector<8x128xf32>
    %44 = tpu.matmul %43, %6, %cst_35 {dimension_numbers = #tpu.dot_dimension_numbers<[1], [0], [0], [1], [0, 0, 1, 1], [], []>} : vector<8x128xbf16>, vector<128x128xbf16>, vector<8x128xf32> -> vector<8x128xf32>
    %45 = arith.addf %44, %27 : vector<8x128xf32>
    %cst_36 = arith.constant dense<0xFF800000> : vector<8xf32>
    %46 = vector.multi_reduction <maximumf>, %45, %cst_36 [1] : vector<8x128xf32> to vector<8xf32>
    %47 = vector.shape_cast %46 : vector<8xf32> to vector<8x1xf32>
    %48 = vector.broadcast %47 : vector<8x1xf32> to vector<8x128xf32>
    %49 = arith.subf %45, %48 : vector<8x128xf32>
    %50 = math.exp %49 : vector<8x128xf32>
    %cst_37 = arith.constant dense<0.000000e+00> : vector<8xf32>
    %51 = vector.multi_reduction <add>, %50, %cst_37 [1] : vector<8x128xf32> to vector<8xf32>
    %52 = vector.shape_cast %51 : vector<8xf32> to vector<8x1xf32>
    %53 = tpu.reciprocal %52 {approx = true} : vector<8x1xf32> -> vector<8x1xf32>
    %54 = arith.mulf %52, %53 : vector<8x1xf32>
    %cst_38 = arith.constant 2.000000e+00 : f32
    %55 = vector.broadcast %cst_38 : f32 to vector<8x1xf32>
    %56 = arith.subf %55, %54 : vector<8x1xf32>
    %57 = arith.mulf %53, %56 : vector<8x1xf32>
    %58 = vector.broadcast %57 : vector<8x1xf32> to vector<8x128xf32>
    %59 = arith.mulf %50, %58 : vector<8x128xf32>
    %60 = arith.truncf %59 : vector<8x128xf32> to vector<8x128xbf16>
    %61 = arith.index_cast %c0_i32_28 : i32 to index
    %c0_39 = arith.constant 0 : index
    %c0_40 = arith.constant 0 : index
    %62 = vector.load %arg12[%61, %c0_39, %c0_40] : memref<8x8x128xbf16, #tpu.memory_space<vmem>>, vector<1x8x128xbf16>
    %63 = vector.shape_cast %62 : vector<1x8x128xbf16> to vector<8x128xbf16>
    %64 = vector.shape_cast %60 : vector<8x128xbf16> to vector<1x8x128xbf16>
    tpu.vector_store %arg12[%61, %c0_39, %c0_40], %64 {strides = array<i32>} : memref<8x8x128xbf16, #tpu.memory_space<vmem>>, vector<1x8x128xbf16>,
    %65 = arith.extf %34 : vector<8x128xbf16> to vector<8x128xf32>
    %66 = arith.mulf %59, %65 : vector<8x128xf32>
    %67 = arith.truncf %66 : vector<8x128xf32> to vector<8x128xbf16>
    %cst_41 = arith.constant dense<0.000000e+00> : vector<8x512xf32>
    %68 = tpu.matmul %67, %7, %cst_41 {dimension_numbers = #tpu.dot_dimension_numbers<[1], [0], [0], [1], [0, 0, 1, 1], [], []>} : vector<8x128xbf16>, vector<128x512xbf16>, vector<8x512xf32> -> vector<8x512xf32>
    %cst_42 = arith.constant dense<0.000000e+00> : vector<8x512xf32>
    %69 = tpu.matmul %30, %8, %cst_42 {dimension_numbers = #tpu.dot_dimension_numbers<[1], [0], [0], [1], [0, 0, 1, 1], [], []>} : vector<8x128xbf16>, vector<128x512xbf16>, vector<8x512xf32> -> vector<8x512xf32>
    %70 = arith.addf %68, %69 : vector<8x512xf32>
    %71 = arith.addf %70, %19 : vector<8x512xf32>
    %72 = vector.extract_strided_slice %71 {offsets = [0, 0], sizes = [8, 128], strides = [1, 1]} : vector<8x512xf32> to vector<8x128xf32>
    %73 = arith.negf %72 : vector<8x128xf32>
    %74 = math.exp %73 : vector<8x128xf32>
    %cst_43 = arith.constant 1.000000e+00 : f32
    %75 = vector.broadcast %cst_43 : f32 to vector<8x128xf32>
    %76 = arith.addf %75, %74 : vector<8x128xf32>
    %77 = arith.divf %75, %76 : vector<8x128xf32>
    %78 = vector.extract_strided_slice %71 {offsets = [0, 128], sizes = [8, 128], strides = [1, 1]} : vector<8x512xf32> to vector<8x128xf32>
    %79 = arith.negf %78 : vector<8x128xf32>
    %80 = math.exp %79 : vector<8x128xf32>
    %cst_44 = arith.constant 1.000000e+00 : f32
    %81 = vector.broadcast %cst_44 : f32 to vector<8x128xf32>
    %82 = arith.addf %81, %80 : vector<8x128xf32>
    %83 = arith.divf %81, %82 : vector<8x128xf32>
    %84 = vector.extract_strided_slice %71 {offsets = [0, 256], sizes = [8, 128], strides = [1, 1]} : vector<8x512xf32> to vector<8x128xf32>
    %85 = math.tanh %84 : vector<8x128xf32>
    %86 = vector.extract_strided_slice %71 {offsets = [0, 384], sizes = [8, 128], strides = [1, 1]} : vector<8x512xf32> to vector<8x128xf32>
    %87 = arith.negf %86 : vector<8x128xf32>
    %88 = math.exp %87 : vector<8x128xf32>
    %cst_45 = arith.constant 1.000000e+00 : f32
    %89 = vector.broadcast %cst_45 : f32 to vector<8x128xf32>
    %90 = arith.addf %89, %88 : vector<8x128xf32>
    %91 = arith.divf %89, %90 : vector<8x128xf32>
    %92 = arith.mulf %83, %29 : vector<8x128xf32>
    %93 = arith.mulf %77, %85 : vector<8x128xf32>
    %94 = arith.addf %92, %93 : vector<8x128xf32>
    %95 = math.tanh %94 : vector<8x128xf32>
    %96 = arith.mulf %91, %95 : vector<8x128xf32>
    %97 = arith.index_cast %c0_i32_28 : i32 to index
    %c0_46 = arith.constant 0 : index
    %c0_47 = arith.constant 0 : index
    %98 = vector.load %arg11[%97, %c0_46, %c0_47] : memref<8x8x128xf32, #tpu.memory_space<vmem>>, vector<1x8x128xf32>
    %99 = vector.shape_cast %98 : vector<1x8x128xf32> to vector<8x128xf32>
    %100 = vector.shape_cast %96 : vector<8x128xf32> to vector<1x8x128xf32>
    tpu.vector_store %arg11[%97, %c0_46, %c0_47], %100 {strides = array<i32>} : memref<8x8x128xf32, #tpu.memory_space<vmem>>, vector<1x8x128xf32>,
    %c1_i32 = arith.constant 1 : i32
    %101 = arith.truncf %96 : vector<8x128xf32> to vector<8x128xbf16>
    %102 = arith.truncf %94 : vector<8x128xf32> to vector<8x128xbf16>
    %103 = arith.index_cast %c1_i32 : i32 to index
    %c0_48 = arith.constant 0 : index
    %c0_49 = arith.constant 0 : index
    %104 = vector.load %arg2[%103, %c0_48, %c0_49] : memref<8x8x128xbf16, #tpu.memory_space<vmem>>, vector<1x8x128xbf16>
    %105 = vector.shape_cast %104 : vector<1x8x128xbf16> to vector<8x128xbf16>
    %106 = arith.index_cast %c1_i32 : i32 to index
    %c0_50 = arith.constant 0 : index
    %c0_51 = arith.constant 0 : index
    %107 = vector.load %arg15[%106, %c0_50, %c0_51] : memref<8x8x128xf32, #tpu.memory_space<vmem>>, vector<1x8x128xf32>
    %108 = vector.shape_cast %107 : vector<1x8x128xf32> to vector<8x128xf32>
    %cst_52 = arith.constant dense<0.000000e+00> : vector<8x128xf32>
    %109 = tpu.matmul %101, %4, %cst_52 {dimension_numbers = #tpu.dot_dimension_numbers<[1], [0], [0], [1], [0, 0, 1, 1], [], []>} : vector<8x128xbf16>, vector<128x128xbf16>, vector<8x128xf32> -> vector<8x128xf32>
    %110 = arith.addf %108, %109 : vector<8x128xf32>
    %cst_53 = arith.constant dense<0.000000e+00> : vector<8x128xf32>
    %111 = tpu.matmul %102, %5, %cst_53 {dimension_numbers = #tpu.dot_dimension_numbers<[1], [0], [0], [1], [0, 0, 1, 1], [], []>} : vector<8x128xbf16>, vector<128x128xbf16>, vector<8x128xf32> -> vector<8x128xf32>
    %112 = arith.addf %110, %111 : vector<8x128xf32>
    %113 = math.tanh %112 : vector<8x128xf32>
    %114 = arith.truncf %113 : vector<8x128xf32> to vector<8x128xbf16>
    %cst_54 = arith.constant dense<0.000000e+00> : vector<8x128xf32>
    %115 = tpu.matmul %114, %6, %cst_54 {dimension_numbers = #tpu.dot_dimension_numbers<[1], [0], [0], [1], [0, 0, 1, 1], [], []>} : vector<8x128xbf16>, vector<128x128xbf16>, vector<8x128xf32> -> vector<8x128xf32>
    %116 = arith.addf %115, %27 : vector<8x128xf32>
    %cst_55 = arith.constant dense<0xFF800000> : vector<8xf32>
    %117 = vector.multi_reduction <maximumf>, %116, %cst_55 [1] : vector<8x128xf32> to vector<8xf32>
    %118 = vector.shape_cast %117 : vector<8xf32> to vector<8x1xf32>
    %119 = vector.broadcast %118 : vector<8x1xf32> to vector<8x128xf32>
    %120 = arith.subf %116, %119 : vector<8x128xf32>
    %121 = math.exp %120 : vector<8x128xf32>
    %cst_56 = arith.constant dense<0.000000e+00> : vector<8xf32>
    %122 = vector.multi_reduction <add>, %121, %cst_56 [1] : vector<8x128xf32> to vector<8xf32>
    %123 = vector.shape_cast %122 : vector<8xf32> to vector<8x1xf32>
    %124 = tpu.reciprocal %123 {approx = true} : vector<8x1xf32> -> vector<8x1xf32>
    %125 = arith.mulf %123, %124 : vector<8x1xf32>
    %cst_57 = arith.constant 2.000000e+00 : f32
    %126 = vector.broadcast %cst_57 : f32 to vector<8x1xf32>
    %127 = arith.subf %126, %125 : vector<8x1xf32>
    %128 = arith.mulf %124, %127 : vector<8x1xf32>
    %129 = vector.broadcast %128 : vector<8x1xf32> to vector<8x128xf32>
    %130 = arith.mulf %121, %129 : vector<8x128xf32>
    %131 = arith.truncf %130 : vector<8x128xf32> to vector<8x128xbf16>
    %132 = arith.index_cast %c1_i32 : i32 to index
    %c0_58 = arith.constant 0 : index
    %c0_59 = arith.constant 0 : index
    %133 = vector.load %arg12[%132, %c0_58, %c0_59] : memref<8x8x128xbf16, #tpu.memory_space<vmem>>, vector<1x8x128xbf16>
    %134 = vector.shape_cast %133 : vector<1x8x128xbf16> to vector<8x128xbf16>
    %135 = vector.shape_cast %131 : vector<8x128xbf16> to vector<1x8x128xbf16>
    tpu.vector_store %arg12[%132, %c0_58, %c0_59], %135 {strides = array<i32>} : memref<8x8x128xbf16, #tpu.memory_space<vmem>>, vector<1x8x128xbf16>,
    %136 = arith.extf %105 : vector<8x128xbf16> to vector<8x128xf32>
    %137 = arith.mulf %130, %136 : vector<8x128xf32>
    %138 = arith.truncf %137 : vector<8x128xf32> to vector<8x128xbf16>
    %cst_60 = arith.constant dense<0.000000e+00> : vector<8x512xf32>
    %139 = tpu.matmul %138, %7, %cst_60 {dimension_numbers = #tpu.dot_dimension_numbers<[1], [0], [0], [1], [0, 0, 1, 1], [], []>} : vector<8x128xbf16>, vector<128x512xbf16>, vector<8x512xf32> -> vector<8x512xf32>
    %cst_61 = arith.constant dense<0.000000e+00> : vector<8x512xf32>
    %140 = tpu.matmul %101, %8, %cst_61 {dimension_numbers = #tpu.dot_dimension_numbers<[1], [0], [0], [1], [0, 0, 1, 1], [], []>} : vector<8x128xbf16>, vector<128x512xbf16>, vector<8x512xf32> -> vector<8x512xf32>
    %141 = arith.addf %139, %140 : vector<8x512xf32>
    %142 = arith.addf %141, %19 : vector<8x512xf32>
    %143 = vector.extract_strided_slice %142 {offsets = [0, 0], sizes = [8, 128], strides = [1, 1]} : vector<8x512xf32> to vector<8x128xf32>
    %144 = arith.negf %143 : vector<8x128xf32>
    %145 = math.exp %144 : vector<8x128xf32>
    %cst_62 = arith.constant 1.000000e+00 : f32
    %146 = vector.broadcast %cst_62 : f32 to vector<8x128xf32>
    %147 = arith.addf %146, %145 : vector<8x128xf32>
    %148 = arith.divf %146, %147 : vector<8x128xf32>
    %149 = vector.extract_strided_slice %142 {offsets = [0, 128], sizes = [8, 128], strides = [1, 1]} : vector<8x512xf32> to vector<8x128xf32>
    %150 = arith.negf %149 : vector<8x128xf32>
    %151 = math.exp %150 : vector<8x128xf32>
    %cst_63 = arith.constant 1.000000e+00 : f32
    %152 = vector.broadcast %cst_63 : f32 to vector<8x128xf32>
    %153 = arith.addf %152, %151 : vector<8x128xf32>
    %154 = arith.divf %152, %153 : vector<8x128xf32>
    %155 = vector.extract_strided_slice %142 {offsets = [0, 256], sizes = [8, 128], strides = [1, 1]} : vector<8x512xf32> to vector<8x128xf32>
    %156 = math.tanh %155 : vector<8x128xf32>
    %157 = vector.extract_strided_slice %142 {offsets = [0, 384], sizes = [8, 128], strides = [1, 1]} : vector<8x512xf32> to vector<8x128xf32>
    %158 = arith.negf %157 : vector<8x128xf32>
    %159 = math.exp %158 : vector<8x128xf32>
    %cst_64 = arith.constant 1.000000e+00 : f32
    %160 = vector.broadcast %cst_64 : f32 to vector<8x128xf32>
    %161 = arith.addf %160, %159 : vector<8x128xf32>
    %162 = arith.divf %160, %161 : vector<8x128xf32>
    %163 = arith.mulf %154, %94 : vector<8x128xf32>
    %164 = arith.mulf %148, %156 : vector<8x128xf32>
    %165 = arith.addf %163, %164 : vector<8x128xf32>
    %166 = math.tanh %165 : vector<8x128xf32>
    %167 = arith.mulf %162, %166 : vector<8x128xf32>
    %168 = arith.index_cast %c1_i32 : i32 to index
    %c0_65 = arith.constant 0 : index
    %c0_66 = arith.constant 0 : index
    %169 = vector.load %arg11[%168, %c0_65, %c0_66] : memref<8x8x128xf32, #tpu.memory_space<vmem>>, vector<1x8x128xf32>
    %170 = vector.shape_cast %169 : vector<1x8x128xf32> to vector<8x128xf32>
    %171 = vector.shape_cast %167 : vector<8x128xf32> to vector<1x8x128xf32>
    tpu.vector_store %arg11[%168, %c0_65, %c0_66], %171 {strides = array<i32>} : memref<8x8x128xf32, #tpu.memory_space<vmem>>, vector<1x8x128xf32>,
    %c2_i32 = arith.constant 2 : i32
    %172 = arith.truncf %167 : vector<8x128xf32> to vector<8x128xbf16>
    %173 = arith.truncf %165 : vector<8x128xf32> to vector<8x128xbf16>
    %174 = arith.index_cast %c2_i32 : i32 to index
    %c0_67 = arith.constant 0 : index
    %c0_68 = arith.constant 0 : index
    %175 = vector.load %arg2[%174, %c0_67, %c0_68] : memref<8x8x128xbf16, #tpu.memory_space<vmem>>, vector<1x8x128xbf16>
    %176 = vector.shape_cast %175 : vector<1x8x128xbf16> to vector<8x128xbf16>
    %177 = arith.index_cast %c2_i32 : i32 to index
    %c0_69 = arith.constant 0 : index
    %c0_70 = arith.constant 0 : index
    %178 = vector.load %arg15[%177, %c0_69, %c0_70] : memref<8x8x128xf32, #tpu.memory_space<vmem>>, vector<1x8x128xf32>
    %179 = vector.shape_cast %178 : vector<1x8x128xf32> to vector<8x128xf32>
    %cst_71 = arith.constant dense<0.000000e+00> : vector<8x128xf32>
    %180 = tpu.matmul %172, %4, %cst_71 {dimension_numbers = #tpu.dot_dimension_numbers<[1], [0], [0], [1], [0, 0, 1, 1], [], []>} : vector<8x128xbf16>, vector<128x128xbf16>, vector<8x128xf32> -> vector<8x128xf32>
    %181 = arith.addf %179, %180 : vector<8x128xf32>
    %cst_72 = arith.constant dense<0.000000e+00> : vector<8x128xf32>
    %182 = tpu.matmul %173, %5, %cst_72 {dimension_numbers = #tpu.dot_dimension_numbers<[1], [0], [0], [1], [0, 0, 1, 1], [], []>} : vector<8x128xbf16>, vector<128x128xbf16>, vector<8x128xf32> -> vector<8x128xf32>
    %183 = arith.addf %181, %182 : vector<8x128xf32>
    %184 = math.tanh %183 : vector<8x128xf32>
    %185 = arith.truncf %184 : vector<8x128xf32> to vector<8x128xbf16>
    %cst_73 = arith.constant dense<0.000000e+00> : vector<8x128xf32>
    %186 = tpu.matmul %185, %6, %cst_73 {dimension_numbers = #tpu.dot_dimension_numbers<[1], [0], [0], [1], [0, 0, 1, 1], [], []>} : vector<8x128xbf16>, vector<128x128xbf16>, vector<8x128xf32> -> vector<8x128xf32>
    %187 = arith.addf %186, %27 : vector<8x128xf32>
    %cst_74 = arith.constant dense<0xFF800000> : vector<8xf32>
    %188 = vector.multi_reduction <maximumf>, %187, %cst_74 [1] : vector<8x128xf32> to vector<8xf32>
    %189 = vector.shape_cast %188 : vector<8xf32> to vector<8x1xf32>
    %190 = vector.broadcast %189 : vector<8x1xf32> to vector<8x128xf32>
    %191 = arith.subf %187, %190 : vector<8x128xf32>
    %192 = math.exp %191 : vector<8x128xf32>
    %cst_75 = arith.constant dense<0.000000e+00> : vector<8xf32>
    %193 = vector.multi_reduction <add>, %192, %cst_75 [1] : vector<8x128xf32> to vector<8xf32>
    %194 = vector.shape_cast %193 : vector<8xf32> to vector<8x1xf32>
    %195 = tpu.reciprocal %194 {approx = true} : vector<8x1xf32> -> vector<8x1xf32>
    %196 = arith.mulf %194, %195 : vector<8x1xf32>
    %cst_76 = arith.constant 2.000000e+00 : f32
    %197 = vector.broadcast %cst_76 : f32 to vector<8x1xf32>
    %198 = arith.subf %197, %196 : vector<8x1xf32>
    %199 = arith.mulf %195, %198 : vector<8x1xf32>
    %200 = vector.broadcast %199 : vector<8x1xf32> to vector<8x128xf32>
    %201 = arith.mulf %192, %200 : vector<8x128xf32>
    %202 = arith.truncf %201 : vector<8x128xf32> to vector<8x128xbf16>
    %203 = arith.index_cast %c2_i32 : i32 to index
    %c0_77 = arith.constant 0 : index
    %c0_78 = arith.constant 0 : index
    %204 = vector.load %arg12[%203, %c0_77, %c0_78] : memref<8x8x128xbf16, #tpu.memory_space<vmem>>, vector<1x8x128xbf16>
    %205 = vector.shape_cast %204 : vector<1x8x128xbf16> to vector<8x128xbf16>
    %206 = vector.shape_cast %202 : vector<8x128xbf16> to vector<1x8x128xbf16>
    tpu.vector_store %arg12[%203, %c0_77, %c0_78], %206 {strides = array<i32>} : memref<8x8x128xbf16, #tpu.memory_space<vmem>>, vector<1x8x128xbf16>,
    %207 = arith.extf %176 : vector<8x128xbf16> to vector<8x128xf32>
    %208 = arith.mulf %201, %207 : vector<8x128xf32>
    %209 = arith.truncf %208 : vector<8x128xf32> to vector<8x128xbf16>
    %cst_79 = arith.constant dense<0.000000e+00> : vector<8x512xf32>
    %210 = tpu.matmul %209, %7, %cst_79 {dimension_numbers = #tpu.dot_dimension_numbers<[1], [0], [0], [1], [0, 0, 1, 1], [], []>} : vector<8x128xbf16>, vector<128x512xbf16>, vector<8x512xf32> -> vector<8x512xf32>
    %cst_80 = arith.constant dense<0.000000e+00> : vector<8x512xf32>
    %211 = tpu.matmul %172, %8, %cst_80 {dimension_numbers = #tpu.dot_dimension_numbers<[1], [0], [0], [1], [0, 0, 1, 1], [], []>} : vector<8x128xbf16>, vector<128x512xbf16>, vector<8x512xf32> -> vector<8x512xf32>
    %212 = arith.addf %210, %211 : vector<8x512xf32>
    %213 = arith.addf %212, %19 : vector<8x512xf32>
    %214 = vector.extract_strided_slice %213 {offsets = [0, 0], sizes = [8, 128], strides = [1, 1]} : vector<8x512xf32> to vector<8x128xf32>
    %215 = arith.negf %214 : vector<8x128xf32>
    %216 = math.exp %215 : vector<8x128xf32>
    %cst_81 = arith.constant 1.000000e+00 : f32
    %217 = vector.broadcast %cst_81 : f32 to vector<8x128xf32>
    %218 = arith.addf %217, %216 : vector<8x128xf32>
    %219 = arith.divf %217, %218 : vector<8x128xf32>
    %220 = vector.extract_strided_slice %213 {offsets = [0, 128], sizes = [8, 128], strides = [1, 1]} : vector<8x512xf32> to vector<8x128xf32>
    %221 = arith.negf %220 : vector<8x128xf32>
    %222 = math.exp %221 : vector<8x128xf32>
    %cst_82 = arith.constant 1.000000e+00 : f32
    %223 = vector.broadcast %cst_82 : f32 to vector<8x128xf32>
    %224 = arith.addf %223, %222 : vector<8x128xf32>
    %225 = arith.divf %223, %224 : vector<8x128xf32>
    %226 = vector.extract_strided_slice %213 {offsets = [0, 256], sizes = [8, 128], strides = [1, 1]} : vector<8x512xf32> to vector<8x128xf32>
    %227 = math.tanh %226 : vector<8x128xf32>
    %228 = vector.extract_strided_slice %213 {offsets = [0, 384], sizes = [8, 128], strides = [1, 1]} : vector<8x512xf32> to vector<8x128xf32>
    %229 = arith.negf %228 : vector<8x128xf32>
    %230 = math.exp %229 : vector<8x128xf32>
    %cst_83 = arith.constant 1.000000e+00 : f32
    %231 = vector.broadcast %cst_83 : f32 to vector<8x128xf32>
    %232 = arith.addf %231, %230 : vector<8x128xf32>
    %233 = arith.divf %231, %232 : vector<8x128xf32>
    %234 = arith.mulf %225, %165 : vector<8x128xf32>
    %235 = arith.mulf %219, %227 : vector<8x128xf32>
    %236 = arith.addf %234, %235 : vector<8x128xf32>
    %237 = math.tanh %236 : vector<8x128xf32>
    %238 = arith.mulf %233, %237 : vector<8x128xf32>
    %239 = arith.index_cast %c2_i32 : i32 to index
    %c0_84 = arith.constant 0 : index
    %c0_85 = arith.constant 0 : index
    %240 = vector.load %arg11[%239, %c0_84, %c0_85] : memref<8x8x128xf32, #tpu.memory_space<vmem>>, vector<1x8x128xf32>
    %241 = vector.shape_cast %240 : vector<1x8x128xf32> to vector<8x128xf32>
    %242 = vector.shape_cast %238 : vector<8x128xf32> to vector<1x8x128xf32>
    tpu.vector_store %arg11[%239, %c0_84, %c0_85], %242 {strides = array<i32>} : memref<8x8x128xf32, #tpu.memory_space<vmem>>, vector<1x8x128xf32>,
    %c3_i32 = arith.constant 3 : i32
    %243 = arith.truncf %238 : vector<8x128xf32> to vector<8x128xbf16>
    %244 = arith.truncf %236 : vector<8x128xf32> to vector<8x128xbf16>
    %245 = arith.index_cast %c3_i32 : i32 to index
    %c0_86 = arith.constant 0 : index
    %c0_87 = arith.constant 0 : index
    %246 = vector.load %arg2[%245, %c0_86, %c0_87] : memref<8x8x128xbf16, #tpu.memory_space<vmem>>, vector<1x8x128xbf16>
    %247 = vector.shape_cast %246 : vector<1x8x128xbf16> to vector<8x128xbf16>
    %248 = arith.index_cast %c3_i32 : i32 to index
    %c0_88 = arith.constant 0 : index
    %c0_89 = arith.constant 0 : index
    %249 = vector.load %arg15[%248, %c0_88, %c0_89] : memref<8x8x128xf32, #tpu.memory_space<vmem>>, vector<1x8x128xf32>
    %250 = vector.shape_cast %249 : vector<1x8x128xf32> to vector<8x128xf32>
    %cst_90 = arith.constant dense<0.000000e+00> : vector<8x128xf32>
    %251 = tpu.matmul %243, %4, %cst_90 {dimension_numbers = #tpu.dot_dimension_numbers<[1], [0], [0], [1], [0, 0, 1, 1], [], []>} : vector<8x128xbf16>, vector<128x128xbf16>, vector<8x128xf32> -> vector<8x128xf32>
    %252 = arith.addf %250, %251 : vector<8x128xf32>
    %cst_91 = arith.constant dense<0.000000e+00> : vector<8x128xf32>
    %253 = tpu.matmul %244, %5, %cst_91 {dimension_numbers = #tpu.dot_dimension_numbers<[1], [0], [0], [1], [0, 0, 1, 1], [], []>} : vector<8x128xbf16>, vector<128x128xbf16>, vector<8x128xf32> -> vector<8x128xf32>
    %254 = arith.addf %252, %253 : vector<8x128xf32>
    %255 = math.tanh %254 : vector<8x128xf32>
    %256 = arith.truncf %255 : vector<8x128xf32> to vector<8x128xbf16>
    %cst_92 = arith.constant dense<0.000000e+00> : vector<8x128xf32>
    %257 = tpu.matmul %256, %6, %cst_92 {dimension_numbers = #tpu.dot_dimension_numbers<[1], [0], [0], [1], [0, 0, 1, 1], [], []>} : vector<8x128xbf16>, vector<128x128xbf16>, vector<8x128xf32> -> vector<8x128xf32>
    %258 = arith.addf %257, %27 : vector<8x128xf32>
    %cst_93 = arith.constant dense<0xFF800000> : vector<8xf32>
    %259 = vector.multi_reduction <maximumf>, %258, %cst_93 [1] : vector<8x128xf32> to vector<8xf32>
    %260 = vector.shape_cast %259 : vector<8xf32> to vector<8x1xf32>
    %261 = vector.broadcast %260 : vector<8x1xf32> to vector<8x128xf32>
    %262 = arith.subf %258, %261 : vector<8x128xf32>
    %263 = math.exp %262 : vector<8x128xf32>
    %cst_94 = arith.constant dense<0.000000e+00> : vector<8xf32>
    %264 = vector.multi_reduction <add>, %263, %cst_94 [1] : vector<8x128xf32> to vector<8xf32>
    %265 = vector.shape_cast %264 : vector<8xf32> to vector<8x1xf32>
    %266 = tpu.reciprocal %265 {approx = true} : vector<8x1xf32> -> vector<8x1xf32>
    %267 = arith.mulf %265, %266 : vector<8x1xf32>
    %cst_95 = arith.constant 2.000000e+00 : f32
    %268 = vector.broadcast %cst_95 : f32 to vector<8x1xf32>
    %269 = arith.subf %268, %267 : vector<8x1xf32>
    %270 = arith.mulf %266, %269 : vector<8x1xf32>
    %271 = vector.broadcast %270 : vector<8x1xf32> to vector<8x128xf32>
    %272 = arith.mulf %263, %271 : vector<8x128xf32>
    %273 = arith.truncf %272 : vector<8x128xf32> to vector<8x128xbf16>
    %274 = arith.index_cast %c3_i32 : i32 to index
    %c0_96 = arith.constant 0 : index
    %c0_97 = arith.constant 0 : index
    %275 = vector.load %arg12[%274, %c0_96, %c0_97] : memref<8x8x128xbf16, #tpu.memory_space<vmem>>, vector<1x8x128xbf16>
    %276 = vector.shape_cast %275 : vector<1x8x128xbf16> to vector<8x128xbf16>
    %277 = vector.shape_cast %273 : vector<8x128xbf16> to vector<1x8x128xbf16>
    tpu.vector_store %arg12[%274, %c0_96, %c0_97], %277 {strides = array<i32>} : memref<8x8x128xbf16, #tpu.memory_space<vmem>>, vector<1x8x128xbf16>,
    %278 = arith.extf %247 : vector<8x128xbf16> to vector<8x128xf32>
    %279 = arith.mulf %272, %278 : vector<8x128xf32>
    %280 = arith.truncf %279 : vector<8x128xf32> to vector<8x128xbf16>
    %cst_98 = arith.constant dense<0.000000e+00> : vector<8x512xf32>
    %281 = tpu.matmul %280, %7, %cst_98 {dimension_numbers = #tpu.dot_dimension_numbers<[1], [0], [0], [1], [0, 0, 1, 1], [], []>} : vector<8x128xbf16>, vector<128x512xbf16>, vector<8x512xf32> -> vector<8x512xf32>
    %cst_99 = arith.constant dense<0.000000e+00> : vector<8x512xf32>
    %282 = tpu.matmul %243, %8, %cst_99 {dimension_numbers = #tpu.dot_dimension_numbers<[1], [0], [0], [1], [0, 0, 1, 1], [], []>} : vector<8x128xbf16>, vector<128x512xbf16>, vector<8x512xf32> -> vector<8x512xf32>
    %283 = arith.addf %281, %282 : vector<8x512xf32>
    %284 = arith.addf %283, %19 : vector<8x512xf32>
    %285 = vector.extract_strided_slice %284 {offsets = [0, 0], sizes = [8, 128], strides = [1, 1]} : vector<8x512xf32> to vector<8x128xf32>
    %286 = arith.negf %285 : vector<8x128xf32>
    %287 = math.exp %286 : vector<8x128xf32>
    %cst_100 = arith.constant 1.000000e+00 : f32
    %288 = vector.broadcast %cst_100 : f32 to vector<8x128xf32>
    %289 = arith.addf %288, %287 : vector<8x128xf32>
    %290 = arith.divf %288, %289 : vector<8x128xf32>
    %291 = vector.extract_strided_slice %284 {offsets = [0, 128], sizes = [8, 128], strides = [1, 1]} : vector<8x512xf32> to vector<8x128xf32>
    %292 = arith.negf %291 : vector<8x128xf32>
    %293 = math.exp %292 : vector<8x128xf32>
    %cst_101 = arith.constant 1.000000e+00 : f32
    %294 = vector.broadcast %cst_101 : f32 to vector<8x128xf32>
    %295 = arith.addf %294, %293 : vector<8x128xf32>
    %296 = arith.divf %294, %295 : vector<8x128xf32>
    %297 = vector.extract_strided_slice %284 {offsets = [0, 256], sizes = [8, 128], strides = [1, 1]} : vector<8x512xf32> to vector<8x128xf32>
    %298 = math.tanh %297 : vector<8x128xf32>
    %299 = vector.extract_strided_slice %284 {offsets = [0, 384], sizes = [8, 128], strides = [1, 1]} : vector<8x512xf32> to vector<8x128xf32>
    %300 = arith.negf %299 : vector<8x128xf32>
    %301 = math.exp %300 : vector<8x128xf32>
    %cst_102 = arith.constant 1.000000e+00 : f32
    %302 = vector.broadcast %cst_102 : f32 to vector<8x128xf32>
    %303 = arith.addf %302, %301 : vector<8x128xf32>
    %304 = arith.divf %302, %303 : vector<8x128xf32>
    %305 = arith.mulf %296, %236 : vector<8x128xf32>
    %306 = arith.mulf %290, %298 : vector<8x128xf32>
    %307 = arith.addf %305, %306 : vector<8x128xf32>
    %308 = math.tanh %307 : vector<8x128xf32>
    %309 = arith.mulf %304, %308 : vector<8x128xf32>
    %310 = arith.index_cast %c3_i32 : i32 to index
    %c0_103 = arith.constant 0 : index
    %c0_104 = arith.constant 0 : index
    %311 = vector.load %arg11[%310, %c0_103, %c0_104] : memref<8x8x128xf32, #tpu.memory_space<vmem>>, vector<1x8x128xf32>
    %312 = vector.shape_cast %311 : vector<1x8x128xf32> to vector<8x128xf32>
    %313 = vector.shape_cast %309 : vector<8x128xf32> to vector<1x8x128xf32>
    tpu.vector_store %arg11[%310, %c0_103, %c0_104], %313 {strides = array<i32>} : memref<8x8x128xf32, #tpu.memory_space<vmem>>, vector<1x8x128xf32>,
    %c4_i32 = arith.constant 4 : i32
    %314 = arith.truncf %309 : vector<8x128xf32> to vector<8x128xbf16>
    %315 = arith.truncf %307 : vector<8x128xf32> to vector<8x128xbf16>
    %316 = arith.index_cast %c4_i32 : i32 to index
    %c0_105 = arith.constant 0 : index
    %c0_106 = arith.constant 0 : index
    %317 = vector.load %arg2[%316, %c0_105, %c0_106] : memref<8x8x128xbf16, #tpu.memory_space<vmem>>, vector<1x8x128xbf16>
    %318 = vector.shape_cast %317 : vector<1x8x128xbf16> to vector<8x128xbf16>
    %319 = arith.index_cast %c4_i32 : i32 to index
    %c0_107 = arith.constant 0 : index
    %c0_108 = arith.constant 0 : index
    %320 = vector.load %arg15[%319, %c0_107, %c0_108] : memref<8x8x128xf32, #tpu.memory_space<vmem>>, vector<1x8x128xf32>
    %321 = vector.shape_cast %320 : vector<1x8x128xf32> to vector<8x128xf32>
    %cst_109 = arith.constant dense<0.000000e+00> : vector<8x128xf32>
    %322 = tpu.matmul %314, %4, %cst_109 {dimension_numbers = #tpu.dot_dimension_numbers<[1], [0], [0], [1], [0, 0, 1, 1], [], []>} : vector<8x128xbf16>, vector<128x128xbf16>, vector<8x128xf32> -> vector<8x128xf32>
    %323 = arith.addf %321, %322 : vector<8x128xf32>
    %cst_110 = arith.constant dense<0.000000e+00> : vector<8x128xf32>
    %324 = tpu.matmul %315, %5, %cst_110 {dimension_numbers = #tpu.dot_dimension_numbers<[1], [0], [0], [1], [0, 0, 1, 1], [], []>} : vector<8x128xbf16>, vector<128x128xbf16>, vector<8x128xf32> -> vector<8x128xf32>
    %325 = arith.addf %323, %324 : vector<8x128xf32>
    %326 = math.tanh %325 : vector<8x128xf32>
    %327 = arith.truncf %326 : vector<8x128xf32> to vector<8x128xbf16>
    %cst_111 = arith.constant dense<0.000000e+00> : vector<8x128xf32>
    %328 = tpu.matmul %327, %6, %cst_111 {dimension_numbers = #tpu.dot_dimension_numbers<[1], [0], [0], [1], [0, 0, 1, 1], [], []>} : vector<8x128xbf16>, vector<128x128xbf16>, vector<8x128xf32> -> vector<8x128xf32>
    %329 = arith.addf %328, %27 : vector<8x128xf32>
    %cst_112 = arith.constant dense<0xFF800000> : vector<8xf32>
    %330 = vector.multi_reduction <maximumf>, %329, %cst_112 [1] : vector<8x128xf32> to vector<8xf32>
    %331 = vector.shape_cast %330 : vector<8xf32> to vector<8x1xf32>
    %332 = vector.broadcast %331 : vector<8x1xf32> to vector<8x128xf32>
    %333 = arith.subf %329, %332 : vector<8x128xf32>
    %334 = math.exp %333 : vector<8x128xf32>
    %cst_113 = arith.constant dense<0.000000e+00> : vector<8xf32>
    %335 = vector.multi_reduction <add>, %334, %cst_113 [1] : vector<8x128xf32> to vector<8xf32>
    %336 = vector.shape_cast %335 : vector<8xf32> to vector<8x1xf32>
    %337 = tpu.reciprocal %336 {approx = true} : vector<8x1xf32> -> vector<8x1xf32>
    %338 = arith.mulf %336, %337 : vector<8x1xf32>
    %cst_114 = arith.constant 2.000000e+00 : f32
    %339 = vector.broadcast %cst_114 : f32 to vector<8x1xf32>
    %340 = arith.subf %339, %338 : vector<8x1xf32>
    %341 = arith.mulf %337, %340 : vector<8x1xf32>
    %342 = vector.broadcast %341 : vector<8x1xf32> to vector<8x128xf32>
    %343 = arith.mulf %334, %342 : vector<8x128xf32>
    %344 = arith.truncf %343 : vector<8x128xf32> to vector<8x128xbf16>
    %345 = arith.index_cast %c4_i32 : i32 to index
    %c0_115 = arith.constant 0 : index
    %c0_116 = arith.constant 0 : index
    %346 = vector.load %arg12[%345, %c0_115, %c0_116] : memref<8x8x128xbf16, #tpu.memory_space<vmem>>, vector<1x8x128xbf16>
    %347 = vector.shape_cast %346 : vector<1x8x128xbf16> to vector<8x128xbf16>
    %348 = vector.shape_cast %344 : vector<8x128xbf16> to vector<1x8x128xbf16>
    tpu.vector_store %arg12[%345, %c0_115, %c0_116], %348 {strides = array<i32>} : memref<8x8x128xbf16, #tpu.memory_space<vmem>>, vector<1x8x128xbf16>,
    %349 = arith.extf %318 : vector<8x128xbf16> to vector<8x128xf32>
    %350 = arith.mulf %343, %349 : vector<8x128xf32>
    %351 = arith.truncf %350 : vector<8x128xf32> to vector<8x128xbf16>
    %cst_117 = arith.constant dense<0.000000e+00> : vector<8x512xf32>
    %352 = tpu.matmul %351, %7, %cst_117 {dimension_numbers = #tpu.dot_dimension_numbers<[1], [0], [0], [1], [0, 0, 1, 1], [], []>} : vector<8x128xbf16>, vector<128x512xbf16>, vector<8x512xf32> -> vector<8x512xf32>
    %cst_118 = arith.constant dense<0.000000e+00> : vector<8x512xf32>
    %353 = tpu.matmul %314, %8, %cst_118 {dimension_numbers = #tpu.dot_dimension_numbers<[1], [0], [0], [1], [0, 0, 1, 1], [], []>} : vector<8x128xbf16>, vector<128x512xbf16>, vector<8x512xf32> -> vector<8x512xf32>
    %354 = arith.addf %352, %353 : vector<8x512xf32>
    %355 = arith.addf %354, %19 : vector<8x512xf32>
    %356 = vector.extract_strided_slice %355 {offsets = [0, 0], sizes = [8, 128], strides = [1, 1]} : vector<8x512xf32> to vector<8x128xf32>
    %357 = arith.negf %356 : vector<8x128xf32>
    %358 = math.exp %357 : vector<8x128xf32>
    %cst_119 = arith.constant 1.000000e+00 : f32
    %359 = vector.broadcast %cst_119 : f32 to vector<8x128xf32>
    %360 = arith.addf %359, %358 : vector<8x128xf32>
    %361 = arith.divf %359, %360 : vector<8x128xf32>
    %362 = vector.extract_strided_slice %355 {offsets = [0, 128], sizes = [8, 128], strides = [1, 1]} : vector<8x512xf32> to vector<8x128xf32>
    %363 = arith.negf %362 : vector<8x128xf32>
    %364 = math.exp %363 : vector<8x128xf32>
    %cst_120 = arith.constant 1.000000e+00 : f32
    %365 = vector.broadcast %cst_120 : f32 to vector<8x128xf32>
    %366 = arith.addf %365, %364 : vector<8x128xf32>
    %367 = arith.divf %365, %366 : vector<8x128xf32>
    %368 = vector.extract_strided_slice %355 {offsets = [0, 256], sizes = [8, 128], strides = [1, 1]} : vector<8x512xf32> to vector<8x128xf32>
    %369 = math.tanh %368 : vector<8x128xf32>
    %370 = vector.extract_strided_slice %355 {offsets = [0, 384], sizes = [8, 128], strides = [1, 1]} : vector<8x512xf32> to vector<8x128xf32>
    %371 = arith.negf %370 : vector<8x128xf32>
    %372 = math.exp %371 : vector<8x128xf32>
    %cst_121 = arith.constant 1.000000e+00 : f32
    %373 = vector.broadcast %cst_121 : f32 to vector<8x128xf32>
    %374 = arith.addf %373, %372 : vector<8x128xf32>
    %375 = arith.divf %373, %374 : vector<8x128xf32>
    %376 = arith.mulf %367, %307 : vector<8x128xf32>
    %377 = arith.mulf %361, %369 : vector<8x128xf32>
    %378 = arith.addf %376, %377 : vector<8x128xf32>
    %379 = math.tanh %378 : vector<8x128xf32>
    %380 = arith.mulf %375, %379 : vector<8x128xf32>
    %381 = arith.index_cast %c4_i32 : i32 to index
    %c0_122 = arith.constant 0 : index
    %c0_123 = arith.constant 0 : index
    %382 = vector.load %arg11[%381, %c0_122, %c0_123] : memref<8x8x128xf32, #tpu.memory_space<vmem>>, vector<1x8x128xf32>
    %383 = vector.shape_cast %382 : vector<1x8x128xf32> to vector<8x128xf32>
    %384 = vector.shape_cast %380 : vector<8x128xf32> to vector<1x8x128xf32>
    tpu.vector_store %arg11[%381, %c0_122, %c0_123], %384 {strides = array<i32>} : memref<8x8x128xf32, #tpu.memory_space<vmem>>, vector<1x8x128xf32>,
    %c5_i32 = arith.constant 5 : i32
    %385 = arith.truncf %380 : vector<8x128xf32> to vector<8x128xbf16>
    %386 = arith.truncf %378 : vector<8x128xf32> to vector<8x128xbf16>
    %387 = arith.index_cast %c5_i32 : i32 to index
    %c0_124 = arith.constant 0 : index
    %c0_125 = arith.constant 0 : index
    %388 = vector.load %arg2[%387, %c0_124, %c0_125] : memref<8x8x128xbf16, #tpu.memory_space<vmem>>, vector<1x8x128xbf16>
    %389 = vector.shape_cast %388 : vector<1x8x128xbf16> to vector<8x128xbf16>
    %390 = arith.index_cast %c5_i32 : i32 to index
    %c0_126 = arith.constant 0 : index
    %c0_127 = arith.constant 0 : index
    %391 = vector.load %arg15[%390, %c0_126, %c0_127] : memref<8x8x128xf32, #tpu.memory_space<vmem>>, vector<1x8x128xf32>
    %392 = vector.shape_cast %391 : vector<1x8x128xf32> to vector<8x128xf32>
    %cst_128 = arith.constant dense<0.000000e+00> : vector<8x128xf32>
    %393 = tpu.matmul %385, %4, %cst_128 {dimension_numbers = #tpu.dot_dimension_numbers<[1], [0], [0], [1], [0, 0, 1, 1], [], []>} : vector<8x128xbf16>, vector<128x128xbf16>, vector<8x128xf32> -> vector<8x128xf32>
    %394 = arith.addf %392, %393 : vector<8x128xf32>
    %cst_129 = arith.constant dense<0.000000e+00> : vector<8x128xf32>
    %395 = tpu.matmul %386, %5, %cst_129 {dimension_numbers = #tpu.dot_dimension_numbers<[1], [0], [0], [1], [0, 0, 1, 1], [], []>} : vector<8x128xbf16>, vector<128x128xbf16>, vector<8x128xf32> -> vector<8x128xf32>
    %396 = arith.addf %394, %395 : vector<8x128xf32>
    %397 = math.tanh %396 : vector<8x128xf32>
    %398 = arith.truncf %397 : vector<8x128xf32> to vector<8x128xbf16>
    %cst_130 = arith.constant dense<0.000000e+00> : vector<8x128xf32>
    %399 = tpu.matmul %398, %6, %cst_130 {dimension_numbers = #tpu.dot_dimension_numbers<[1], [0], [0], [1], [0, 0, 1, 1], [], []>} : vector<8x128xbf16>, vector<128x128xbf16>, vector<8x128xf32> -> vector<8x128xf32>
    %400 = arith.addf %399, %27 : vector<8x128xf32>
    %cst_131 = arith.constant dense<0xFF800000> : vector<8xf32>
    %401 = vector.multi_reduction <maximumf>, %400, %cst_131 [1] : vector<8x128xf32> to vector<8xf32>
    %402 = vector.shape_cast %401 : vector<8xf32> to vector<8x1xf32>
    %403 = vector.broadcast %402 : vector<8x1xf32> to vector<8x128xf32>
    %404 = arith.subf %400, %403 : vector<8x128xf32>
    %405 = math.exp %404 : vector<8x128xf32>
    %cst_132 = arith.constant dense<0.000000e+00> : vector<8xf32>
    %406 = vector.multi_reduction <add>, %405, %cst_132 [1] : vector<8x128xf32> to vector<8xf32>
    %407 = vector.shape_cast %406 : vector<8xf32> to vector<8x1xf32>
    %408 = tpu.reciprocal %407 {approx = true} : vector<8x1xf32> -> vector<8x1xf32>
    %409 = arith.mulf %407, %408 : vector<8x1xf32>
    %cst_133 = arith.constant 2.000000e+00 : f32
    %410 = vector.broadcast %cst_133 : f32 to vector<8x1xf32>
    %411 = arith.subf %410, %409 : vector<8x1xf32>
    %412 = arith.mulf %408, %411 : vector<8x1xf32>
    %413 = vector.broadcast %412 : vector<8x1xf32> to vector<8x128xf32>
    %414 = arith.mulf %405, %413 : vector<8x128xf32>
    %415 = arith.truncf %414 : vector<8x128xf32> to vector<8x128xbf16>
    %416 = arith.index_cast %c5_i32 : i32 to index
    %c0_134 = arith.constant 0 : index
    %c0_135 = arith.constant 0 : index
    %417 = vector.load %arg12[%416, %c0_134, %c0_135] : memref<8x8x128xbf16, #tpu.memory_space<vmem>>, vector<1x8x128xbf16>
    %418 = vector.shape_cast %417 : vector<1x8x128xbf16> to vector<8x128xbf16>
    %419 = vector.shape_cast %415 : vector<8x128xbf16> to vector<1x8x128xbf16>
    tpu.vector_store %arg12[%416, %c0_134, %c0_135], %419 {strides = array<i32>} : memref<8x8x128xbf16, #tpu.memory_space<vmem>>, vector<1x8x128xbf16>,
    %420 = arith.extf %389 : vector<8x128xbf16> to vector<8x128xf32>
    %421 = arith.mulf %414, %420 : vector<8x128xf32>
    %422 = arith.truncf %421 : vector<8x128xf32> to vector<8x128xbf16>
    %cst_136 = arith.constant dense<0.000000e+00> : vector<8x512xf32>
    %423 = tpu.matmul %422, %7, %cst_136 {dimension_numbers = #tpu.dot_dimension_numbers<[1], [0], [0], [1], [0, 0, 1, 1], [], []>} : vector<8x128xbf16>, vector<128x512xbf16>, vector<8x512xf32> -> vector<8x512xf32>
    %cst_137 = arith.constant dense<0.000000e+00> : vector<8x512xf32>
    %424 = tpu.matmul %385, %8, %cst_137 {dimension_numbers = #tpu.dot_dimension_numbers<[1], [0], [0], [1], [0, 0, 1, 1], [], []>} : vector<8x128xbf16>, vector<128x512xbf16>, vector<8x512xf32> -> vector<8x512xf32>
    %425 = arith.addf %423, %424 : vector<8x512xf32>
    %426 = arith.addf %425, %19 : vector<8x512xf32>
    %427 = vector.extract_strided_slice %426 {offsets = [0, 0], sizes = [8, 128], strides = [1, 1]} : vector<8x512xf32> to vector<8x128xf32>
    %428 = arith.negf %427 : vector<8x128xf32>
    %429 = math.exp %428 : vector<8x128xf32>
    %cst_138 = arith.constant 1.000000e+00 : f32
    %430 = vector.broadcast %cst_138 : f32 to vector<8x128xf32>
    %431 = arith.addf %430, %429 : vector<8x128xf32>
    %432 = arith.divf %430, %431 : vector<8x128xf32>
    %433 = vector.extract_strided_slice %426 {offsets = [0, 128], sizes = [8, 128], strides = [1, 1]} : vector<8x512xf32> to vector<8x128xf32>
    %434 = arith.negf %433 : vector<8x128xf32>
    %435 = math.exp %434 : vector<8x128xf32>
    %cst_139 = arith.constant 1.000000e+00 : f32
    %436 = vector.broadcast %cst_139 : f32 to vector<8x128xf32>
    %437 = arith.addf %436, %435 : vector<8x128xf32>
    %438 = arith.divf %436, %437 : vector<8x128xf32>
    %439 = vector.extract_strided_slice %426 {offsets = [0, 256], sizes = [8, 128], strides = [1, 1]} : vector<8x512xf32> to vector<8x128xf32>
    %440 = math.tanh %439 : vector<8x128xf32>
    %441 = vector.extract_strided_slice %426 {offsets = [0, 384], sizes = [8, 128], strides = [1, 1]} : vector<8x512xf32> to vector<8x128xf32>
    %442 = arith.negf %441 : vector<8x128xf32>
    %443 = math.exp %442 : vector<8x128xf32>
    %cst_140 = arith.constant 1.000000e+00 : f32
    %444 = vector.broadcast %cst_140 : f32 to vector<8x128xf32>
    %445 = arith.addf %444, %443 : vector<8x128xf32>
    %446 = arith.divf %444, %445 : vector<8x128xf32>
    %447 = arith.mulf %438, %378 : vector<8x128xf32>
    %448 = arith.mulf %432, %440 : vector<8x128xf32>
    %449 = arith.addf %447, %448 : vector<8x128xf32>
    %450 = math.tanh %449 : vector<8x128xf32>
    %451 = arith.mulf %446, %450 : vector<8x128xf32>
    %452 = arith.index_cast %c5_i32 : i32 to index
    %c0_141 = arith.constant 0 : index
    %c0_142 = arith.constant 0 : index
    %453 = vector.load %arg11[%452, %c0_141, %c0_142] : memref<8x8x128xf32, #tpu.memory_space<vmem>>, vector<1x8x128xf32>
    %454 = vector.shape_cast %453 : vector<1x8x128xf32> to vector<8x128xf32>
    %455 = vector.shape_cast %451 : vector<8x128xf32> to vector<1x8x128xf32>
    tpu.vector_store %arg11[%452, %c0_141, %c0_142], %455 {strides = array<i32>} : memref<8x8x128xf32, #tpu.memory_space<vmem>>, vector<1x8x128xf32>,
    %c6_i32 = arith.constant 6 : i32
    %456 = arith.truncf %451 : vector<8x128xf32> to vector<8x128xbf16>
    %457 = arith.truncf %449 : vector<8x128xf32> to vector<8x128xbf16>
    %458 = arith.index_cast %c6_i32 : i32 to index
    %c0_143 = arith.constant 0 : index
    %c0_144 = arith.constant 0 : index
    %459 = vector.load %arg2[%458, %c0_143, %c0_144] : memref<8x8x128xbf16, #tpu.memory_space<vmem>>, vector<1x8x128xbf16>
    %460 = vector.shape_cast %459 : vector<1x8x128xbf16> to vector<8x128xbf16>
    %461 = arith.index_cast %c6_i32 : i32 to index
    %c0_145 = arith.constant 0 : index
    %c0_146 = arith.constant 0 : index
    %462 = vector.load %arg15[%461, %c0_145, %c0_146] : memref<8x8x128xf32, #tpu.memory_space<vmem>>, vector<1x8x128xf32>
    %463 = vector.shape_cast %462 : vector<1x8x128xf32> to vector<8x128xf32>
    %cst_147 = arith.constant dense<0.000000e+00> : vector<8x128xf32>
    %464 = tpu.matmul %456, %4, %cst_147 {dimension_numbers = #tpu.dot_dimension_numbers<[1], [0], [0], [1], [0, 0, 1, 1], [], []>} : vector<8x128xbf16>, vector<128x128xbf16>, vector<8x128xf32> -> vector<8x128xf32>
    %465 = arith.addf %463, %464 : vector<8x128xf32>
    %cst_148 = arith.constant dense<0.000000e+00> : vector<8x128xf32>
    %466 = tpu.matmul %457, %5, %cst_148 {dimension_numbers = #tpu.dot_dimension_numbers<[1], [0], [0], [1], [0, 0, 1, 1], [], []>} : vector<8x128xbf16>, vector<128x128xbf16>, vector<8x128xf32> -> vector<8x128xf32>
    %467 = arith.addf %465, %466 : vector<8x128xf32>
    %468 = math.tanh %467 : vector<8x128xf32>
    %469 = arith.truncf %468 : vector<8x128xf32> to vector<8x128xbf16>
    %cst_149 = arith.constant dense<0.000000e+00> : vector<8x128xf32>
    %470 = tpu.matmul %469, %6, %cst_149 {dimension_numbers = #tpu.dot_dimension_numbers<[1], [0], [0], [1], [0, 0, 1, 1], [], []>} : vector<8x128xbf16>, vector<128x128xbf16>, vector<8x128xf32> -> vector<8x128xf32>
    %471 = arith.addf %470, %27 : vector<8x128xf32>
    %cst_150 = arith.constant dense<0xFF800000> : vector<8xf32>
    %472 = vector.multi_reduction <maximumf>, %471, %cst_150 [1] : vector<8x128xf32> to vector<8xf32>
    %473 = vector.shape_cast %472 : vector<8xf32> to vector<8x1xf32>
    %474 = vector.broadcast %473 : vector<8x1xf32> to vector<8x128xf32>
    %475 = arith.subf %471, %474 : vector<8x128xf32>
    %476 = math.exp %475 : vector<8x128xf32>
    %cst_151 = arith.constant dense<0.000000e+00> : vector<8xf32>
    %477 = vector.multi_reduction <add>, %476, %cst_151 [1] : vector<8x128xf32> to vector<8xf32>
    %478 = vector.shape_cast %477 : vector<8xf32> to vector<8x1xf32>
    %479 = tpu.reciprocal %478 {approx = true} : vector<8x1xf32> -> vector<8x1xf32>
    %480 = arith.mulf %478, %479 : vector<8x1xf32>
    %cst_152 = arith.constant 2.000000e+00 : f32
    %481 = vector.broadcast %cst_152 : f32 to vector<8x1xf32>
    %482 = arith.subf %481, %480 : vector<8x1xf32>
    %483 = arith.mulf %479, %482 : vector<8x1xf32>
    %484 = vector.broadcast %483 : vector<8x1xf32> to vector<8x128xf32>
    %485 = arith.mulf %476, %484 : vector<8x128xf32>
    %486 = arith.truncf %485 : vector<8x128xf32> to vector<8x128xbf16>
    %487 = arith.index_cast %c6_i32 : i32 to index
    %c0_153 = arith.constant 0 : index
    %c0_154 = arith.constant 0 : index
    %488 = vector.load %arg12[%487, %c0_153, %c0_154] : memref<8x8x128xbf16, #tpu.memory_space<vmem>>, vector<1x8x128xbf16>
    %489 = vector.shape_cast %488 : vector<1x8x128xbf16> to vector<8x128xbf16>
    %490 = vector.shape_cast %486 : vector<8x128xbf16> to vector<1x8x128xbf16>
    tpu.vector_store %arg12[%487, %c0_153, %c0_154], %490 {strides = array<i32>} : memref<8x8x128xbf16, #tpu.memory_space<vmem>>, vector<1x8x128xbf16>,
    %491 = arith.extf %460 : vector<8x128xbf16> to vector<8x128xf32>
    %492 = arith.mulf %485, %491 : vector<8x128xf32>
    %493 = arith.truncf %492 : vector<8x128xf32> to vector<8x128xbf16>
    %cst_155 = arith.constant dense<0.000000e+00> : vector<8x512xf32>
    %494 = tpu.matmul %493, %7, %cst_155 {dimension_numbers = #tpu.dot_dimension_numbers<[1], [0], [0], [1], [0, 0, 1, 1], [], []>} : vector<8x128xbf16>, vector<128x512xbf16>, vector<8x512xf32> -> vector<8x512xf32>
    %cst_156 = arith.constant dense<0.000000e+00> : vector<8x512xf32>
    %495 = tpu.matmul %456, %8, %cst_156 {dimension_numbers = #tpu.dot_dimension_numbers<[1], [0], [0], [1], [0, 0, 1, 1], [], []>} : vector<8x128xbf16>, vector<128x512xbf16>, vector<8x512xf32> -> vector<8x512xf32>
    %496 = arith.addf %494, %495 : vector<8x512xf32>
    %497 = arith.addf %496, %19 : vector<8x512xf32>
    %498 = vector.extract_strided_slice %497 {offsets = [0, 0], sizes = [8, 128], strides = [1, 1]} : vector<8x512xf32> to vector<8x128xf32>
    %499 = arith.negf %498 : vector<8x128xf32>
    %500 = math.exp %499 : vector<8x128xf32>
    %cst_157 = arith.constant 1.000000e+00 : f32
    %501 = vector.broadcast %cst_157 : f32 to vector<8x128xf32>
    %502 = arith.addf %501, %500 : vector<8x128xf32>
    %503 = arith.divf %501, %502 : vector<8x128xf32>
    %504 = vector.extract_strided_slice %497 {offsets = [0, 128], sizes = [8, 128], strides = [1, 1]} : vector<8x512xf32> to vector<8x128xf32>
    %505 = arith.negf %504 : vector<8x128xf32>
    %506 = math.exp %505 : vector<8x128xf32>
    %cst_158 = arith.constant 1.000000e+00 : f32
    %507 = vector.broadcast %cst_158 : f32 to vector<8x128xf32>
    %508 = arith.addf %507, %506 : vector<8x128xf32>
    %509 = arith.divf %507, %508 : vector<8x128xf32>
    %510 = vector.extract_strided_slice %497 {offsets = [0, 256], sizes = [8, 128], strides = [1, 1]} : vector<8x512xf32> to vector<8x128xf32>
    %511 = math.tanh %510 : vector<8x128xf32>
    %512 = vector.extract_strided_slice %497 {offsets = [0, 384], sizes = [8, 128], strides = [1, 1]} : vector<8x512xf32> to vector<8x128xf32>
    %513 = arith.negf %512 : vector<8x128xf32>
    %514 = math.exp %513 : vector<8x128xf32>
    %cst_159 = arith.constant 1.000000e+00 : f32
    %515 = vector.broadcast %cst_159 : f32 to vector<8x128xf32>
    %516 = arith.addf %515, %514 : vector<8x128xf32>
    %517 = arith.divf %515, %516 : vector<8x128xf32>
    %518 = arith.mulf %509, %449 : vector<8x128xf32>
    %519 = arith.mulf %503, %511 : vector<8x128xf32>
    %520 = arith.addf %518, %519 : vector<8x128xf32>
    %521 = math.tanh %520 : vector<8x128xf32>
    %522 = arith.mulf %517, %521 : vector<8x128xf32>
    %523 = arith.index_cast %c6_i32 : i32 to index
    %c0_160 = arith.constant 0 : index
    %c0_161 = arith.constant 0 : index
    %524 = vector.load %arg11[%523, %c0_160, %c0_161] : memref<8x8x128xf32, #tpu.memory_space<vmem>>, vector<1x8x128xf32>
    %525 = vector.shape_cast %524 : vector<1x8x128xf32> to vector<8x128xf32>
    %526 = vector.shape_cast %522 : vector<8x128xf32> to vector<1x8x128xf32>
    tpu.vector_store %arg11[%523, %c0_160, %c0_161], %526 {strides = array<i32>} : memref<8x8x128xf32, #tpu.memory_space<vmem>>, vector<1x8x128xf32>,
    %c7_i32 = arith.constant 7 : i32
    %527 = arith.truncf %522 : vector<8x128xf32> to vector<8x128xbf16>
    %528 = arith.truncf %520 : vector<8x128xf32> to vector<8x128xbf16>
    %529 = arith.index_cast %c7_i32 : i32 to index
    %c0_162 = arith.constant 0 : index
    %c0_163 = arith.constant 0 : index
    %530 = vector.load %arg2[%529, %c0_162, %c0_163] : memref<8x8x128xbf16, #tpu.memory_space<vmem>>, vector<1x8x128xbf16>
    %531 = vector.shape_cast %530 : vector<1x8x128xbf16> to vector<8x128xbf16>
    %532 = arith.index_cast %c7_i32 : i32 to index
    %c0_164 = arith.constant 0 : index
    %c0_165 = arith.constant 0 : index
    %533 = vector.load %arg15[%532, %c0_164, %c0_165] : memref<8x8x128xf32, #tpu.memory_space<vmem>>, vector<1x8x128xf32>
    %534 = vector.shape_cast %533 : vector<1x8x128xf32> to vector<8x128xf32>
    %cst_166 = arith.constant dense<0.000000e+00> : vector<8x128xf32>
    %535 = tpu.matmul %527, %4, %cst_166 {dimension_numbers = #tpu.dot_dimension_numbers<[1], [0], [0], [1], [0, 0, 1, 1], [], []>} : vector<8x128xbf16>, vector<128x128xbf16>, vector<8x128xf32> -> vector<8x128xf32>
    %536 = arith.addf %534, %535 : vector<8x128xf32>
    %cst_167 = arith.constant dense<0.000000e+00> : vector<8x128xf32>
    %537 = tpu.matmul %528, %5, %cst_167 {dimension_numbers = #tpu.dot_dimension_numbers<[1], [0], [0], [1], [0, 0, 1, 1], [], []>} : vector<8x128xbf16>, vector<128x128xbf16>, vector<8x128xf32> -> vector<8x128xf32>
    %538 = arith.addf %536, %537 : vector<8x128xf32>
    %539 = math.tanh %538 : vector<8x128xf32>
    %540 = arith.truncf %539 : vector<8x128xf32> to vector<8x128xbf16>
    %cst_168 = arith.constant dense<0.000000e+00> : vector<8x128xf32>
    %541 = tpu.matmul %540, %6, %cst_168 {dimension_numbers = #tpu.dot_dimension_numbers<[1], [0], [0], [1], [0, 0, 1, 1], [], []>} : vector<8x128xbf16>, vector<128x128xbf16>, vector<8x128xf32> -> vector<8x128xf32>
    %542 = arith.addf %541, %27 : vector<8x128xf32>
    %cst_169 = arith.constant dense<0xFF800000> : vector<8xf32>
    %543 = vector.multi_reduction <maximumf>, %542, %cst_169 [1] : vector<8x128xf32> to vector<8xf32>
    %544 = vector.shape_cast %543 : vector<8xf32> to vector<8x1xf32>
    %545 = vector.broadcast %544 : vector<8x1xf32> to vector<8x128xf32>
    %546 = arith.subf %542, %545 : vector<8x128xf32>
    %547 = math.exp %546 : vector<8x128xf32>
    %cst_170 = arith.constant dense<0.000000e+00> : vector<8xf32>
    %548 = vector.multi_reduction <add>, %547, %cst_170 [1] : vector<8x128xf32> to vector<8xf32>
    %549 = vector.shape_cast %548 : vector<8xf32> to vector<8x1xf32>
    %550 = tpu.reciprocal %549 {approx = true} : vector<8x1xf32> -> vector<8x1xf32>
    %551 = arith.mulf %549, %550 : vector<8x1xf32>
    %cst_171 = arith.constant 2.000000e+00 : f32
    %552 = vector.broadcast %cst_171 : f32 to vector<8x1xf32>
    %553 = arith.subf %552, %551 : vector<8x1xf32>
    %554 = arith.mulf %550, %553 : vector<8x1xf32>
    %555 = vector.broadcast %554 : vector<8x1xf32> to vector<8x128xf32>
    %556 = arith.mulf %547, %555 : vector<8x128xf32>
    %557 = arith.truncf %556 : vector<8x128xf32> to vector<8x128xbf16>
    %558 = arith.index_cast %c7_i32 : i32 to index
    %c0_172 = arith.constant 0 : index
    %c0_173 = arith.constant 0 : index
    %559 = vector.load %arg12[%558, %c0_172, %c0_173] : memref<8x8x128xbf16, #tpu.memory_space<vmem>>, vector<1x8x128xbf16>
    %560 = vector.shape_cast %559 : vector<1x8x128xbf16> to vector<8x128xbf16>
    %561 = vector.shape_cast %557 : vector<8x128xbf16> to vector<1x8x128xbf16>
    tpu.vector_store %arg12[%558, %c0_172, %c0_173], %561 {strides = array<i32>} : memref<8x8x128xbf16, #tpu.memory_space<vmem>>, vector<1x8x128xbf16>,
    %562 = arith.extf %531 : vector<8x128xbf16> to vector<8x128xf32>
    %563 = arith.mulf %556, %562 : vector<8x128xf32>
    %564 = arith.truncf %563 : vector<8x128xf32> to vector<8x128xbf16>
    %cst_174 = arith.constant dense<0.000000e+00> : vector<8x512xf32>
    %565 = tpu.matmul %564, %7, %cst_174 {dimension_numbers = #tpu.dot_dimension_numbers<[1], [0], [0], [1], [0, 0, 1, 1], [], []>} : vector<8x128xbf16>, vector<128x512xbf16>, vector<8x512xf32> -> vector<8x512xf32>
    %cst_175 = arith.constant dense<0.000000e+00> : vector<8x512xf32>
    %566 = tpu.matmul %527, %8, %cst_175 {dimension_numbers = #tpu.dot_dimension_numbers<[1], [0], [0], [1], [0, 0, 1, 1], [], []>} : vector<8x128xbf16>, vector<128x512xbf16>, vector<8x512xf32> -> vector<8x512xf32>
    %567 = arith.addf %565, %566 : vector<8x512xf32>
    %568 = arith.addf %567, %19 : vector<8x512xf32>
    %569 = vector.extract_strided_slice %568 {offsets = [0, 0], sizes = [8, 128], strides = [1, 1]} : vector<8x512xf32> to vector<8x128xf32>
    %570 = arith.negf %569 : vector<8x128xf32>
    %571 = math.exp %570 : vector<8x128xf32>
    %cst_176 = arith.constant 1.000000e+00 : f32
    %572 = vector.broadcast %cst_176 : f32 to vector<8x128xf32>
    %573 = arith.addf %572, %571 : vector<8x128xf32>
    %574 = arith.divf %572, %573 : vector<8x128xf32>
    %575 = vector.extract_strided_slice %568 {offsets = [0, 128], sizes = [8, 128], strides = [1, 1]} : vector<8x512xf32> to vector<8x128xf32>
    %576 = arith.negf %575 : vector<8x128xf32>
    %577 = math.exp %576 : vector<8x128xf32>
    %cst_177 = arith.constant 1.000000e+00 : f32
    %578 = vector.broadcast %cst_177 : f32 to vector<8x128xf32>
    %579 = arith.addf %578, %577 : vector<8x128xf32>
    %580 = arith.divf %578, %579 : vector<8x128xf32>
    %581 = vector.extract_strided_slice %568 {offsets = [0, 256], sizes = [8, 128], strides = [1, 1]} : vector<8x512xf32> to vector<8x128xf32>
    %582 = math.tanh %581 : vector<8x128xf32>
    %583 = vector.extract_strided_slice %568 {offsets = [0, 384], sizes = [8, 128], strides = [1, 1]} : vector<8x512xf32> to vector<8x128xf32>
    %584 = arith.negf %583 : vector<8x128xf32>
    %585 = math.exp %584 : vector<8x128xf32>
    %cst_178 = arith.constant 1.000000e+00 : f32
    %586 = vector.broadcast %cst_178 : f32 to vector<8x128xf32>
    %587 = arith.addf %586, %585 : vector<8x128xf32>
    %588 = arith.divf %586, %587 : vector<8x128xf32>
    %589 = arith.mulf %580, %520 : vector<8x128xf32>
    %590 = arith.mulf %574, %582 : vector<8x128xf32>
    %591 = arith.addf %589, %590 : vector<8x128xf32>
    %592 = math.tanh %591 : vector<8x128xf32>
    %593 = arith.mulf %588, %592 : vector<8x128xf32>
    %594 = arith.index_cast %c7_i32 : i32 to index
    %c0_179 = arith.constant 0 : index
    %c0_180 = arith.constant 0 : index
    %595 = vector.load %arg11[%594, %c0_179, %c0_180] : memref<8x8x128xf32, #tpu.memory_space<vmem>>, vector<1x8x128xf32>
    %596 = vector.shape_cast %595 : vector<1x8x128xf32> to vector<8x128xf32>
    %597 = vector.shape_cast %593 : vector<8x128xf32> to vector<1x8x128xf32>
    tpu.vector_store %arg11[%594, %c0_179, %c0_180], %597 {strides = array<i32>} : memref<8x8x128xf32, #tpu.memory_space<vmem>>, vector<1x8x128xf32>,
    %c8_i32 = arith.constant 8 : i32
    %c0_181 = arith.constant 0 : index
    %c0_182 = arith.constant 0 : index
    %598 = vector.load %arg13[%c0_181, %c0_182] : memref<8x128xf32, #tpu.memory_space<vmem>>, vector<8x128xf32>
    tpu.vector_store %arg13[%c0_181, %c0_182], %593 {strides = array<i32>} : memref<8x128xf32, #tpu.memory_space<vmem>>, vector<8x128xf32>,
    %c0_183 = arith.constant 0 : index
    %c0_184 = arith.constant 0 : index
    %599 = vector.load %arg14[%c0_183, %c0_184] : memref<8x128xf32, #tpu.memory_space<vmem>>, vector<8x128xf32>
    tpu.vector_store %arg14[%c0_183, %c0_184], %591 {strides = array<i32>} : memref<8x128xf32, #tpu.memory_space<vmem>>, vector<8x128xf32>,
    return
  }
  func.func @transform_0(%arg0: i32, %arg1: i32) -> (i32, i32, i32) {
    %c0_i32 = arith.constant 0 : i32
    %c0_i32_0 = arith.constant 0 : i32
    return %arg1, %arg0, %c0_i32 : i32, i32, i32
  }
  func.func @transform_1(%arg0: i32, %arg1: i32) -> (i32, i32) {
    %c0_i32 = arith.constant 0 : i32
    %c0_i32_0 = arith.constant 0 : i32
    %c0_i32_1 = arith.constant 0 : i32
    return %c0_i32, %c0_i32_0 : i32, i32
  }
  func.func @transform_2(%arg0: i32, %arg1: i32) -> (i32, i32) {
    %c0_i32 = arith.constant 0 : i32
    %c0_i32_0 = arith.constant 0 : i32
    %c0_i32_1 = arith.constant 0 : i32
    return %c0_i32, %c0_i32_0 : i32, i32
  }
  func.func @transform_3(%arg0: i32, %arg1: i32) -> (i32, i32) {
    %c0_i32 = arith.constant 0 : i32
    %c0_i32_0 = arith.constant 0 : i32
    %c0_i32_1 = arith.constant 0 : i32
    return %c0_i32, %c0_i32_0 : i32, i32
  }
  func.func @transform_4(%arg0: i32, %arg1: i32) -> (i32, i32) {
    %c0_i32 = arith.constant 0 : i32
    %c0_i32_0 = arith.constant 0 : i32
    %c0_i32_1 = arith.constant 0 : i32
    return %c0_i32, %c0_i32_0 : i32, i32
  }
  func.func @transform_5(%arg0: i32, %arg1: i32) -> (i32, i32) {
    %c0_i32 = arith.constant 0 : i32
    %c0_i32_0 = arith.constant 0 : i32
    %c0_i32_1 = arith.constant 0 : i32
    return %c0_i32, %c0_i32_0 : i32, i32
  }
  func.func @transform_6(%arg0: i32, %arg1: i32) -> (i32, i32) {
    %c0_i32 = arith.constant 0 : i32
    %c0_i32_0 = arith.constant 0 : i32
    %c0_i32_1 = arith.constant 0 : i32
    return %c0_i32, %c0_i32_0 : i32, i32
  }
  func.func @transform_7(%arg0: i32, %arg1: i32) -> (i32, i32) {
    %c0_i32 = arith.constant 0 : i32
    %c0_i32_0 = arith.constant 0 : i32
    %c0_i32_1 = arith.constant 0 : i32
    return %c0_i32, %c0_i32_0 : i32, i32
  }
  func.func @transform_8(%arg0: i32, %arg1: i32) -> (i32, i32) {
    %c0_i32 = arith.constant 0 : i32
    %c0_i32_0 = arith.constant 0 : i32
    %c0_i32_1 = arith.constant 0 : i32
    return %c0_i32, %c0_i32_0 : i32, i32
  }
  func.func @transform_9(%arg0: i32, %arg1: i32) -> (i32, i32, i32) {
    %c0_i32 = arith.constant 0 : i32
    %c0_i32_0 = arith.constant 0 : i32
    return %arg1, %arg0, %c0_i32 : i32, i32, i32
  }
  func.func @transform_10(%arg0: i32, %arg1: i32) -> (i32, i32, i32) {
    %c0_i32 = arith.constant 0 : i32
    %c0_i32_0 = arith.constant 0 : i32
    return %arg1, %arg0, %c0_i32 : i32, i32, i32
  }
  func.func @transform_11(%arg0: i32, %arg1: i32) -> (i32, i32) {
    %c0_i32 = arith.constant 0 : i32
    %c0_i32_0 = arith.constant 0 : i32
    return %arg0, %c0_i32 : i32, i32
  }
  func.func @transform_12(%arg0: i32, %arg1: i32) -> (i32, i32) {
    %c0_i32 = arith.constant 0 : i32
    %c0_i32_0 = arith.constant 0 : i32
    return %arg0, %c0_i32 : i32, i32
  }
}

</mosaic_0001>

<llo_original>
// kernel: tpu_custom_call.1
$region0: #{tpu_custom_call.1}
  #allocation0 [shape = 'u32[]', space=smem, size = 0x4, offset = 0x4, fixed_abs, tag = 'smem constant byte address 0x4 - core index']
  #allocation1 [shape = 'u32[72,128]{1,0:T(1,128)}', space=vmem, size = 0x9000, scoped, tag = 'internal scratch']
  #allocation2 [shape = 'f32[8,8,128]{2,1,0:T(8,128)}', space=vmem, size = 0x8000, scoped, tag = 'scratch operand']
  %s0 = inlined_call_operand.hbm [shape: bf16[8,8,128], index: 0, kind: input, shape index: {}]
  %s1 = inlined_call_operand.hbm [shape: bf16[128,128], index: 1, kind: input, shape index: {}]
  %s2 = inlined_call_operand.hbm [shape: bf16[128,128], index: 2, kind: input, shape index: {}]
  %s3 = inlined_call_operand.hbm [shape: bf16[128,128], index: 3, kind: input, shape index: {}]
  %s4 = inlined_call_operand.vmem [shape: f32[1,128], index: 4, kind: input, shape index: {}]
  %s5 = inlined_call_operand.hbm [shape: bf16[128,128], index: 5, kind: input, shape index: {}]
  %s6 = inlined_call_operand.hbm [shape: bf16[128,512], index: 6, kind: input, shape index: {}]
  %s7 = inlined_call_operand.hbm [shape: bf16[128,512], index: 7, kind: input, shape index: {}]
  %s8 = inlined_call_operand.vmem [shape: f32[1,512], index: 8, kind: input, shape index: {}]
  %s9 = inlined_call_operand.hbm [shape: f32[8,8,128], index: 9, kind: output, shape index: {0}]
  %s10 = inlined_call_operand.hbm [shape: bf16[8,8,128], index: 10, kind: output, shape index: {1}]
  %s11 = inlined_call_operand.hbm [shape: f32[8,128], index: 11, kind: output, shape index: {2}]
  %s12 = inlined_call_operand.hbm [shape: f32[8,128], index: 12, kind: output, shape index: {3}]
  %13 = xla_tuple %s9, %s10, %s11, %s12
  %s14 = sld [smem:[#allocation0]]
  $region102: #{tpu_custom_call.1} parent=0
    _
  %s16 = ssub.s32 1, %s14
  %s17 = scalar_select 0, %s16, %s14
  $region1: #{tpu_custom_call.1} parent=0
    #allocation3 [shape = 'u8[16384]{0}', space=vmem, size = 0x4000, scoped, tag = 'input window, operand 0, single buffered']
    #allocation4 [shape = 's32[1]{0}', space=sflag, size = 0x4, scoped, tag = 'scoped memory for tpu_custom_call.1']
    #allocation5 [shape = 's32[1]{0}', space=sflag, size = 0x4, scoped, tag = 'scoped memory for tpu_custom_call.1']
    #allocation6 [shape = 'u8[32768]{0}', space=vmem, size = 0x8000, scoped, tag = 'input window, operand 1, single buffered']
    #allocation7 [shape = 's32[1]{0}', space=sflag, size = 0x4, scoped, tag = 'scoped memory for tpu_custom_call.1']
    #allocation8 [shape = 'u8[32768]{0}', space=vmem, size = 0x8000, scoped, tag = 'input window, operand 2, single buffered']
    #allocation9 [shape = 'u8[32768]{0}', space=vmem, size = 0x8000, scoped, tag = 'input window, operand 3, single buffered']
    #allocation10 [shape = 's32[1]{0}', space=sflag, size = 0x4, scoped, tag = 'scoped memory for tpu_custom_call.1']
    #allocation11 [shape = 'u8[32768]{0}', space=vmem, size = 0x8000, scoped, tag = 'input window, operand 5, single buffered']
    #allocation12 [shape = 'u8[131072]{0}', space=vmem, size = 0x20000, scoped, tag = 'input window, operand 6, single buffered']
    #allocation13 [shape = 's32[1]{0}', space=sflag, size = 0x4, scoped, tag = 'scoped memory for tpu_custom_call.1']
    #allocation14 [shape = 'u8[131072]{0}', space=vmem, size = 0x20000, scoped, tag = 'input window, operand 7, single buffered']
    #allocation15 [shape = 'u8[32768]{0}', space=vmem, size = 0x8000, scoped, tag = 'output window, operand 0, single buffered']
    #allocation16 [shape = 'u8[16384]{0}', space=vmem, size = 0x4000, scoped, tag = 'output window, operand 1, single buffered']
    #allocation17 [shape = 's32[1]{0}', space=sflag, size = 0x4, scoped, tag = 'scoped memory for tpu_custom_call.1']
    #allocation18 [shape = 'u8[4096]{0}', space=vmem, size = 0x1000, scoped, tag = 'output window, operand 2, single buffered']
    #allocation19 [shape = 'u8[4096]{0}', space=vmem, size = 0x1000, scoped, tag = 'output window, operand 3, single buffered']
    #allocation20 [shape = 's32[1]{0}', space=sflag, size = 0x4, scoped, tag = 'scoped memory for tpu_custom_call.1']
    %18 = vsyncpa [#allocation4], 0
    %19 = vsyncpa [#allocation7], 0
    %20 = vsyncpa [#allocation10], 0
    %21 = vsyncpa [#allocation13], 0
    %22 = vsyncpa [#allocation5], 0
    %23 = vsyncpa [#allocation17], 0
    %24 = vsyncpa [#allocation20], 0
    // Predicated region
    $region2: #{tpu_custom_call.1} parent=1 // pred_check
      _
    $region3: #{tpu_custom_call.1} parent=1 // pred_check_branch
      %26 = sbr.rel (0) target = $region5
    $region4: #{tpu_custom_call.1} parent=1 // pred_region
      %28 = vsyncadd [#allocation4], 0
      %s29 = sshll.u32 %s0, 4
      %s30 = int_to_ptr.hbm [resolvable:$true] %s29
      %s31 = sshll.u32 [#allocation3], 4
      %s32 = int_to_ptr.vmem [resolvable:$true] %s31
      %37 = dma.hbm_to_vmem [thread:$0]  %s30, 512, %s32, [#allocation4], 64, 64, 4
    $region5: #{tpu_custom_call.1} parent=1 // pred_fallthru
      _
    // Predicated region
    $region6: #{tpu_custom_call.1} parent=1 // pred_check
      _
    $region7: #{tpu_custom_call.1} parent=1 // pred_check_branch
      %39 = sbr.rel (0) target = $region9
    $region8: #{tpu_custom_call.1} parent=1 // pred_region
      %41 = vsyncadd [#allocation7], 0
      %s42 = sshll.u32 %s1, 4
      %s43 = int_to_ptr.hbm [resolvable:$true] %s42
      %s44 = sshll.u32 [#allocation6], 4
      %s45 = int_to_ptr.vmem [resolvable:$true] %s44
      %50 = dma.hbm_to_vmem [thread:$0]  %s43, 1024, %s45, [#allocation7], 64, 64, 4
    $region9: #{tpu_custom_call.1} parent=1 // pred_fallthru
      _
    // Predicated region
    $region10: #{tpu_custom_call.1} parent=1 // pred_check
      _
    $region11: #{tpu_custom_call.1} parent=1 // pred_check_branch
      %52 = sbr.rel (0) target = $region13
    $region12: #{tpu_custom_call.1} parent=1 // pred_region
      %54 = vsyncadd [#allocation7], 0
      %s55 = sshll.u32 %s2, 4
      %s56 = int_to_ptr.hbm [resolvable:$true] %s55
      %s57 = sshll.u32 [#allocation8], 4
      %s58 = int_to_ptr.vmem [resolvable:$true] %s57
      %63 = dma.hbm_to_vmem [thread:$0]  %s56, 1024, %s58, [#allocation7], 64, 64, 4
    $region13: #{tpu_custom_call.1} parent=1 // pred_fallthru
      _
    // Predicated region
    $region14: #{tpu_custom_call.1} parent=1 // pred_check
      _
    $region15: #{tpu_custom_call.1} parent=1 // pred_check_branch
      %65 = sbr.rel (0) target = $region17
    $region16: #{tpu_custom_call.1} parent=1 // pred_region
      %67 = vsyncadd [#allocation10], 0
      %s68 = sshll.u32 %s3, 4
      %s69 = int_to_ptr.hbm [resolvable:$true] %s68
      %s70 = sshll.u32 [#allocation9], 4
      %s71 = int_to_ptr.vmem [resolvable:$true] %s70
      %76 = dma.hbm_to_vmem [thread:$0]  %s69, 1024, %s71, [#allocation10], 64, 64, 4
    $region17: #{tpu_custom_call.1} parent=1 // pred_fallthru
      _
    // Predicated region
    $region18: #{tpu_custom_call.1} parent=1 // pred_check
      _
    $region19: #{tpu_custom_call.1} parent=1 // pred_check_branch
      %78 = sbr.rel (0) target = $region21
    $region20: #{tpu_custom_call.1} parent=1 // pred_region
      _
    $region21: #{tpu_custom_call.1} parent=1 // pred_fallthru
      _
    // Predicated region
    $region22: #{tpu_custom_call.1} parent=1 // pred_check
      _
    $region23: #{tpu_custom_call.1} parent=1 // pred_check_branch
      %80 = sbr.rel (0) target = $region25
    $region24: #{tpu_custom_call.1} parent=1 // pred_region
      %82 = vsyncadd [#allocation10], 0
      %s83 = sshll.u32 %s5, 4
      %s84 = int_to_ptr.hbm [resolvable:$true] %s83
      %s85 = sshll.u32 [#allocation11], 4
      %s86 = int_to_ptr.vmem [resolvable:$true] %s85
      %91 = dma.hbm_to_vmem [thread:$0]  %s84, 1024, %s86, [#allocation10], 64, 64, 4
    $region25: #{tpu_custom_call.1} parent=1 // pred_fallthru
      _
    // Predicated region
    $region26: #{tpu_custom_call.1} parent=1 // pred_check
      _
    $region27: #{tpu_custom_call.1} parent=1 // pred_check_branch
      %93 = sbr.rel (0) target = $region29
    $region28: #{tpu_custom_call.1} parent=1 // pred_region
      %95 = vsyncadd [#allocation13], 0
      %s96 = sshll.u32 %s6, 4
      %s97 = int_to_ptr.hbm [resolvable:$true] %s96
      %s98 = sshll.u32 [#allocation12], 4
      %s99 = int_to_ptr.vmem [resolvable:$true] %s98
      %104 = dma.hbm_to_vmem [thread:$0]  %s97, 4096, %s99, [#allocation13], 256, 256, 16
    $region29: #{tpu_custom_call.1} parent=1 // pred_fallthru
      _
    // Predicated region
    $region30: #{tpu_custom_call.1} parent=1 // pred_check
      _
    $region31: #{tpu_custom_call.1} parent=1 // pred_check_branch
      %106 = sbr.rel (0) target = $region33
    $region32: #{tpu_custom_call.1} parent=1 // pred_region
      %108 = vsyncadd [#allocation13], 0
      %s109 = sshll.u32 %s7, 4
      %s110 = int_to_ptr.hbm [resolvable:$true] %s109
      %s111 = sshll.u32 [#allocation14], 4
      %s112 = int_to_ptr.vmem [resolvable:$true] %s111
      %117 = dma.hbm_to_vmem [thread:$0]  %s110, 4096, %s112, [#allocation13], 256, 256, 16
    $region33: #{tpu_custom_call.1} parent=1 // pred_fallthru
      _
    // Predicated region
    $region34: #{tpu_custom_call.1} parent=1 // pred_check
      _
    $region35: #{tpu_custom_call.1} parent=1 // pred_check_branch
      %119 = sbr.rel (0) target = $region37
    $region36: #{tpu_custom_call.1} parent=1 // pred_region
      _
    $region37: #{tpu_custom_call.1} parent=1 // pred_fallthru
      _
    // Predicated region
    $region38: #{tpu_custom_call.1} parent=1 // pred_check
      _
    $region39: #{tpu_custom_call.1} parent=1 // pred_check_branch
      %121 = sbr.rel (0) target = $region41
    $region40: #{tpu_custom_call.1} parent=1 // pred_region
      %123 = dma.done [#allocation4], 512
    $region41: #{tpu_custom_call.1} parent=1 // pred_fallthru
      _
    // Predicated region
    $region42: #{tpu_custom_call.1} parent=1 // pred_check
      _
    $region43: #{tpu_custom_call.1} parent=1 // pred_check_branch
      %125 = sbr.rel (0) target = $region45
    $region44: #{tpu_custom_call.1} parent=1 // pred_region
      %127 = dma.done [#allocation7], 1024
    $region45: #{tpu_custom_call.1} parent=1 // pred_fallthru
      _
    // Predicated region
    $region46: #{tpu_custom_call.1} parent=1 // pred_check
      _
    $region47: #{tpu_custom_call.1} parent=1 // pred_check_branch
      %129 = sbr.rel (0) target = $region49
    $region48: #{tpu_custom_call.1} parent=1 // pred_region
      %131 = dma.done [#allocation7], 1024
    $region49: #{tpu_custom_call.1} parent=1 // pred_fallthru
      _
    // Predicated region
    $region50: #{tpu_custom_call.1} parent=1 // pred_check
      _
    $region51: #{tpu_custom_call.1} parent=1 // pred_check_branch
      %133 = sbr.rel (0) target = $region53
    $region52: #{tpu_custom_call.1} parent=1 // pred_region
      %135 = dma.done [#allocation10], 1024
    $region53: #{tpu_custom_call.1} parent=1 // pred_fallthru
      _
    // Predicated region
    $region54: #{tpu_custom_call.1} parent=1 // pred_check
      _
    $region55: #{tpu_custom_call.1} parent=1 // pred_check_branch
      %137 = sbr.rel (0) target = $region57
    $region56: #{tpu_custom_call.1} parent=1 // pred_region
      %139 = dma.done [#allocation10], 1024
    $region57: #{tpu_custom_call.1} parent=1 // pred_fallthru
      _
    // Predicated region
    $region58: #{tpu_custom_call.1} parent=1 // pred_check
      _
    $region59: #{tpu_custom_call.1} parent=1 // pred_check_branch
      %141 = sbr.rel (0) target = $region61
    $region60: #{tpu_custom_call.1} parent=1 // pred_region
      %143 = dma.done [#allocation13], 4096
    $region61: #{tpu_custom_call.1} parent=1 // pred_fallthru
      _
    // Predicated region
    $region62: #{tpu_custom_call.1} parent=1 // pred_check
      _
    $region63: #{tpu_custom_call.1} parent=1 // pred_check_branch
      %145 = sbr.rel (0) target = $region65
    $region64: #{tpu_custom_call.1} parent=1 // pred_region
      %147 = dma.done [#allocation13], 4096
    $region65: #{tpu_custom_call.1} parent=1 // pred_fallthru
      _
    %p148 = scmp.eq.s32.totalorder 0, 0
    // Predicated region
    $region66: #{tpu_custom_call.1} parent=1 // pred_check
      %p149 = pneg %p148
    $region67: #{tpu_custom_call.1} parent=1 // pred_check_branch
      %151 = sbr.rel (%p149) target = $region69
    $region68: #{tpu_custom_call.1} parent=1 // pred_region
      %152 = vst [vmem:[#allocation18] sm:$0xff] 0.0
      %153 = vst [vmem:[#allocation19] sm:$0xff] 0.0
    $region69: #{tpu_custom_call.1} parent=1 // pred_fallthru
      _
    %v154 = vld [vmem:[#allocation6] sm:$0xf]
    %v155 = vld [vmem:[#allocation6 + $0x4] sm:$0xf]
    %v156 = vld [vmem:[#allocation6 + $0x8] sm:$0xf]
    %v157 = vld [vmem:[#allocation6 + $0xc] sm:$0xf]
    %v158 = vld [vmem:[#allocation6 + $0x10] sm:$0xf]
    %v159 = vld [vmem:[#allocation6 + $0x14] sm:$0xf]
    %v160 = vld [vmem:[#allocation6 + $0x18] sm:$0xf]
    %v161 = vld [vmem:[#allocation6 + $0x1c] sm:$0xf]
    %v162 = vld [vmem:[#allocation6 + $0x20] sm:$0xf]
    %v163 = vld [vmem:[#allocation6 + $0x24] sm:$0xf]
    %v164 = vld [vmem:[#allocation6 + $0x28] sm:$0xf]
    %v165 = vld [vmem:[#allocation6 + $0x2c] sm:$0xf]
    %v166 = vld [vmem:[#allocation6 + $0x30] sm:$0xf]
    %v167 = vld [vmem:[#allocation6 + $0x34] sm:$0xf]
    %v168 = vld [vmem:[#allocation6 + $0x38] sm:$0xf]
    %v169 = vld [vmem:[#allocation6 + $0x3c] sm:$0xf]
    %v170 = vld [vmem:[#allocation8] sm:$0xf]
    %v171 = vld [vmem:[#allocation8 + $0x4] sm:$0xf]
    %v172 = vld [vmem:[#allocation8 + $0x8] sm:$0xf]
    %v173 = vld [vmem:[#allocation8 + $0xc] sm:$0xf]
    %v174 = vld [vmem:[#allocation8 + $0x10] sm:$0xf]
    %v175 = vld [vmem:[#allocation8 + $0x14] sm:$0xf]
    %v176 = vld [vmem:[#allocation8 + $0x18] sm:$0xf]
    %v177 = vld [vmem:[#allocation8 + $0x1c] sm:$0xf]
    %v178 = vld [vmem:[#allocation8 + $0x20] sm:$0xf]
    %v179 = vld [vmem:[#allocation8 + $0x24] sm:$0xf]
    %v180 = vld [vmem:[#allocation8 + $0x28] sm:$0xf]
    %v181 = vld [vmem:[#allocation8 + $0x2c] sm:$0xf]
    %v182 = vld [vmem:[#allocation8 + $0x30] sm:$0xf]
    %v183 = vld [vmem:[#allocation8 + $0x34] sm:$0xf]
    %v184 = vld [vmem:[#allocation8 + $0x38] sm:$0xf]
    %v185 = vld [vmem:[#allocation8 + $0x3c] sm:$0xf]
    %v186 = vld [vmem:[#allocation9] sm:$0xf]
    %v187 = vld [vmem:[#allocation9 + $0x4] sm:$0xf]
    %v188 = vld [vmem:[#allocation9 + $0x8] sm:$0xf]
    %v189 = vld [vmem:[#allocation9 + $0xc] sm:$0xf]
    %v190 = vld [vmem:[#allocation9 + $0x10] sm:$0xf]
    %v191 = vld [vmem:[#allocation9 + $0x14] sm:$0xf]
    %v192 = vld [vmem:[#allocation9 + $0x18] sm:$0xf]
    %v193 = vld [vmem:[#allocation9 + $0x1c] sm:$0xf]
    %v194 = vld [vmem:[#allocation9 + $0x20] sm:$0xf]
    %v195 = vld [vmem:[#allocation9 + $0x24] sm:$0xf]
    %v196 = vld [vmem:[#allocation9 + $0x28] sm:$0xf]
    %v197 = vld [vmem:[#allocation9 + $0x2c] sm:$0xf]
    %v198 = vld [vmem:[#allocation9 + $0x30] sm:$0xf]
    %v199 = vld [vmem:[#allocation9 + $0x34] sm:$0xf]
    %v200 = vld [vmem:[#allocation9 + $0x38] sm:$0xf]
    %v201 = vld [vmem:[#allocation9 + $0x3c] sm:$0xf]
    %v202 = vld [vmem:[#allocation11] sm:$0xf]
    %v203 = vld [vmem:[#allocation11 + $0x4] sm:$0xf]
    %v204 = vld [vmem:[#allocation11 + $0x8] sm:$0xf]
    %v205 = vld [vmem:[#allocation11 + $0xc] sm:$0xf]
    %v206 = vld [vmem:[#allocation11 + $0x10] sm:$0xf]
    %v207 = vld [vmem:[#allocation11 + $0x14] sm:$0xf]
    %v208 = vld [vmem:[#allocation11 + $0x18] sm:$0xf]
    %v209 = vld [vmem:[#allocation11 + $0x1c] sm:$0xf]
    %v210 = vld [vmem:[#allocation11 + $0x20] sm:$0xf]
    %v211 = vld [vmem:[#allocation11 + $0x24] sm:$0xf]
    %v212 = vld [vmem:[#allocation11 + $0x28] sm:$0xf]
    %v213 = vld [vmem:[#allocation11 + $0x2c] sm:$0xf]
    %v214 = vld [vmem:[#allocation11 + $0x30] sm:$0xf]
    %v215 = vld [vmem:[#allocation11 + $0x34] sm:$0xf]
    %v216 = vld [vmem:[#allocation11 + $0x38] sm:$0xf]
    %v217 = vld [vmem:[#allocation11 + $0x3c] sm:$0xf]
    %v218 = vld [vmem:[#allocation12] sm:$0xff]
    %v219 = vld [vmem:[#allocation12 + $0x8] sm:$0xff]
    %v220 = vld [vmem:[#allocation12 + $0x10] sm:$0xff]
    %v221 = vld [vmem:[#allocation12 + $0x18] sm:$0xff]
    %v222 = vld [vmem:[#allocation12 + $0x20] sm:$0xff]
    %v223 = vld [vmem:[#allocation12 + $0x28] sm:$0xff]
    %v224 = vld [vmem:[#allocation12 + $0x30] sm:$0xff]
    %v225 = vld [vmem:[#allocation12 + $0x38] sm:$0xff]
    %v226 = vld [vmem:[#allocation12 + $0x40] sm:$0xff]
    %v227 = vld [vmem:[#allocation12 + $0x48] sm:$0xff]
    %v228 = vld [vmem:[#allocation12 + $0x50] sm:$0xff]
    %v229 = vld [vmem:[#allocation12 + $0x58] sm:$0xff]
    %v230 = vld [vmem:[#allocation12 + $0x60] sm:$0xff]
    %v231 = vld [vmem:[#allocation12 + $0x68] sm:$0xff]
    %v232 = vld [vmem:[#allocation12 + $0x70] sm:$0xff]
    %v233 = vld [vmem:[#allocation12 + $0x78] sm:$0xff]
    %v234 = vld [vmem:[#allocation12 + $0x80] sm:$0xff]
    %v235 = vld [vmem:[#allocation12 + $0x88] sm:$0xff]
    %v236 = vld [vmem:[#allocation12 + $0x90] sm:$0xff]
    %v237 = vld [vmem:[#allocation12 + $0x98] sm:$0xff]
    %v238 = vld [vmem:[#allocation12 + $0xa0] sm:$0xff]
    %v239 = vld [vmem:[#allocation12 + $0xa8] sm:$0xff]
    %v240 = vld [vmem:[#allocation12 + $0xb0] sm:$0xff]
    %v241 = vld [vmem:[#allocation12 + $0xb8] sm:$0xff]
    %v242 = vld [vmem:[#allocation12 + $0xc0] sm:$0xff]
    %v243 = vld [vmem:[#allocation12 + $0xc8] sm:$0xff]
    %v244 = vld [vmem:[#allocation12 + $0xd0] sm:$0xff]
    %v245 = vld [vmem:[#allocation12 + $0xd8] sm:$0xff]
    %v246 = vld [vmem:[#allocation12 + $0xe0] sm:$0xff]
    %v247 = vld [vmem:[#allocation12 + $0xe8] sm:$0xff]
    %v248 = vld [vmem:[#allocation12 + $0xf0] sm:$0xff]
    %v249 = vld [vmem:[#allocation12 + $0xf8] sm:$0xff]
    %v250 = vld [vmem:[#allocation14] sm:$0xff]
    %v251 = vld [vmem:[#allocation14 + $0x8] sm:$0xff]
    %v252 = vld [vmem:[#allocation14 + $0x10] sm:$0xff]
    %v253 = vld [vmem:[#allocation14 + $0x18] sm:$0xff]
    %v254 = vld [vmem:[#allocation14 + $0x20] sm:$0xff]
    %v255 = vld [vmem:[#allocation14 + $0x28] sm:$0xff]
    %v256 = vld [vmem:[#allocation14 + $0x30] sm:$0xff]
    %v257 = vld [vmem:[#allocation14 + $0x38] sm:$0xff]
    %v258 = vld [vmem:[#allocation14 + $0x40] sm:$0xff]
    %v259 = vld [vmem:[#allocation14 + $0x48] sm:$0xff]
    %v260 = vld [vmem:[#allocation14 + $0x50] sm:$0xff]
    %v261 = vld [vmem:[#allocation14 + $0x58] sm:$0xff]
    %v262 = vld [vmem:[#allocation14 + $0x60] sm:$0xff]
    %v263 = vld [vmem:[#allocation14 + $0x68] sm:$0xff]
    %v264 = vld [vmem:[#allocation14 + $0x70] sm:$0xff]
    %v265 = vld [vmem:[#allocation14 + $0x78] sm:$0xff]
    %v266 = vld [vmem:[#allocation14 + $0x80] sm:$0xff]
    %v267 = vld [vmem:[#allocation14 + $0x88] sm:$0xff]
    %v268 = vld [vmem:[#allocation14 + $0x90] sm:$0xff]
    %v269 = vld [vmem:[#allocation14 + $0x98] sm:$0xff]
    %v270 = vld [vmem:[#allocation14 + $0xa0] sm:$0xff]
    %v271 = vld [vmem:[#allocation14 + $0xa8] sm:$0xff]
    %v272 = vld [vmem:[#allocation14 + $0xb0] sm:$0xff]
    %v273 = vld [vmem:[#allocation14 + $0xb8] sm:$0xff]
    %v274 = vld [vmem:[#allocation14 + $0xc0] sm:$0xff]
    %v275 = vld [vmem:[#allocation14 + $0xc8] sm:$0xff]
    %v276 = vld [vmem:[#allocation14 + $0xd0] sm:$0xff]
    %v277 = vld [vmem:[#allocation14 + $0xd8] sm:$0xff]
    %v278 = vld [vmem:[#allocation14 + $0xe0] sm:$0xff]
    %v279 = vld [vmem:[#allocation14 + $0xe8] sm:$0xff]
    %v280 = vld [vmem:[#allocation14 + $0xf0] sm:$0xff]
    %v281 = vld [vmem:[#allocation14 + $0xf8] sm:$0xff]
    %v282 = vld [vmem:[#allocation3] sm:$0xf]
    %v283 = vld [vmem:[#allocation3 + $0x4] sm:$0xf]
    %v284 = vld [vmem:[#allocation3 + $0x8] sm:$0xf]
    %v285 = vld [vmem:[#allocation3 + $0xc] sm:$0xf]
    %v286 = vld [vmem:[#allocation3 + $0x10] sm:$0xf]
    %v287 = vld [vmem:[#allocation3 + $0x14] sm:$0xf]
    %v288 = vld [vmem:[#allocation3 + $0x18] sm:$0xf]
    %v289 = vld [vmem:[#allocation3 + $0x1c] sm:$0xf]
    %v290 = vld [vmem:[%s4] sm:$0x1]
    %v292 = vperm.slane %v290, 0
    %v302 = vunpack.c.l.b16 %v282
    %v303 = vunpack.c.l.b16 %v283
    %v304 = vunpack.c.l.b16 %v284
    %v305 = vunpack.c.l.b16 %v285
    %v306 = vunpack.c.l.b16 %v286
    %v307 = vunpack.c.l.b16 %v287
    %v308 = vunpack.c.l.b16 %v288
    %v309 = vunpack.c.l.b16 %v289
    %v310 = vpack.c.b16 %v303, %v302
    %v311 = vpack.c.b16 %v305, %v304
    %v312 = vpack.c.b16 %v307, %v306
    %v313 = vpack.c.b16 %v309, %v308
    %v334 = vunpack.c.l.b16 %v154
    %v335 = vunpack.c.l.b16 %v155
    %v336 = vunpack.c.l.b16 %v156
    %v337 = vunpack.c.l.b16 %v157
    %v338 = vunpack.c.l.b16 %v158
    %v339 = vunpack.c.l.b16 %v159
    %v340 = vunpack.c.l.b16 %v160
    %v341 = vunpack.c.l.b16 %v161
    %v342 = vunpack.c.l.b16 %v162
    %v343 = vunpack.c.l.b16 %v163
    %v344 = vunpack.c.l.b16 %v164
    %v345 = vunpack.c.l.b16 %v165
    %v346 = vunpack.c.l.b16 %v166
    %v347 = vunpack.c.l.b16 %v167
    %v348 = vunpack.c.l.b16 %v168
    %v349 = vunpack.c.l.b16 %v169
    %v350 = vpack.c.b16 %v335, %v334
    %v351 = vpack.c.b16 %v337, %v336
    %v352 = vpack.c.b16 %v339, %v338
    %v353 = vpack.c.b16 %v341, %v340
    %v354 = vpack.c.b16 %v343, %v342
    %v355 = vpack.c.b16 %v345, %v344
    %v356 = vpack.c.b16 %v347, %v346
    %v357 = vpack.c.b16 %v349, %v348
    %366 = vmatpush.bf16.msra.mxu0 %v357
    %367 = vmatpush.bf16.msra.mxu0 %v356
    %368 = vmatpush.bf16.msra.mxu0 %v355
    %369 = vmatpush.bf16.msra.mxu0 %v354
    %370 = vmatpush.bf16.msra.mxu0 %v353
    %371 = vmatpush.bf16.msra.mxu0 %v352
    %372 = vmatpush.bf16.msra.mxu0 %v351
    %373 = vmatpush.bf16.msra.mxu0 %v350
    %374 = vmatmul.bf16.gmra.mxu0 %v310
    %v375 = vpop.f32.mrf.mxu0
    %v376 = vadd.f32 %v292, %v375
    %v377 = vpop.f32.mrf.mxu0
    %v378 = vadd.f32 %v292, %v377
    %379 = vmatmul.bf16.gmra.mxu0 %v311
    %v380 = vpop.f32.mrf.mxu0
    %v381 = vadd.f32 %v292, %v380
    %v382 = vpop.f32.mrf.mxu0
    %v383 = vadd.f32 %v292, %v382
    %384 = vmatmul.bf16.gmra.mxu0 %v312
    %v385 = vpop.f32.mrf.mxu0
    %v386 = vadd.f32 %v292, %v385
    %v387 = vpop.f32.mrf.mxu0
    %v388 = vadd.f32 %v292, %v387
    %389 = vmatmul.bf16.gmra.mxu0 %v313
    %v390 = vpop.f32.mrf.mxu0
    %v391 = vadd.f32 %v292, %v390
    %v392 = vpop.f32.mrf.mxu0
    %v393 = vadd.f32 %v292, %v392
    %394 = vdwg.mxu0
    %395 = vst [vmem:[#allocation2] sm:$0xff] %v376
    %396 = vst [vmem:[#allocation2 + $0x8] sm:$0xff] %v378
    %397 = vst [vmem:[#allocation2 + $0x10] sm:$0xff] %v381
    %398 = vst [vmem:[#allocation2 + $0x18] sm:$0xff] %v383
    %399 = vst [vmem:[#allocation2 + $0x20] sm:$0xff] %v386
    %400 = vst [vmem:[#allocation2 + $0x28] sm:$0xff] %v388
    %401 = vst [vmem:[#allocation2 + $0x30] sm:$0xff] %v391
    %402 = vst [vmem:[#allocation2 + $0x38] sm:$0xff] %v393
    %v403 = vld [vmem:[%s8] sm:$0xf]
    %v405 = vperm.slane %v403, 0
    %v406 = vperm.slane %v403, 1
    %v407 = vperm.slane %v403, 2
    %v408 = vperm.slane %v403, 3
    %v413 = vlaneseq
    %v414 = vand.u32 %v413, 127
    %vm415 = vcmp.lt.s32.totalorder %v414, 16
    %v416 = vsel %vm415, 0.0, -1e+30
    %v417 = vld [vmem:[#allocation18] sm:$0xff]
    %v418 = vld [vmem:[#allocation19] sm:$0xff]
    %v419 = vpack.c.bf16 %v417, %v417
    %v420 = vpack.c.bf16 %v418, %v418
    %v421 = vld [vmem:[#allocation3] sm:$0xf]
    %v422 = vld [vmem:[#allocation2] sm:$0xff]
    %v439 = vunpack.c.l.b16 %v170
    %v440 = vunpack.c.l.b16 %v171
    %v441 = vunpack.c.l.b16 %v172
    %v442 = vunpack.c.l.b16 %v173
    %v443 = vunpack.c.l.b16 %v174
    %v444 = vunpack.c.l.b16 %v175
    %v445 = vunpack.c.l.b16 %v176
    %v446 = vunpack.c.l.b16 %v177
    %v447 = vunpack.c.l.b16 %v178
    %v448 = vunpack.c.l.b16 %v179
    %v449 = vunpack.c.l.b16 %v180
    %v450 = vunpack.c.l.b16 %v181
    %v451 = vunpack.c.l.b16 %v182
    %v452 = vunpack.c.l.b16 %v183
    %v453 = vunpack.c.l.b16 %v184
    %v454 = vunpack.c.l.b16 %v185
    %v455 = vpack.c.b16 %v440, %v439
    %v456 = vpack.c.b16 %v442, %v441
    %v457 = vpack.c.b16 %v444, %v443
    %v458 = vpack.c.b16 %v446, %v445
    %v459 = vpack.c.b16 %v448, %v447
    %v460 = vpack.c.b16 %v450, %v449
    %v461 = vpack.c.b16 %v452, %v451
    %v462 = vpack.c.b16 %v454, %v453
    %471 = vmatpush.bf16.msra.mxu0 %v462
    %472 = vmatpush.bf16.msra.mxu0 %v461
    %473 = vmatpush.bf16.msra.mxu0 %v460
    %474 = vmatpush.bf16.msra.mxu0 %v459
    %475 = vmatpush.bf16.msra.mxu0 %v458
    %476 = vmatpush.bf16.msra.mxu0 %v457
    %477 = vmatpush.bf16.msra.mxu0 %v456
    %478 = vmatpush.bf16.msra.mxu0 %v455
    %479 = vmatmul.bf16.gmra.mxu0 %v419
    %v480 = vpop.f32.mrf.mxu0
    %v481 = vadd.f32 0.0, %v480
    %v482 = vpop.f32.mrf.mxu0
    %483 = vdwg.mxu0
    %v484 = vadd.f32 %v422, %v481
    %v501 = vunpack.c.l.b16 %v186
    %v502 = vunpack.c.l.b16 %v187
    %v503 = vunpack.c.l.b16 %v188
    %v504 = vunpack.c.l.b16 %v189
    %v505 = vunpack.c.l.b16 %v190
    %v506 = vunpack.c.l.b16 %v191
    %v507 = vunpack.c.l.b16 %v192
    %v508 = vunpack.c.l.b16 %v193
    %v509 = vunpack.c.l.b16 %v194
    %v510 = vunpack.c.l.b16 %v195
    %v511 = vunpack.c.l.b16 %v196
    %v512 = vunpack.c.l.b16 %v197
    %v513 = vunpack.c.l.b16 %v198
    %v514 = vunpack.c.l.b16 %v199
    %v515 = vunpack.c.l.b16 %v200
    %v516 = vunpack.c.l.b16 %v201
    %v517 = vpack.c.b16 %v502, %v501
    %v518 = vpack.c.b16 %v504, %v503
    %v519 = vpack.c.b16 %v506, %v505
    %v520 = vpack.c.b16 %v508, %v507
    %v521 = vpack.c.b16 %v510, %v509
    %v522 = vpack.c.b16 %v512, %v511
    %v523 = vpack.c.b16 %v514, %v513
    %v524 = vpack.c.b16 %v516, %v515
    %533 = vmatpush.bf16.msra.mxu0 %v524
    %534 = vmatpush.bf16.msra.mxu0 %v523
    %535 = vmatpush.bf16.msra.mxu0 %v522
    %536 = vmatpush.bf16.msra.mxu0 %v521
    %537 = vmatpush.bf16.msra.mxu0 %v520
    %538 = vmatpush.bf16.msra.mxu0 %v519
    %539 = vmatpush.bf16.msra.mxu0 %v518
    %540 = vmatpush.bf16.msra.mxu0 %v517
    %541 = vmatmul.bf16.gmra.mxu0 %v420
    %v542 = vpop.f32.mrf.mxu0
    %v543 = vadd.f32 0.0, %v542
    %v544 = vpop.f32.mrf.mxu0
    %545 = vdwg.mxu0
    %v546 = vadd.f32 %v484, %v543
    %v547 = vtanh.pop %v546
    %v548 = vpack.c.bf16 %v547, %v547
    %v565 = vunpack.c.l.b16 %v202
    %v566 = vunpack.c.l.b16 %v203
    %v567 = vunpack.c.l.b16 %v204
    %v568 = vunpack.c.l.b16 %v205
    %v569 = vunpack.c.l.b16 %v206
    %v570 = vunpack.c.l.b16 %v207
    %v571 = vunpack.c.l.b16 %v208
    %v572 = vunpack.c.l.b16 %v209
    %v573 = vunpack.c.l.b16 %v210
    %v574 = vunpack.c.l.b16 %v211
    %v575 = vunpack.c.l.b16 %v212
    %v576 = vunpack.c.l.b16 %v213
    %v577 = vunpack.c.l.b16 %v214
    %v578 = vunpack.c.l.b16 %v215
    %v579 = vunpack.c.l.b16 %v216
    %v580 = vunpack.c.l.b16 %v217
    %v581 = vpack.c.b16 %v566, %v565
    %v582 = vpack.c.b16 %v568, %v567
    %v583 = vpack.c.b16 %v570, %v569
    %v584 = vpack.c.b16 %v572, %v571
    %v585 = vpack.c.b16 %v574, %v573
    %v586 = vpack.c.b16 %v576, %v575
    %v587 = vpack.c.b16 %v578, %v577
    %v588 = vpack.c.b16 %v580, %v579
    %597 = vmatpush.bf16.msra.mxu0 %v588
    %598 = vmatpush.bf16.msra.mxu0 %v587
    %599 = vmatpush.bf16.msra.mxu0 %v586
    %600 = vmatpush.bf16.msra.mxu0 %v585
    %601 = vmatpush.bf16.msra.mxu0 %v584
    %602 = vmatpush.bf16.msra.mxu0 %v583
    %603 = vmatpush.bf16.msra.mxu0 %v582
    %604 = vmatpush.bf16.msra.mxu0 %v581
    %605 = vmatmul.bf16.gmra.mxu0 %v548
    %v606 = vpop.f32.mrf.mxu0
    %v607 = vadd.f32 %v416, %v606
    %v608 = vpop.f32.mrf.mxu0
    %609 = vdwg.mxu0
    %610 = vmax.xlane.f32.xlu0 %v607
    %v611 = vpop.xlane.xlu0 %610
    %v612 = vsub.f32 %v607, %v611
    %v613 = vmul.f32 %v612, 1.442695
    %v614 = vpow.pop %v613
    %615 = vadd.xlane.f32.xlu0 %v614
    %v616 = vpop.xlane.xlu0 %615
    %v617 = vrcp.pop %v616
    %v618 = vmul.f32 %v616, %v617
    %v619 = vsub.f32 2.0, %v618
    %v620 = vmul.f32 %v617, %v619
    %v621 = vmul.f32 %v614, %v620
    %v622 = vpack.c.bf16 %v621, %v621
    %623 = vst [vmem:[#allocation16] sm:$0xf] %v622
    %v624 = vunpack.c.l.bf16 %v421
    %v625 = vmul.f32 %v621, %v624
    %v626 = vpack.c.bf16 %v625, %v625
    %v659 = vunpack.c.l.b16 %v250
    %v660 = vunpack.c.h.b16 %v250
    %v661 = vunpack.c.l.b16 %v251
    %v662 = vunpack.c.h.b16 %v251
    %v663 = vunpack.c.l.b16 %v252
    %v664 = vunpack.c.h.b16 %v252
    %v665 = vunpack.c.l.b16 %v253
    %v666 = vunpack.c.h.b16 %v253
    %v667 = vunpack.c.l.b16 %v254
    %v668 = vunpack.c.h.b16 %v254
    %v669 = vunpack.c.l.b16 %v255
    %v670 = vunpack.c.h.b16 %v255
    %v671 = vunpack.c.l.b16 %v256
    %v672 = vunpack.c.h.b16 %v256
    %v673 = vunpack.c.l.b16 %v257
    %v674 = vunpack.c.h.b16 %v257
    %v675 = vunpack.c.l.b16 %v258
    %v676 = vunpack.c.h.b16 %v258
    %v677 = vunpack.c.l.b16 %v259
    %v678 = vunpack.c.h.b16 %v259
    %v679 = vunpack.c.l.b16 %v260
    %v680 = vunpack.c.h.b16 %v260
    %v681 = vunpack.c.l.b16 %v261
    %v682 = vunpack.c.h.b16 %v261
    %v683 = vunpack.c.l.b16 %v262
    %v684 = vunpack.c.h.b16 %v262
    %v685 = vunpack.c.l.b16 %v263
    %v686 = vunpack.c.h.b16 %v263
    %v687 = vunpack.c.l.b16 %v264
    %v688 = vunpack.c.h.b16 %v264
    %v689 = vunpack.c.l.b16 %v265
    %v690 = vunpack.c.h.b16 %v265
    %v691 = vunpack.c.l.b16 %v266
    %v692 = vunpack.c.h.b16 %v266
    %v693 = vunpack.c.l.b16 %v267
    %v694 = vunpack.c.h.b16 %v267
    %v695 = vunpack.c.l.b16 %v268
    %v696 = vunpack.c.h.b16 %v268
    %v697 = vunpack.c.l.b16 %v269
    %v698 = vunpack.c.h.b16 %v269
    %v699 = vunpack.c.l.b16 %v270
    %v700 = vunpack.c.h.b16 %v270
    %v701 = vunpack.c.l.b16 %v271
    %v702 = vunpack.c.h.b16 %v271
    %v703 = vunpack.c.l.b16 %v272
    %v704 = vunpack.c.h.b16 %v272
    %v705 = vunpack.c.l.b16 %v273
    %v706 = vunpack.c.h.b16 %v273
    %v707 = vunpack.c.l.b16 %v274
    %v708 = vunpack.c.h.b16 %v274
    %v709 = vunpack.c.l.b16 %v275
    %v710 = vunpack.c.h.b16 %v275
    %v711 = vunpack.c.l.b16 %v276
    %v712 = vunpack.c.h.b16 %v276
    %v713 = vunpack.c.l.b16 %v277
    %v714 = vunpack.c.h.b16 %v277
    %v715 = vunpack.c.l.b16 %v278
    %v716 = vunpack.c.h.b16 %v278
    %v717 = vunpack.c.l.b16 %v279
    %v718 = vunpack.c.h.b16 %v279
    %v719 = vunpack.c.l.b16 %v280
    %v720 = vunpack.c.h.b16 %v280
    %v721 = vunpack.c.l.b16 %v281
    %v722 = vunpack.c.h.b16 %v281
    %v723 = vpack.c.b16 %v663, %v659
    %v724 = vpack.c.b16 %v664, %v660
    %v725 = vpack.c.b16 %v665, %v661
    %v726 = vpack.c.b16 %v666, %v662
    %v727 = vpack.c.b16 %v671, %v667
    %v728 = vpack.c.b16 %v672, %v668
    %v729 = vpack.c.b16 %v673, %v669
    %v730 = vpack.c.b16 %v674, %v670
    %v731 = vpack.c.b16 %v679, %v675
    %v732 = vpack.c.b16 %v680, %v676
    %v733 = vpack.c.b16 %v681, %v677
    %v734 = vpack.c.b16 %v682, %v678
    %v735 = vpack.c.b16 %v687, %v683
    %v736 = vpack.c.b16 %v688, %v684
    %v737 = vpack.c.b16 %v689, %v685
    %v738 = vpack.c.b16 %v690, %v686
    %v739 = vpack.c.b16 %v695, %v691
    %v740 = vpack.c.b16 %v696, %v692
    %v741 = vpack.c.b16 %v697, %v693
    %v742 = vpack.c.b16 %v698, %v694
    %v743 = vpack.c.b16 %v703, %v699
    %v744 = vpack.c.b16 %v704, %v700
    %v745 = vpack.c.b16 %v705, %v701
    %v746 = vpack.c.b16 %v706, %v702
    %v747 = vpack.c.b16 %v711, %v707
    %v748 = vpack.c.b16 %v712, %v708
    %v749 = vpack.c.b16 %v713, %v709
    %v750 = vpack.c.b16 %v714, %v710
    %v751 = vpack.c.b16 %v719, %v715
    %v752 = vpack.c.b16 %v720, %v716
    %v753 = vpack.c.b16 %v721, %v717
    %v754 = vpack.c.b16 %v722, %v718
    %787 = vmatpush.bf16.msra.mxu0 %v751
    %788 = vmatpush.bf16.msra.mxu0 %v747
    %789 = vmatpush.bf16.msra.mxu0 %v743
    %790 = vmatpush.bf16.msra.mxu0 %v739
    %791 = vmatpush.bf16.msra.mxu0 %v735
    %792 = vmatpush.bf16.msra.mxu0 %v731
    %793 = vmatpush.bf16.msra.mxu0 %v727
    %794 = vmatpush.bf16.msra.mxu0 %v723
    %795 = vmatmul.bf16.gmra.mxu0 %v419
    %v796 = vpop.f32.mrf.mxu0
    %v797 = vadd.f32 0.0, %v796
    %v798 = vpop.f32.mrf.mxu0
    %799 = vdwg.mxu0
    %800 = vmatpush.bf16.msra.mxu0 %v752
    %801 = vmatpush.bf16.msra.mxu0 %v748
    %802 = vmatpush.bf16.msra.mxu0 %v744
    %803 = vmatpush.bf16.msra.mxu0 %v740
    %804 = vmatpush.bf16.msra.mxu0 %v736
    %805 = vmatpush.bf16.msra.mxu0 %v732
    %806 = vmatpush.bf16.msra.mxu0 %v728
    %807 = vmatpush.bf16.msra.mxu0 %v724
    %808 = vmatmul.bf16.gmra.mxu0 %v419
    %v809 = vpop.f32.mrf.mxu0
    %v810 = vadd.f32 0.0, %v809
    %v811 = vpop.f32.mrf.mxu0
    %812 = vdwg.mxu0
    %813 = vmatpush.bf16.msra.mxu0 %v753
    %814 = vmatpush.bf16.msra.mxu0 %v749
    %815 = vmatpush.bf16.msra.mxu0 %v745
    %816 = vmatpush.bf16.msra.mxu0 %v741
    %817 = vmatpush.bf16.msra.mxu0 %v737
    %818 = vmatpush.bf16.msra.mxu0 %v733
    %819 = vmatpush.bf16.msra.mxu0 %v729
    %820 = vmatpush.bf16.msra.mxu0 %v725
    %821 = vmatmul.bf16.gmra.mxu0 %v419
    %v822 = vpop.f32.mrf.mxu0
    %v823 = vadd.f32 0.0, %v822
    %v824 = vpop.f32.mrf.mxu0
    %825 = vdwg.mxu0
    %826 = vmatpush.bf16.msra.mxu0 %v754
    %827 = vmatpush.bf16.msra.mxu0 %v750
    %828 = vmatpush.bf16.msra.mxu0 %v746
    %829 = vmatpush.bf16.msra.mxu0 %v742
    %830 = vmatpush.bf16.msra.mxu0 %v738
    %831 = vmatpush.bf16.msra.mxu0 %v734
    %832 = vmatpush.bf16.msra.mxu0 %v730
    %833 = vmatpush.bf16.msra.mxu0 %v726
    %834 = vmatmul.bf16.gmra.mxu0 %v419
    %v835 = vpop.f32.mrf.mxu0
    %v836 = vadd.f32 0.0, %v835
    %v837 = vpop.f32.mrf.mxu0
    %838 = vdwg.mxu0
    %v871 = vunpack.c.l.b16 %v218
    %v872 = vunpack.c.h.b16 %v218
    %v873 = vunpack.c.l.b16 %v219
    %v874 = vunpack.c.h.b16 %v219
    %v875 = vunpack.c.l.b16 %v220
    %v876 = vunpack.c.h.b16 %v220
    %v877 = vunpack.c.l.b16 %v221
    %v878 = vunpack.c.h.b16 %v221
    %v879 = vunpack.c.l.b16 %v222
    %v880 = vunpack.c.h.b16 %v222
    %v881 = vunpack.c.l.b16 %v223
    %v882 = vunpack.c.h.b16 %v223
    %v883 = vunpack.c.l.b16 %v224
    %v884 = vunpack.c.h.b16 %v224
    %v885 = vunpack.c.l.b16 %v225
    %v886 = vunpack.c.h.b16 %v225
    %v887 = vunpack.c.l.b16 %v226
    %v888 = vunpack.c.h.b16 %v226
    %v889 = vunpack.c.l.b16 %v227
    %v890 = vunpack.c.h.b16 %v227
    %v891 = vunpack.c.l.b16 %v228
    %v892 = vunpack.c.h.b16 %v228
    %v893 = vunpack.c.l.b16 %v229
    %v894 = vunpack.c.h.b16 %v229
    %v895 = vunpack.c.l.b16 %v230
    %v896 = vunpack.c.h.b16 %v230
    %v897 = vunpack.c.l.b16 %v231
    %v898 = vunpack.c.h.b16 %v231
    %v899 = vunpack.c.l.b16 %v232
    %v900 = vunpack.c.h.b16 %v232
    %v901 = vunpack.c.l.b16 %v233
    %v902 = vunpack.c.h.b16 %v233
    %v903 = vunpack.c.l.b16 %v234
    %v904 = vunpack.c.h.b16 %v234
    %v905 = vunpack.c.l.b16 %v235
    %v906 = vunpack.c.h.b16 %v235
    %v907 = vunpack.c.l.b16 %v236
    %v908 = vunpack.c.h.b16 %v236
    %v909 = vunpack.c.l.b16 %v237
    %v910 = vunpack.c.h.b16 %v237
    %v911 = vunpack.c.l.b16 %v238
    %v912 = vunpack.c.h.b16 %v238
    %v913 = vunpack.c.l.b16 %v239
    %v914 = vunpack.c.h.b16 %v239
    %v915 = vunpack.c.l.b16 %v240
    %v916 = vunpack.c.h.b16 %v240
    %v917 = vunpack.c.l.b16 %v241
    %v918 = vunpack.c.h.b16 %v241
    %v919 = vunpack.c.l.b16 %v242
    %v920 = vunpack.c.h.b16 %v242
    %v921 = vunpack.c.l.b16 %v243
    %v922 = vunpack.c.h.b16 %v243
    %v923 = vunpack.c.l.b16 %v244
    %v924 = vunpack.c.h.b16 %v244
    %v925 = vunpack.c.l.b16 %v245
    %v926 = vunpack.c.h.b16 %v245
    %v927 = vunpack.c.l.b16 %v246
    %v928 = vunpack.c.h.b16 %v246
    %v929 = vunpack.c.l.b16 %v247
    %v930 = vunpack.c.h.b16 %v247
    %v931 = vunpack.c.l.b16 %v248
    %v932 = vunpack.c.h.b16 %v248
    %v933 = vunpack.c.l.b16 %v249
    %v934 = vunpack.c.h.b16 %v249
    %v935 = vpack.c.b16 %v875, %v871
    %v936 = vpack.c.b16 %v876, %v872
    %v937 = vpack.c.b16 %v877, %v873
    %v938 = vpack.c.b16 %v878, %v874
    %v939 = vpack.c.b16 %v883, %v879
    %v940 = vpack.c.b16 %v884, %v880
    %v941 = vpack.c.b16 %v885, %v881
    %v942 = vpack.c.b16 %v886, %v882
    %v943 = vpack.c.b16 %v891, %v887
    %v944 = vpack.c.b16 %v892, %v888
    %v945 = vpack.c.b16 %v893, %v889
    %v946 = vpack.c.b16 %v894, %v890
    %v947 = vpack.c.b16 %v899, %v895
    %v948 = vpack.c.b16 %v900, %v896
    %v949 = vpack.c.b16 %v901, %v897
    %v950 = vpack.c.b16 %v902, %v898
    %v951 = vpack.c.b16 %v907, %v903
    %v952 = vpack.c.b16 %v908, %v904
    %v953 = vpack.c.b16 %v909, %v905
    %v954 = vpack.c.b16 %v910, %v906
    %v955 = vpack.c.b16 %v915, %v911
    %v956 = vpack.c.b16 %v916, %v912
    %v957 = vpack.c.b16 %v917, %v913
    %v958 = vpack.c.b16 %v918, %v914
    %v959 = vpack.c.b16 %v923, %v919
    %v960 = vpack.c.b16 %v924, %v920
    %v961 = vpack.c.b16 %v925, %v921
    %v962 = vpack.c.b16 %v926, %v922
    %v963 = vpack.c.b16 %v931, %v927
    %v964 = vpack.c.b16 %v932, %v928
    %v965 = vpack.c.b16 %v933, %v929
    %v966 = vpack.c.b16 %v934, %v930
    %999 = vmatpush.bf16.msra.mxu0 %v963
    %1000 = vmatpush.bf16.msra.mxu0 %v959
    %1001 = vmatpush.bf16.msra.mxu0 %v955
    %1002 = vmatpush.bf16.msra.mxu0 %v951
    %1003 = vmatpush.bf16.msra.mxu0 %v947
    %1004 = vmatpush.bf16.msra.mxu0 %v943
    %1005 = vmatpush.bf16.msra.mxu0 %v939
    %1006 = vmatpush.bf16.msra.mxu0 %v935
    %1007 = vmatmul.bf16.gmra.mxu0 %v626
    %v1008 = vpop.f32.mrf.mxu0
    %v1009 = vadd.f32 %v797, %v1008
    %v1010 = vpop.f32.mrf.mxu0
    %1011 = vdwg.mxu0
    %1012 = vmatpush.bf16.msra.mxu0 %v964
    %1013 = vmatpush.bf16.msra.mxu0 %v960
    %1014 = vmatpush.bf16.msra.mxu0 %v956
    %1015 = vmatpush.bf16.msra.mxu0 %v952
    %1016 = vmatpush.bf16.msra.mxu0 %v948
    %1017 = vmatpush.bf16.msra.mxu0 %v944
    %1018 = vmatpush.bf16.msra.mxu0 %v940
    %1019 = vmatpush.bf16.msra.mxu0 %v936
    %1020 = vmatmul.bf16.gmra.mxu0 %v626
    %v1021 = vpop.f32.mrf.mxu0
    %v1022 = vadd.f32 %v810, %v1021
    %v1023 = vpop.f32.mrf.mxu0
    %1024 = vdwg.mxu0
    %1025 = vmatpush.bf16.msra.mxu0 %v965
    %1026 = vmatpush.bf16.msra.mxu0 %v961
    %1027 = vmatpush.bf16.msra.mxu0 %v957
    %1028 = vmatpush.bf16.msra.mxu0 %v953
    %1029 = vmatpush.bf16.msra.mxu0 %v949
    %1030 = vmatpush.bf16.msra.mxu0 %v945
    %1031 = vmatpush.bf16.msra.mxu0 %v941
    %1032 = vmatpush.bf16.msra.mxu0 %v937
    %1033 = vmatmul.bf16.gmra.mxu0 %v626
    %v1034 = vpop.f32.mrf.mxu0
    %v1035 = vadd.f32 %v823, %v1034
    %v1036 = vpop.f32.mrf.mxu0
    %1037 = vdwg.mxu0
    %1038 = vmatpush.bf16.msra.mxu0 %v966
    %1039 = vmatpush.bf16.msra.mxu0 %v962
    %1040 = vmatpush.bf16.msra.mxu0 %v958
    %1041 = vmatpush.bf16.msra.mxu0 %v954
    %1042 = vmatpush.bf16.msra.mxu0 %v950
    %1043 = vmatpush.bf16.msra.mxu0 %v946
    %1044 = vmatpush.bf16.msra.mxu0 %v942
    %1045 = vmatpush.bf16.msra.mxu0 %v938
    %1046 = vmatmul.bf16.gmra.mxu0 %v626
    %v1047 = vpop.f32.mrf.mxu0
    %v1048 = vadd.f32 %v836, %v1047
    %v1049 = vpop.f32.mrf.mxu0
    %1050 = vdwg.mxu0
    %v1051 = vadd.f32 %v1009, %v405
    %v1052 = vadd.f32 %v1022, %v406
    %v1053 = vadd.f32 %v1035, %v407
    %v1054 = vadd.f32 %v1048, %v408
    %v1055 = vxor.u32 %v1051, 2147483648
    %v1056 = vmul.f32 %v1055, 1.442695
    %v1057 = vpow.pop %v1056
    %v1058 = vadd.f32 %v1057, 1.0
    %v1059 = vrcp.pop %v1058
    %v1060 = vmul.f32 %v1058, %v1059
    %v1061 = vsub.f32 1.0, %v1060
    %v1062 = vmul.f32 %v1059, %v1061
    %v1063 = vadd.f32 %v1059, %v1062
    %vm1064 = vweird.f32 %v1058
    %vm1065 = vweird.f32 %v1059
    %vm1066 = vmor %vm1064, %vm1065
    %v1067 = vsel %vm1066, %v1059, %v1063
    %v1068 = vand.u32 2147483647, %v1058
    %vm1069 = vcmp.eq.f32.partialorder %v1068, 8.507059e+37
    %v1070 = vand.u32 %v1058, 2147483648
    %v1071 = vor.u32 1.1754944e-38, %v1070
    %v1072 = vsel %vm1069, %v1071, %v1067
    %v1073 = vmul.f32 1.0, %v1072
    %v1074 = vxor.u32 %v1052, 2147483648
    %v1075 = vmul.f32 %v1074, 1.442695
    %v1076 = vpow.pop %v1075
    %v1077 = vadd.f32 %v1076, 1.0
    %v1078 = vrcp.pop %v1077
    %v1079 = vmul.f32 %v1077, %v1078
    %v1080 = vsub.f32 1.0, %v1079
    %v1081 = vmul.f32 %v1078, %v1080
    %v1082 = vadd.f32 %v1078, %v1081
    %vm1083 = vweird.f32 %v1077
    %vm1084 = vweird.f32 %v1078
    %vm1085 = vmor %vm1083, %vm1084
    %v1086 = vsel %vm1085, %v1078, %v1082
    %v1087 = vand.u32 2147483647, %v1077
    %vm1088 = vcmp.eq.f32.partialorder %v1087, 8.507059e+37
    %v1089 = vand.u32 %v1077, 2147483648
    %v1090 = vor.u32 1.1754944e-38, %v1089
    %v1091 = vsel %vm1088, %v1090, %v1086
    %v1092 = vmul.f32 1.0, %v1091
    %v1093 = vtanh.pop %v1053
    %v1094 = vxor.u32 %v1054, 2147483648
    %v1095 = vmul.f32 %v1094, 1.442695
    %v1096 = vpow.pop %v1095
    %v1097 = vadd.f32 %v1096, 1.0
    %v1098 = vrcp.pop %v1097
    %v1099 = vmul.f32 %v1097, %v1098
    %v1100 = vsub.f32 1.0, %v1099
    %v1101 = vmul.f32 %v1098, %v1100
    %v1102 = vadd.f32 %v1098, %v1101
    %vm1103 = vweird.f32 %v1097
    %vm1104 = vweird.f32 %v1098
    %vm1105 = vmor %vm1103, %vm1104
    %v1106 = vsel %vm1105, %v1098, %v1102
    %v1107 = vand.u32 2147483647, %v1097
    %vm1108 = vcmp.eq.f32.partialorder %v1107, 8.507059e+37
    %v1109 = vand.u32 %v1097, 2147483648
    %v1110 = vor.u32 1.1754944e-38, %v1109
    %v1111 = vsel %vm1108, %v1110, %v1106
    %v1112 = vmul.f32 1.0, %v1111
    %v1113 = vmul.f32 %v1092, %v418
    %v1114 = vmul.f32 %v1073, %v1093
    %v1115 = vadd.f32 %v1113, %v1114
    %v1116 = vtanh.pop %v1115
    %v1117 = vmul.f32 %v1112, %v1116
    %1118 = vst [vmem:[#allocation15] sm:$0xff] %v1117
    %v1119 = vpack.c.bf16 %v1117, %v1117
    %v1120 = vpack.c.bf16 %v1115, %v1115
    %s1121 = scalar_lea.vmem [#allocation3], 4
    %v1122 = vld [vmem:[%s1121] sm:$0xf]
    %s1123 = scalar_lea.vmem [#allocation2], 8
    %v1124 = vld [vmem:[%s1123] sm:$0xff]
    %1125 = vmatpush.bf16.msra.mxu0 %v462
    %1126 = vmatpush.bf16.msra.mxu0 %v461
    %1127 = vmatpush.bf16.msra.mxu0 %v460
    %1128 = vmatpush.bf16.msra.mxu0 %v459
    %1129 = vmatpush.bf16.msra.mxu0 %v458
    %1130 = vmatpush.bf16.msra.mxu0 %v457
    %1131 = vmatpush.bf16.msra.mxu0 %v456
    %1132 = vmatpush.bf16.msra.mxu0 %v455
    %1133 = vmatmul.bf16.gmra.mxu0 %v1119
    %v1134 = vpop.f32.mrf.mxu0
    %v1135 = vadd.f32 0.0, %v1134
    %v1136 = vpop.f32.mrf.mxu0
    %1137 = vdwg.mxu0
    %v1138 = vadd.f32 %v1124, %v1135
    %1139 = vmatpush.bf16.msra.mxu0 %v524
    %1140 = vmatpush.bf16.msra.mxu0 %v523
    %1141 = vmatpush.bf16.msra.mxu0 %v522
    %1142 = vmatpush.bf16.msra.mxu0 %v521
    %1143 = vmatpush.bf16.msra.mxu0 %v520
    %1144 = vmatpush.bf16.msra.mxu0 %v519
    %1145 = vmatpush.bf16.msra.mxu0 %v518
    %1146 = vmatpush.bf16.msra.mxu0 %v517
    %1147 = vmatmul.bf16.gmra.mxu0 %v1120
    %v1148 = vpop.f32.mrf.mxu0
    %v1149 = vadd.f32 0.0, %v1148
    %v1150 = vpop.f32.mrf.mxu0
    %1151 = vdwg.mxu0
    %v1152 = vadd.f32 %v1138, %v1149
    %v1153 = vtanh.pop %v1152
    %v1154 = vpack.c.bf16 %v1153, %v1153
    %1155 = vmatpush.bf16.msra.mxu0 %v588
    %1156 = vmatpush.bf16.msra.mxu0 %v587
    %1157 = vmatpush.bf16.msra.mxu0 %v586
    %1158 = vmatpush.bf16.msra.mxu0 %v585
    %1159 = vmatpush.bf16.msra.mxu0 %v584
    %1160 = vmatpush.bf16.msra.mxu0 %v583
    %1161 = vmatpush.bf16.msra.mxu0 %v582
    %1162 = vmatpush.bf16.msra.mxu0 %v581
    %1163 = vmatmul.bf16.gmra.mxu0 %v1154
    %v1164 = vpop.f32.mrf.mxu0
    %v1165 = vadd.f32 %v416, %v1164
    %v1166 = vpop.f32.mrf.mxu0
    %1167 = vdwg.mxu0
    %1168 = vmax.xlane.f32.xlu0 %v1165
    %v1169 = vpop.xlane.xlu0 %1168
    %v1170 = vsub.f32 %v1165, %v1169
    %v1171 = vmul.f32 %v1170, 1.442695
    %v1172 = vpow.pop %v1171
    %1173 = vadd.xlane.f32.xlu0 %v1172
    %v1174 = vpop.xlane.xlu0 %1173
    %v1175 = vrcp.pop %v1174
    %v1176 = vmul.f32 %v1174, %v1175
    %v1177 = vsub.f32 2.0, %v1176
    %v1178 = vmul.f32 %v1175, %v1177
    %v1179 = vmul.f32 %v1172, %v1178
    %v1180 = vpack.c.bf16 %v1179, %v1179
    %s1181 = scalar_lea.vmem [#allocation16], 4
    %1182 = vst [vmem:[%s1181] sm:$0xf] %v1180
    %v1183 = vunpack.c.l.bf16 %v1122
    %v1184 = vmul.f32 %v1179, %v1183
    %v1185 = vpack.c.bf16 %v1184, %v1184
    %1186 = vmatpush.bf16.msra.mxu0 %v751
    %1187 = vmatpush.bf16.msra.mxu0 %v747
    %1188 = vmatpush.bf16.msra.mxu0 %v743
    %1189 = vmatpush.bf16.msra.mxu0 %v739
    %1190 = vmatpush.bf16.msra.mxu0 %v735
    %1191 = vmatpush.bf16.msra.mxu0 %v731
    %1192 = vmatpush.bf16.msra.mxu0 %v727
    %1193 = vmatpush.bf16.msra.mxu0 %v723
    %1194 = vmatmul.bf16.gmra.mxu0 %v1119
    %v1195 = vpop.f32.mrf.mxu0
    %v1196 = vadd.f32 0.0, %v1195
    %v1197 = vpop.f32.mrf.mxu0
    %1198 = vdwg.mxu0
    %1199 = vmatpush.bf16.msra.mxu0 %v752
    %1200 = vmatpush.bf16.msra.mxu0 %v748
    %1201 = vmatpush.bf16.msra.mxu0 %v744
    %1202 = vmatpush.bf16.msra.mxu0 %v740
    %1203 = vmatpush.bf16.msra.mxu0 %v736
    %1204 = vmatpush.bf16.msra.mxu0 %v732
    %1205 = vmatpush.bf16.msra.mxu0 %v728
    %1206 = vmatpush.bf16.msra.mxu0 %v724
    %1207 = vmatmul.bf16.gmra.mxu0 %v1119
    %v1208 = vpop.f32.mrf.mxu0
    %v1209 = vadd.f32 0.0, %v1208
    %v1210 = vpop.f32.mrf.mxu0
    %1211 = vdwg.mxu0
    %1212 = vmatpush.bf16.msra.mxu0 %v753
    %1213 = vmatpush.bf16.msra.mxu0 %v749
    %1214 = vmatpush.bf16.msra.mxu0 %v745
    %1215 = vmatpush.bf16.msra.mxu0 %v741
    %1216 = vmatpush.bf16.msra.mxu0 %v737
    %1217 = vmatpush.bf16.msra.mxu0 %v733
    %1218 = vmatpush.bf16.msra.mxu0 %v729
    %1219 = vmatpush.bf16.msra.mxu0 %v725
    %1220 = vmatmul.bf16.gmra.mxu0 %v1119
    %v1221 = vpop.f32.mrf.mxu0
    %v1222 = vadd.f32 0.0, %v1221
    %v1223 = vpop.f32.mrf.mxu0
    %1224 = vdwg.mxu0
    %1225 = vmatpush.bf16.msra.mxu0 %v754
    %1226 = vmatpush.bf16.msra.mxu0 %v750
    %1227 = vmatpush.bf16.msra.mxu0 %v746
    %1228 = vmatpush.bf16.msra.mxu0 %v742
    %1229 = vmatpush.bf16.msra.mxu0 %v738
    %1230 = vmatpush.bf16.msra.mxu0 %v734
    %1231 = vmatpush.bf16.msra.mxu0 %v730
    %1232 = vmatpush.bf16.msra.mxu0 %v726
    %1233 = vmatmul.bf16.gmra.mxu0 %v1119
    %v1234 = vpop.f32.mrf.mxu0
    %v1235 = vadd.f32 0.0, %v1234
    %v1236 = vpop.f32.mrf.mxu0
    %1237 = vdwg.mxu0
    %1238 = vmatpush.bf16.msra.mxu0 %v963
    %1239 = vmatpush.bf16.msra.mxu0 %v959
    %1240 = vmatpush.bf16.msra.mxu0 %v955
    %1241 = vmatpush.bf16.msra.mxu0 %v951
    %1242 = vmatpush.bf16.msra.mxu0 %v947
    %1243 = vmatpush.bf16.msra.mxu0 %v943
    %1244 = vmatpush.bf16.msra.mxu0 %v939
    %1245 = vmatpush.bf16.msra.mxu0 %v935
    %1246 = vmatmul.bf16.gmra.mxu0 %v1185
    %v1247 = vpop.f32.mrf.mxu0
    %v1248 = vadd.f32 %v1196, %v1247
    %v1249 = vpop.f32.mrf.mxu0
    %1250 = vdwg.mxu0
    %1251 = vmatpush.bf16.msra.mxu0 %v964
    %1252 = vmatpush.bf16.msra.mxu0 %v960
    %1253 = vmatpush.bf16.msra.mxu0 %v956
    %1254 = vmatpush.bf16.msra.mxu0 %v952
    %1255 = vmatpush.bf16.msra.mxu0 %v948
    %1256 = vmatpush.bf16.msra.mxu0 %v944
    %1257 = vmatpush.bf16.msra.mxu0 %v940
    %1258 = vmatpush.bf16.msra.mxu0 %v936
    %1259 = vmatmul.bf16.gmra.mxu0 %v1185
    %v1260 = vpop.f32.mrf.mxu0
    %v1261 = vadd.f32 %v1209, %v1260
    %v1262 = vpop.f32.mrf.mxu0
    %1263 = vdwg.mxu0
    %1264 = vmatpush.bf16.msra.mxu0 %v965
    %1265 = vmatpush.bf16.msra.mxu0 %v961
    %1266 = vmatpush.bf16.msra.mxu0 %v957
    %1267 = vmatpush.bf16.msra.mxu0 %v953
    %1268 = vmatpush.bf16.msra.mxu0 %v949
    %1269 = vmatpush.bf16.msra.mxu0 %v945
    %1270 = vmatpush.bf16.msra.mxu0 %v941
    %1271 = vmatpush.bf16.msra.mxu0 %v937
    %1272 = vmatmul.bf16.gmra.mxu0 %v1185
    %v1273 = vpop.f32.mrf.mxu0
    %v1274 = vadd.f32 %v1222, %v1273
    %v1275 = vpop.f32.mrf.mxu0
    %1276 = vdwg.mxu0
    %1277 = vmatpush.bf16.msra.mxu0 %v966
    %1278 = vmatpush.bf16.msra.mxu0 %v962
    %1279 = vmatpush.bf16.msra.mxu0 %v958
    %1280 = vmatpush.bf16.msra.mxu0 %v954
    %1281 = vmatpush.bf16.msra.mxu0 %v950
    %1282 = vmatpush.bf16.msra.mxu0 %v946
    %1283 = vmatpush.bf16.msra.mxu0 %v942
    %1284 = vmatpush.bf16.msra.mxu0 %v938
    %1285 = vmatmul.bf16.gmra.mxu0 %v1185
    %v1286 = vpop.f32.mrf.mxu0
    %v1287 = vadd.f32 %v1235, %v1286
    %v1288 = vpop.f32.mrf.mxu0
    %1289 = vdwg.mxu0
    %v1290 = vadd.f32 %v1248, %v405
    %v1291 = vadd.f32 %v1261, %v406
    %v1292 = vadd.f32 %v1274, %v407
    %v1293 = vadd.f32 %v1287, %v408
    %v1294 = vxor.u32 %v1290, 2147483648
    %v1295 = vmul.f32 %v1294, 1.442695
    %v1296 = vpow.pop %v1295
    %v1297 = vadd.f32 %v1296, 1.0
    %v1298 = vrcp.pop %v1297
    %v1299 = vmul.f32 %v1297, %v1298
    %v1300 = vsub.f32 1.0, %v1299
    %v1301 = vmul.f32 %v1298, %v1300
    %v1302 = vadd.f32 %v1298, %v1301
    %vm1303 = vweird.f32 %v1297
    %vm1304 = vweird.f32 %v1298
    %vm1305 = vmor %vm1303, %vm1304
    %v1306 = vsel %vm1305, %v1298, %v1302
    %v1307 = vand.u32 2147483647, %v1297
    %vm1308 = vcmp.eq.f32.partialorder %v1307, 8.507059e+37
    %v1309 = vand.u32 %v1297, 2147483648
    %v1310 = vor.u32 1.1754944e-38, %v1309
    %v1311 = vsel %vm1308, %v1310, %v1306
    %v1312 = vmul.f32 1.0, %v1311
    %v1313 = vxor.u32 %v1291, 2147483648
    %v1314 = vmul.f32 %v1313, 1.442695
    %v1315 = vpow.pop %v1314
    %v1316 = vadd.f32 %v1315, 1.0
    %v1317 = vrcp.pop %v1316
    %v1318 = vmul.f32 %v1316, %v1317
    %v1319 = vsub.f32 1.0, %v1318
    %v1320 = vmul.f32 %v1317, %v1319
    %v1321 = vadd.f32 %v1317, %v1320
    %vm1322 = vweird.f32 %v1316
    %vm1323 = vweird.f32 %v1317
    %vm1324 = vmor %vm1322, %vm1323
    %v1325 = vsel %vm1324, %v1317, %v1321
    %v1326 = vand.u32 2147483647, %v1316
    %vm1327 = vcmp.eq.f32.partialorder %v1326, 8.507059e+37
    %v1328 = vand.u32 %v1316, 2147483648
    %v1329 = vor.u32 1.1754944e-38, %v1328
    %v1330 = vsel %vm1327, %v1329, %v1325
    %v1331 = vmul.f32 1.0, %v1330
    %v1332 = vtanh.pop %v1292
    %v1333 = vxor.u32 %v1293, 2147483648
    %v1334 = vmul.f32 %v1333, 1.442695
    %v1335 = vpow.pop %v1334
    %v1336 = vadd.f32 %v1335, 1.0
    %v1337 = vrcp.pop %v1336
    %v1338 = vmul.f32 %v1336, %v1337
    %v1339 = vsub.f32 1.0, %v1338
    %v1340 = vmul.f32 %v1337, %v1339
    %v1341 = vadd.f32 %v1337, %v1340
    %vm1342 = vweird.f32 %v1336
    %vm1343 = vweird.f32 %v1337
    %vm1344 = vmor %vm1342, %vm1343
    %v1345 = vsel %vm1344, %v1337, %v1341
    %v1346 = vand.u32 2147483647, %v1336
    %vm1347 = vcmp.eq.f32.partialorder %v1346, 8.507059e+37
    %v1348 = vand.u32 %v1336, 2147483648
    %v1349 = vor.u32 1.1754944e-38, %v1348
    %v1350 = vsel %vm1347, %v1349, %v1345
    %v1351 = vmul.f32 1.0, %v1350
    %v1352 = vmul.f32 %v1331, %v1115
    %v1353 = vmul.f32 %v1312, %v1332
    %v1354 = vadd.f32 %v1352, %v1353
    %v1355 = vtanh.pop %v1354
    %v1356 = vmul.f32 %v1351, %v1355
    %s1357 = scalar_lea.vmem [#allocation15], 8
    %1358 = vst [vmem:[%s1357] sm:$0xff] %v1356
    %v1359 = vpack.c.bf16 %v1356, %v1356
    %v1360 = vpack.c.bf16 %v1354, %v1354
    %s1361 = scalar_lea.vmem [#allocation3], 8
    %v1362 = vld [vmem:[%s1361] sm:$0xf]
    %s1363 = scalar_lea.vmem [#allocation2], 16
    %v1364 = vld [vmem:[%s1363] sm:$0xff]
    %1365 = vmatpush.bf16.msra.mxu0 %v462
    %1366 = vmatpush.bf16.msra.mxu0 %v461
    %1367 = vmatpush.bf16.msra.mxu0 %v460
    %1368 = vmatpush.bf16.msra.mxu0 %v459
    %1369 = vmatpush.bf16.msra.mxu0 %v458
    %1370 = vmatpush.bf16.msra.mxu0 %v457
    %1371 = vmatpush.bf16.msra.mxu0 %v456
    %1372 = vmatpush.bf16.msra.mxu0 %v455
    %1373 = vmatmul.bf16.gmra.mxu0 %v1359
    %v1374 = vpop.f32.mrf.mxu0
    %v1375 = vadd.f32 0.0, %v1374
    %v1376 = vpop.f32.mrf.mxu0
    %1377 = vdwg.mxu0
    %v1378 = vadd.f32 %v1364, %v1375
    %1379 = vmatpush.bf16.msra.mxu0 %v524
    %1380 = vmatpush.bf16.msra.mxu0 %v523
    %1381 = vmatpush.bf16.msra.mxu0 %v522
    %1382 = vmatpush.bf16.msra.mxu0 %v521
    %1383 = vmatpush.bf16.msra.mxu0 %v520
    %1384 = vmatpush.bf16.msra.mxu0 %v519
    %1385 = vmatpush.bf16.msra.mxu0 %v518
    %1386 = vmatpush.bf16.msra.mxu0 %v517
    %1387 = vmatmul.bf16.gmra.mxu0 %v1360
    %v1388 = vpop.f32.mrf.mxu0
    %v1389 = vadd.f32 0.0, %v1388
    %v1390 = vpop.f32.mrf.mxu0
    %1391 = vdwg.mxu0
    %v1392 = vadd.f32 %v1378, %v1389
    %v1393 = vtanh.pop %v1392
    %v1394 = vpack.c.bf16 %v1393, %v1393
    %1395 = vmatpush.bf16.msra.mxu0 %v588
    %1396 = vmatpush.bf16.msra.mxu0 %v587
    %1397 = vmatpush.bf16.msra.mxu0 %v586
    %1398 = vmatpush.bf16.msra.mxu0 %v585
    %1399 = vmatpush.bf16.msra.mxu0 %v584
    %1400 = vmatpush.bf16.msra.mxu0 %v583
    %1401 = vmatpush.bf16.msra.mxu0 %v582
    %1402 = vmatpush.bf16.msra.mxu0 %v581
    %1403 = vmatmul.bf16.gmra.mxu0 %v1394
    %v1404 = vpop.f32.mrf.mxu0
    %v1405 = vadd.f32 %v416, %v1404
    %v1406 = vpop.f32.mrf.mxu0
    %1407 = vdwg.mxu0
    %1408 = vmax.xlane.f32.xlu0 %v1405
    %v1409 = vpop.xlane.xlu0 %1408
    %v1410 = vsub.f32 %v1405, %v1409
    %v1411 = vmul.f32 %v1410, 1.442695
    %v1412 = vpow.pop %v1411
    %1413 = vadd.xlane.f32.xlu0 %v1412
    %v1414 = vpop.xlane.xlu0 %1413
    %v1415 = vrcp.pop %v1414
    %v1416 = vmul.f32 %v1414, %v1415
    %v1417 = vsub.f32 2.0, %v1416
    %v1418 = vmul.f32 %v1415, %v1417
    %v1419 = vmul.f32 %v1412, %v1418
    %v1420 = vpack.c.bf16 %v1419, %v1419
    %s1421 = scalar_lea.vmem [#allocation16], 8
    %1422 = vst [vmem:[%s1421] sm:$0xf] %v1420
    %v1423 = vunpack.c.l.bf16 %v1362
    %v1424 = vmul.f32 %v1419, %v1423
    %v1425 = vpack.c.bf16 %v1424, %v1424
    %1426 = vmatpush.bf16.msra.mxu0 %v751
    %1427 = vmatpush.bf16.msra.mxu0 %v747
    %1428 = vmatpush.bf16.msra.mxu0 %v743
    %1429 = vmatpush.bf16.msra.mxu0 %v739
    %1430 = vmatpush.bf16.msra.mxu0 %v735
    %1431 = vmatpush.bf16.msra.mxu0 %v731
    %1432 = vmatpush.bf16.msra.mxu0 %v727
    %1433 = vmatpush.bf16.msra.mxu0 %v723
    %1434 = vmatmul.bf16.gmra.mxu0 %v1359
    %v1435 = vpop.f32.mrf.mxu0
    %v1436 = vadd.f32 0.0, %v1435
    %v1437 = vpop.f32.mrf.mxu0
    %1438 = vdwg.mxu0
    %1439 = vmatpush.bf16.msra.mxu0 %v752
    %1440 = vmatpush.bf16.msra.mxu0 %v748
    %1441 = vmatpush.bf16.msra.mxu0 %v744
    %1442 = vmatpush.bf16.msra.mxu0 %v740
    %1443 = vmatpush.bf16.msra.mxu0 %v736
    %1444 = vmatpush.bf16.msra.mxu0 %v732
    %1445 = vmatpush.bf16.msra.mxu0 %v728
    %1446 = vmatpush.bf16.msra.mxu0 %v724
    %1447 = vmatmul.bf16.gmra.mxu0 %v1359
    %v1448 = vpop.f32.mrf.mxu0
    %v1449 = vadd.f32 0.0, %v1448
    %v1450 = vpop.f32.mrf.mxu0
    %1451 = vdwg.mxu0
    %1452 = vmatpush.bf16.msra.mxu0 %v753
    %1453 = vmatpush.bf16.msra.mxu0 %v749
    %1454 = vmatpush.bf16.msra.mxu0 %v745
    %1455 = vmatpush.bf16.msra.mxu0 %v741
    %1456 = vmatpush.bf16.msra.mxu0 %v737
    %1457 = vmatpush.bf16.msra.mxu0 %v733
    %1458 = vmatpush.bf16.msra.mxu0 %v729
    %1459 = vmatpush.bf16.msra.mxu0 %v725
    %1460 = vmatmul.bf16.gmra.mxu0 %v1359
    %v1461 = vpop.f32.mrf.mxu0
    %v1462 = vadd.f32 0.0, %v1461
    %v1463 = vpop.f32.mrf.mxu0
    %1464 = vdwg.mxu0
    %1465 = vmatpush.bf16.msra.mxu0 %v754
    %1466 = vmatpush.bf16.msra.mxu0 %v750
    %1467 = vmatpush.bf16.msra.mxu0 %v746
    %1468 = vmatpush.bf16.msra.mxu0 %v742
    %1469 = vmatpush.bf16.msra.mxu0 %v738
    %1470 = vmatpush.bf16.msra.mxu0 %v734
    %1471 = vmatpush.bf16.msra.mxu0 %v730
    %1472 = vmatpush.bf16.msra.mxu0 %v726
    %1473 = vmatmul.bf16.gmra.mxu0 %v1359
    %v1474 = vpop.f32.mrf.mxu0
    %v1475 = vadd.f32 0.0, %v1474
    %v1476 = vpop.f32.mrf.mxu0
    %1477 = vdwg.mxu0
    %1478 = vmatpush.bf16.msra.mxu0 %v963
    %1479 = vmatpush.bf16.msra.mxu0 %v959
    %1480 = vmatpush.bf16.msra.mxu0 %v955
    %1481 = vmatpush.bf16.msra.mxu0 %v951
    %1482 = vmatpush.bf16.msra.mxu0 %v947
    %1483 = vmatpush.bf16.msra.mxu0 %v943
    %1484 = vmatpush.bf16.msra.mxu0 %v939
    %1485 = vmatpush.bf16.msra.mxu0 %v935
    %1486 = vmatmul.bf16.gmra.mxu0 %v1425
    %v1487 = vpop.f32.mrf.mxu0
    %v1488 = vadd.f32 %v1436, %v1487
    %v1489 = vpop.f32.mrf.mxu0
    %1490 = vdwg.mxu0
    %1491 = vmatpush.bf16.msra.mxu0 %v964
    %1492 = vmatpush.bf16.msra.mxu0 %v960
    %1493 = vmatpush.bf16.msra.mxu0 %v956
    %1494 = vmatpush.bf16.msra.mxu0 %v952
    %1495 = vmatpush.bf16.msra.mxu0 %v948
    %1496 = vmatpush.bf16.msra.mxu0 %v944
    %1497 = vmatpush.bf16.msra.mxu0 %v940
    %1498 = vmatpush.bf16.msra.mxu0 %v936
    %1499 = vmatmul.bf16.gmra.mxu0 %v1425
    %v1500 = vpop.f32.mrf.mxu0
    %v1501 = vadd.f32 %v1449, %v1500
    %v1502 = vpop.f32.mrf.mxu0
    %1503 = vdwg.mxu0
    %1504 = vmatpush.bf16.msra.mxu0 %v965
    %1505 = vmatpush.bf16.msra.mxu0 %v961
    %1506 = vmatpush.bf16.msra.mxu0 %v957
    %1507 = vmatpush.bf16.msra.mxu0 %v953
    %1508 = vmatpush.bf16.msra.mxu0 %v949
    %1509 = vmatpush.bf16.msra.mxu0 %v945
    %1510 = vmatpush.bf16.msra.mxu0 %v941
    %1511 = vmatpush.bf16.msra.mxu0 %v937
    %1512 = vmatmul.bf16.gmra.mxu0 %v1425
    %v1513 = vpop.f32.mrf.mxu0
    %v1514 = vadd.f32 %v1462, %v1513
    %v1515 = vpop.f32.mrf.mxu0
    %1516 = vdwg.mxu0
    %1517 = vmatpush.bf16.msra.mxu0 %v966
    %1518 = vmatpush.bf16.msra.mxu0 %v962
    %1519 = vmatpush.bf16.msra.mxu0 %v958
    %1520 = vmatpush.bf16.msra.mxu0 %v954
    %1521 = vmatpush.bf16.msra.mxu0 %v950
    %1522 = vmatpush.bf16.msra.mxu0 %v946
    %1523 = vmatpush.bf16.msra.mxu0 %v942
    %1524 = vmatpush.bf16.msra.mxu0 %v938
    %1525 = vmatmul.bf16.gmra.mxu0 %v1425
    %v1526 = vpop.f32.mrf.mxu0
    %v1527 = vadd.f32 %v1475, %v1526
    %v1528 = vpop.f32.mrf.mxu0
    %1529 = vdwg.mxu0
    %v1530 = vadd.f32 %v1488, %v405
    %v1531 = vadd.f32 %v1501, %v406
    %v1532 = vadd.f32 %v1514, %v407
    %v1533 = vadd.f32 %v1527, %v408
    %v1534 = vxor.u32 %v1530, 2147483648
    %v1535 = vmul.f32 %v1534, 1.442695
    %v1536 = vpow.pop %v1535
    %v1537 = vadd.f32 %v1536, 1.0
    %v1538 = vrcp.pop %v1537
    %v1539 = vmul.f32 %v1537, %v1538
    %v1540 = vsub.f32 1.0, %v1539
    %v1541 = vmul.f32 %v1538, %v1540
    %v1542 = vadd.f32 %v1538, %v1541
    %vm1543 = vweird.f32 %v1537
    %vm1544 = vweird.f32 %v1538
    %vm1545 = vmor %vm1543, %vm1544
    %v1546 = vsel %vm1545, %v1538, %v1542
    %v1547 = vand.u32 2147483647, %v1537
    %vm1548 = vcmp.eq.f32.partialorder %v1547, 8.507059e+37
    %v1549 = vand.u32 %v1537, 2147483648
    %v1550 = vor.u32 1.1754944e-38, %v1549
    %v1551 = vsel %vm1548, %v1550, %v1546
    %v1552 = vmul.f32 1.0, %v1551
    %v1553 = vxor.u32 %v1531, 2147483648
    %v1554 = vmul.f32 %v1553, 1.442695
    %v1555 = vpow.pop %v1554
    %v1556 = vadd.f32 %v1555, 1.0
    %v1557 = vrcp.pop %v1556
    %v1558 = vmul.f32 %v1556, %v1557
    %v1559 = vsub.f32 1.0, %v1558
    %v1560 = vmul.f32 %v1557, %v1559
    %v1561 = vadd.f32 %v1557, %v1560
    %vm1562 = vweird.f32 %v1556
    %vm1563 = vweird.f32 %v1557
    %vm1564 = vmor %vm1562, %vm1563
    %v1565 = vsel %vm1564, %v1557, %v1561
    %v1566 = vand.u32 2147483647, %v1556
    %vm1567 = vcmp.eq.f32.partialorder %v1566, 8.507059e+37
    %v1568 = vand.u32 %v1556, 2147483648
    %v1569 = vor.u32 1.1754944e-38, %v1568
    %v1570 = vsel %vm1567, %v1569, %v1565
    %v1571 = vmul.f32 1.0, %v1570
    %v1572 = vtanh.pop %v1532
    %v1573 = vxor.u32 %v1533, 2147483648
    %v1574 = vmul.f32 %v1573, 1.442695
    %v1575 = vpow.pop %v1574
    %v1576 = vadd.f32 %v1575, 1.0
    %v1577 = vrcp.pop %v1576
    %v1578 = vmul.f32 %v1576, %v1577
    %v1579 = vsub.f32 1.0, %v1578
    %v1580 = vmul.f32 %v1577, %v1579
    %v1581 = vadd.f32 %v1577, %v1580
    %vm1582 = vweird.f32 %v1576
    %vm1583 = vweird.f32 %v1577
    %vm1584 = vmor %vm1582, %vm1583
    %v1585 = vsel %vm1584, %v1577, %v1581
    %v1586 = vand.u32 2147483647, %v1576
    %vm1587 = vcmp.eq.f32.partialorder %v1586, 8.507059e+37
    %v1588 = vand.u32 %v1576, 2147483648
    %v1589 = vor.u32 1.1754944e-38, %v1588
    %v1590 = vsel %vm1587, %v1589, %v1585
    %v1591 = vmul.f32 1.0, %v1590
    %v1592 = vmul.f32 %v1571, %v1354
    %v1593 = vmul.f32 %v1552, %v1572
    %v1594 = vadd.f32 %v1592, %v1593
    %v1595 = vtanh.pop %v1594
    %v1596 = vmul.f32 %v1591, %v1595
    %s1597 = scalar_lea.vmem [#allocation15], 16
    %1598 = vst [vmem:[%s1597] sm:$0xff] %v1596
    %v1599 = vpack.c.bf16 %v1596, %v1596
    %v1600 = vpack.c.bf16 %v1594, %v1594
    %s1601 = scalar_lea.vmem [#allocation3], 12
    %v1602 = vld [vmem:[%s1601] sm:$0xf]
    %s1603 = scalar_lea.vmem [#allocation2], 24
    %v1604 = vld [vmem:[%s1603] sm:$0xff]
    %1605 = vmatpush.bf16.msra.mxu0 %v462
    %1606 = vmatpush.bf16.msra.mxu0 %v461
    %1607 = vmatpush.bf16.msra.mxu0 %v460
    %1608 = vmatpush.bf16.msra.mxu0 %v459
    %1609 = vmatpush.bf16.msra.mxu0 %v458
    %1610 = vmatpush.bf16.msra.mxu0 %v457
    %1611 = vmatpush.bf16.msra.mxu0 %v456
    %1612 = vmatpush.bf16.msra.mxu0 %v455
    %1613 = vmatmul.bf16.gmra.mxu0 %v1599
    %v1614 = vpop.f32.mrf.mxu0
    %v1615 = vadd.f32 0.0, %v1614
    %v1616 = vpop.f32.mrf.mxu0
    %1617 = vdwg.mxu0
    %v1618 = vadd.f32 %v1604, %v1615
    %1619 = vmatpush.bf16.msra.mxu0 %v524
    %1620 = vmatpush.bf16.msra.mxu0 %v523
    %1621 = vmatpush.bf16.msra.mxu0 %v522
    %1622 = vmatpush.bf16.msra.mxu0 %v521
    %1623 = vmatpush.bf16.msra.mxu0 %v520
    %1624 = vmatpush.bf16.msra.mxu0 %v519
    %1625 = vmatpush.bf16.msra.mxu0 %v518
    %1626 = vmatpush.bf16.msra.mxu0 %v517
    %1627 = vmatmul.bf16.gmra.mxu0 %v1600
    %v1628 = vpop.f32.mrf.mxu0
    %v1629 = vadd.f32 0.0, %v1628
    %v1630 = vpop.f32.mrf.mxu0
    %1631 = vdwg.mxu0
    %v1632 = vadd.f32 %v1618, %v1629
    %v1633 = vtanh.pop %v1632
    %v1634 = vpack.c.bf16 %v1633, %v1633
    %1635 = vmatpush.bf16.msra.mxu0 %v588
    %1636 = vmatpush.bf16.msra.mxu0 %v587
    %1637 = vmatpush.bf16.msra.mxu0 %v586
    %1638 = vmatpush.bf16.msra.mxu0 %v585
    %1639 = vmatpush.bf16.msra.mxu0 %v584
    %1640 = vmatpush.bf16.msra.mxu0 %v583
    %1641 = vmatpush.bf16.msra.mxu0 %v582
    %1642 = vmatpush.bf16.msra.mxu0 %v581
    %1643 = vmatmul.bf16.gmra.mxu0 %v1634
    %v1644 = vpop.f32.mrf.mxu0
    %v1645 = vadd.f32 %v416, %v1644
    %v1646 = vpop.f32.mrf.mxu0
    %1647 = vdwg.mxu0
    %1648 = vmax.xlane.f32.xlu0 %v1645
    %v1649 = vpop.xlane.xlu0 %1648
    %v1650 = vsub.f32 %v1645, %v1649
    %v1651 = vmul.f32 %v1650, 1.442695
    %v1652 = vpow.pop %v1651
    %1653 = vadd.xlane.f32.xlu0 %v1652
    %v1654 = vpop.xlane.xlu0 %1653
    %v1655 = vrcp.pop %v1654
    %v1656 = vmul.f32 %v1654, %v1655
    %v1657 = vsub.f32 2.0, %v1656
    %v1658 = vmul.f32 %v1655, %v1657
    %v1659 = vmul.f32 %v1652, %v1658
    %v1660 = vpack.c.bf16 %v1659, %v1659
    %s1661 = scalar_lea.vmem [#allocation16], 12
    %1662 = vst [vmem:[%s1661] sm:$0xf] %v1660
    %v1663 = vunpack.c.l.bf16 %v1602
    %v1664 = vmul.f32 %v1659, %v1663
    %v1665 = vpack.c.bf16 %v1664, %v1664
    %1666 = vmatpush.bf16.msra.mxu0 %v751
    %1667 = vmatpush.bf16.msra.mxu0 %v747
    %1668 = vmatpush.bf16.msra.mxu0 %v743
    %1669 = vmatpush.bf16.msra.mxu0 %v739
    %1670 = vmatpush.bf16.msra.mxu0 %v735
    %1671 = vmatpush.bf16.msra.mxu0 %v731
    %1672 = vmatpush.bf16.msra.mxu0 %v727
    %1673 = vmatpush.bf16.msra.mxu0 %v723
    %1674 = vmatmul.bf16.gmra.mxu0 %v1599
    %v1675 = vpop.f32.mrf.mxu0
    %v1676 = vadd.f32 0.0, %v1675
    %v1677 = vpop.f32.mrf.mxu0
    %1678 = vdwg.mxu0
    %1679 = vmatpush.bf16.msra.mxu0 %v752
    %1680 = vmatpush.bf16.msra.mxu0 %v748
    %1681 = vmatpush.bf16.msra.mxu0 %v744
    %1682 = vmatpush.bf16.msra.mxu0 %v740
    %1683 = vmatpush.bf16.msra.mxu0 %v736
    %1684 = vmatpush.bf16.msra.mxu0 %v732
    %1685 = vmatpush.bf16.msra.mxu0 %v728
    %1686 = vmatpush.bf16.msra.mxu0 %v724
    %1687 = vmatmul.bf16.gmra.mxu0 %v1599
    %v1688 = vpop.f32.mrf.mxu0
    %v1689 = vadd.f32 0.0, %v1688
    %v1690 = vpop.f32.mrf.mxu0
    %1691 = vdwg.mxu0
    %1692 = vmatpush.bf16.msra.mxu0 %v753
    %1693 = vmatpush.bf16.msra.mxu0 %v749
    %1694 = vmatpush.bf16.msra.mxu0 %v745
    %1695 = vmatpush.bf16.msra.mxu0 %v741
    %1696 = vmatpush.bf16.msra.mxu0 %v737
    %1697 = vmatpush.bf16.msra.mxu0 %v733
    %1698 = vmatpush.bf16.msra.mxu0 %v729
    %1699 = vmatpush.bf16.msra.mxu0 %v725
    %1700 = vmatmul.bf16.gmra.mxu0 %v1599
    %v1701 = vpop.f32.mrf.mxu0
    %v1702 = vadd.f32 0.0, %v1701
    %v1703 = vpop.f32.mrf.mxu0
    %1704 = vdwg.mxu0
    %1705 = vmatpush.bf16.msra.mxu0 %v754
    %1706 = vmatpush.bf16.msra.mxu0 %v750
    %1707 = vmatpush.bf16.msra.mxu0 %v746
    %1708 = vmatpush.bf16.msra.mxu0 %v742
    %1709 = vmatpush.bf16.msra.mxu0 %v738
    %1710 = vmatpush.bf16.msra.mxu0 %v734
    %1711 = vmatpush.bf16.msra.mxu0 %v730
    %1712 = vmatpush.bf16.msra.mxu0 %v726
    %1713 = vmatmul.bf16.gmra.mxu0 %v1599
    %v1714 = vpop.f32.mrf.mxu0
    %v1715 = vadd.f32 0.0, %v1714
    %v1716 = vpop.f32.mrf.mxu0
    %1717 = vdwg.mxu0
    %1718 = vmatpush.bf16.msra.mxu0 %v963
    %1719 = vmatpush.bf16.msra.mxu0 %v959
    %1720 = vmatpush.bf16.msra.mxu0 %v955
    %1721 = vmatpush.bf16.msra.mxu0 %v951
    %1722 = vmatpush.bf16.msra.mxu0 %v947
    %1723 = vmatpush.bf16.msra.mxu0 %v943
    %1724 = vmatpush.bf16.msra.mxu0 %v939
    %1725 = vmatpush.bf16.msra.mxu0 %v935
    %1726 = vmatmul.bf16.gmra.mxu0 %v1665
    %v1727 = vpop.f32.mrf.mxu0
    %v1728 = vadd.f32 %v1676, %v1727
    %v1729 = vpop.f32.mrf.mxu0
    %1730 = vdwg.mxu0
    %1731 = vmatpush.bf16.msra.mxu0 %v964
    %1732 = vmatpush.bf16.msra.mxu0 %v960
    %1733 = vmatpush.bf16.msra.mxu0 %v956
    %1734 = vmatpush.bf16.msra.mxu0 %v952
    %1735 = vmatpush.bf16.msra.mxu0 %v948
    %1736 = vmatpush.bf16.msra.mxu0 %v944
    %1737 = vmatpush.bf16.msra.mxu0 %v940
    %1738 = vmatpush.bf16.msra.mxu0 %v936
    %1739 = vmatmul.bf16.gmra.mxu0 %v1665
    %v1740 = vpop.f32.mrf.mxu0
    %v1741 = vadd.f32 %v1689, %v1740
    %v1742 = vpop.f32.mrf.mxu0
    %1743 = vdwg.mxu0
    %1744 = vmatpush.bf16.msra.mxu0 %v965
    %1745 = vmatpush.bf16.msra.mxu0 %v961
    %1746 = vmatpush.bf16.msra.mxu0 %v957
    %1747 = vmatpush.bf16.msra.mxu0 %v953
    %1748 = vmatpush.bf16.msra.mxu0 %v949
    %1749 = vmatpush.bf16.msra.mxu0 %v945
    %1750 = vmatpush.bf16.msra.mxu0 %v941
    %1751 = vmatpush.bf16.msra.mxu0 %v937
    %1752 = vmatmul.bf16.gmra.mxu0 %v1665
    %v1753 = vpop.f32.mrf.mxu0
    %v1754 = vadd.f32 %v1702, %v1753
    %v1755 = vpop.f32.mrf.mxu0
    %1756 = vdwg.mxu0
    %1757 = vmatpush.bf16.msra.mxu0 %v966
    %1758 = vmatpush.bf16.msra.mxu0 %v962
    %1759 = vmatpush.bf16.msra.mxu0 %v958
    %1760 = vmatpush.bf16.msra.mxu0 %v954
    %1761 = vmatpush.bf16.msra.mxu0 %v950
    %1762 = vmatpush.bf16.msra.mxu0 %v946
    %1763 = vmatpush.bf16.msra.mxu0 %v942
    %1764 = vmatpush.bf16.msra.mxu0 %v938
    %1765 = vmatmul.bf16.gmra.mxu0 %v1665
    %v1766 = vpop.f32.mrf.mxu0
    %v1767 = vadd.f32 %v1715, %v1766
    %v1768 = vpop.f32.mrf.mxu0
    %1769 = vdwg.mxu0
    %v1770 = vadd.f32 %v1728, %v405
    %v1771 = vadd.f32 %v1741, %v406
    %v1772 = vadd.f32 %v1754, %v407
    %v1773 = vadd.f32 %v1767, %v408
    %v1774 = vxor.u32 %v1770, 2147483648
    %v1775 = vmul.f32 %v1774, 1.442695
    %v1776 = vpow.pop %v1775
    %v1777 = vadd.f32 %v1776, 1.0
    %v1778 = vrcp.pop %v1777
    %v1779 = vmul.f32 %v1777, %v1778
    %v1780 = vsub.f32 1.0, %v1779
    %v1781 = vmul.f32 %v1778, %v1780
    %v1782 = vadd.f32 %v1778, %v1781
    %vm1783 = vweird.f32 %v1777
    %vm1784 = vweird.f32 %v1778
    %vm1785 = vmor %vm1783, %vm1784
    %v1786 = vsel %vm1785, %v1778, %v1782
    %v1787 = vand.u32 2147483647, %v1777
    %vm1788 = vcmp.eq.f32.partialorder %v1787, 8.507059e+37
    %v1789 = vand.u32 %v1777, 2147483648
    %v1790 = vor.u32 1.1754944e-38, %v1789
    %v1791 = vsel %vm1788, %v1790, %v1786
    %v1792 = vmul.f32 1.0, %v1791
    %v1793 = vxor.u32 %v1771, 2147483648
    %v1794 = vmul.f32 %v1793, 1.442695
    %v1795 = vpow.pop %v1794
    %v1796 = vadd.f32 %v1795, 1.0
    %v1797 = vrcp.pop %v1796
    %v1798 = vmul.f32 %v1796, %v1797
    %v1799 = vsub.f32 1.0, %v1798
    %v1800 = vmul.f32 %v1797, %v1799
    %v1801 = vadd.f32 %v1797, %v1800
    %vm1802 = vweird.f32 %v1796
    %vm1803 = vweird.f32 %v1797
    %vm1804 = vmor %vm1802, %vm1803
    %v1805 = vsel %vm1804, %v1797, %v1801
    %v1806 = vand.u32 2147483647, %v1796
    %vm1807 = vcmp.eq.f32.partialorder %v1806, 8.507059e+37
    %v1808 = vand.u32 %v1796, 2147483648
    %v1809 = vor.u32 1.1754944e-38, %v1808
    %v1810 = vsel %vm1807, %v1809, %v1805
    %v1811 = vmul.f32 1.0, %v1810
    %v1812 = vtanh.pop %v1772
    %v1813 = vxor.u32 %v1773, 2147483648
    %v1814 = vmul.f32 %v1813, 1.442695
    %v1815 = vpow.pop %v1814
    %v1816 = vadd.f32 %v1815, 1.0
    %v1817 = vrcp.pop %v1816
    %v1818 = vmul.f32 %v1816, %v1817
    %v1819 = vsub.f32 1.0, %v1818
    %v1820 = vmul.f32 %v1817, %v1819
    %v1821 = vadd.f32 %v1817, %v1820
    %vm1822 = vweird.f32 %v1816
    %vm1823 = vweird.f32 %v1817
    %vm1824 = vmor %vm1822, %vm1823
    %v1825 = vsel %vm1824, %v1817, %v1821
    %v1826 = vand.u32 2147483647, %v1816
    %vm1827 = vcmp.eq.f32.partialorder %v1826, 8.507059e+37
    %v1828 = vand.u32 %v1816, 2147483648
    %v1829 = vor.u32 1.1754944e-38, %v1828
    %v1830 = vsel %vm1827, %v1829, %v1825
    %v1831 = vmul.f32 1.0, %v1830
    %v1832 = vmul.f32 %v1811, %v1594
    %v1833 = vmul.f32 %v1792, %v1812
    %v1834 = vadd.f32 %v1832, %v1833
    %v1835 = vtanh.pop %v1834
    %v1836 = vmul.f32 %v1831, %v1835
    %s1837 = scalar_lea.vmem [#allocation15], 24
    %1838 = vst [vmem:[%s1837] sm:$0xff] %v1836
    %v1839 = vpack.c.bf16 %v1836, %v1836
    %v1840 = vpack.c.bf16 %v1834, %v1834
    %s1841 = scalar_lea.vmem [#allocation3], 16
    %v1842 = vld [vmem:[%s1841] sm:$0xf]
    %s1843 = scalar_lea.vmem [#allocation2], 32
    %v1844 = vld [vmem:[%s1843] sm:$0xff]
    %1845 = vmatpush.bf16.msra.mxu0 %v462
    %1846 = vmatpush.bf16.msra.mxu0 %v461
    %1847 = vmatpush.bf16.msra.mxu0 %v460
    %1848 = vmatpush.bf16.msra.mxu0 %v459
    %1849 = vmatpush.bf16.msra.mxu0 %v458
    %1850 = vmatpush.bf16.msra.mxu0 %v457
    %1851 = vmatpush.bf16.msra.mxu0 %v456
    %1852 = vmatpush.bf16.msra.mxu0 %v455
    %1853 = vmatmul.bf16.gmra.mxu0 %v1839
    %v1854 = vpop.f32.mrf.mxu0
    %v1855 = vadd.f32 0.0, %v1854
    %v1856 = vpop.f32.mrf.mxu0
    %1857 = vdwg.mxu0
    %v1858 = vadd.f32 %v1844, %v1855
    %1859 = vmatpush.bf16.msra.mxu0 %v524
    %1860 = vmatpush.bf16.msra.mxu0 %v523
    %1861 = vmatpush.bf16.msra.mxu0 %v522
    %1862 = vmatpush.bf16.msra.mxu0 %v521
    %1863 = vmatpush.bf16.msra.mxu0 %v520
    %1864 = vmatpush.bf16.msra.mxu0 %v519
    %1865 = vmatpush.bf16.msra.mxu0 %v518
    %1866 = vmatpush.bf16.msra.mxu0 %v517
    %1867 = vmatmul.bf16.gmra.mxu0 %v1840
    %v1868 = vpop.f32.mrf.mxu0
    %v1869 = vadd.f32 0.0, %v1868
    %v1870 = vpop.f32.mrf.mxu0
    %1871 = vdwg.mxu0
    %v1872 = vadd.f32 %v1858, %v1869
    %v1873 = vtanh.pop %v1872
    %v1874 = vpack.c.bf16 %v1873, %v1873
    %1875 = vmatpush.bf16.msra.mxu0 %v588
    %1876 = vmatpush.bf16.msra.mxu0 %v587
    %1877 = vmatpush.bf16.msra.mxu0 %v586
    %1878 = vmatpush.bf16.msra.mxu0 %v585
    %1879 = vmatpush.bf16.msra.mxu0 %v584
    %1880 = vmatpush.bf16.msra.mxu0 %v583
    %1881 = vmatpush.bf16.msra.mxu0 %v582
    %1882 = vmatpush.bf16.msra.mxu0 %v581
    %1883 = vmatmul.bf16.gmra.mxu0 %v1874
    %v1884 = vpop.f32.mrf.mxu0
    %v1885 = vadd.f32 %v416, %v1884
    %v1886 = vpop.f32.mrf.mxu0
    %1887 = vdwg.mxu0
    %1888 = vmax.xlane.f32.xlu0 %v1885
    %v1889 = vpop.xlane.xlu0 %1888
    %v1890 = vsub.f32 %v1885, %v1889
    %v1891 = vmul.f32 %v1890, 1.442695
    %v1892 = vpow.pop %v1891
    %1893 = vadd.xlane.f32.xlu0 %v1892
    %v1894 = vpop.xlane.xlu0 %1893
    %v1895 = vrcp.pop %v1894
    %v1896 = vmul.f32 %v1894, %v1895
    %v1897 = vsub.f32 2.0, %v1896
    %v1898 = vmul.f32 %v1895, %v1897
    %v1899 = vmul.f32 %v1892, %v1898
    %v1900 = vpack.c.bf16 %v1899, %v1899
    %s1901 = scalar_lea.vmem [#allocation16], 16
    %1902 = vst [vmem:[%s1901] sm:$0xf] %v1900
    %v1903 = vunpack.c.l.bf16 %v1842
    %v1904 = vmul.f32 %v1899, %v1903
    %v1905 = vpack.c.bf16 %v1904, %v1904
    %1906 = vmatpush.bf16.msra.mxu0 %v751
    %1907 = vmatpush.bf16.msra.mxu0 %v747
    %1908 = vmatpush.bf16.msra.mxu0 %v743
    %1909 = vmatpush.bf16.msra.mxu0 %v739
    %1910 = vmatpush.bf16.msra.mxu0 %v735
    %1911 = vmatpush.bf16.msra.mxu0 %v731
    %1912 = vmatpush.bf16.msra.mxu0 %v727
    %1913 = vmatpush.bf16.msra.mxu0 %v723
    %1914 = vmatmul.bf16.gmra.mxu0 %v1839
    %v1915 = vpop.f32.mrf.mxu0
    %v1916 = vadd.f32 0.0, %v1915
    %v1917 = vpop.f32.mrf.mxu0
    %1918 = vdwg.mxu0
    %1919 = vmatpush.bf16.msra.mxu0 %v752
    %1920 = vmatpush.bf16.msra.mxu0 %v748
    %1921 = vmatpush.bf16.msra.mxu0 %v744
    %1922 = vmatpush.bf16.msra.mxu0 %v740
    %1923 = vmatpush.bf16.msra.mxu0 %v736
    %1924 = vmatpush.bf16.msra.mxu0 %v732
    %1925 = vmatpush.bf16.msra.mxu0 %v728
    %1926 = vmatpush.bf16.msra.mxu0 %v724
    %1927 = vmatmul.bf16.gmra.mxu0 %v1839
    %v1928 = vpop.f32.mrf.mxu0
    %v1929 = vadd.f32 0.0, %v1928
    %v1930 = vpop.f32.mrf.mxu0
    %1931 = vdwg.mxu0
    %1932 = vmatpush.bf16.msra.mxu0 %v753
    %1933 = vmatpush.bf16.msra.mxu0 %v749
    %1934 = vmatpush.bf16.msra.mxu0 %v745
    %1935 = vmatpush.bf16.msra.mxu0 %v741
    %1936 = vmatpush.bf16.msra.mxu0 %v737
    %1937 = vmatpush.bf16.msra.mxu0 %v733
    %1938 = vmatpush.bf16.msra.mxu0 %v729
    %1939 = vmatpush.bf16.msra.mxu0 %v725
    %1940 = vmatmul.bf16.gmra.mxu0 %v1839
    %v1941 = vpop.f32.mrf.mxu0
    %v1942 = vadd.f32 0.0, %v1941
    %v1943 = vpop.f32.mrf.mxu0
    %1944 = vdwg.mxu0
    %1945 = vmatpush.bf16.msra.mxu0 %v754
    %1946 = vmatpush.bf16.msra.mxu0 %v750
    %1947 = vmatpush.bf16.msra.mxu0 %v746
    %1948 = vmatpush.bf16.msra.mxu0 %v742
    %1949 = vmatpush.bf16.msra.mxu0 %v738
    %1950 = vmatpush.bf16.msra.mxu0 %v734
    %1951 = vmatpush.bf16.msra.mxu0 %v730
    %1952 = vmatpush.bf16.msra.mxu0 %v726
    %1953 = vmatmul.bf16.gmra.mxu0 %v1839
    %v1954 = vpop.f32.mrf.mxu0
    %v1955 = vadd.f32 0.0, %v1954
    %v1956 = vpop.f32.mrf.mxu0
    %1957 = vdwg.mxu0
    %1958 = vmatpush.bf16.msra.mxu0 %v963
    %1959 = vmatpush.bf16.msra.mxu0 %v959
    %1960 = vmatpush.bf16.msra.mxu0 %v955
    %1961 = vmatpush.bf16.msra.mxu0 %v951
    %1962 = vmatpush.bf16.msra.mxu0 %v947
    %1963 = vmatpush.bf16.msra.mxu0 %v943
    %1964 = vmatpush.bf16.msra.mxu0 %v939
    %1965 = vmatpush.bf16.msra.mxu0 %v935
    %1966 = vmatmul.bf16.gmra.mxu0 %v1905
    %v1967 = vpop.f32.mrf.mxu0
    %v1968 = vadd.f32 %v1916, %v1967
    %v1969 = vpop.f32.mrf.mxu0
    %1970 = vdwg.mxu0
    %1971 = vmatpush.bf16.msra.mxu0 %v964
    %1972 = vmatpush.bf16.msra.mxu0 %v960
    %1973 = vmatpush.bf16.msra.mxu0 %v956
    %1974 = vmatpush.bf16.msra.mxu0 %v952
    %1975 = vmatpush.bf16.msra.mxu0 %v948
    %1976 = vmatpush.bf16.msra.mxu0 %v944
    %1977 = vmatpush.bf16.msra.mxu0 %v940
    %1978 = vmatpush.bf16.msra.mxu0 %v936
    %1979 = vmatmul.bf16.gmra.mxu0 %v1905
    %v1980 = vpop.f32.mrf.mxu0
    %v1981 = vadd.f32 %v1929, %v1980
    %v1982 = vpop.f32.mrf.mxu0
    %1983 = vdwg.mxu0
    %1984 = vmatpush.bf16.msra.mxu0 %v965
    %1985 = vmatpush.bf16.msra.mxu0 %v961
    %1986 = vmatpush.bf16.msra.mxu0 %v957
    %1987 = vmatpush.bf16.msra.mxu0 %v953
    %1988 = vmatpush.bf16.msra.mxu0 %v949
    %1989 = vmatpush.bf16.msra.mxu0 %v945
    %1990 = vmatpush.bf16.msra.mxu0 %v941
    %1991 = vmatpush.bf16.msra.mxu0 %v937
    %1992 = vmatmul.bf16.gmra.mxu0 %v1905
    %v1993 = vpop.f32.mrf.mxu0
    %v1994 = vadd.f32 %v1942, %v1993
    %v1995 = vpop.f32.mrf.mxu0
    %1996 = vdwg.mxu0
    %1997 = vmatpush.bf16.msra.mxu0 %v966
    %1998 = vmatpush.bf16.msra.mxu0 %v962
    %1999 = vmatpush.bf16.msra.mxu0 %v958
    %2000 = vmatpush.bf16.msra.mxu0 %v954
    %2001 = vmatpush.bf16.msra.mxu0 %v950
    %2002 = vmatpush.bf16.msra.mxu0 %v946
    %2003 = vmatpush.bf16.msra.mxu0 %v942
    %2004 = vmatpush.bf16.msra.mxu0 %v938
    %2005 = vmatmul.bf16.gmra.mxu0 %v1905
    %v2006 = vpop.f32.mrf.mxu0
    %v2007 = vadd.f32 %v1955, %v2006
    %v2008 = vpop.f32.mrf.mxu0
    %2009 = vdwg.mxu0
    %v2010 = vadd.f32 %v1968, %v405
    %v2011 = vadd.f32 %v1981, %v406
    %v2012 = vadd.f32 %v1994, %v407
    %v2013 = vadd.f32 %v2007, %v408
    %v2014 = vxor.u32 %v2010, 2147483648
    %v2015 = vmul.f32 %v2014, 1.442695
    %v2016 = vpow.pop %v2015
    %v2017 = vadd.f32 %v2016, 1.0
    %v2018 = vrcp.pop %v2017
    %v2019 = vmul.f32 %v2017, %v2018
    %v2020 = vsub.f32 1.0, %v2019
    %v2021 = vmul.f32 %v2018, %v2020
    %v2022 = vadd.f32 %v2018, %v2021
    %vm2023 = vweird.f32 %v2017
    %vm2024 = vweird.f32 %v2018
    %vm2025 = vmor %vm2023, %vm2024
    %v2026 = vsel %vm2025, %v2018, %v2022
    %v2027 = vand.u32 2147483647, %v2017
    %vm2028 = vcmp.eq.f32.partialorder %v2027, 8.507059e+37
    %v2029 = vand.u32 %v2017, 2147483648
    %v2030 = vor.u32 1.1754944e-38, %v2029
    %v2031 = vsel %vm2028, %v2030, %v2026
    %v2032 = vmul.f32 1.0, %v2031
    %v2033 = vxor.u32 %v2011, 2147483648
    %v2034 = vmul.f32 %v2033, 1.442695
    %v2035 = vpow.pop %v2034
    %v2036 = vadd.f32 %v2035, 1.0
    %v2037 = vrcp.pop %v2036
    %v2038 = vmul.f32 %v2036, %v2037
    %v2039 = vsub.f32 1.0, %v2038
    %v2040 = vmul.f32 %v2037, %v2039
    %v2041 = vadd.f32 %v2037, %v2040
    %vm2042 = vweird.f32 %v2036
    %vm2043 = vweird.f32 %v2037
    %vm2044 = vmor %vm2042, %vm2043
    %v2045 = vsel %vm2044, %v2037, %v2041
    %v2046 = vand.u32 2147483647, %v2036
    %vm2047 = vcmp.eq.f32.partialorder %v2046, 8.507059e+37
    %v2048 = vand.u32 %v2036, 2147483648
    %v2049 = vor.u32 1.1754944e-38, %v2048
    %v2050 = vsel %vm2047, %v2049, %v2045
    %v2051 = vmul.f32 1.0, %v2050
    %v2052 = vtanh.pop %v2012
    %v2053 = vxor.u32 %v2013, 2147483648
    %v2054 = vmul.f32 %v2053, 1.442695
    %v2055 = vpow.pop %v2054
    %v2056 = vadd.f32 %v2055, 1.0
    %v2057 = vrcp.pop %v2056
    %v2058 = vmul.f32 %v2056, %v2057
    %v2059 = vsub.f32 1.0, %v2058
    %v2060 = vmul.f32 %v2057, %v2059
    %v2061 = vadd.f32 %v2057, %v2060
    %vm2062 = vweird.f32 %v2056
    %vm2063 = vweird.f32 %v2057
    %vm2064 = vmor %vm2062, %vm2063
    %v2065 = vsel %vm2064, %v2057, %v2061
    %v2066 = vand.u32 2147483647, %v2056
    %vm2067 = vcmp.eq.f32.partialorder %v2066, 8.507059e+37
    %v2068 = vand.u32 %v2056, 2147483648
    %v2069 = vor.u32 1.1754944e-38, %v2068
    %v2070 = vsel %vm2067, %v2069, %v2065
    %v2071 = vmul.f32 1.0, %v2070
    %v2072 = vmul.f32 %v2051, %v1834
    %v2073 = vmul.f32 %v2032, %v2052
    %v2074 = vadd.f32 %v2072, %v2073
    %v2075 = vtanh.pop %v2074
    %v2076 = vmul.f32 %v2071, %v2075
    %s2077 = scalar_lea.vmem [#allocation15], 32
    %2078 = vst [vmem:[%s2077] sm:$0xff] %v2076
    %v2079 = vpack.c.bf16 %v2076, %v2076
    %v2080 = vpack.c.bf16 %v2074, %v2074
    %s2081 = scalar_lea.vmem [#allocation3], 20
    %v2082 = vld [vmem:[%s2081] sm:$0xf]
    %s2083 = scalar_lea.vmem [#allocation2], 40
    %v2084 = vld [vmem:[%s2083] sm:$0xff]
    %2085 = vmatpush.bf16.msra.mxu0 %v462
    %2086 = vmatpush.bf16.msra.mxu0 %v461
    %2087 = vmatpush.bf16.msra.mxu0 %v460
    %2088 = vmatpush.bf16.msra.mxu0 %v459
    %2089 = vmatpush.bf16.msra.mxu0 %v458
    %2090 = vmatpush.bf16.msra.mxu0 %v457
    %2091 = vmatpush.bf16.msra.mxu0 %v456
    %2092 = vmatpush.bf16.msra.mxu0 %v455
    %2093 = vmatmul.bf16.gmra.mxu0 %v2079
    %v2094 = vpop.f32.mrf.mxu0
    %v2095 = vadd.f32 0.0, %v2094
    %v2096 = vpop.f32.mrf.mxu0
    %2097 = vdwg.mxu0
    %v2098 = vadd.f32 %v2084, %v2095
    %2099 = vmatpush.bf16.msra.mxu0 %v524
    %2100 = vmatpush.bf16.msra.mxu0 %v523
    %2101 = vmatpush.bf16.msra.mxu0 %v522
    %2102 = vmatpush.bf16.msra.mxu0 %v521
    %2103 = vmatpush.bf16.msra.mxu0 %v520
    %2104 = vmatpush.bf16.msra.mxu0 %v519
    %2105 = vmatpush.bf16.msra.mxu0 %v518
    %2106 = vmatpush.bf16.msra.mxu0 %v517
    %2107 = vmatmul.bf16.gmra.mxu0 %v2080
    %v2108 = vpop.f32.mrf.mxu0
    %v2109 = vadd.f32 0.0, %v2108
    %v2110 = vpop.f32.mrf.mxu0
    %2111 = vdwg.mxu0
    %v2112 = vadd.f32 %v2098, %v2109
    %v2113 = vtanh.pop %v2112
    %v2114 = vpack.c.bf16 %v2113, %v2113
    %2115 = vmatpush.bf16.msra.mxu0 %v588
    %2116 = vmatpush.bf16.msra.mxu0 %v587
    %2117 = vmatpush.bf16.msra.mxu0 %v586
    %2118 = vmatpush.bf16.msra.mxu0 %v585
    %2119 = vmatpush.bf16.msra.mxu0 %v584
    %2120 = vmatpush.bf16.msra.mxu0 %v583
    %2121 = vmatpush.bf16.msra.mxu0 %v582
    %2122 = vmatpush.bf16.msra.mxu0 %v581
    %2123 = vmatmul.bf16.gmra.mxu0 %v2114
    %v2124 = vpop.f32.mrf.mxu0
    %v2125 = vadd.f32 %v416, %v2124
    %v2126 = vpop.f32.mrf.mxu0
    %2127 = vdwg.mxu0
    %2128 = vmax.xlane.f32.xlu0 %v2125
    %v2129 = vpop.xlane.xlu0 %2128
    %v2130 = vsub.f32 %v2125, %v2129
    %v2131 = vmul.f32 %v2130, 1.442695
    %v2132 = vpow.pop %v2131
    %2133 = vadd.xlane.f32.xlu0 %v2132
    %v2134 = vpop.xlane.xlu0 %2133
    %v2135 = vrcp.pop %v2134
    %v2136 = vmul.f32 %v2134, %v2135
    %v2137 = vsub.f32 2.0, %v2136
    %v2138 = vmul.f32 %v2135, %v2137
    %v2139 = vmul.f32 %v2132, %v2138
    %v2140 = vpack.c.bf16 %v2139, %v2139
    %s2141 = scalar_lea.vmem [#allocation16], 20
    %2142 = vst [vmem:[%s2141] sm:$0xf] %v2140
    %v2143 = vunpack.c.l.bf16 %v2082
    %v2144 = vmul.f32 %v2139, %v2143
    %v2145 = vpack.c.bf16 %v2144, %v2144
    %2146 = vmatpush.bf16.msra.mxu0 %v751
    %2147 = vmatpush.bf16.msra.mxu0 %v747
    %2148 = vmatpush.bf16.msra.mxu0 %v743
    %2149 = vmatpush.bf16.msra.mxu0 %v739
    %2150 = vmatpush.bf16.msra.mxu0 %v735
    %2151 = vmatpush.bf16.msra.mxu0 %v731
    %2152 = vmatpush.bf16.msra.mxu0 %v727
    %2153 = vmatpush.bf16.msra.mxu0 %v723
    %2154 = vmatmul.bf16.gmra.mxu0 %v2079
    %v2155 = vpop.f32.mrf.mxu0
    %v2156 = vadd.f32 0.0, %v2155
    %v2157 = vpop.f32.mrf.mxu0
    %2158 = vdwg.mxu0
    %2159 = vmatpush.bf16.msra.mxu0 %v752
    %2160 = vmatpush.bf16.msra.mxu0 %v748
    %2161 = vmatpush.bf16.msra.mxu0 %v744
    %2162 = vmatpush.bf16.msra.mxu0 %v740
    %2163 = vmatpush.bf16.msra.mxu0 %v736
    %2164 = vmatpush.bf16.msra.mxu0 %v732
    %2165 = vmatpush.bf16.msra.mxu0 %v728
    %2166 = vmatpush.bf16.msra.mxu0 %v724
    %2167 = vmatmul.bf16.gmra.mxu0 %v2079
    %v2168 = vpop.f32.mrf.mxu0
    %v2169 = vadd.f32 0.0, %v2168
    %v2170 = vpop.f32.mrf.mxu0
    %2171 = vdwg.mxu0
    %2172 = vmatpush.bf16.msra.mxu0 %v753
    %2173 = vmatpush.bf16.msra.mxu0 %v749
    %2174 = vmatpush.bf16.msra.mxu0 %v745
    %2175 = vmatpush.bf16.msra.mxu0 %v741
    %2176 = vmatpush.bf16.msra.mxu0 %v737
    %2177 = vmatpush.bf16.msra.mxu0 %v733
    %2178 = vmatpush.bf16.msra.mxu0 %v729
    %2179 = vmatpush.bf16.msra.mxu0 %v725
    %2180 = vmatmul.bf16.gmra.mxu0 %v2079
    %v2181 = vpop.f32.mrf.mxu0
    %v2182 = vadd.f32 0.0, %v2181
    %v2183 = vpop.f32.mrf.mxu0
    %2184 = vdwg.mxu0
    %2185 = vmatpush.bf16.msra.mxu0 %v754
    %2186 = vmatpush.bf16.msra.mxu0 %v750
    %2187 = vmatpush.bf16.msra.mxu0 %v746
    %2188 = vmatpush.bf16.msra.mxu0 %v742
    %2189 = vmatpush.bf16.msra.mxu0 %v738
    %2190 = vmatpush.bf16.msra.mxu0 %v734
    %2191 = vmatpush.bf16.msra.mxu0 %v730
    %2192 = vmatpush.bf16.msra.mxu0 %v726
    %2193 = vmatmul.bf16.gmra.mxu0 %v2079
    %v2194 = vpop.f32.mrf.mxu0
    %v2195 = vadd.f32 0.0, %v2194
    %v2196 = vpop.f32.mrf.mxu0
    %2197 = vdwg.mxu0
    %2198 = vmatpush.bf16.msra.mxu0 %v963
    %2199 = vmatpush.bf16.msra.mxu0 %v959
    %2200 = vmatpush.bf16.msra.mxu0 %v955
    %2201 = vmatpush.bf16.msra.mxu0 %v951
    %2202 = vmatpush.bf16.msra.mxu0 %v947
    %2203 = vmatpush.bf16.msra.mxu0 %v943
    %2204 = vmatpush.bf16.msra.mxu0 %v939
    %2205 = vmatpush.bf16.msra.mxu0 %v935
    %2206 = vmatmul.bf16.gmra.mxu0 %v2145
    %v2207 = vpop.f32.mrf.mxu0
    %v2208 = vadd.f32 %v2156, %v2207
    %v2209 = vpop.f32.mrf.mxu0
    %2210 = vdwg.mxu0
    %2211 = vmatpush.bf16.msra.mxu0 %v964
    %2212 = vmatpush.bf16.msra.mxu0 %v960
    %2213 = vmatpush.bf16.msra.mxu0 %v956
    %2214 = vmatpush.bf16.msra.mxu0 %v952
    %2215 = vmatpush.bf16.msra.mxu0 %v948
    %2216 = vmatpush.bf16.msra.mxu0 %v944
    %2217 = vmatpush.bf16.msra.mxu0 %v940
    %2218 = vmatpush.bf16.msra.mxu0 %v936
    %2219 = vmatmul.bf16.gmra.mxu0 %v2145
    %v2220 = vpop.f32.mrf.mxu0
    %v2221 = vadd.f32 %v2169, %v2220
    %v2222 = vpop.f32.mrf.mxu0
    %2223 = vdwg.mxu0
    %2224 = vmatpush.bf16.msra.mxu0 %v965
    %2225 = vmatpush.bf16.msra.mxu0 %v961
    %2226 = vmatpush.bf16.msra.mxu0 %v957
    %2227 = vmatpush.bf16.msra.mxu0 %v953
    %2228 = vmatpush.bf16.msra.mxu0 %v949
    %2229 = vmatpush.bf16.msra.mxu0 %v945
    %2230 = vmatpush.bf16.msra.mxu0 %v941
    %2231 = vmatpush.bf16.msra.mxu0 %v937
    %2232 = vmatmul.bf16.gmra.mxu0 %v2145
    %v2233 = vpop.f32.mrf.mxu0
    %v2234 = vadd.f32 %v2182, %v2233
    %v2235 = vpop.f32.mrf.mxu0
    %2236 = vdwg.mxu0
    %2237 = vmatpush.bf16.msra.mxu0 %v966
    %2238 = vmatpush.bf16.msra.mxu0 %v962
    %2239 = vmatpush.bf16.msra.mxu0 %v958
    %2240 = vmatpush.bf16.msra.mxu0 %v954
    %2241 = vmatpush.bf16.msra.mxu0 %v950
    %2242 = vmatpush.bf16.msra.mxu0 %v946
    %2243 = vmatpush.bf16.msra.mxu0 %v942
    %2244 = vmatpush.bf16.msra.mxu0 %v938
    %2245 = vmatmul.bf16.gmra.mxu0 %v2145
    %v2246 = vpop.f32.mrf.mxu0
    %v2247 = vadd.f32 %v2195, %v2246
    %v2248 = vpop.f32.mrf.mxu0
    %2249 = vdwg.mxu0
    %v2250 = vadd.f32 %v2208, %v405
    %v2251 = vadd.f32 %v2221, %v406
    %v2252 = vadd.f32 %v2234, %v407
    %v2253 = vadd.f32 %v2247, %v408
    %v2254 = vxor.u32 %v2250, 2147483648
    %v2255 = vmul.f32 %v2254, 1.442695
    %v2256 = vpow.pop %v2255
    %v2257 = vadd.f32 %v2256, 1.0
    %v2258 = vrcp.pop %v2257
    %v2259 = vmul.f32 %v2257, %v2258
    %v2260 = vsub.f32 1.0, %v2259
    %v2261 = vmul.f32 %v2258, %v2260
    %v2262 = vadd.f32 %v2258, %v2261
    %vm2263 = vweird.f32 %v2257
    %vm2264 = vweird.f32 %v2258
    %vm2265 = vmor %vm2263, %vm2264
    %v2266 = vsel %vm2265, %v2258, %v2262
    %v2267 = vand.u32 2147483647, %v2257
    %vm2268 = vcmp.eq.f32.partialorder %v2267, 8.507059e+37
    %v2269 = vand.u32 %v2257, 2147483648
    %v2270 = vor.u32 1.1754944e-38, %v2269
    %v2271 = vsel %vm2268, %v2270, %v2266
    %v2272 = vmul.f32 1.0, %v2271
    %v2273 = vxor.u32 %v2251, 2147483648
    %v2274 = vmul.f32 %v2273, 1.442695
    %v2275 = vpow.pop %v2274
    %v2276 = vadd.f32 %v2275, 1.0
    %v2277 = vrcp.pop %v2276
    %v2278 = vmul.f32 %v2276, %v2277
    %v2279 = vsub.f32 1.0, %v2278
    %v2280 = vmul.f32 %v2277, %v2279
    %v2281 = vadd.f32 %v2277, %v2280
    %vm2282 = vweird.f32 %v2276
    %vm2283 = vweird.f32 %v2277
    %vm2284 = vmor %vm2282, %vm2283
    %v2285 = vsel %vm2284, %v2277, %v2281
    %v2286 = vand.u32 2147483647, %v2276
    %vm2287 = vcmp.eq.f32.partialorder %v2286, 8.507059e+37
    %v2288 = vand.u32 %v2276, 2147483648
    %v2289 = vor.u32 1.1754944e-38, %v2288
    %v2290 = vsel %vm2287, %v2289, %v2285
    %v2291 = vmul.f32 1.0, %v2290
    %v2292 = vtanh.pop %v2252
    %v2293 = vxor.u32 %v2253, 2147483648
    %v2294 = vmul.f32 %v2293, 1.442695
    %v2295 = vpow.pop %v2294
    %v2296 = vadd.f32 %v2295, 1.0
    %v2297 = vrcp.pop %v2296
    %v2298 = vmul.f32 %v2296, %v2297
    %v2299 = vsub.f32 1.0, %v2298
    %v2300 = vmul.f32 %v2297, %v2299
    %v2301 = vadd.f32 %v2297, %v2300
    %vm2302 = vweird.f32 %v2296
    %vm2303 = vweird.f32 %v2297
    %vm2304 = vmor %vm2302, %vm2303
    %v2305 = vsel %vm2304, %v2297, %v2301
    %v2306 = vand.u32 2147483647, %v2296
    %vm2307 = vcmp.eq.f32.partialorder %v2306, 8.507059e+37
    %v2308 = vand.u32 %v2296, 2147483648
    %v2309 = vor.u32 1.1754944e-38, %v2308
    %v2310 = vsel %vm2307, %v2309, %v2305
    %v2311 = vmul.f32 1.0, %v2310
    %v2312 = vmul.f32 %v2291, %v2074
    %v2313 = vmul.f32 %v2272, %v2292
    %v2314 = vadd.f32 %v2312, %v2313
    %v2315 = vtanh.pop %v2314
    %v2316 = vmul.f32 %v2311, %v2315
    %s2317 = scalar_lea.vmem [#allocation15], 40
    %2318 = vst [vmem:[%s2317] sm:$0xff] %v2316
    %v2319 = vpack.c.bf16 %v2316, %v2316
    %v2320 = vpack.c.bf16 %v2314, %v2314
    %s2321 = scalar_lea.vmem [#allocation3], 24
    %v2322 = vld [vmem:[%s2321] sm:$0xf]
    %s2323 = scalar_lea.vmem [#allocation2], 48
    %v2324 = vld [vmem:[%s2323] sm:$0xff]
    %2325 = vmatpush.bf16.msra.mxu0 %v462
    %2326 = vmatpush.bf16.msra.mxu0 %v461
    %2327 = vmatpush.bf16.msra.mxu0 %v460
    %2328 = vmatpush.bf16.msra.mxu0 %v459
    %2329 = vmatpush.bf16.msra.mxu0 %v458
    %2330 = vmatpush.bf16.msra.mxu0 %v457
    %2331 = vmatpush.bf16.msra.mxu0 %v456
    %2332 = vmatpush.bf16.msra.mxu0 %v455
    %2333 = vmatmul.bf16.gmra.mxu0 %v2319
    %v2334 = vpop.f32.mrf.mxu0
    %v2335 = vadd.f32 0.0, %v2334
    %v2336 = vpop.f32.mrf.mxu0
    %2337 = vdwg.mxu0
    %v2338 = vadd.f32 %v2324, %v2335
    %2339 = vmatpush.bf16.msra.mxu0 %v524
    %2340 = vmatpush.bf16.msra.mxu0 %v523
    %2341 = vmatpush.bf16.msra.mxu0 %v522
    %2342 = vmatpush.bf16.msra.mxu0 %v521
    %2343 = vmatpush.bf16.msra.mxu0 %v520
    %2344 = vmatpush.bf16.msra.mxu0 %v519
    %2345 = vmatpush.bf16.msra.mxu0 %v518
    %2346 = vmatpush.bf16.msra.mxu0 %v517
    %2347 = vmatmul.bf16.gmra.mxu0 %v2320
    %v2348 = vpop.f32.mrf.mxu0
    %v2349 = vadd.f32 0.0, %v2348
    %v2350 = vpop.f32.mrf.mxu0
    %2351 = vdwg.mxu0
    %v2352 = vadd.f32 %v2338, %v2349
    %v2353 = vtanh.pop %v2352
    %v2354 = vpack.c.bf16 %v2353, %v2353
    %2355 = vmatpush.bf16.msra.mxu0 %v588
    %2356 = vmatpush.bf16.msra.mxu0 %v587
    %2357 = vmatpush.bf16.msra.mxu0 %v586
    %2358 = vmatpush.bf16.msra.mxu0 %v585
    %2359 = vmatpush.bf16.msra.mxu0 %v584
    %2360 = vmatpush.bf16.msra.mxu0 %v583
    %2361 = vmatpush.bf16.msra.mxu0 %v582
    %2362 = vmatpush.bf16.msra.mxu0 %v581
    %2363 = vmatmul.bf16.gmra.mxu0 %v2354
    %v2364 = vpop.f32.mrf.mxu0
    %v2365 = vadd.f32 %v416, %v2364
    %v2366 = vpop.f32.mrf.mxu0
    %2367 = vdwg.mxu0
    %2368 = vmax.xlane.f32.xlu0 %v2365
    %v2369 = vpop.xlane.xlu0 %2368
    %v2370 = vsub.f32 %v2365, %v2369
    %v2371 = vmul.f32 %v2370, 1.442695
    %v2372 = vpow.pop %v2371
    %2373 = vadd.xlane.f32.xlu0 %v2372
    %v2374 = vpop.xlane.xlu0 %2373
    %v2375 = vrcp.pop %v2374
    %v2376 = vmul.f32 %v2374, %v2375
    %v2377 = vsub.f32 2.0, %v2376
    %v2378 = vmul.f32 %v2375, %v2377
    %v2379 = vmul.f32 %v2372, %v2378
    %v2380 = vpack.c.bf16 %v2379, %v2379
    %s2381 = scalar_lea.vmem [#allocation16], 24
    %2382 = vst [vmem:[%s2381] sm:$0xf] %v2380
    %v2383 = vunpack.c.l.bf16 %v2322
    %v2384 = vmul.f32 %v2379, %v2383
    %v2385 = vpack.c.bf16 %v2384, %v2384
    %2386 = vmatpush.bf16.msra.mxu0 %v751
    %2387 = vmatpush.bf16.msra.mxu0 %v747
    %2388 = vmatpush.bf16.msra.mxu0 %v743
    %2389 = vmatpush.bf16.msra.mxu0 %v739
    %2390 = vmatpush.bf16.msra.mxu0 %v735
    %2391 = vmatpush.bf16.msra.mxu0 %v731
    %2392 = vmatpush.bf16.msra.mxu0 %v727
    %2393 = vmatpush.bf16.msra.mxu0 %v723
    %2394 = vmatmul.bf16.gmra.mxu0 %v2319
    %v2395 = vpop.f32.mrf.mxu0
    %v2396 = vadd.f32 0.0, %v2395
    %v2397 = vpop.f32.mrf.mxu0
    %2398 = vdwg.mxu0
    %2399 = vmatpush.bf16.msra.mxu0 %v752
    %2400 = vmatpush.bf16.msra.mxu0 %v748
    %2401 = vmatpush.bf16.msra.mxu0 %v744
    %2402 = vmatpush.bf16.msra.mxu0 %v740
    %2403 = vmatpush.bf16.msra.mxu0 %v736
    %2404 = vmatpush.bf16.msra.mxu0 %v732
    %2405 = vmatpush.bf16.msra.mxu0 %v728
    %2406 = vmatpush.bf16.msra.mxu0 %v724
    %2407 = vmatmul.bf16.gmra.mxu0 %v2319
    %v2408 = vpop.f32.mrf.mxu0
    %v2409 = vadd.f32 0.0, %v2408
    %v2410 = vpop.f32.mrf.mxu0
    %2411 = vdwg.mxu0
    %2412 = vmatpush.bf16.msra.mxu0 %v753
    %2413 = vmatpush.bf16.msra.mxu0 %v749
    %2414 = vmatpush.bf16.msra.mxu0 %v745
    %2415 = vmatpush.bf16.msra.mxu0 %v741
    %2416 = vmatpush.bf16.msra.mxu0 %v737
    %2417 = vmatpush.bf16.msra.mxu0 %v733
    %2418 = vmatpush.bf16.msra.mxu0 %v729
    %2419 = vmatpush.bf16.msra.mxu0 %v725
    %2420 = vmatmul.bf16.gmra.mxu0 %v2319
    %v2421 = vpop.f32.mrf.mxu0
    %v2422 = vadd.f32 0.0, %v2421
    %v2423 = vpop.f32.mrf.mxu0
    %2424 = vdwg.mxu0
    %2425 = vmatpush.bf16.msra.mxu0 %v754
    %2426 = vmatpush.bf16.msra.mxu0 %v750
    %2427 = vmatpush.bf16.msra.mxu0 %v746
    %2428 = vmatpush.bf16.msra.mxu0 %v742
    %2429 = vmatpush.bf16.msra.mxu0 %v738
    %2430 = vmatpush.bf16.msra.mxu0 %v734
    %2431 = vmatpush.bf16.msra.mxu0 %v730
    %2432 = vmatpush.bf16.msra.mxu0 %v726
    %2433 = vmatmul.bf16.gmra.mxu0 %v2319
    %v2434 = vpop.f32.mrf.mxu0
    %v2435 = vadd.f32 0.0, %v2434
    %v2436 = vpop.f32.mrf.mxu0
    %2437 = vdwg.mxu0
    %2438 = vmatpush.bf16.msra.mxu0 %v963
    %2439 = vmatpush.bf16.msra.mxu0 %v959
    %2440 = vmatpush.bf16.msra.mxu0 %v955
    %2441 = vmatpush.bf16.msra.mxu0 %v951
    %2442 = vmatpush.bf16.msra.mxu0 %v947
    %2443 = vmatpush.bf16.msra.mxu0 %v943
    %2444 = vmatpush.bf16.msra.mxu0 %v939
    %2445 = vmatpush.bf16.msra.mxu0 %v935
    %2446 = vmatmul.bf16.gmra.mxu0 %v2385
    %v2447 = vpop.f32.mrf.mxu0
    %v2448 = vadd.f32 %v2396, %v2447
    %v2449 = vpop.f32.mrf.mxu0
    %2450 = vdwg.mxu0
    %2451 = vmatpush.bf16.msra.mxu0 %v964
    %2452 = vmatpush.bf16.msra.mxu0 %v960
    %2453 = vmatpush.bf16.msra.mxu0 %v956
    %2454 = vmatpush.bf16.msra.mxu0 %v952
    %2455 = vmatpush.bf16.msra.mxu0 %v948
    %2456 = vmatpush.bf16.msra.mxu0 %v944
    %2457 = vmatpush.bf16.msra.mxu0 %v940
    %2458 = vmatpush.bf16.msra.mxu0 %v936
    %2459 = vmatmul.bf16.gmra.mxu0 %v2385
    %v2460 = vpop.f32.mrf.mxu0
    %v2461 = vadd.f32 %v2409, %v2460
    %v2462 = vpop.f32.mrf.mxu0
    %2463 = vdwg.mxu0
    %2464 = vmatpush.bf16.msra.mxu0 %v965
    %2465 = vmatpush.bf16.msra.mxu0 %v961
    %2466 = vmatpush.bf16.msra.mxu0 %v957
    %2467 = vmatpush.bf16.msra.mxu0 %v953
    %2468 = vmatpush.bf16.msra.mxu0 %v949
    %2469 = vmatpush.bf16.msra.mxu0 %v945
    %2470 = vmatpush.bf16.msra.mxu0 %v941
    %2471 = vmatpush.bf16.msra.mxu0 %v937
    %2472 = vmatmul.bf16.gmra.mxu0 %v2385
    %v2473 = vpop.f32.mrf.mxu0
    %v2474 = vadd.f32 %v2422, %v2473
    %v2475 = vpop.f32.mrf.mxu0
    %2476 = vdwg.mxu0
    %2477 = vmatpush.bf16.msra.mxu0 %v966
    %2478 = vmatpush.bf16.msra.mxu0 %v962
    %2479 = vmatpush.bf16.msra.mxu0 %v958
    %2480 = vmatpush.bf16.msra.mxu0 %v954
    %2481 = vmatpush.bf16.msra.mxu0 %v950
    %2482 = vmatpush.bf16.msra.mxu0 %v946
    %2483 = vmatpush.bf16.msra.mxu0 %v942
    %2484 = vmatpush.bf16.msra.mxu0 %v938
    %2485 = vmatmul.bf16.gmra.mxu0 %v2385
    %v2486 = vpop.f32.mrf.mxu0
    %v2487 = vadd.f32 %v2435, %v2486
    %v2488 = vpop.f32.mrf.mxu0
    %2489 = vdwg.mxu0
    %v2490 = vadd.f32 %v2448, %v405
    %v2491 = vadd.f32 %v2461, %v406
    %v2492 = vadd.f32 %v2474, %v407
    %v2493 = vadd.f32 %v2487, %v408
    %v2494 = vxor.u32 %v2490, 2147483648
    %v2495 = vmul.f32 %v2494, 1.442695
    %v2496 = vpow.pop %v2495
    %v2497 = vadd.f32 %v2496, 1.0
    %v2498 = vrcp.pop %v2497
    %v2499 = vmul.f32 %v2497, %v2498
    %v2500 = vsub.f32 1.0, %v2499
    %v2501 = vmul.f32 %v2498, %v2500
    %v2502 = vadd.f32 %v2498, %v2501
    %vm2503 = vweird.f32 %v2497
    %vm2504 = vweird.f32 %v2498
    %vm2505 = vmor %vm2503, %vm2504
    %v2506 = vsel %vm2505, %v2498, %v2502
    %v2507 = vand.u32 2147483647, %v2497
    %vm2508 = vcmp.eq.f32.partialorder %v2507, 8.507059e+37
    %v2509 = vand.u32 %v2497, 2147483648
    %v2510 = vor.u32 1.1754944e-38, %v2509
    %v2511 = vsel %vm2508, %v2510, %v2506
    %v2512 = vmul.f32 1.0, %v2511
    %v2513 = vxor.u32 %v2491, 2147483648
    %v2514 = vmul.f32 %v2513, 1.442695
    %v2515 = vpow.pop %v2514
    %v2516 = vadd.f32 %v2515, 1.0
    %v2517 = vrcp.pop %v2516
    %v2518 = vmul.f32 %v2516, %v2517
    %v2519 = vsub.f32 1.0, %v2518
    %v2520 = vmul.f32 %v2517, %v2519
    %v2521 = vadd.f32 %v2517, %v2520
    %vm2522 = vweird.f32 %v2516
    %vm2523 = vweird.f32 %v2517
    %vm2524 = vmor %vm2522, %vm2523
    %v2525 = vsel %vm2524, %v2517, %v2521
    %v2526 = vand.u32 2147483647, %v2516
    %vm2527 = vcmp.eq.f32.partialorder %v2526, 8.507059e+37
    %v2528 = vand.u32 %v2516, 2147483648
    %v2529 = vor.u32 1.1754944e-38, %v2528
    %v2530 = vsel %vm2527, %v2529, %v2525
    %v2531 = vmul.f32 1.0, %v2530
    %v2532 = vtanh.pop %v2492
    %v2533 = vxor.u32 %v2493, 2147483648
    %v2534 = vmul.f32 %v2533, 1.442695
    %v2535 = vpow.pop %v2534
    %v2536 = vadd.f32 %v2535, 1.0
    %v2537 = vrcp.pop %v2536
    %v2538 = vmul.f32 %v2536, %v2537
    %v2539 = vsub.f32 1.0, %v2538
    %v2540 = vmul.f32 %v2537, %v2539
    %v2541 = vadd.f32 %v2537, %v2540
    %vm2542 = vweird.f32 %v2536
    %vm2543 = vweird.f32 %v2537
    %vm2544 = vmor %vm2542, %vm2543
    %v2545 = vsel %vm2544, %v2537, %v2541
    %v2546 = vand.u32 2147483647, %v2536
    %vm2547 = vcmp.eq.f32.partialorder %v2546, 8.507059e+37
    %v2548 = vand.u32 %v2536, 2147483648
    %v2549 = vor.u32 1.1754944e-38, %v2548
    %v2550 = vsel %vm2547, %v2549, %v2545
    %v2551 = vmul.f32 1.0, %v2550
    %v2552 = vmul.f32 %v2531, %v2314
    %v2553 = vmul.f32 %v2512, %v2532
    %v2554 = vadd.f32 %v2552, %v2553
    %v2555 = vtanh.pop %v2554
    %v2556 = vmul.f32 %v2551, %v2555
    %s2557 = scalar_lea.vmem [#allocation15], 48
    %2558 = vst [vmem:[%s2557] sm:$0xff] %v2556
    %v2559 = vpack.c.bf16 %v2556, %v2556
    %v2560 = vpack.c.bf16 %v2554, %v2554
    %s2561 = scalar_lea.vmem [#allocation3], 28
    %v2562 = vld [vmem:[%s2561] sm:$0xf]
    %s2563 = scalar_lea.vmem [#allocation2], 56
    %v2564 = vld [vmem:[%s2563] sm:$0xff]
    %2565 = vmatpush.bf16.msra.mxu0 %v462
    %2566 = vmatpush.bf16.msra.mxu0 %v461
    %2567 = vmatpush.bf16.msra.mxu0 %v460
    %2568 = vmatpush.bf16.msra.mxu0 %v459
    %2569 = vmatpush.bf16.msra.mxu0 %v458
    %2570 = vmatpush.bf16.msra.mxu0 %v457
    %2571 = vmatpush.bf16.msra.mxu0 %v456
    %2572 = vmatpush.bf16.msra.mxu0 %v455
    %2573 = vmatmul.bf16.gmra.mxu0 %v2559
    %v2574 = vpop.f32.mrf.mxu0
    %v2575 = vadd.f32 0.0, %v2574
    %v2576 = vpop.f32.mrf.mxu0
    %2577 = vdwg.mxu0
    %v2578 = vadd.f32 %v2564, %v2575
    %2579 = vmatpush.bf16.msra.mxu0 %v524
    %2580 = vmatpush.bf16.msra.mxu0 %v523
    %2581 = vmatpush.bf16.msra.mxu0 %v522
    %2582 = vmatpush.bf16.msra.mxu0 %v521
    %2583 = vmatpush.bf16.msra.mxu0 %v520
    %2584 = vmatpush.bf16.msra.mxu0 %v519
    %2585 = vmatpush.bf16.msra.mxu0 %v518
    %2586 = vmatpush.bf16.msra.mxu0 %v517
    %2587 = vmatmul.bf16.gmra.mxu0 %v2560
    %v2588 = vpop.f32.mrf.mxu0
    %v2589 = vadd.f32 0.0, %v2588
    %v2590 = vpop.f32.mrf.mxu0
    %2591 = vdwg.mxu0
    %v2592 = vadd.f32 %v2578, %v2589
    %v2593 = vtanh.pop %v2592
    %v2594 = vpack.c.bf16 %v2593, %v2593
    %2595 = vmatpush.bf16.msra.mxu0 %v588
    %2596 = vmatpush.bf16.msra.mxu0 %v587
    %2597 = vmatpush.bf16.msra.mxu0 %v586
    %2598 = vmatpush.bf16.msra.mxu0 %v585
    %2599 = vmatpush.bf16.msra.mxu0 %v584
    %2600 = vmatpush.bf16.msra.mxu0 %v583
    %2601 = vmatpush.bf16.msra.mxu0 %v582
    %2602 = vmatpush.bf16.msra.mxu0 %v581
    %2603 = vmatmul.bf16.gmra.mxu0 %v2594
    %v2604 = vpop.f32.mrf.mxu0
    %v2605 = vadd.f32 %v416, %v2604
    %v2606 = vpop.f32.mrf.mxu0
    %2607 = vdwg.mxu0
    %2608 = vmax.xlane.f32.xlu0 %v2605
    %v2609 = vpop.xlane.xlu0 %2608
    %v2610 = vsub.f32 %v2605, %v2609
    %v2611 = vmul.f32 %v2610, 1.442695
    %v2612 = vpow.pop %v2611
    %2613 = vadd.xlane.f32.xlu0 %v2612
    %v2614 = vpop.xlane.xlu0 %2613
    %v2615 = vrcp.pop %v2614
    %v2616 = vmul.f32 %v2614, %v2615
    %v2617 = vsub.f32 2.0, %v2616
    %v2618 = vmul.f32 %v2615, %v2617
    %v2619 = vmul.f32 %v2612, %v2618
    %v2620 = vpack.c.bf16 %v2619, %v2619
    %s2621 = scalar_lea.vmem [#allocation16], 28
    %2622 = vst [vmem:[%s2621] sm:$0xf] %v2620
    %v2623 = vunpack.c.l.bf16 %v2562
    %v2624 = vmul.f32 %v2619, %v2623
    %v2625 = vpack.c.bf16 %v2624, %v2624
    %2626 = vmatpush.bf16.msra.mxu0 %v751
    %2627 = vmatpush.bf16.msra.mxu0 %v747
    %2628 = vmatpush.bf16.msra.mxu0 %v743
    %2629 = vmatpush.bf16.msra.mxu0 %v739
    %2630 = vmatpush.bf16.msra.mxu0 %v735
    %2631 = vmatpush.bf16.msra.mxu0 %v731
    %2632 = vmatpush.bf16.msra.mxu0 %v727
    %2633 = vmatpush.bf16.msra.mxu0 %v723
    %2634 = vmatmul.bf16.gmra.mxu0 %v2559
    %v2635 = vpop.f32.mrf.mxu0
    %v2636 = vadd.f32 0.0, %v2635
    %v2637 = vpop.f32.mrf.mxu0
    %2638 = vdwg.mxu0
    %2639 = vmatpush.bf16.msra.mxu0 %v752
    %2640 = vmatpush.bf16.msra.mxu0 %v748
    %2641 = vmatpush.bf16.msra.mxu0 %v744
    %2642 = vmatpush.bf16.msra.mxu0 %v740
    %2643 = vmatpush.bf16.msra.mxu0 %v736
    %2644 = vmatpush.bf16.msra.mxu0 %v732
    %2645 = vmatpush.bf16.msra.mxu0 %v728
    %2646 = vmatpush.bf16.msra.mxu0 %v724
    %2647 = vmatmul.bf16.gmra.mxu0 %v2559
    %v2648 = vpop.f32.mrf.mxu0
    %v2649 = vadd.f32 0.0, %v2648
    %v2650 = vpop.f32.mrf.mxu0
    %2651 = vdwg.mxu0
    %2652 = vmatpush.bf16.msra.mxu0 %v753
    %2653 = vmatpush.bf16.msra.mxu0 %v749
    %2654 = vmatpush.bf16.msra.mxu0 %v745
    %2655 = vmatpush.bf16.msra.mxu0 %v741
    %2656 = vmatpush.bf16.msra.mxu0 %v737
    %2657 = vmatpush.bf16.msra.mxu0 %v733
    %2658 = vmatpush.bf16.msra.mxu0 %v729
    %2659 = vmatpush.bf16.msra.mxu0 %v725
    %2660 = vmatmul.bf16.gmra.mxu0 %v2559
    %v2661 = vpop.f32.mrf.mxu0
    %v2662 = vadd.f32 0.0, %v2661
    %v2663 = vpop.f32.mrf.mxu0
    %2664 = vdwg.mxu0
    %2665 = vmatpush.bf16.msra.mxu0 %v754
    %2666 = vmatpush.bf16.msra.mxu0 %v750
    %2667 = vmatpush.bf16.msra.mxu0 %v746
    %2668 = vmatpush.bf16.msra.mxu0 %v742
    %2669 = vmatpush.bf16.msra.mxu0 %v738
    %2670 = vmatpush.bf16.msra.mxu0 %v734
    %2671 = vmatpush.bf16.msra.mxu0 %v730
    %2672 = vmatpush.bf16.msra.mxu0 %v726
    %2673 = vmatmul.bf16.gmra.mxu0 %v2559
    %v2674 = vpop.f32.mrf.mxu0
    %v2675 = vadd.f32 0.0, %v2674
    %v2676 = vpop.f32.mrf.mxu0
    %2677 = vdwg.mxu0
    %2678 = vmatpush.bf16.msra.mxu0 %v963
    %2679 = vmatpush.bf16.msra.mxu0 %v959
    %2680 = vmatpush.bf16.msra.mxu0 %v955
    %2681 = vmatpush.bf16.msra.mxu0 %v951
    %2682 = vmatpush.bf16.msra.mxu0 %v947
    %2683 = vmatpush.bf16.msra.mxu0 %v943
    %2684 = vmatpush.bf16.msra.mxu0 %v939
    %2685 = vmatpush.bf16.msra.mxu0 %v935
    %2686 = vmatmul.bf16.gmra.mxu0 %v2625
    %v2687 = vpop.f32.mrf.mxu0
    %v2688 = vadd.f32 %v2636, %v2687
    %v2689 = vpop.f32.mrf.mxu0
    %2690 = vdwg.mxu0
    %2691 = vmatpush.bf16.msra.mxu0 %v964
    %2692 = vmatpush.bf16.msra.mxu0 %v960
    %2693 = vmatpush.bf16.msra.mxu0 %v956
    %2694 = vmatpush.bf16.msra.mxu0 %v952
    %2695 = vmatpush.bf16.msra.mxu0 %v948
    %2696 = vmatpush.bf16.msra.mxu0 %v944
    %2697 = vmatpush.bf16.msra.mxu0 %v940
    %2698 = vmatpush.bf16.msra.mxu0 %v936
    %2699 = vmatmul.bf16.gmra.mxu0 %v2625
    %v2700 = vpop.f32.mrf.mxu0
    %v2701 = vadd.f32 %v2649, %v2700
    %v2702 = vpop.f32.mrf.mxu0
    %2703 = vdwg.mxu0
    %2704 = vmatpush.bf16.msra.mxu0 %v965
    %2705 = vmatpush.bf16.msra.mxu0 %v961
    %2706 = vmatpush.bf16.msra.mxu0 %v957
    %2707 = vmatpush.bf16.msra.mxu0 %v953
    %2708 = vmatpush.bf16.msra.mxu0 %v949
    %2709 = vmatpush.bf16.msra.mxu0 %v945
    %2710 = vmatpush.bf16.msra.mxu0 %v941
    %2711 = vmatpush.bf16.msra.mxu0 %v937
    %2712 = vmatmul.bf16.gmra.mxu0 %v2625
    %v2713 = vpop.f32.mrf.mxu0
    %v2714 = vadd.f32 %v2662, %v2713
    %v2715 = vpop.f32.mrf.mxu0
    %2716 = vdwg.mxu0
    %2717 = vmatpush.bf16.msra.mxu0 %v966
    %2718 = vmatpush.bf16.msra.mxu0 %v962
    %2719 = vmatpush.bf16.msra.mxu0 %v958
    %2720 = vmatpush.bf16.msra.mxu0 %v954
    %2721 = vmatpush.bf16.msra.mxu0 %v950
    %2722 = vmatpush.bf16.msra.mxu0 %v946
    %2723 = vmatpush.bf16.msra.mxu0 %v942
    %2724 = vmatpush.bf16.msra.mxu0 %v938
    %2725 = vmatmul.bf16.gmra.mxu0 %v2625
    %v2726 = vpop.f32.mrf.mxu0
    %v2727 = vadd.f32 %v2675, %v2726
    %v2728 = vpop.f32.mrf.mxu0
    %2729 = vdwg.mxu0
    %v2730 = vadd.f32 %v2688, %v405
    %v2731 = vadd.f32 %v2701, %v406
    %v2732 = vadd.f32 %v2714, %v407
    %v2733 = vadd.f32 %v2727, %v408
    %v2734 = vxor.u32 %v2730, 2147483648
    %v2735 = vmul.f32 %v2734, 1.442695
    %v2736 = vpow.pop %v2735
    %v2737 = vadd.f32 %v2736, 1.0
    %v2738 = vrcp.pop %v2737
    %v2739 = vmul.f32 %v2737, %v2738
    %v2740 = vsub.f32 1.0, %v2739
    %v2741 = vmul.f32 %v2738, %v2740
    %v2742 = vadd.f32 %v2738, %v2741
    %vm2743 = vweird.f32 %v2737
    %vm2744 = vweird.f32 %v2738
    %vm2745 = vmor %vm2743, %vm2744
    %v2746 = vsel %vm2745, %v2738, %v2742
    %v2747 = vand.u32 2147483647, %v2737
    %vm2748 = vcmp.eq.f32.partialorder %v2747, 8.507059e+37
    %v2749 = vand.u32 %v2737, 2147483648
    %v2750 = vor.u32 1.1754944e-38, %v2749
    %v2751 = vsel %vm2748, %v2750, %v2746
    %v2752 = vmul.f32 1.0, %v2751
    %v2753 = vxor.u32 %v2731, 2147483648
    %v2754 = vmul.f32 %v2753, 1.442695
    %v2755 = vpow.pop %v2754
    %v2756 = vadd.f32 %v2755, 1.0
    %v2757 = vrcp.pop %v2756
    %v2758 = vmul.f32 %v2756, %v2757
    %v2759 = vsub.f32 1.0, %v2758
    %v2760 = vmul.f32 %v2757, %v2759
    %v2761 = vadd.f32 %v2757, %v2760
    %vm2762 = vweird.f32 %v2756
    %vm2763 = vweird.f32 %v2757
    %vm2764 = vmor %vm2762, %vm2763
    %v2765 = vsel %vm2764, %v2757, %v2761
    %v2766 = vand.u32 2147483647, %v2756
    %vm2767 = vcmp.eq.f32.partialorder %v2766, 8.507059e+37
    %v2768 = vand.u32 %v2756, 2147483648
    %v2769 = vor.u32 1.1754944e-38, %v2768
    %v2770 = vsel %vm2767, %v2769, %v2765
    %v2771 = vmul.f32 1.0, %v2770
    %v2772 = vtanh.pop %v2732
    %v2773 = vxor.u32 %v2733, 2147483648
    %v2774 = vmul.f32 %v2773, 1.442695
    %v2775 = vpow.pop %v2774
    %v2776 = vadd.f32 %v2775, 1.0
    %v2777 = vrcp.pop %v2776
    %v2778 = vmul.f32 %v2776, %v2777
    %v2779 = vsub.f32 1.0, %v2778
    %v2780 = vmul.f32 %v2777, %v2779
    %v2781 = vadd.f32 %v2777, %v2780
    %vm2782 = vweird.f32 %v2776
    %vm2783 = vweird.f32 %v2777
    %vm2784 = vmor %vm2782, %vm2783
    %v2785 = vsel %vm2784, %v2777, %v2781
    %v2786 = vand.u32 2147483647, %v2776
    %vm2787 = vcmp.eq.f32.partialorder %v2786, 8.507059e+37
    %v2788 = vand.u32 %v2776, 2147483648
    %v2789 = vor.u32 1.1754944e-38, %v2788
    %v2790 = vsel %vm2787, %v2789, %v2785
    %v2791 = vmul.f32 1.0, %v2790
    %v2792 = vmul.f32 %v2771, %v2554
    %v2793 = vmul.f32 %v2752, %v2772
    %v2794 = vadd.f32 %v2792, %v2793
    %v2795 = vtanh.pop %v2794
    %v2796 = vmul.f32 %v2791, %v2795
    %s2797 = scalar_lea.vmem [#allocation15], 56
    %2798 = vst [vmem:[%s2797] sm:$0xff] %v2796
    %2799 = vst [vmem:[#allocation18] sm:$0xff] %v2796
    %2800 = vst [vmem:[#allocation19] sm:$0xff] %v2794
    // Predicated region
    $region70: #{tpu_custom_call.1} parent=1 // pred_check
      _
    $region71: #{tpu_custom_call.1} parent=1 // pred_check_branch
      %2802 = sbr.rel (0) target = $region73
    $region72: #{tpu_custom_call.1} parent=1 // pred_region
      %2804 = vsyncadd [#allocation5], 0
      %s2805 = sshll.u32 [#allocation15], 4
      %s2806 = int_to_ptr.vmem [resolvable:$true] %s2805
      %s2807 = sshll.u32 %s9, 4
      %s2808 = int_to_ptr.hbm [resolvable:$true] %s2807
      %2813 = dma.vmem_to_hbm [thread:$0]  %s2806, 1024, %s2808, [#allocation5], 128, 128, 8
    $region73: #{tpu_custom_call.1} parent=1 // pred_fallthru
      _
    // Predicated region
    $region74: #{tpu_custom_call.1} parent=1 // pred_check
      _
    $region75: #{tpu_custom_call.1} parent=1 // pred_check_branch
      %2815 = sbr.rel (0) target = $region77
    $region76: #{tpu_custom_call.1} parent=1 // pred_region
      %2817 = vsyncadd [#allocation17], 0
      %s2818 = sshll.u32 [#allocation16], 4
      %s2819 = int_to_ptr.vmem [resolvable:$true] %s2818
      %s2820 = sshll.u32 %s10, 4
      %s2821 = int_to_ptr.hbm [resolvable:$true] %s2820
      %2826 = dma.vmem_to_hbm [thread:$0]  %s2819, 512, %s2821, [#allocation17], 64, 64, 4
    $region77: #{tpu_custom_call.1} parent=1 // pred_fallthru
      _
    // Predicated region
    $region78: #{tpu_custom_call.1} parent=1 // pred_check
      _
    $region79: #{tpu_custom_call.1} parent=1 // pred_check_branch
      %2828 = sbr.rel (0) target = $region81
    $region80: #{tpu_custom_call.1} parent=1 // pred_region
      %2830 = vsyncadd [#allocation17], 0
      %s2832 = sshll.u32 [#allocation18], 4
      %s2833 = int_to_ptr.vmem [resolvable:$true] %s2832
      %s2834 = sshll.u32 %s11, 4
      %s2835 = int_to_ptr.hbm [resolvable:$true] %s2834
      %2837 = dma.vmem_to_hbm [thread:$0]  %s2833, 128, %s2835, [#allocation17]
    $region81: #{tpu_custom_call.1} parent=1 // pred_fallthru
      _
    // Predicated region
    $region82: #{tpu_custom_call.1} parent=1 // pred_check
      _
    $region83: #{tpu_custom_call.1} parent=1 // pred_check_branch
      %2839 = sbr.rel (0) target = $region85
    $region84: #{tpu_custom_call.1} parent=1 // pred_region
      %2841 = vsyncadd [#allocation20], 0
      %s2843 = sshll.u32 [#allocation19], 4
      %s2844 = int_to_ptr.vmem [resolvable:$true] %s2843
      %s2845 = sshll.u32 %s12, 4
      %s2846 = int_to_ptr.hbm [resolvable:$true] %s2845
      %2848 = dma.vmem_to_hbm [thread:$0]  %s2844, 128, %s2846, [#allocation20]
    $region85: #{tpu_custom_call.1} parent=1 // pred_fallthru
      _
    // Predicated region
    $region86: #{tpu_custom_call.1} parent=1 // pred_check
      _
    $region87: #{tpu_custom_call.1} parent=1 // pred_check_branch
      %2850 = sbr.rel (0) target = $region89
    $region88: #{tpu_custom_call.1} parent=1 // pred_region
      %2852 = dma.done [#allocation5], 1024
    $region89: #{tpu_custom_call.1} parent=1 // pred_fallthru
      _
    // Predicated region
    $region90: #{tpu_custom_call.1} parent=1 // pred_check
      _
    $region91: #{tpu_custom_call.1} parent=1 // pred_check_branch
      %2854 = sbr.rel (0) target = $region93
    $region92: #{tpu_custom_call.1} parent=1 // pred_region
      %2856 = dma.done [#allocation17], 512
    $region93: #{tpu_custom_call.1} parent=1 // pred_fallthru
      _
    // Predicated region
    $region94: #{tpu_custom_call.1} parent=1 // pred_check
      _
    $region95: #{tpu_custom_call.1} parent=1 // pred_check_branch
      %2858 = sbr.rel (0) target = $region97
    $region96: #{tpu_custom_call.1} parent=1 // pred_region
      %2860 = dma.done [#allocation17], 128
    $region97: #{tpu_custom_call.1} parent=1 // pred_fallthru
      _
    // Predicated region
    $region98: #{tpu_custom_call.1} parent=1 // pred_check
      _
    $region99: #{tpu_custom_call.1} parent=1 // pred_check_branch
      %2862 = sbr.rel (0) target = $region101
    $region100: #{tpu_custom_call.1} parent=1 // pred_region
      %2864 = dma.done [#allocation20], 128
    $region101: #{tpu_custom_call.1} parent=1 // pred_fallthru
      _
    %2865 = vsyncpa [#allocation4], 1
    %2866 = vsyncpa [#allocation7], 1
    %2867 = vsyncpa [#allocation10], 1
    %2868 = vsyncpa [#allocation13], 1
    %2869 = vsyncpa [#allocation5], 1
    %2870 = vsyncpa [#allocation17], 1
    %2871 = vsyncpa [#allocation20], 1

// kernel: tpu_custom_call.1
$region0: #{tpu_custom_call.1}
  #allocation0 [shape = 'u32[]', space=smem, size = 0x4, offset = 0x4, fixed_abs, tag = 'smem constant byte address 0x4 - core index']
  #allocation1 [shape = 'u32[72,128]{1,0:T(1,128)}', space=vmem, size = 0x9000, scoped, tag = 'internal scratch']
  #allocation2 [shape = 'f32[8,8,128]{2,1,0:T(8,128)}', space=vmem, size = 0x8000, scoped, tag = 'scratch operand']
  %s0 = inlined_call_operand.hbm [shape: bf16[8,8,128], index: 0, kind: input, shape index: {}]
  %s1 = inlined_call_operand.hbm [shape: bf16[128,128], index: 1, kind: input, shape index: {}]
  %s2 = inlined_call_operand.hbm [shape: bf16[128,128], index: 2, kind: input, shape index: {}]
  %s3 = inlined_call_operand.hbm [shape: bf16[128,128], index: 3, kind: input, shape index: {}]
  %s4 = inlined_call_operand.vmem [shape: f32[1,128], index: 4, kind: input, shape index: {}]
  %s5 = inlined_call_operand.hbm [shape: bf16[128,128], index: 5, kind: input, shape index: {}]
  %s6 = inlined_call_operand.hbm [shape: bf16[128,512], index: 6, kind: input, shape index: {}]
  %s7 = inlined_call_operand.hbm [shape: bf16[128,512], index: 7, kind: input, shape index: {}]
  %s8 = inlined_call_operand.vmem [shape: f32[1,512], index: 8, kind: input, shape index: {}]
  %s9 = inlined_call_operand.hbm [shape: f32[8,8,128], index: 9, kind: output, shape index: {0}]
  %s10 = inlined_call_operand.hbm [shape: bf16[8,8,128], index: 10, kind: output, shape index: {1}]
  %s11 = inlined_call_operand.hbm [shape: f32[8,128], index: 11, kind: output, shape index: {2}]
  %s12 = inlined_call_operand.hbm [shape: f32[8,128], index: 12, kind: output, shape index: {3}]
  %13 = xla_tuple %s9, %s10, %s11, %s12
  %s14 = sld [smem:[#allocation0]]
  $region102: #{tpu_custom_call.1} parent=0
    _
  %s16 = ssub.s32 1, %s14
  %s17 = scalar_select 0, %s16, %s14
  $region1: #{tpu_custom_call.1} parent=0
    #allocation3 [shape = 'u8[16384]{0}', space=vmem, size = 0x4000, scoped, tag = 'input window, operand 0, single buffered']
    #allocation4 [shape = 's32[1]{0}', space=sflag, size = 0x4, scoped, tag = 'scoped memory for tpu_custom_call.1']
    #allocation5 [shape = 's32[1]{0}', space=sflag, size = 0x4, scoped, tag = 'scoped memory for tpu_custom_call.1']
    #allocation6 [shape = 'u8[32768]{0}', space=vmem, size = 0x8000, scoped, tag = 'input window, operand 1, single buffered']
    #allocation7 [shape = 's32[1]{0}', space=sflag, size = 0x4, scoped, tag = 'scoped memory for tpu_custom_call.1']
    #allocation8 [shape = 'u8[32768]{0}', space=vmem, size = 0x8000, scoped, tag = 'input window, operand 2, single buffered']
    #allocation9 [shape = 'u8[32768]{0}', space=vmem, size = 0x8000, scoped, tag = 'input window, operand 3, single buffered']
    #allocation10 [shape = 's32[1]{0}', space=sflag, size = 0x4, scoped, tag = 'scoped memory for tpu_custom_call.1']
    #allocation11 [shape = 'u8[32768]{0}', space=vmem, size = 0x8000, scoped, tag = 'input window, operand 5, single buffered']
    #allocation12 [shape = 'u8[131072]{0}', space=vmem, size = 0x20000, scoped, tag = 'input window, operand 6, single buffered']
    #allocation13 [shape = 's32[1]{0}', space=sflag, size = 0x4, scoped, tag = 'scoped memory for tpu_custom_call.1']
    #allocation14 [shape = 'u8[131072]{0}', space=vmem, size = 0x20000, scoped, tag = 'input window, operand 7, single buffered']
    #allocation15 [shape = 'u8[32768]{0}', space=vmem, size = 0x8000, scoped, tag = 'output window, operand 0, single buffered']
    #allocation16 [shape = 'u8[16384]{0}', space=vmem, size = 0x4000, scoped, tag = 'output window, operand 1, single buffered']
    #allocation17 [shape = 's32[1]{0}', space=sflag, size = 0x4, scoped, tag = 'scoped memory for tpu_custom_call.1']
    #allocation18 [shape = 'u8[4096]{0}', space=vmem, size = 0x1000, scoped, tag = 'output window, operand 2, single buffered']
    #allocation19 [shape = 'u8[4096]{0}', space=vmem, size = 0x1000, scoped, tag = 'output window, operand 3, single buffered']
    #allocation20 [shape = 's32[1]{0}', space=sflag, size = 0x4, scoped, tag = 'scoped memory for tpu_custom_call.1']
    %18 = vsyncpa [#allocation4], 0
    %19 = vsyncpa [#allocation7], 0
    %20 = vsyncpa [#allocation10], 0
    %21 = vsyncpa [#allocation13], 0
    %22 = vsyncpa [#allocation5], 0
    %23 = vsyncpa [#allocation17], 0
    %24 = vsyncpa [#allocation20], 0
    // Predicated region
    $region2: #{tpu_custom_call.1} parent=1 // pred_check
      _
    $region3: #{tpu_custom_call.1} parent=1 // pred_check_branch
      %26 = sbr.rel (0) target = $region5
    $region4: #{tpu_custom_call.1} parent=1 // pred_region
      %28 = vsyncadd [#allocation4], 0
      %s29 = sshll.u32 %s0, 4
      %s30 = int_to_ptr.hbm [resolvable:$true] %s29
      %s31 = sshll.u32 [#allocation3], 4
      %s32 = int_to_ptr.vmem [resolvable:$true] %s31
      %37 = dma.hbm_to_vmem [thread:$0]  %s30, 512, %s32, [#allocation4], 64, 64, 4
    $region5: #{tpu_custom_call.1} parent=1 // pred_fallthru
      _
    // Predicated region
    $region6: #{tpu_custom_call.1} parent=1 // pred_check
      _
    $region7: #{tpu_custom_call.1} parent=1 // pred_check_branch
      %39 = sbr.rel (0) target = $region9
    $region8: #{tpu_custom_call.1} parent=1 // pred_region
      %41 = vsyncadd [#allocation7], 0
      %s42 = sshll.u32 %s1, 4
      %s43 = int_to_ptr.hbm [resolvable:$true] %s42
      %s44 = sshll.u32 [#allocation6], 4
      %s45 = int_to_ptr.vmem [resolvable:$true] %s44
      %50 = dma.hbm_to_vmem [thread:$0]  %s43, 1024, %s45, [#allocation7], 64, 64, 4
    $region9: #{tpu_custom_call.1} parent=1 // pred_fallthru
      _
    // Predicated region
    $region10: #{tpu_custom_call.1} parent=1 // pred_check
      _
    $region11: #{tpu_custom_call.1} parent=1 // pred_check_branch
      %52 = sbr.rel (0) target = $region13
    $region12: #{tpu_custom_call.1} parent=1 // pred_region
      %54 = vsyncadd [#allocation7], 0
      %s55 = sshll.u32 %s2, 4
      %s56 = int_to_ptr.hbm [resolvable:$true] %s55
      %s57 = sshll.u32 [#allocation8], 4
      %s58 = int_to_ptr.vmem [resolvable:$true] %s57
      %63 = dma.hbm_to_vmem [thread:$0]  %s56, 1024, %s58, [#allocation7], 64, 64, 4
    $region13: #{tpu_custom_call.1} parent=1 // pred_fallthru
      _
    // Predicated region
    $region14: #{tpu_custom_call.1} parent=1 // pred_check
      _
    $region15: #{tpu_custom_call.1} parent=1 // pred_check_branch
      %65 = sbr.rel (0) target = $region17
    $region16: #{tpu_custom_call.1} parent=1 // pred_region
      %67 = vsyncadd [#allocation10], 0
      %s68 = sshll.u32 %s3, 4
      %s69 = int_to_ptr.hbm [resolvable:$true] %s68
      %s70 = sshll.u32 [#allocation9], 4
      %s71 = int_to_ptr.vmem [resolvable:$true] %s70
      %76 = dma.hbm_to_vmem [thread:$0]  %s69, 1024, %s71, [#allocation10], 64, 64, 4
    $region17: #{tpu_custom_call.1} parent=1 // pred_fallthru
      _
    // Predicated region
    $region18: #{tpu_custom_call.1} parent=1 // pred_check
      _
    $region19: #{tpu_custom_call.1} parent=1 // pred_check_branch
      %78 = sbr.rel (0) target = $region21
    $region20: #{tpu_custom_call.1} parent=1 // pred_region
      _
    $region21: #{tpu_custom_call.1} parent=1 // pred_fallthru
      _
    // Predicated region
    $region22: #{tpu_custom_call.1} parent=1 // pred_check
      _
    $region23: #{tpu_custom_call.1} parent=1 // pred_check_branch
      %80 = sbr.rel (0) target = $region25
    $region24: #{tpu_custom_call.1} parent=1 // pred_region
      %82 = vsyncadd [#allocation10], 0
      %s83 = sshll.u32 %s5, 4
      %s84 = int_to_ptr.hbm [resolvable:$true] %s83
      %s85 = sshll.u32 [#allocation11], 4
      %s86 = int_to_ptr.vmem [resolvable:$true] %s85
      %91 = dma.hbm_to_vmem [thread:$0]  %s84, 1024, %s86, [#allocation10], 64, 64, 4
    $region25: #{tpu_custom_call.1} parent=1 // pred_fallthru
      _
    // Predicated region
    $region26: #{tpu_custom_call.1} parent=1 // pred_check
      _
    $region27: #{tpu_custom_call.1} parent=1 // pred_check_branch
      %93 = sbr.rel (0) target = $region29
    $region28: #{tpu_custom_call.1} parent=1 // pred_region
      %95 = vsyncadd [#allocation13], 0
      %s96 = sshll.u32 %s6, 4
      %s97 = int_to_ptr.hbm [resolvable:$true] %s96
      %s98 = sshll.u32 [#allocation12], 4
      %s99 = int_to_ptr.vmem [resolvable:$true] %s98
      %104 = dma.hbm_to_vmem [thread:$0]  %s97, 4096, %s99, [#allocation13], 256, 256, 16
    $region29: #{tpu_custom_call.1} parent=1 // pred_fallthru
      _
    // Predicated region
    $region30: #{tpu_custom_call.1} parent=1 // pred_check
      _
    $region31: #{tpu_custom_call.1} parent=1 // pred_check_branch
      %106 = sbr.rel (0) target = $region33
    $region32: #{tpu_custom_call.1} parent=1 // pred_region
      %108 = vsyncadd [#allocation13], 0
      %s109 = sshll.u32 %s7, 4
      %s110 = int_to_ptr.hbm [resolvable:$true] %s109
      %s111 = sshll.u32 [#allocation14], 4
      %s112 = int_to_ptr.vmem [resolvable:$true] %s111
      %117 = dma.hbm_to_vmem [thread:$0]  %s110, 4096, %s112, [#allocation13], 256, 256, 16
    $region33: #{tpu_custom_call.1} parent=1 // pred_fallthru
      _
    // Predicated region
    $region34: #{tpu_custom_call.1} parent=1 // pred_check
      _
    $region35: #{tpu_custom_call.1} parent=1 // pred_check_branch
      %119 = sbr.rel (0) target = $region37
    $region36: #{tpu_custom_call.1} parent=1 // pred_region
      _
    $region37: #{tpu_custom_call.1} parent=1 // pred_fallthru
      _
    // Predicated region
    $region38: #{tpu_custom_call.1} parent=1 // pred_check
      _
    $region39: #{tpu_custom_call.1} parent=1 // pred_check_branch
      %121 = sbr.rel (0) target = $region41
    $region40: #{tpu_custom_call.1} parent=1 // pred_region
      %123 = dma.done [#allocation4], 512
    $region41: #{tpu_custom_call.1} parent=1 // pred_fallthru
      _
    // Predicated region
    $region42: #{tpu_custom_call.1} parent=1 // pred_check
      _
    $region43: #{tpu_custom_call.1} parent=1 // pred_check_branch
      %125 = sbr.rel (0) target = $region45
    $region44: #{tpu_custom_call.1} parent=1 // pred_region
      %127 = dma.done [#allocation7], 1024
    $region45: #{tpu_custom_call.1} parent=1 // pred_fallthru
      _
    // Predicated region
    $region46: #{tpu_custom_call.1} parent=1 // pred_check
      _
    $region47: #{tpu_custom_call.1} parent=1 // pred_check_branch
      %129 = sbr.rel (0) target = $region49
    $region48: #{tpu_custom_call.1} parent=1 // pred_region
      %131 = dma.done [#allocation7], 1024
    $region49: #{tpu_custom_call.1} parent=1 // pred_fallthru
      _
    // Predicated region
    $region50: #{tpu_custom_call.1} parent=1 // pred_check
      _
    $region51: #{tpu_custom_call.1} parent=1 // pred_check_branch
      %133 = sbr.rel (0) target = $region53
    $region52: #{tpu_custom_call.1} parent=1 // pred_region
      %135 = dma.done [#allocation10], 1024
    $region53: #{tpu_custom_call.1} parent=1 // pred_fallthru
      _
    // Predicated region
    $region54: #{tpu_custom_call.1} parent=1 // pred_check
      _
    $region55: #{tpu_custom_call.1} parent=1 // pred_check_branch
      %137 = sbr.rel (0) target = $region57
    $region56: #{tpu_custom_call.1} parent=1 // pred_region
      %139 = dma.done [#allocation10], 1024
    $region57: #{tpu_custom_call.1} parent=1 // pred_fallthru
      _
    // Predicated region
    $region58: #{tpu_custom_call.1} parent=1 // pred_check
      _
    $region59: #{tpu_custom_call.1} parent=1 // pred_check_branch
      %141 = sbr.rel (0) target = $region61
    $region60: #{tpu_custom_call.1} parent=1 // pred_region
      %143 = dma.done [#allocation13], 4096
    $region61: #{tpu_custom_call.1} parent=1 // pred_fallthru
      _
    // Predicated region
    $region62: #{tpu_custom_call.1} parent=1 // pred_check
      _
    $region63: #{tpu_custom_call.1} parent=1 // pred_check_branch
      %145 = sbr.rel (0) target = $region65
    $region64: #{tpu_custom_call.1} parent=1 // pred_region
      %147 = dma.done [#allocation13], 4096
    $region65: #{tpu_custom_call.1} parent=1 // pred_fallthru
      _
    %p148 = scmp.eq.s32.totalorder 0, 0
    // Predicated region
    $region66: #{tpu_custom_call.1} parent=1 // pred_check
      %p149 = pneg %p148
    $region67: #{tpu_custom_call.1} parent=1 // pred_check_branch
      %151 = sbr.rel (%p149) target = $region69
    $region68: #{tpu_custom_call.1} parent=1 // pred_region
      %152 = vst [vmem:[#allocation18] sm:$0xff] 0.0
      %153 = vst [vmem:[#allocation19] sm:$0xff] 0.0
    $region69: #{tpu_custom_call.1} parent=1 // pred_fallthru
      _
    %v154 = vld [vmem:[#allocation6] sm:$0xf]
    %v155 = vld [vmem:[#allocation6 + $0x4] sm:$0xf]
    %v156 = vld [vmem:[#allocation6 + $0x8] sm:$0xf]
    %v157 = vld [vmem:[#allocation6 + $0xc] sm:$0xf]
    %v158 = vld [vmem:[#allocation6 + $0x10] sm:$0xf]
    %v159 = vld [vmem:[#allocation6 + $0x14] sm:$0xf]
    %v160 = vld [vmem:[#allocation6 + $0x18] sm:$0xf]
    %v161 = vld [vmem:[#allocation6 + $0x1c] sm:$0xf]
    %v162 = vld [vmem:[#allocation6 + $0x20] sm:$0xf]
    %v163 = vld [vmem:[#allocation6 + $0x24] sm:$0xf]
    %v164 = vld [vmem:[#allocation6 + $0x28] sm:$0xf]
    %v165 = vld [vmem:[#allocation6 + $0x2c] sm:$0xf]
    %v166 = vld [vmem:[#allocation6 + $0x30] sm:$0xf]
    %v167 = vld [vmem:[#allocation6 + $0x34] sm:$0xf]
    %v168 = vld [vmem:[#allocation6 + $0x38] sm:$0xf]
    %v169 = vld [vmem:[#allocation6 + $0x3c] sm:$0xf]
    %v170 = vld [vmem:[#allocation8] sm:$0xf]
    %v171 = vld [vmem:[#allocation8 + $0x4] sm:$0xf]
    %v172 = vld [vmem:[#allocation8 + $0x8] sm:$0xf]
    %v173 = vld [vmem:[#allocation8 + $0xc] sm:$0xf]
    %v174 = vld [vmem:[#allocation8 + $0x10] sm:$0xf]
    %v175 = vld [vmem:[#allocation8 + $0x14] sm:$0xf]
    %v176 = vld [vmem:[#allocation8 + $0x18] sm:$0xf]
    %v177 = vld [vmem:[#allocation8 + $0x1c] sm:$0xf]
    %v178 = vld [vmem:[#allocation8 + $0x20] sm:$0xf]
    %v179 = vld [vmem:[#allocation8 + $0x24] sm:$0xf]
    %v180 = vld [vmem:[#allocation8 + $0x28] sm:$0xf]
    %v181 = vld [vmem:[#allocation8 + $0x2c] sm:$0xf]
    %v182 = vld [vmem:[#allocation8 + $0x30] sm:$0xf]
    %v183 = vld [vmem:[#allocation8 + $0x34] sm:$0xf]
    %v184 = vld [vmem:[#allocation8 + $0x38] sm:$0xf]
    %v185 = vld [vmem:[#allocation8 + $0x3c] sm:$0xf]
    %v186 = vld [vmem:[#allocation9] sm:$0xf]
    %v187 = vld [vmem:[#allocation9 + $0x4] sm:$0xf]
    %v188 = vld [vmem:[#allocation9 + $0x8] sm:$0xf]
    %v189 = vld [vmem:[#allocation9 + $0xc] sm:$0xf]
    %v190 = vld [vmem:[#allocation9 + $0x10] sm:$0xf]
    %v191 = vld [vmem:[#allocation9 + $0x14] sm:$0xf]
    %v192 = vld [vmem:[#allocation9 + $0x18] sm:$0xf]
    %v193 = vld [vmem:[#allocation9 + $0x1c] sm:$0xf]
    %v194 = vld [vmem:[#allocation9 + $0x20] sm:$0xf]
    %v195 = vld [vmem:[#allocation9 + $0x24] sm:$0xf]
    %v196 = vld [vmem:[#allocation9 + $0x28] sm:$0xf]
    %v197 = vld [vmem:[#allocation9 + $0x2c] sm:$0xf]
    %v198 = vld [vmem:[#allocation9 + $0x30] sm:$0xf]
    %v199 = vld [vmem:[#allocation9 + $0x34] sm:$0xf]
    %v200 = vld [vmem:[#allocation9 + $0x38] sm:$0xf]
    %v201 = vld [vmem:[#allocation9 + $0x3c] sm:$0xf]
    %v202 = vld [vmem:[#allocation11] sm:$0xf]
    %v203 = vld [vmem:[#allocation11 + $0x4] sm:$0xf]
    %v204 = vld [vmem:[#allocation11 + $0x8] sm:$0xf]
    %v205 = vld [vmem:[#allocation11 + $0xc] sm:$0xf]
    %v206 = vld [vmem:[#allocation11 + $0x10] sm:$0xf]
    %v207 = vld [vmem:[#allocation11 + $0x14] sm:$0xf]
    %v208 = vld [vmem:[#allocation11 + $0x18] sm:$0xf]
    %v209 = vld [vmem:[#allocation11 + $0x1c] sm:$0xf]
    %v210 = vld [vmem:[#allocation11 + $0x20] sm:$0xf]
    %v211 = vld [vmem:[#allocation11 + $0x24] sm:$0xf]
    %v212 = vld [vmem:[#allocation11 + $0x28] sm:$0xf]
    %v213 = vld [vmem:[#allocation11 + $0x2c] sm:$0xf]
    %v214 = vld [vmem:[#allocation11 + $0x30] sm:$0xf]
    %v215 = vld [vmem:[#allocation11 + $0x34] sm:$0xf]
    %v216 = vld [vmem:[#allocation11 + $0x38] sm:$0xf]
    %v217 = vld [vmem:[#allocation11 + $0x3c] sm:$0xf]
    %v218 = vld [vmem:[#allocation12] sm:$0xff]
    %v219 = vld [vmem:[#allocation12 + $0x8] sm:$0xff]
    %v220 = vld [vmem:[#allocation12 + $0x10] sm:$0xff]
    %v221 = vld [vmem:[#allocation12 + $0x18] sm:$0xff]
    %v222 = vld [vmem:[#allocation12 + $0x20] sm:$0xff]
    %v223 = vld [vmem:[#allocation12 + $0x28] sm:$0xff]
    %v224 = vld [vmem:[#allocation12 + $0x30] sm:$0xff]
    %v225 = vld [vmem:[#allocation12 + $0x38] sm:$0xff]
    %v226 = vld [vmem:[#allocation12 + $0x40] sm:$0xff]
    %v227 = vld [vmem:[#allocation12 + $0x48] sm:$0xff]
    %v228 = vld [vmem:[#allocation12 + $0x50] sm:$0xff]
    %v229 = vld [vmem:[#allocation12 + $0x58] sm:$0xff]
    %v230 = vld [vmem:[#allocation12 + $0x60] sm:$0xff]
    %v231 = vld [vmem:[#allocation12 + $0x68] sm:$0xff]
    %v232 = vld [vmem:[#allocation12 + $0x70] sm:$0xff]
    %v233 = vld [vmem:[#allocation12 + $0x78] sm:$0xff]
    %v234 = vld [vmem:[#allocation12 + $0x80] sm:$0xff]
    %v235 = vld [vmem:[#allocation12 + $0x88] sm:$0xff]
    %v236 = vld [vmem:[#allocation12 + $0x90] sm:$0xff]
    %v237 = vld [vmem:[#allocation12 + $0x98] sm:$0xff]
    %v238 = vld [vmem:[#allocation12 + $0xa0] sm:$0xff]
    %v239 = vld [vmem:[#allocation12 + $0xa8] sm:$0xff]
    %v240 = vld [vmem:[#allocation12 + $0xb0] sm:$0xff]
    %v241 = vld [vmem:[#allocation12 + $0xb8] sm:$0xff]
    %v242 = vld [vmem:[#allocation12 + $0xc0] sm:$0xff]
    %v243 = vld [vmem:[#allocation12 + $0xc8] sm:$0xff]
    %v244 = vld [vmem:[#allocation12 + $0xd0] sm:$0xff]
    %v245 = vld [vmem:[#allocation12 + $0xd8] sm:$0xff]
    %v246 = vld [vmem:[#allocation12 + $0xe0] sm:$0xff]
    %v247 = vld [vmem:[#allocation12 + $0xe8] sm:$0xff]
    %v248 = vld [vmem:[#allocation12 + $0xf0] sm:$0xff]
    %v249 = vld [vmem:[#allocation12 + $0xf8] sm:$0xff]
    %v250 = vld [vmem:[#allocation14] sm:$0xff]
    %v251 = vld [vmem:[#allocation14 + $0x8] sm:$0xff]
    %v252 = vld [vmem:[#allocation14 + $0x10] sm:$0xff]
    %v253 = vld [vmem:[#allocation14 + $0x18] sm:$0xff]
    %v254 = vld [vmem:[#allocation14 + $0x20] sm:$0xff]
    %v255 = vld [vmem:[#allocation14 + $0x28] sm:$0xff]
    %v256 = vld [vmem:[#allocation14 + $0x30] sm:$0xff]
    %v257 = vld [vmem:[#allocation14 + $0x38] sm:$0xff]
    %v258 = vld [vmem:[#allocation14 + $0x40] sm:$0xff]
    %v259 = vld [vmem:[#allocation14 + $0x48] sm:$0xff]
    %v260 = vld [vmem:[#allocation14 + $0x50] sm:$0xff]
    %v261 = vld [vmem:[#allocation14 + $0x58] sm:$0xff]
    %v262 = vld [vmem:[#allocation14 + $0x60] sm:$0xff]
    %v263 = vld [vmem:[#allocation14 + $0x68] sm:$0xff]
    %v264 = vld [vmem:[#allocation14 + $0x70] sm:$0xff]
    %v265 = vld [vmem:[#allocation14 + $0x78] sm:$0xff]
    %v266 = vld [vmem:[#allocation14 + $0x80] sm:$0xff]
    %v267 = vld [vmem:[#allocation14 + $0x88] sm:$0xff]
    %v268 = vld [vmem:[#allocation14 + $0x90] sm:$0xff]
    %v269 = vld [vmem:[#allocation14 + $0x98] sm:$0xff]
    %v270 = vld [vmem:[#allocation14 + $0xa0] sm:$0xff]
    %v271 = vld [vmem:[#allocation14 + $0xa8] sm:$0xff]
    %v272 = vld [vmem:[#allocation14 + $0xb0] sm:$0xff]
    %v273 = vld [vmem:[#allocation14 + $0xb8] sm:$0xff]
    %v274 = vld [vmem:[#allocation14 + $0xc0] sm:$0xff]
    %v275 = vld [vmem:[#allocation14 + $0xc8] sm:$0xff]
    %v276 = vld [vmem:[#allocation14 + $0xd0] sm:$0xff]
    %v277 = vld [vmem:[#allocation14 + $0xd8] sm:$0xff]
    %v278 = vld [vmem:[#allocation14 + $0xe0] sm:$0xff]
    %v279 = vld [vmem:[#allocation14 + $0xe8] sm:$0xff]
    %v280 = vld [vmem:[#allocation14 + $0xf0] sm:$0xff]
    %v281 = vld [vmem:[#allocation14 + $0xf8] sm:$0xff]
    %v282 = vld [vmem:[#allocation3] sm:$0xf]
    %v283 = vld [vmem:[#allocation3 + $0x4] sm:$0xf]
    %v284 = vld [vmem:[#allocation3 + $0x8] sm:$0xf]
    %v285 = vld [vmem:[#allocation3 + $0xc] sm:$0xf]
    %v286 = vld [vmem:[#allocation3 + $0x10] sm:$0xf]
    %v287 = vld [vmem:[#allocation3 + $0x14] sm:$0xf]
    %v288 = vld [vmem:[#allocation3 + $0x18] sm:$0xf]
    %v289 = vld [vmem:[#allocation3 + $0x1c] sm:$0xf]
    %v290 = vld [vmem:[%s4] sm:$0x1]
    %v292 = vperm.slane %v290, 0
    %v302 = vunpack.c.l.b16 %v282
    %v303 = vunpack.c.l.b16 %v283
    %v304 = vunpack.c.l.b16 %v284
    %v305 = vunpack.c.l.b16 %v285
    %v306 = vunpack.c.l.b16 %v286
    %v307 = vunpack.c.l.b16 %v287
    %v308 = vunpack.c.l.b16 %v288
    %v309 = vunpack.c.l.b16 %v289
    %v310 = vpack.c.b16 %v303, %v302
    %v311 = vpack.c.b16 %v305, %v304
    %v312 = vpack.c.b16 %v307, %v306
    %v313 = vpack.c.b16 %v309, %v308
    %v334 = vunpack.c.l.b16 %v154
    %v335 = vunpack.c.l.b16 %v155
    %v336 = vunpack.c.l.b16 %v156
    %v337 = vunpack.c.l.b16 %v157
    %v338 = vunpack.c.l.b16 %v158
    %v339 = vunpack.c.l.b16 %v159
    %v340 = vunpack.c.l.b16 %v160
    %v341 = vunpack.c.l.b16 %v161
    %v342 = vunpack.c.l.b16 %v162
    %v343 = vunpack.c.l.b16 %v163
    %v344 = vunpack.c.l.b16 %v164
    %v345 = vunpack.c.l.b16 %v165
    %v346 = vunpack.c.l.b16 %v166
    %v347 = vunpack.c.l.b16 %v167
    %v348 = vunpack.c.l.b16 %v168
    %v349 = vunpack.c.l.b16 %v169
    %v350 = vpack.c.b16 %v335, %v334
    %v351 = vpack.c.b16 %v337, %v336
    %v352 = vpack.c.b16 %v339, %v338
    %v353 = vpack.c.b16 %v341, %v340
    %v354 = vpack.c.b16 %v343, %v342
    %v355 = vpack.c.b16 %v345, %v344
    %v356 = vpack.c.b16 %v347, %v346
    %v357 = vpack.c.b16 %v349, %v348
    %366 = vmatpush.bf16.msra.mxu0 %v357
    %367 = vmatpush.bf16.msra.mxu0 %v356
    %368 = vmatpush.bf16.msra.mxu0 %v355
    %369 = vmatpush.bf16.msra.mxu0 %v354
    %370 = vmatpush.bf16.msra.mxu0 %v353
    %371 = vmatpush.bf16.msra.mxu0 %v352
    %372 = vmatpush.bf16.msra.mxu0 %v351
    %373 = vmatpush.bf16.msra.mxu0 %v350
    %374 = vmatmul.bf16.gmra.mxu0 %v310
    %v375 = vpop.f32.mrf.mxu0
    %v376 = vadd.f32 %v292, %v375
    %v377 = vpop.f32.mrf.mxu0
    %v378 = vadd.f32 %v292, %v377
    %379 = vmatmul.bf16.gmra.mxu0 %v311
    %v380 = vpop.f32.mrf.mxu0
    %v381 = vadd.f32 %v292, %v380
    %v382 = vpop.f32.mrf.mxu0
    %v383 = vadd.f32 %v292, %v382
    %384 = vmatmul.bf16.gmra.mxu0 %v312
    %v385 = vpop.f32.mrf.mxu0
    %v386 = vadd.f32 %v292, %v385
    %v387 = vpop.f32.mrf.mxu0
    %v388 = vadd.f32 %v292, %v387
    %389 = vmatmul.bf16.gmra.mxu0 %v313
    %v390 = vpop.f32.mrf.mxu0
    %v391 = vadd.f32 %v292, %v390
    %v392 = vpop.f32.mrf.mxu0
    %v393 = vadd.f32 %v292, %v392
    %394 = vdwg.mxu0
    %395 = vst [vmem:[#allocation2] sm:$0xff] %v376
    %396 = vst [vmem:[#allocation2 + $0x8] sm:$0xff] %v378
    %397 = vst [vmem:[#allocation2 + $0x10] sm:$0xff] %v381
    %398 = vst [vmem:[#allocation2 + $0x18] sm:$0xff] %v383
    %399 = vst [vmem:[#allocation2 + $0x20] sm:$0xff] %v386
    %400 = vst [vmem:[#allocation2 + $0x28] sm:$0xff] %v388
    %401 = vst [vmem:[#allocation2 + $0x30] sm:$0xff] %v391
    %402 = vst [vmem:[#allocation2 + $0x38] sm:$0xff] %v393
    %v403 = vld [vmem:[%s8] sm:$0xf]
    %v405 = vperm.slane %v403, 0
    %v406 = vperm.slane %v403, 1
    %v407 = vperm.slane %v403, 2
    %v408 = vperm.slane %v403, 3
    %v413 = vlaneseq
    %v414 = vand.u32 %v413, 127
    %vm415 = vcmp.lt.s32.totalorder %v414, 16
    %v416 = vsel %vm415, 0.0, -1e+30
    %v417 = vld [vmem:[#allocation18] sm:$0xff]
    %v418 = vld [vmem:[#allocation19] sm:$0xff]
    %v419 = vpack.c.bf16 %v417, %v417
    %v420 = vpack.c.bf16 %v418, %v418
    %v421 = vld [vmem:[#allocation3] sm:$0xf]
    %v422 = vld [vmem:[#allocation2] sm:$0xff]
    %v439 = vunpack.c.l.b16 %v170
    %v440 = vunpack.c.l.b16 %v171
    %v441 = vunpack.c.l.b16 %v172
    %v442 = vunpack.c.l.b16 %v173
    %v443 = vunpack.c.l.b16 %v174
    %v444 = vunpack.c.l.b16 %v175
    %v445 = vunpack.c.l.b16 %v176
    %v446 = vunpack.c.l.b16 %v177
    %v447 = vunpack.c.l.b16 %v178
    %v448 = vunpack.c.l.b16 %v179
    %v449 = vunpack.c.l.b16 %v180
    %v450 = vunpack.c.l.b16 %v181
    %v451 = vunpack.c.l.b16 %v182
    %v452 = vunpack.c.l.b16 %v183
    %v453 = vunpack.c.l.b16 %v184
    %v454 = vunpack.c.l.b16 %v185
    %v455 = vpack.c.b16 %v440, %v439
    %v456 = vpack.c.b16 %v442, %v441
    %v457 = vpack.c.b16 %v444, %v443
    %v458 = vpack.c.b16 %v446, %v445
    %v459 = vpack.c.b16 %v448, %v447
    %v460 = vpack.c.b16 %v450, %v449
    %v461 = vpack.c.b16 %v452, %v451
    %v462 = vpack.c.b16 %v454, %v453
    %471 = vmatpush.bf16.msra.mxu0 %v462
    %472 = vmatpush.bf16.msra.mxu0 %v461
    %473 = vmatpush.bf16.msra.mxu0 %v460
    %474 = vmatpush.bf16.msra.mxu0 %v459
    %475 = vmatpush.bf16.msra.mxu0 %v458
    %476 = vmatpush.bf16.msra.mxu0 %v457
    %477 = vmatpush.bf16.msra.mxu0 %v456
    %478 = vmatpush.bf16.msra.mxu0 %v455
    %479 = vmatmul.bf16.gmra.mxu0 %v419
    %v480 = vpop.f32.mrf.mxu0
    %v481 = vadd.f32 0.0, %v480
    %v482 = vpop.f32.mrf.mxu0
    %483 = vdwg.mxu0
    %v484 = vadd.f32 %v422, %v481
    %v501 = vunpack.c.l.b16 %v186
    %v502 = vunpack.c.l.b16 %v187
    %v503 = vunpack.c.l.b16 %v188
    %v504 = vunpack.c.l.b16 %v189
    %v505 = vunpack.c.l.b16 %v190
    %v506 = vunpack.c.l.b16 %v191
    %v507 = vunpack.c.l.b16 %v192
    %v508 = vunpack.c.l.b16 %v193
    %v509 = vunpack.c.l.b16 %v194
    %v510 = vunpack.c.l.b16 %v195
    %v511 = vunpack.c.l.b16 %v196
    %v512 = vunpack.c.l.b16 %v197
    %v513 = vunpack.c.l.b16 %v198
    %v514 = vunpack.c.l.b16 %v199
    %v515 = vunpack.c.l.b16 %v200
    %v516 = vunpack.c.l.b16 %v201
    %v517 = vpack.c.b16 %v502, %v501
    %v518 = vpack.c.b16 %v504, %v503
    %v519 = vpack.c.b16 %v506, %v505
    %v520 = vpack.c.b16 %v508, %v507
    %v521 = vpack.c.b16 %v510, %v509
    %v522 = vpack.c.b16 %v512, %v511
    %v523 = vpack.c.b16 %v514, %v513
    %v524 = vpack.c.b16 %v516, %v515
    %533 = vmatpush.bf16.msra.mxu0 %v524
    %534 = vmatpush.bf16.msra.mxu0 %v523
    %535 = vmatpush.bf16.msra.mxu0 %v522
    %536 = vmatpush.bf16.msra.mxu0 %v521
    %537 = vmatpush.bf16.msra.mxu0 %v520
    %538 = vmatpush.bf16.msra.mxu0 %v519
    %539 = vmatpush.bf16.msra.mxu0 %v518
    %540 = vmatpush.bf16.msra.mxu0 %v517
    %541 = vmatmul.bf16.gmra.mxu0 %v420
    %v542 = vpop.f32.mrf.mxu0
    %v543 = vadd.f32 0.0, %v542
    %v544 = vpop.f32.mrf.mxu0
    %545 = vdwg.mxu0
    %v546 = vadd.f32 %v484, %v543
    %v547 = vtanh.pop %v546
    %v548 = vpack.c.bf16 %v547, %v547
    %v565 = vunpack.c.l.b16 %v202
    %v566 = vunpack.c.l.b16 %v203
    %v567 = vunpack.c.l.b16 %v204
    %v568 = vunpack.c.l.b16 %v205
    %v569 = vunpack.c.l.b16 %v206
    %v570 = vunpack.c.l.b16 %v207
    %v571 = vunpack.c.l.b16 %v208
    %v572 = vunpack.c.l.b16 %v209
    %v573 = vunpack.c.l.b16 %v210
    %v574 = vunpack.c.l.b16 %v211
    %v575 = vunpack.c.l.b16 %v212
    %v576 = vunpack.c.l.b16 %v213
    %v577 = vunpack.c.l.b16 %v214
    %v578 = vunpack.c.l.b16 %v215
    %v579 = vunpack.c.l.b16 %v216
    %v580 = vunpack.c.l.b16 %v217
    %v581 = vpack.c.b16 %v566, %v565
    %v582 = vpack.c.b16 %v568, %v567
    %v583 = vpack.c.b16 %v570, %v569
    %v584 = vpack.c.b16 %v572, %v571
    %v585 = vpack.c.b16 %v574, %v573
    %v586 = vpack.c.b16 %v576, %v575
    %v587 = vpack.c.b16 %v578, %v577
    %v588 = vpack.c.b16 %v580, %v579
    %597 = vmatpush.bf16.msra.mxu0 %v588
    %598 = vmatpush.bf16.msra.mxu0 %v587
    %599 = vmatpush.bf16.msra.mxu0 %v586
    %600 = vmatpush.bf16.msra.mxu0 %v585
    %601 = vmatpush.bf16.msra.mxu0 %v584
    %602 = vmatpush.bf16.msra.mxu0 %v583
    %603 = vmatpush.bf16.msra.mxu0 %v582
    %604 = vmatpush.bf16.msra.mxu0 %v581
    %605 = vmatmul.bf16.gmra.mxu0 %v548
    %v606 = vpop.f32.mrf.mxu0
    %v607 = vadd.f32 %v416, %v606
    %v608 = vpop.f32.mrf.mxu0
    %609 = vdwg.mxu0
    %610 = vmax.xlane.f32.xlu0 %v607
    %v611 = vpop.xlane.xlu0 %610
    %v612 = vsub.f32 %v607, %v611
    %v613 = vmul.f32 %v612, 1.442695
    %v614 = vpow.pop %v613
    %615 = vadd.xlane.f32.xlu0 %v614
    %v616 = vpop.xlane.xlu0 %615
    %v617 = vrcp.pop %v616
    %v618 = vmul.f32 %v616, %v617
    %v619 = vsub.f32 2.0, %v618
    %v620 = vmul.f32 %v617, %v619
    %v621 = vmul.f32 %v614, %v620
    %v622 = vpack.c.bf16 %v621, %v621
    %623 = vst [vmem:[#allocation16] sm:$0xf] %v622
    %v624 = vunpack.c.l.bf16 %v421
    %v625 = vmul.f32 %v621, %v624
    %v626 = vpack.c.bf16 %v625, %v625
    %v659 = vunpack.c.l.b16 %v250
    %v660 = vunpack.c.h.b16 %v250
    %v661 = vunpack.c.l.b16 %v251
    %v662 = vunpack.c.h.b16 %v251
    %v663 = vunpack.c.l.b16 %v252
    %v664 = vunpack.c.h.b16 %v252
    %v665 = vunpack.c.l.b16 %v253
    %v666 = vunpack.c.h.b16 %v253
    %v667 = vunpack.c.l.b16 %v254
    %v668 = vunpack.c.h.b16 %v254
    %v669 = vunpack.c.l.b16 %v255
    %v670 = vunpack.c.h.b16 %v255
    %v671 = vunpack.c.l.b16 %v256
    %v672 = vunpack.c.h.b16 %v256
    %v673 = vunpack.c.l.b16 %v257
    %v674 = vunpack.c.h.b16 %v257
    %v675 = vunpack.c.l.b16 %v258
    %v676 = vunpack.c.h.b16 %v258
    %v677 = vunpack.c.l.b16 %v259
    %v678 = vunpack.c.h.b16 %v259
    %v679 = vunpack.c.l.b16 %v260
    %v680 = vunpack.c.h.b16 %v260
    %v681 = vunpack.c.l.b16 %v261
    %v682 = vunpack.c.h.b16 %v261
    %v683 = vunpack.c.l.b16 %v262
    %v684 = vunpack.c.h.b16 %v262
    %v685 = vunpack.c.l.b16 %v263
    %v686 = vunpack.c.h.b16 %v263
    %v687 = vunpack.c.l.b16 %v264
    %v688 = vunpack.c.h.b16 %v264
    %v689 = vunpack.c.l.b16 %v265
    %v690 = vunpack.c.h.b16 %v265
    %v691 = vunpack.c.l.b16 %v266
    %v692 = vunpack.c.h.b16 %v266
    %v693 = vunpack.c.l.b16 %v267
    %v694 = vunpack.c.h.b16 %v267
    %v695 = vunpack.c.l.b16 %v268
    %v696 = vunpack.c.h.b16 %v268
    %v697 = vunpack.c.l.b16 %v269
    %v698 = vunpack.c.h.b16 %v269
    %v699 = vunpack.c.l.b16 %v270
    %v700 = vunpack.c.h.b16 %v270
    %v701 = vunpack.c.l.b16 %v271
    %v702 = vunpack.c.h.b16 %v271
    %v703 = vunpack.c.l.b16 %v272
    %v704 = vunpack.c.h.b16 %v272
    %v705 = vunpack.c.l.b16 %v273
    %v706 = vunpack.c.h.b16 %v273
    %v707 = vunpack.c.l.b16 %v274
    %v708 = vunpack.c.h.b16 %v274
    %v709 = vunpack.c.l.b16 %v275
    %v710 = vunpack.c.h.b16 %v275
    %v711 = vunpack.c.l.b16 %v276
    %v712 = vunpack.c.h.b16 %v276
    %v713 = vunpack.c.l.b16 %v277
    %v714 = vunpack.c.h.b16 %v277
    %v715 = vunpack.c.l.b16 %v278
    %v716 = vunpack.c.h.b16 %v278
    %v717 = vunpack.c.l.b16 %v279
    %v718 = vunpack.c.h.b16 %v279
    %v719 = vunpack.c.l.b16 %v280
    %v720 = vunpack.c.h.b16 %v280
    %v721 = vunpack.c.l.b16 %v281
    %v722 = vunpack.c.h.b16 %v281
    %v723 = vpack.c.b16 %v663, %v659
    %v724 = vpack.c.b16 %v664, %v660
    %v725 = vpack.c.b16 %v665, %v661
    %v726 = vpack.c.b16 %v666, %v662
    %v727 = vpack.c.b16 %v671, %v667
    %v728 = vpack.c.b16 %v672, %v668
    %v729 = vpack.c.b16 %v673, %v669
    %v730 = vpack.c.b16 %v674, %v670
    %v731 = vpack.c.b16 %v679, %v675
    %v732 = vpack.c.b16 %v680, %v676
    %v733 = vpack.c.b16 %v681, %v677
    %v734 = vpack.c.b16 %v682, %v678
    %v735 = vpack.c.b16 %v687, %v683
    %v736 = vpack.c.b16 %v688, %v684
    %v737 = vpack.c.b16 %v689, %v685
    %v738 = vpack.c.b16 %v690, %v686
    %v739 = vpack.c.b16 %v695, %v691
    %v740 = vpack.c.b16 %v696, %v692
    %v741 = vpack.c.b16 %v697, %v693
    %v742 = vpack.c.b16 %v698, %v694
    %v743 = vpack.c.b16 %v703, %v699
    %v744 = vpack.c.b16 %v704, %v700
    %v745 = vpack.c.b16 %v705, %v701
    %v746 = vpack.c.b16 %v706, %v702
    %v747 = vpack.c.b16 %v711, %v707
    %v748 = vpack.c.b16 %v712, %v708
    %v749 = vpack.c.b16 %v713, %v709
    %v750 = vpack.c.b16 %v714, %v710
    %v751 = vpack.c.b16 %v719, %v715
    %v752 = vpack.c.b16 %v720, %v716
    %v753 = vpack.c.b16 %v721, %v717
    %v754 = vpack.c.b16 %v722, %v718
    %787 = vmatpush.bf16.msra.mxu0 %v751
    %788 = vmatpush.bf16.msra.mxu0 %v747
    %789 = vmatpush.bf16.msra.mxu0 %v743
    %790 = vmatpush.bf16.msra.mxu0 %v739
    %791 = vmatpush.bf16.msra.mxu0 %v735
    %792 = vmatpush.bf16.msra.mxu0 %v731
    %793 = vmatpush.bf16.msra.mxu0 %v727
    %794 = vmatpush.bf16.msra.mxu0 %v723
    %795 = vmatmul.bf16.gmra.mxu0 %v419
    %v796 = vpop.f32.mrf.mxu0
    %v797 = vadd.f32 0.0, %v796
    %v798 = vpop.f32.mrf.mxu0
    %799 = vdwg.mxu0
    %800 = vmatpush.bf16.msra.mxu0 %v752
    %801 = vmatpush.bf16.msra.mxu0 %v748
    %802 = vmatpush.bf16.msra.mxu0 %v744
    %803 = vmatpush.bf16.msra.mxu0 %v740
    %804 = vmatpush.bf16.msra.mxu0 %v736
    %805 = vmatpush.bf16.msra.mxu0 %v732
    %806 = vmatpush.bf16.msra.mxu0 %v728
    %807 = vmatpush.bf16.msra.mxu0 %v724
    %808 = vmatmul.bf16.gmra.mxu0 %v419
    %v809 = vpop.f32.mrf.mxu0
    %v810 = vadd.f32 0.0, %v809
    %v811 = vpop.f32.mrf.mxu0
    %812 = vdwg.mxu0
    %813 = vmatpush.bf16.msra.mxu0 %v753
    %814 = vmatpush.bf16.msra.mxu0 %v749
    %815 = vmatpush.bf16.msra.mxu0 %v745
    %816 = vmatpush.bf16.msra.mxu0 %v741
    %817 = vmatpush.bf16.msra.mxu0 %v737
    %818 = vmatpush.bf16.msra.mxu0 %v733
    %819 = vmatpush.bf16.msra.mxu0 %v729
    %820 = vmatpush.bf16.msra.mxu0 %v725
    %821 = vmatmul.bf16.gmra.mxu0 %v419
    %v822 = vpop.f32.mrf.mxu0
    %v823 = vadd.f32 0.0, %v822
    %v824 = vpop.f32.mrf.mxu0
    %825 = vdwg.mxu0
    %826 = vmatpush.bf16.msra.mxu0 %v754
    %827 = vmatpush.bf16.msra.mxu0 %v750
    %828 = vmatpush.bf16.msra.mxu0 %v746
    %829 = vmatpush.bf16.msra.mxu0 %v742
    %830 = vmatpush.bf16.msra.mxu0 %v738
    %831 = vmatpush.bf16.msra.mxu0 %v734
    %832 = vmatpush.bf16.msra.mxu0 %v730
    %833 = vmatpush.bf16.msra.mxu0 %v726
    %834 = vmatmul.bf16.gmra.mxu0 %v419
    %v835 = vpop.f32.mrf.mxu0
    %v836 = vadd.f32 0.0, %v835
    %v837 = vpop.f32.mrf.mxu0
    %838 = vdwg.mxu0
    %v871 = vunpack.c.l.b16 %v218
    %v872 = vunpack.c.h.b16 %v218
    %v873 = vunpack.c.l.b16 %v219
    %v874 = vunpack.c.h.b16 %v219
    %v875 = vunpack.c.l.b16 %v220
    %v876 = vunpack.c.h.b16 %v220
    %v877 = vunpack.c.l.b16 %v221
    %v878 = vunpack.c.h.b16 %v221
    %v879 = vunpack.c.l.b16 %v222
    %v880 = vunpack.c.h.b16 %v222
    %v881 = vunpack.c.l.b16 %v223
    %v882 = vunpack.c.h.b16 %v223
    %v883 = vunpack.c.l.b16 %v224
    %v884 = vunpack.c.h.b16 %v224
    %v885 = vunpack.c.l.b16 %v225
    %v886 = vunpack.c.h.b16 %v225
    %v887 = vunpack.c.l.b16 %v226
    %v888 = vunpack.c.h.b16 %v226
    %v889 = vunpack.c.l.b16 %v227
    %v890 = vunpack.c.h.b16 %v227
    %v891 = vunpack.c.l.b16 %v228
    %v892 = vunpack.c.h.b16 %v228
    %v893 = vunpack.c.l.b16 %v229
    %v894 = vunpack.c.h.b16 %v229
    %v895 = vunpack.c.l.b16 %v230
    %v896 = vunpack.c.h.b16 %v230
    %v897 = vunpack.c.l.b16 %v231
    %v898 = vunpack.c.h.b16 %v231
    %v899 = vunpack.c.l.b16 %v232
    %v900 = vunpack.c.h.b16 %v232
    %v901 = vunpack.c.l.b16 %v233
    %v902 = vunpack.c.h.b16 %v233
    %v903 = vunpack.c.l.b16 %v234
    %v904 = vunpack.c.h.b16 %v234
    %v905 = vunpack.c.l.b16 %v235
    %v906 = vunpack.c.h.b16 %v235
    %v907 = vunpack.c.l.b16 %v236
    %v908 = vunpack.c.h.b16 %v236
    %v909 = vunpack.c.l.b16 %v237
    %v910 = vunpack.c.h.b16 %v237
    %v911 = vunpack.c.l.b16 %v238
    %v912 = vunpack.c.h.b16 %v238
    %v913 = vunpack.c.l.b16 %v239
    %v914 = vunpack.c.h.b16 %v239
    %v915 = vunpack.c.l.b16 %v240
    %v916 = vunpack.c.h.b16 %v240
    %v917 = vunpack.c.l.b16 %v241
    %v918 = vunpack.c.h.b16 %v241
    %v919 = vunpack.c.l.b16 %v242
    %v920 = vunpack.c.h.b16 %v242
    %v921 = vunpack.c.l.b16 %v243
    %v922 = vunpack.c.h.b16 %v243
    %v923 = vunpack.c.l.b16 %v244
    %v924 = vunpack.c.h.b16 %v244
    %v925 = vunpack.c.l.b16 %v245
    %v926 = vunpack.c.h.b16 %v245
    %v927 = vunpack.c.l.b16 %v246
    %v928 = vunpack.c.h.b16 %v246
    %v929 = vunpack.c.l.b16 %v247
    %v930 = vunpack.c.h.b16 %v247
    %v931 = vunpack.c.l.b16 %v248
    %v932 = vunpack.c.h.b16 %v248
    %v933 = vunpack.c.l.b16 %v249
    %v934 = vunpack.c.h.b16 %v249
    %v935 = vpack.c.b16 %v875, %v871
    %v936 = vpack.c.b16 %v876, %v872
    %v937 = vpack.c.b16 %v877, %v873
    %v938 = vpack.c.b16 %v878, %v874
    %v939 = vpack.c.b16 %v883, %v879
    %v940 = vpack.c.b16 %v884, %v880
    %v941 = vpack.c.b16 %v885, %v881
    %v942 = vpack.c.b16 %v886, %v882
    %v943 = vpack.c.b16 %v891, %v887
    %v944 = vpack.c.b16 %v892, %v888
    %v945 = vpack.c.b16 %v893, %v889
    %v946 = vpack.c.b16 %v894, %v890
    %v947 = vpack.c.b16 %v899, %v895
    %v948 = vpack.c.b16 %v900, %v896
    %v949 = vpack.c.b16 %v901, %v897
    %v950 = vpack.c.b16 %v902, %v898
    %v951 = vpack.c.b16 %v907, %v903
    %v952 = vpack.c.b16 %v908, %v904
    %v953 = vpack.c.b16 %v909, %v905
    %v954 = vpack.c.b16 %v910, %v906
    %v955 = vpack.c.b16 %v915, %v911
    %v956 = vpack.c.b16 %v916, %v912
    %v957 = vpack.c.b16 %v917, %v913
    %v958 = vpack.c.b16 %v918, %v914
    %v959 = vpack.c.b16 %v923, %v919
    %v960 = vpack.c.b16 %v924, %v920
    %v961 = vpack.c.b16 %v925, %v921
    %v962 = vpack.c.b16 %v926, %v922
    %v963 = vpack.c.b16 %v931, %v927
    %v964 = vpack.c.b16 %v932, %v928
    %v965 = vpack.c.b16 %v933, %v929
    %v966 = vpack.c.b16 %v934, %v930
    %999 = vmatpush.bf16.msra.mxu0 %v963
    %1000 = vmatpush.bf16.msra.mxu0 %v959
    %1001 = vmatpush.bf16.msra.mxu0 %v955
    %1002 = vmatpush.bf16.msra.mxu0 %v951
    %1003 = vmatpush.bf16.msra.mxu0 %v947
    %1004 = vmatpush.bf16.msra.mxu0 %v943
    %1005 = vmatpush.bf16.msra.mxu0 %v939
    %1006 = vmatpush.bf16.msra.mxu0 %v935
    %1007 = vmatmul.bf16.gmra.mxu0 %v626
    %v1008 = vpop.f32.mrf.mxu0
    %v1009 = vadd.f32 %v797, %v1008
    %v1010 = vpop.f32.mrf.mxu0
    %1011 = vdwg.mxu0
    %1012 = vmatpush.bf16.msra.mxu0 %v964
    %1013 = vmatpush.bf16.msra.mxu0 %v960
    %1014 = vmatpush.bf16.msra.mxu0 %v956
    %1015 = vmatpush.bf16.msra.mxu0 %v952
    %1016 = vmatpush.bf16.msra.mxu0 %v948
    %1017 = vmatpush.bf16.msra.mxu0 %v944
    %1018 = vmatpush.bf16.msra.mxu0 %v940
    %1019 = vmatpush.bf16.msra.mxu0 %v936
    %1020 = vmatmul.bf16.gmra.mxu0 %v626
    %v1021 = vpop.f32.mrf.mxu0
    %v1022 = vadd.f32 %v810, %v1021
    %v1023 = vpop.f32.mrf.mxu0
    %1024 = vdwg.mxu0
    %1025 = vmatpush.bf16.msra.mxu0 %v965
    %1026 = vmatpush.bf16.msra.mxu0 %v961
    %1027 = vmatpush.bf16.msra.mxu0 %v957
    %1028 = vmatpush.bf16.msra.mxu0 %v953
    %1029 = vmatpush.bf16.msra.mxu0 %v949
    %1030 = vmatpush.bf16.msra.mxu0 %v945
    %1031 = vmatpush.bf16.msra.mxu0 %v941
    %1032 = vmatpush.bf16.msra.mxu0 %v937
    %1033 = vmatmul.bf16.gmra.mxu0 %v626
    %v1034 = vpop.f32.mrf.mxu0
    %v1035 = vadd.f32 %v823, %v1034
    %v1036 = vpop.f32.mrf.mxu0
    %1037 = vdwg.mxu0
    %1038 = vmatpush.bf16.msra.mxu0 %v966
    %1039 = vmatpush.bf16.msra.mxu0 %v962
    %1040 = vmatpush.bf16.msra.mxu0 %v958
    %1041 = vmatpush.bf16.msra.mxu0 %v954
    %1042 = vmatpush.bf16.msra.mxu0 %v950
    %1043 = vmatpush.bf16.msra.mxu0 %v946
    %1044 = vmatpush.bf16.msra.mxu0 %v942
    %1045 = vmatpush.bf16.msra.mxu0 %v938
    %1046 = vmatmul.bf16.gmra.mxu0 %v626
    %v1047 = vpop.f32.mrf.mxu0
    %v1048 = vadd.f32 %v836, %v1047
    %v1049 = vpop.f32.mrf.mxu0
    %1050 = vdwg.mxu0
    %v1051 = vadd.f32 %v1009, %v405
    %v1052 = vadd.f32 %v1022, %v406
    %v1053 = vadd.f32 %v1035, %v407
    %v1054 = vadd.f32 %v1048, %v408
    %v1055 = vxor.u32 %v1051, 2147483648
    %v1056 = vmul.f32 %v1055, 1.442695
    %v1057 = vpow.pop %v1056
    %v1058 = vadd.f32 %v1057, 1.0
    %v1059 = vrcp.pop %v1058
    %v1060 = vmul.f32 %v1058, %v1059
    %v1061 = vsub.f32 1.0, %v1060
    %v1062 = vmul.f32 %v1059, %v1061
    %v1063 = vadd.f32 %v1059, %v1062
    %vm1064 = vweird.f32 %v1058
    %vm1065 = vweird.f32 %v1059
    %vm1066 = vmor %vm1064, %vm1065
    %v1067 = vsel %vm1066, %v1059, %v1063
    %v1068 = vand.u32 2147483647, %v1058
    %vm1069 = vcmp.eq.f32.partialorder %v1068, 8.507059e+37
    %v1070 = vand.u32 %v1058, 2147483648
    %v1071 = vor.u32 1.1754944e-38, %v1070
    %v1072 = vsel %vm1069, %v1071, %v1067
    %v1073 = vmul.f32 1.0, %v1072
    %v1074 = vxor.u32 %v1052, 2147483648
    %v1075 = vmul.f32 %v1074, 1.442695
    %v1076 = vpow.pop %v1075
    %v1077 = vadd.f32 %v1076, 1.0
    %v1078 = vrcp.pop %v1077
    %v1079 = vmul.f32 %v1077, %v1078
    %v1080 = vsub.f32 1.0, %v1079
    %v1081 = vmul.f32 %v1078, %v1080
    %v1082 = vadd.f32 %v1078, %v1081
    %vm1083 = vweird.f32 %v1077
    %vm1084 = vweird.f32 %v1078
    %vm1085 = vmor %vm1083, %vm1084
    %v1086 = vsel %vm1085, %v1078, %v1082
    %v1087 = vand.u32 2147483647, %v1077
    %vm1088 = vcmp.eq.f32.partialorder %v1087, 8.507059e+37
    %v1089 = vand.u32 %v1077, 2147483648
    %v1090 = vor.u32 1.1754944e-38, %v1089
    %v1091 = vsel %vm1088, %v1090, %v1086
    %v1092 = vmul.f32 1.0, %v1091
    %v1093 = vtanh.pop %v1053
    %v1094 = vxor.u32 %v1054, 2147483648
    %v1095 = vmul.f32 %v1094, 1.442695
    %v1096 = vpow.pop %v1095
    %v1097 = vadd.f32 %v1096, 1.0
    %v1098 = vrcp.pop %v1097
    %v1099 = vmul.f32 %v1097, %v1098
    %v1100 = vsub.f32 1.0, %v1099
    %v1101 = vmul.f32 %v1098, %v1100
    %v1102 = vadd.f32 %v1098, %v1101
    %vm1103 = vweird.f32 %v1097
    %vm1104 = vweird.f32 %v1098
    %vm1105 = vmor %vm1103, %vm1104
    %v1106 = vsel %vm1105, %v1098, %v1102
    %v1107 = vand.u32 2147483647, %v1097
    %vm1108 = vcmp.eq.f32.partialorder %v1107, 8.507059e+37
    %v1109 = vand.u32 %v1097, 2147483648
    %v1110 = vor.u32 1.1754944e-38, %v1109
    %v1111 = vsel %vm1108, %v1110, %v1106
    %v1112 = vmul.f32 1.0, %v1111
    %v1113 = vmul.f32 %v1092, %v418
    %v1114 = vmul.f32 %v1073, %v1093
    %v1115 = vadd.f32 %v1113, %v1114
    %v1116 = vtanh.pop %v1115
    %v1117 = vmul.f32 %v1112, %v1116
    %1118 = vst [vmem:[#allocation15] sm:$0xff] %v1117
    %v1119 = vpack.c.bf16 %v1117, %v1117
    %v1120 = vpack.c.bf16 %v1115, %v1115
    %s1121 = scalar_lea.vmem [#allocation3], 4
    %v1122 = vld [vmem:[%s1121] sm:$0xf]
    %s1123 = scalar_lea.vmem [#allocation2], 8
    %v1124 = vld [vmem:[%s1123] sm:$0xff]
    %1125 = vmatpush.bf16.msra.mxu0 %v462
    %1126 = vmatpush.bf16.msra.mxu0 %v461
    %1127 = vmatpush.bf16.msra.mxu0 %v460
    %1128 = vmatpush.bf16.msra.mxu0 %v459
    %1129 = vmatpush.bf16.msra.mxu0 %v458
    %1130 = vmatpush.bf16.msra.mxu0 %v457
    %1131 = vmatpush.bf16.msra.mxu0 %v456
    %1132 = vmatpush.bf16.msra.mxu0 %v455
    %1133 = vmatmul.bf16.gmra.mxu0 %v1119
    %v1134 = vpop.f32.mrf.mxu0
    %v1135 = vadd.f32 0.0, %v1134
    %v1136 = vpop.f32.mrf.mxu0
    %1137 = vdwg.mxu0
    %v1138 = vadd.f32 %v1124, %v1135
    %1139 = vmatpush.bf16.msra.mxu0 %v524
    %1140 = vmatpush.bf16.msra.mxu0 %v523
    %1141 = vmatpush.bf16.msra.mxu0 %v522
    %1142 = vmatpush.bf16.msra.mxu0 %v521
    %1143 = vmatpush.bf16.msra.mxu0 %v520
    %1144 = vmatpush.bf16.msra.mxu0 %v519
    %1145 = vmatpush.bf16.msra.mxu0 %v518
    %1146 = vmatpush.bf16.msra.mxu0 %v517
    %1147 = vmatmul.bf16.gmra.mxu0 %v1120
    %v1148 = vpop.f32.mrf.mxu0
    %v1149 = vadd.f32 0.0, %v1148
    %v1150 = vpop.f32.mrf.mxu0
    %1151 = vdwg.mxu0
    %v1152 = vadd.f32 %v1138, %v1149
    %v1153 = vtanh.pop %v1152
    %v1154 = vpack.c.bf16 %v1153, %v1153
    %1155 = vmatpush.bf16.msra.mxu0 %v588
    %1156 = vmatpush.bf16.msra.mxu0 %v587
    %1157 = vmatpush.bf16.msra.mxu0 %v586
    %1158 = vmatpush.bf16.msra.mxu0 %v585
    %1159 = vmatpush.bf16.msra.mxu0 %v584
    %1160 = vmatpush.bf16.msra.mxu0 %v583
    %1161 = vmatpush.bf16.msra.mxu0 %v582
    %1162 = vmatpush.bf16.msra.mxu0 %v581
    %1163 = vmatmul.bf16.gmra.mxu0 %v1154
    %v1164 = vpop.f32.mrf.mxu0
    %v1165 = vadd.f32 %v416, %v1164
    %v1166 = vpop.f32.mrf.mxu0
    %1167 = vdwg.mxu0
    %1168 = vmax.xlane.f32.xlu0 %v1165
    %v1169 = vpop.xlane.xlu0 %1168
    %v1170 = vsub.f32 %v1165, %v1169
    %v1171 = vmul.f32 %v1170, 1.442695
    %v1172 = vpow.pop %v1171
    %1173 = vadd.xlane.f32.xlu0 %v1172
    %v1174 = vpop.xlane.xlu0 %1173
    %v1175 = vrcp.pop %v1174
    %v1176 = vmul.f32 %v1174, %v1175
    %v1177 = vsub.f32 2.0, %v1176
    %v1178 = vmul.f32 %v1175, %v1177
    %v1179 = vmul.f32 %v1172, %v1178
    %v1180 = vpack.c.bf16 %v1179, %v1179
    %s1181 = scalar_lea.vmem [#allocation16], 4
    %1182 = vst [vmem:[%s1181] sm:$0xf] %v1180
    %v1183 = vunpack.c.l.bf16 %v1122
    %v1184 = vmul.f32 %v1179, %v1183
    %v1185 = vpack.c.bf16 %v1184, %v1184
    %1186 = vmatpush.bf16.msra.mxu0 %v751
    %1187 = vmatpush.bf16.msra.mxu0 %v747
    %1188 = vmatpush.bf16.msra.mxu0 %v743
    %1189 = vmatpush.bf16.msra.mxu0 %v739
    %1190 = vmatpush.bf16.msra.mxu0 %v735
    %1191 = vmatpush.bf16.msra.mxu0 %v731
    %1192 = vmatpush.bf16.msra.mxu0 %v727
    %1193 = vmatpush.bf16.msra.mxu0 %v723
    %1194 = vmatmul.bf16.gmra.mxu0 %v1119
    %v1195 = vpop.f32.mrf.mxu0
    %v1196 = vadd.f32 0.0, %v1195
    %v1197 = vpop.f32.mrf.mxu0
    %1198 = vdwg.mxu0
    %1199 = vmatpush.bf16.msra.mxu0 %v752
    %1200 = vmatpush.bf16.msra.mxu0 %v748
    %1201 = vmatpush.bf16.msra.mxu0 %v744
    %1202 = vmatpush.bf16.msra.mxu0 %v740
    %1203 = vmatpush.bf16.msra.mxu0 %v736
    %1204 = vmatpush.bf16.msra.mxu0 %v732
    %1205 = vmatpush.bf16.msra.mxu0 %v728
    %1206 = vmatpush.bf16.msra.mxu0 %v724
    %1207 = vmatmul.bf16.gmra.mxu0 %v1119
    %v1208 = vpop.f32.mrf.mxu0
    %v1209 = vadd.f32 0.0, %v1208
    %v1210 = vpop.f32.mrf.mxu0
    %1211 = vdwg.mxu0
    %1212 = vmatpush.bf16.msra.mxu0 %v753
    %1213 = vmatpush.bf16.msra.mxu0 %v749
    %1214 = vmatpush.bf16.msra.mxu0 %v745
    %1215 = vmatpush.bf16.msra.mxu0 %v741
    %1216 = vmatpush.bf16.msra.mxu0 %v737
    %1217 = vmatpush.bf16.msra.mxu0 %v733
    %1218 = vmatpush.bf16.msra.mxu0 %v729
    %1219 = vmatpush.bf16.msra.mxu0 %v725
    %1220 = vmatmul.bf16.gmra.mxu0 %v1119
    %v1221 = vpop.f32.mrf.mxu0
    %v1222 = vadd.f32 0.0, %v1221
    %v1223 = vpop.f32.mrf.mxu0
    %1224 = vdwg.mxu0
    %1225 = vmatpush.bf16.msra.mxu0 %v754
    %1226 = vmatpush.bf16.msra.mxu0 %v750
    %1227 = vmatpush.bf16.msra.mxu0 %v746
    %1228 = vmatpush.bf16.msra.mxu0 %v742
    %1229 = vmatpush.bf16.msra.mxu0 %v738
    %1230 = vmatpush.bf16.msra.mxu0 %v734
    %1231 = vmatpush.bf16.msra.mxu0 %v730
    %1232 = vmatpush.bf16.msra.mxu0 %v726
    %1233 = vmatmul.bf16.gmra.mxu0 %v1119
    %v1234 = vpop.f32.mrf.mxu0
    %v1235 = vadd.f32 0.0, %v1234
    %v1236 = vpop.f32.mrf.mxu0
    %1237 = vdwg.mxu0
    %1238 = vmatpush.bf16.msra.mxu0 %v963
    %1239 = vmatpush.bf16.msra.mxu0 %v959
    %1240 = vmatpush.bf16.msra.mxu0 %v955
    %1241 = vmatpush.bf16.msra.mxu0 %v951
    %1242 = vmatpush.bf16.msra.mxu0 %v947
    %1243 = vmatpush.bf16.msra.mxu0 %v943
    %1244 = vmatpush.bf16.msra.mxu0 %v939
    %1245 = vmatpush.bf16.msra.mxu0 %v935
    %1246 = vmatmul.bf16.gmra.mxu0 %v1185
    %v1247 = vpop.f32.mrf.mxu0
    %v1248 = vadd.f32 %v1196, %v1247
    %v1249 = vpop.f32.mrf.mxu0
    %1250 = vdwg.mxu0
    %1251 = vmatpush.bf16.msra.mxu0 %v964
    %1252 = vmatpush.bf16.msra.mxu0 %v960
    %1253 = vmatpush.bf16.msra.mxu0 %v956
    %1254 = vmatpush.bf16.msra.mxu0 %v952
    %1255 = vmatpush.bf16.msra.mxu0 %v948
    %1256 = vmatpush.bf16.msra.mxu0 %v944
    %1257 = vmatpush.bf16.msra.mxu0 %v940
    %1258 = vmatpush.bf16.msra.mxu0 %v936
    %1259 = vmatmul.bf16.gmra.mxu0 %v1185
    %v1260 = vpop.f32.mrf.mxu0
    %v1261 = vadd.f32 %v1209, %v1260
    %v1262 = vpop.f32.mrf.mxu0
    %1263 = vdwg.mxu0
    %1264 = vmatpush.bf16.msra.mxu0 %v965
    %1265 = vmatpush.bf16.msra.mxu0 %v961
    %1266 = vmatpush.bf16.msra.mxu0 %v957
    %1267 = vmatpush.bf16.msra.mxu0 %v953
    %1268 = vmatpush.bf16.msra.mxu0 %v949
    %1269 = vmatpush.bf16.msra.mxu0 %v945
    %1270 = vmatpush.bf16.msra.mxu0 %v941
    %1271 = vmatpush.bf16.msra.mxu0 %v937
    %1272 = vmatmul.bf16.gmra.mxu0 %v1185
    %v1273 = vpop.f32.mrf.mxu0
    %v1274 = vadd.f32 %v1222, %v1273
    %v1275 = vpop.f32.mrf.mxu0
    %1276 = vdwg.mxu0
    %1277 = vmatpush.bf16.msra.mxu0 %v966
    %1278 = vmatpush.bf16.msra.mxu0 %v962
    %1279 = vmatpush.bf16.msra.mxu0 %v958
    %1280 = vmatpush.bf16.msra.mxu0 %v954
    %1281 = vmatpush.bf16.msra.mxu0 %v950
    %1282 = vmatpush.bf16.msra.mxu0 %v946
    %1283 = vmatpush.bf16.msra.mxu0 %v942
    %1284 = vmatpush.bf16.msra.mxu0 %v938
    %1285 = vmatmul.bf16.gmra.mxu0 %v1185
    %v1286 = vpop.f32.mrf.mxu0
    %v1287 = vadd.f32 %v1235, %v1286
    %v1288 = vpop.f32.mrf.mxu0
    %1289 = vdwg.mxu0
    %v1290 = vadd.f32 %v1248, %v405
    %v1291 = vadd.f32 %v1261, %v406
    %v1292 = vadd.f32 %v1274, %v407
    %v1293 = vadd.f32 %v1287, %v408
    %v1294 = vxor.u32 %v1290, 2147483648
    %v1295 = vmul.f32 %v1294, 1.442695
    %v1296 = vpow.pop %v1295
    %v1297 = vadd.f32 %v1296, 1.0
    %v1298 = vrcp.pop %v1297
    %v1299 = vmul.f32 %v1297, %v1298
    %v1300 = vsub.f32 1.0, %v1299
    %v1301 = vmul.f32 %v1298, %v1300
    %v1302 = vadd.f32 %v1298, %v1301
    %vm1303 = vweird.f32 %v1297
    %vm1304 = vweird.f32 %v1298
    %vm1305 = vmor %vm1303, %vm1304
    %v1306 = vsel %vm1305, %v1298, %v1302
    %v1307 = vand.u32 2147483647, %v1297
    %vm1308 = vcmp.eq.f32.partialorder %v1307, 8.507059e+37
    %v1309 = vand.u32 %v1297, 2147483648
    %v1310 = vor.u32 1.1754944e-38, %v1309
    %v1311 = vsel %vm1308, %v1310, %v1306
    %v1312 = vmul.f32 1.0, %v1311
    %v1313 = vxor.u32 %v1291, 2147483648
    %v1314 = vmul.f32 %v1313, 1.442695
    %v1315 = vpow.pop %v1314
    %v1316 = vadd.f32 %v1315, 1.0
    %v1317 = vrcp.pop %v1316
    %v1318 = vmul.f32 %v1316, %v1317
    %v1319 = vsub.f32 1.0, %v1318
    %v1320 = vmul.f32 %v1317, %v1319
    %v1321 = vadd.f32 %v1317, %v1320
    %vm1322 = vweird.f32 %v1316
    %vm1323 = vweird.f32 %v1317
    %vm1324 = vmor %vm1322, %vm1323
    %v1325 = vsel %vm1324, %v1317, %v1321
    %v1326 = vand.u32 2147483647, %v1316
    %vm1327 = vcmp.eq.f32.partialorder %v1326, 8.507059e+37
    %v1328 = vand.u32 %v1316, 2147483648
    %v1329 = vor.u32 1.1754944e-38, %v1328
    %v1330 = vsel %vm1327, %v1329, %v1325
    %v1331 = vmul.f32 1.0, %v1330
    %v1332 = vtanh.pop %v1292
    %v1333 = vxor.u32 %v1293, 2147483648
    %v1334 = vmul.f32 %v1333, 1.442695
    %v1335 = vpow.pop %v1334
    %v1336 = vadd.f32 %v1335, 1.0
    %v1337 = vrcp.pop %v1336
    %v1338 = vmul.f32 %v1336, %v1337
    %v1339 = vsub.f32 1.0, %v1338
    %v1340 = vmul.f32 %v1337, %v1339
    %v1341 = vadd.f32 %v1337, %v1340
    %vm1342 = vweird.f32 %v1336
    %vm1343 = vweird.f32 %v1337
    %vm1344 = vmor %vm1342, %vm1343
    %v1345 = vsel %vm1344, %v1337, %v1341
    %v1346 = vand.u32 2147483647, %v1336
    %vm1347 = vcmp.eq.f32.partialorder %v1346, 8.507059e+37
    %v1348 = vand.u32 %v1336, 2147483648
    %v1349 = vor.u32 1.1754944e-38, %v1348
    %v1350 = vsel %vm1347, %v1349, %v1345
    %v1351 = vmul.f32 1.0, %v1350
    %v1352 = vmul.f32 %v1331, %v1115
    %v1353 = vmul.f32 %v1312, %v1332
    %v1354 = vadd.f32 %v1352, %v1353
    %v1355 = vtanh.pop %v1354
    %v1356 = vmul.f32 %v1351, %v1355
    %s1357 = scalar_lea.vmem [#allocation15], 8
    %1358 = vst [vmem:[%s1357] sm:$0xff] %v1356
    %v1359 = vpack.c.bf16 %v1356, %v1356
    %v1360 = vpack.c.bf16 %v1354, %v1354
    %s1361 = scalar_lea.vmem [#allocation3], 8
    %v1362 = vld [vmem:[%s1361] sm:$0xf]
    %s1363 = scalar_lea.vmem [#allocation2], 16
    %v1364 = vld [vmem:[%s1363] sm:$0xff]
    %1365 = vmatpush.bf16.msra.mxu0 %v462
    %1366 = vmatpush.bf16.msra.mxu0 %v461
    %1367 = vmatpush.bf16.msra.mxu0 %v460
    %1368 = vmatpush.bf16.msra.mxu0 %v459
    %1369 = vmatpush.bf16.msra.mxu0 %v458
    %1370 = vmatpush.bf16.msra.mxu0 %v457
    %1371 = vmatpush.bf16.msra.mxu0 %v456
    %1372 = vmatpush.bf16.msra.mxu0 %v455
    %1373 = vmatmul.bf16.gmra.mxu0 %v1359
    %v1374 = vpop.f32.mrf.mxu0
    %v1375 = vadd.f32 0.0, %v1374
    %v1376 = vpop.f32.mrf.mxu0
    %1377 = vdwg.mxu0
    %v1378 = vadd.f32 %v1364, %v1375
    %1379 = vmatpush.bf16.msra.mxu0 %v524
    %1380 = vmatpush.bf16.msra.mxu0 %v523
    %1381 = vmatpush.bf16.msra.mxu0 %v522
    %1382 = vmatpush.bf16.msra.mxu0 %v521
    %1383 = vmatpush.bf16.msra.mxu0 %v520
    %1384 = vmatpush.bf16.msra.mxu0 %v519
    %1385 = vmatpush.bf16.msra.mxu0 %v518
    %1386 = vmatpush.bf16.msra.mxu0 %v517
    %1387 = vmatmul.bf16.gmra.mxu0 %v1360
    %v1388 = vpop.f32.mrf.mxu0
    %v1389 = vadd.f32 0.0, %v1388
    %v1390 = vpop.f32.mrf.mxu0
    %1391 = vdwg.mxu0
    %v1392 = vadd.f32 %v1378, %v1389
    %v1393 = vtanh.pop %v1392
    %v1394 = vpack.c.bf16 %v1393, %v1393
    %1395 = vmatpush.bf16.msra.mxu0 %v588
    %1396 = vmatpush.bf16.msra.mxu0 %v587
    %1397 = vmatpush.bf16.msra.mxu0 %v586
    %1398 = vmatpush.bf16.msra.mxu0 %v585
    %1399 = vmatpush.bf16.msra.mxu0 %v584
    %1400 = vmatpush.bf16.msra.mxu0 %v583
    %1401 = vmatpush.bf16.msra.mxu0 %v582
    %1402 = vmatpush.bf16.msra.mxu0 %v581
    %1403 = vmatmul.bf16.gmra.mxu0 %v1394
    %v1404 = vpop.f32.mrf.mxu0
    %v1405 = vadd.f32 %v416, %v1404
    %v1406 = vpop.f32.mrf.mxu0
    %1407 = vdwg.mxu0
    %1408 = vmax.xlane.f32.xlu0 %v1405
    %v1409 = vpop.xlane.xlu0 %1408
    %v1410 = vsub.f32 %v1405, %v1409
    %v1411 = vmul.f32 %v1410, 1.442695
    %v1412 = vpow.pop %v1411
    %1413 = vadd.xlane.f32.xlu0 %v1412
    %v1414 = vpop.xlane.xlu0 %1413
    %v1415 = vrcp.pop %v1414
    %v1416 = vmul.f32 %v1414, %v1415
    %v1417 = vsub.f32 2.0, %v1416
    %v1418 = vmul.f32 %v1415, %v1417
    %v1419 = vmul.f32 %v1412, %v1418
    %v1420 = vpack.c.bf16 %v1419, %v1419
    %s1421 = scalar_lea.vmem [#allocation16], 8
    %1422 = vst [vmem:[%s1421] sm:$0xf] %v1420
    %v1423 = vunpack.c.l.bf16 %v1362
    %v1424 = vmul.f32 %v1419, %v1423
    %v1425 = vpack.c.bf16 %v1424, %v1424
    %1426 = vmatpush.bf16.msra.mxu0 %v751
    %1427 = vmatpush.bf16.msra.mxu0 %v747
    %1428 = vmatpush.bf16.msra.mxu0 %v743
    %1429 = vmatpush.bf16.msra.mxu0 %v739
    %1430 = vmatpush.bf16.msra.mxu0 %v735
    %1431 = vmatpush.bf16.msra.mxu0 %v731
    %1432 = vmatpush.bf16.msra.mxu0 %v727
    %1433 = vmatpush.bf16.msra.mxu0 %v723
    %1434 = vmatmul.bf16.gmra.mxu0 %v1359
    %v1435 = vpop.f32.mrf.mxu0
    %v1436 = vadd.f32 0.0, %v1435
    %v1437 = vpop.f32.mrf.mxu0
    %1438 = vdwg.mxu0
    %1439 = vmatpush.bf16.msra.mxu0 %v752
    %1440 = vmatpush.bf16.msra.mxu0 %v748
    %1441 = vmatpush.bf16.msra.mxu0 %v744
    %1442 = vmatpush.bf16.msra.mxu0 %v740
    %1443 = vmatpush.bf16.msra.mxu0 %v736
    %1444 = vmatpush.bf16.msra.mxu0 %v732
    %1445 = vmatpush.bf16.msra.mxu0 %v728
    %1446 = vmatpush.bf16.msra.mxu0 %v724
    %1447 = vmatmul.bf16.gmra.mxu0 %v1359
    %v1448 = vpop.f32.mrf.mxu0
    %v1449 = vadd.f32 0.0, %v1448
    %v1450 = vpop.f32.mrf.mxu0
    %1451 = vdwg.mxu0
    %1452 = vmatpush.bf16.msra.mxu0 %v753
    %1453 = vmatpush.bf16.msra.mxu0 %v749
    %1454 = vmatpush.bf16.msra.mxu0 %v745
    %1455 = vmatpush.bf16.msra.mxu0 %v741
    %1456 = vmatpush.bf16.msra.mxu0 %v737
    %1457 = vmatpush.bf16.msra.mxu0 %v733
    %1458 = vmatpush.bf16.msra.mxu0 %v729
    %1459 = vmatpush.bf16.msra.mxu0 %v725
    %1460 = vmatmul.bf16.gmra.mxu0 %v1359
    %v1461 = vpop.f32.mrf.mxu0
    %v1462 = vadd.f32 0.0, %v1461
    %v1463 = vpop.f32.mrf.mxu0
    %1464 = vdwg.mxu0
    %1465 = vmatpush.bf16.msra.mxu0 %v754
    %1466 = vmatpush.bf16.msra.mxu0 %v750
    %1467 = vmatpush.bf16.msra.mxu0 %v746
    %1468 = vmatpush.bf16.msra.mxu0 %v742
    %1469 = vmatpush.bf16.msra.mxu0 %v738
    %1470 = vmatpush.bf16.msra.mxu0 %v734
    %1471 = vmatpush.bf16.msra.mxu0 %v730
    %1472 = vmatpush.bf16.msra.mxu0 %v726
    %1473 = vmatmul.bf16.gmra.mxu0 %v1359
    %v1474 = vpop.f32.mrf.mxu0
    %v1475 = vadd.f32 0.0, %v1474
    %v1476 = vpop.f32.mrf.mxu0
    %1477 = vdwg.mxu0
    %1478 = vmatpush.bf16.msra.mxu0 %v963
    %1479 = vmatpush.bf16.msra.mxu0 %v959
    %1480 = vmatpush.bf16.msra.mxu0 %v955
    %1481 = vmatpush.bf16.msra.mxu0 %v951
    %1482 = vmatpush.bf16.msra.mxu0 %v947
    %1483 = vmatpush.bf16.msra.mxu0 %v943
    %1484 = vmatpush.bf16.msra.mxu0 %v939
    %1485 = vmatpush.bf16.msra.mxu0 %v935
    %1486 = vmatmul.bf16.gmra.mxu0 %v1425
    %v1487 = vpop.f32.mrf.mxu0
    %v1488 = vadd.f32 %v1436, %v1487
    %v1489 = vpop.f32.mrf.mxu0
    %1490 = vdwg.mxu0
    %1491 = vmatpush.bf16.msra.mxu0 %v964
    %1492 = vmatpush.bf16.msra.mxu0 %v960
    %1493 = vmatpush.bf16.msra.mxu0 %v956
    %1494 = vmatpush.bf16.msra.mxu0 %v952
    %1495 = vmatpush.bf16.msra.mxu0 %v948
    %1496 = vmatpush.bf16.msra.mxu0 %v944
    %1497 = vmatpush.bf16.msra.mxu0 %v940
    %1498 = vmatpush.bf16.msra.mxu0 %v936
    %1499 = vmatmul.bf16.gmra.mxu0 %v1425
    %v1500 = vpop.f32.mrf.mxu0
    %v1501 = vadd.f32 %v1449, %v1500
    %v1502 = vpop.f32.mrf.mxu0
    %1503 = vdwg.mxu0
    %1504 = vmatpush.bf16.msra.mxu0 %v965
    %1505 = vmatpush.bf16.msra.mxu0 %v961
    %1506 = vmatpush.bf16.msra.mxu0 %v957
    %1507 = vmatpush.bf16.msra.mxu0 %v953
    %1508 = vmatpush.bf16.msra.mxu0 %v949
    %1509 = vmatpush.bf16.msra.mxu0 %v945
    %1510 = vmatpush.bf16.msra.mxu0 %v941
    %1511 = vmatpush.bf16.msra.mxu0 %v937
    %1512 = vmatmul.bf16.gmra.mxu0 %v1425
    %v1513 = vpop.f32.mrf.mxu0
    %v1514 = vadd.f32 %v1462, %v1513
    %v1515 = vpop.f32.mrf.mxu0
    %1516 = vdwg.mxu0
    %1517 = vmatpush.bf16.msra.mxu0 %v966
    %1518 = vmatpush.bf16.msra.mxu0 %v962
    %1519 = vmatpush.bf16.msra.mxu0 %v958
    %1520 = vmatpush.bf16.msra.mxu0 %v954
    %1521 = vmatpush.bf16.msra.mxu0 %v950
    %1522 = vmatpush.bf16.msra.mxu0 %v946
    %1523 = vmatpush.bf16.msra.mxu0 %v942
    %1524 = vmatpush.bf16.msra.mxu0 %v938
    %1525 = vmatmul.bf16.gmra.mxu0 %v1425
    %v1526 = vpop.f32.mrf.mxu0
    %v1527 = vadd.f32 %v1475, %v1526
    %v1528 = vpop.f32.mrf.mxu0
    %1529 = vdwg.mxu0
    %v1530 = vadd.f32 %v1488, %v405
    %v1531 = vadd.f32 %v1501, %v406
    %v1532 = vadd.f32 %v1514, %v407
    %v1533 = vadd.f32 %v1527, %v408
    %v1534 = vxor.u32 %v1530, 2147483648
    %v1535 = vmul.f32 %v1534, 1.442695
    %v1536 = vpow.pop %v1535
    %v1537 = vadd.f32 %v1536, 1.0
    %v1538 = vrcp.pop %v1537
    %v1539 = vmul.f32 %v1537, %v1538
    %v1540 = vsub.f32 1.0, %v1539
    %v1541 = vmul.f32 %v1538, %v1540
    %v1542 = vadd.f32 %v1538, %v1541
    %vm1543 = vweird.f32 %v1537
    %vm1544 = vweird.f32 %v1538
    %vm1545 = vmor %vm1543, %vm1544
    %v1546 = vsel %vm1545, %v1538, %v1542
    %v1547 = vand.u32 2147483647, %v1537
    %vm1548 = vcmp.eq.f32.partialorder %v1547, 8.507059e+37
    %v1549 = vand.u32 %v1537, 2147483648
    %v1550 = vor.u32 1.1754944e-38, %v1549
    %v1551 = vsel %vm1548, %v1550, %v1546
    %v1552 = vmul.f32 1.0, %v1551
    %v1553 = vxor.u32 %v1531, 2147483648
    %v1554 = vmul.f32 %v1553, 1.442695
    %v1555 = vpow.pop %v1554
    %v1556 = vadd.f32 %v1555, 1.0
    %v1557 = vrcp.pop %v1556
    %v1558 = vmul.f32 %v1556, %v1557
    %v1559 = vsub.f32 1.0, %v1558
    %v1560 = vmul.f32 %v1557, %v1559
    %v1561 = vadd.f32 %v1557, %v1560
    %vm1562 = vweird.f32 %v1556
    %vm1563 = vweird.f32 %v1557
    %vm1564 = vmor %vm1562, %vm1563
    %v1565 = vsel %vm1564, %v1557, %v1561
    %v1566 = vand.u32 2147483647, %v1556
    %vm1567 = vcmp.eq.f32.partialorder %v1566, 8.507059e+37
    %v1568 = vand.u32 %v1556, 2147483648
    %v1569 = vor.u32 1.1754944e-38, %v1568
    %v1570 = vsel %vm1567, %v1569, %v1565
    %v1571 = vmul.f32 1.0, %v1570
    %v1572 = vtanh.pop %v1532
    %v1573 = vxor.u32 %v1533, 2147483648
    %v1574 = vmul.f32 %v1573, 1.442695
    %v1575 = vpow.pop %v1574
    %v1576 = vadd.f32 %v1575, 1.0
    %v1577 = vrcp.pop %v1576
    %v1578 = vmul.f32 %v1576, %v1577
    %v1579 = vsub.f32 1.0, %v1578
    %v1580 = vmul.f32 %v1577, %v1579
    %v1581 = vadd.f32 %v1577, %v1580
    %vm1582 = vweird.f32 %v1576
    %vm1583 = vweird.f32 %v1577
    %vm1584 = vmor %vm1582, %vm1583
    %v1585 = vsel %vm1584, %v1577, %v1581
    %v1586 = vand.u32 2147483647, %v1576
    %vm1587 = vcmp.eq.f32.partialorder %v1586, 8.507059e+37
    %v1588 = vand.u32 %v1576, 2147483648
    %v1589 = vor.u32 1.1754944e-38, %v1588
    %v1590 = vsel %vm1587, %v1589, %v1585
    %v1591 = vmul.f32 1.0, %v1590
    %v1592 = vmul.f32 %v1571, %v1354
    %v1593 = vmul.f32 %v1552, %v1572
    %v1594 = vadd.f32 %v1592, %v1593
    %v1595 = vtanh.pop %v1594
    %v1596 = vmul.f32 %v1591, %v1595
    %s1597 = scalar_lea.vmem [#allocation15], 16
    %1598 = vst [vmem:[%s1597] sm:$0xff] %v1596
    %v1599 = vpack.c.bf16 %v1596, %v1596
    %v1600 = vpack.c.bf16 %v1594, %v1594
    %s1601 = scalar_lea.vmem [#allocation3], 12
    %v1602 = vld [vmem:[%s1601] sm:$0xf]
    %s1603 = scalar_lea.vmem [#allocation2], 24
    %v1604 = vld [vmem:[%s1603] sm:$0xff]
    %1605 = vmatpush.bf16.msra.mxu0 %v462
    %1606 = vmatpush.bf16.msra.mxu0 %v461
    %1607 = vmatpush.bf16.msra.mxu0 %v460
    %1608 = vmatpush.bf16.msra.mxu0 %v459
    %1609 = vmatpush.bf16.msra.mxu0 %v458
    %1610 = vmatpush.bf16.msra.mxu0 %v457
    %1611 = vmatpush.bf16.msra.mxu0 %v456
    %1612 = vmatpush.bf16.msra.mxu0 %v455
    %1613 = vmatmul.bf16.gmra.mxu0 %v1599
    %v1614 = vpop.f32.mrf.mxu0
    %v1615 = vadd.f32 0.0, %v1614
    %v1616 = vpop.f32.mrf.mxu0
    %1617 = vdwg.mxu0
    %v1618 = vadd.f32 %v1604, %v1615
    %1619 = vmatpush.bf16.msra.mxu0 %v524
    %1620 = vmatpush.bf16.msra.mxu0 %v523
    %1621 = vmatpush.bf16.msra.mxu0 %v522
    %1622 = vmatpush.bf16.msra.mxu0 %v521
    %1623 = vmatpush.bf16.msra.mxu0 %v520
    %1624 = vmatpush.bf16.msra.mxu0 %v519
    %1625 = vmatpush.bf16.msra.mxu0 %v518
    %1626 = vmatpush.bf16.msra.mxu0 %v517
    %1627 = vmatmul.bf16.gmra.mxu0 %v1600
    %v1628 = vpop.f32.mrf.mxu0
    %v1629 = vadd.f32 0.0, %v1628
    %v1630 = vpop.f32.mrf.mxu0
    %1631 = vdwg.mxu0
    %v1632 = vadd.f32 %v1618, %v1629
    %v1633 = vtanh.pop %v1632
    %v1634 = vpack.c.bf16 %v1633, %v1633
    %1635 = vmatpush.bf16.msra.mxu0 %v588
    %1636 = vmatpush.bf16.msra.mxu0 %v587
    %1637 = vmatpush.bf16.msra.mxu0 %v586
    %1638 = vmatpush.bf16.msra.mxu0 %v585
    %1639 = vmatpush.bf16.msra.mxu0 %v584
    %1640 = vmatpush.bf16.msra.mxu0 %v583
    %1641 = vmatpush.bf16.msra.mxu0 %v582
    %1642 = vmatpush.bf16.msra.mxu0 %v581
    %1643 = vmatmul.bf16.gmra.mxu0 %v1634
    %v1644 = vpop.f32.mrf.mxu0
    %v1645 = vadd.f32 %v416, %v1644
    %v1646 = vpop.f32.mrf.mxu0
    %1647 = vdwg.mxu0
    %1648 = vmax.xlane.f32.xlu0 %v1645
    %v1649 = vpop.xlane.xlu0 %1648
    %v1650 = vsub.f32 %v1645, %v1649
    %v1651 = vmul.f32 %v1650, 1.442695
    %v1652 = vpow.pop %v1651
    %1653 = vadd.xlane.f32.xlu0 %v1652
    %v1654 = vpop.xlane.xlu0 %1653
    %v1655 = vrcp.pop %v1654
    %v1656 = vmul.f32 %v1654, %v1655
    %v1657 = vsub.f32 2.0, %v1656
    %v1658 = vmul.f32 %v1655, %v1657
    %v1659 = vmul.f32 %v1652, %v1658
    %v1660 = vpack.c.bf16 %v1659, %v1659
    %s1661 = scalar_lea.vmem [#allocation16], 12
    %1662 = vst [vmem:[%s1661] sm:$0xf] %v1660
    %v1663 = vunpack.c.l.bf16 %v1602
    %v1664 = vmul.f32 %v1659, %v1663
    %v1665 = vpack.c.bf16 %v1664, %v1664
    %1666 = vmatpush.bf16.msra.mxu0 %v751
    %1667 = vmatpush.bf16.msra.mxu0 %v747
    %1668 = vmatpush.bf16.msra.mxu0 %v743
    %1669 = vmatpush.bf16.msra.mxu0 %v739
    %1670 = vmatpush.bf16.msra.mxu0 %v735
    %1671 = vmatpush.bf16.msra.mxu0 %v731
    %1672 = vmatpush.bf16.msra.mxu0 %v727
    %1673 = vmatpush.bf16.msra.mxu0 %v723
    %1674 = vmatmul.bf16.gmra.mxu0 %v1599
    %v1675 = vpop.f32.mrf.mxu0
    %v1676 = vadd.f32 0.0, %v1675
    %v1677 = vpop.f32.mrf.mxu0
    %1678 = vdwg.mxu0
    %1679 = vmatpush.bf16.msra.mxu0 %v752
    %1680 = vmatpush.bf16.msra.mxu0 %v748
    %1681 = vmatpush.bf16.msra.mxu0 %v744
    %1682 = vmatpush.bf16.msra.mxu0 %v740
    %1683 = vmatpush.bf16.msra.mxu0 %v736
    %1684 = vmatpush.bf16.msra.mxu0 %v732
    %1685 = vmatpush.bf16.msra.mxu0 %v728
    %1686 = vmatpush.bf16.msra.mxu0 %v724
    %1687 = vmatmul.bf16.gmra.mxu0 %v1599
    %v1688 = vpop.f32.mrf.mxu0
    %v1689 = vadd.f32 0.0, %v1688
    %v1690 = vpop.f32.mrf.mxu0
    %1691 = vdwg.mxu0
    %1692 = vmatpush.bf16.msra.mxu0 %v753
    %1693 = vmatpush.bf16.msra.mxu0 %v749
    %1694 = vmatpush.bf16.msra.mxu0 %v745
    %1695 = vmatpush.bf16.msra.mxu0 %v741
    %1696 = vmatpush.bf16.msra.mxu0 %v737
    %1697 = vmatpush.bf16.msra.mxu0 %v733
    %1698 = vmatpush.bf16.msra.mxu0 %v729
    %1699 = vmatpush.bf16.msra.mxu0 %v725
    %1700 = vmatmul.bf16.gmra.mxu0 %v1599
    %v1701 = vpop.f32.mrf.mxu0
    %v1702 = vadd.f32 0.0, %v1701
    %v1703 = vpop.f32.mrf.mxu0
    %1704 = vdwg.mxu0
    %1705 = vmatpush.bf16.msra.mxu0 %v754
    %1706 = vmatpush.bf16.msra.mxu0 %v750
    %1707 = vmatpush.bf16.msra.mxu0 %v746
    %1708 = vmatpush.bf16.msra.mxu0 %v742
    %1709 = vmatpush.bf16.msra.mxu0 %v738
    %1710 = vmatpush.bf16.msra.mxu0 %v734
    %1711 = vmatpush.bf16.msra.mxu0 %v730
    %1712 = vmatpush.bf16.msra.mxu0 %v726
    %1713 = vmatmul.bf16.gmra.mxu0 %v1599
    %v1714 = vpop.f32.mrf.mxu0
    %v1715 = vadd.f32 0.0, %v1714
    %v1716 = vpop.f32.mrf.mxu0
    %1717 = vdwg.mxu0
    %1718 = vmatpush.bf16.msra.mxu0 %v963
    %1719 = vmatpush.bf16.msra.mxu0 %v959
    %1720 = vmatpush.bf16.msra.mxu0 %v955
    %1721 = vmatpush.bf16.msra.mxu0 %v951
    %1722 = vmatpush.bf16.msra.mxu0 %v947
    %1723 = vmatpush.bf16.msra.mxu0 %v943
    %1724 = vmatpush.bf16.msra.mxu0 %v939
    %1725 = vmatpush.bf16.msra.mxu0 %v935
    %1726 = vmatmul.bf16.gmra.mxu0 %v1665
    %v1727 = vpop.f32.mrf.mxu0
    %v1728 = vadd.f32 %v1676, %v1727
    %v1729 = vpop.f32.mrf.mxu0
    %1730 = vdwg.mxu0
    %1731 = vmatpush.bf16.msra.mxu0 %v964
    %1732 = vmatpush.bf16.msra.mxu0 %v960
    %1733 = vmatpush.bf16.msra.mxu0 %v956
    %1734 = vmatpush.bf16.msra.mxu0 %v952
    %1735 = vmatpush.bf16.msra.mxu0 %v948
    %1736 = vmatpush.bf16.msra.mxu0 %v944
    %1737 = vmatpush.bf16.msra.mxu0 %v940
    %1738 = vmatpush.bf16.msra.mxu0 %v936
    %1739 = vmatmul.bf16.gmra.mxu0 %v1665
    %v1740 = vpop.f32.mrf.mxu0
    %v1741 = vadd.f32 %v1689, %v1740
    %v1742 = vpop.f32.mrf.mxu0
    %1743 = vdwg.mxu0
    %1744 = vmatpush.bf16.msra.mxu0 %v965
    %1745 = vmatpush.bf16.msra.mxu0 %v961
    %1746 = vmatpush.bf16.msra.mxu0 %v957
    %1747 = vmatpush.bf16.msra.mxu0 %v953
    %1748 = vmatpush.bf16.msra.mxu0 %v949
    %1749 = vmatpush.bf16.msra.mxu0 %v945
    %1750 = vmatpush.bf16.msra.mxu0 %v941
    %1751 = vmatpush.bf16.msra.mxu0 %v937
    %1752 = vmatmul.bf16.gmra.mxu0 %v1665
    %v1753 = vpop.f32.mrf.mxu0
    %v1754 = vadd.f32 %v1702, %v1753
    %v1755 = vpop.f32.mrf.mxu0
    %1756 = vdwg.mxu0
    %1757 = vmatpush.bf16.msra.mxu0 %v966
    %1758 = vmatpush.bf16.msra.mxu0 %v962
    %1759 = vmatpush.bf16.msra.mxu0 %v958
    %1760 = vmatpush.bf16.msra.mxu0 %v954
    %1761 = vmatpush.bf16.msra.mxu0 %v950
    %1762 = vmatpush.bf16.msra.mxu0 %v946
    %1763 = vmatpush.bf16.msra.mxu0 %v942
    %1764 = vmatpush.bf16.msra.mxu0 %v938
    %1765 = vmatmul.bf16.gmra.mxu0 %v1665
    %v1766 = vpop.f32.mrf.mxu0
    %v1767 = vadd.f32 %v1715, %v1766
    %v1768 = vpop.f32.mrf.mxu0
    %1769 = vdwg.mxu0
    %v1770 = vadd.f32 %v1728, %v405
    %v1771 = vadd.f32 %v1741, %v406
    %v1772 = vadd.f32 %v1754, %v407
    %v1773 = vadd.f32 %v1767, %v408
    %v1774 = vxor.u32 %v1770, 2147483648
    %v1775 = vmul.f32 %v1774, 1.442695
    %v1776 = vpow.pop %v1775
    %v1777 = vadd.f32 %v1776, 1.0
    %v1778 = vrcp.pop %v1777
    %v1779 = vmul.f32 %v1777, %v1778
    %v1780 = vsub.f32 1.0, %v1779
    %v1781 = vmul.f32 %v1778, %v1780
    %v1782 = vadd.f32 %v1778, %v1781
    %vm1783 = vweird.f32 %v1777
    %vm1784 = vweird.f32 %v1778
    %vm1785 = vmor %vm1783, %vm1784
    %v1786 = vsel %vm1785, %v1778, %v1782
    %v1787 = vand.u32 2147483647, %v1777
    %vm1788 = vcmp.eq.f32.partialorder %v1787, 8.507059e+37
    %v1789 = vand.u32 %v1777, 2147483648
    %v1790 = vor.u32 1.1754944e-38, %v1789
    %v1791 = vsel %vm1788, %v1790, %v1786
    %v1792 = vmul.f32 1.0, %v1791
    %v1793 = vxor.u32 %v1771, 2147483648
    %v1794 = vmul.f32 %v1793, 1.442695
    %v1795 = vpow.pop %v1794
    %v1796 = vadd.f32 %v1795, 1.0
    %v1797 = vrcp.pop %v1796
    %v1798 = vmul.f32 %v1796, %v1797
    %v1799 = vsub.f32 1.0, %v1798
    %v1800 = vmul.f32 %v1797, %v1799
    %v1801 = vadd.f32 %v1797, %v1800
    %vm1802 = vweird.f32 %v1796
    %vm1803 = vweird.f32 %v1797
    %vm1804 = vmor %vm1802, %vm1803
    %v1805 = vsel %vm1804, %v1797, %v1801
    %v1806 = vand.u32 2147483647, %v1796
    %vm1807 = vcmp.eq.f32.partialorder %v1806, 8.507059e+37
    %v1808 = vand.u32 %v1796, 2147483648
    %v1809 = vor.u32 1.1754944e-38, %v1808
    %v1810 = vsel %vm1807, %v1809, %v1805
    %v1811 = vmul.f32 1.0, %v1810
    %v1812 = vtanh.pop %v1772
    %v1813 = vxor.u32 %v1773, 2147483648
    %v1814 = vmul.f32 %v1813, 1.442695
    %v1815 = vpow.pop %v1814
    %v1816 = vadd.f32 %v1815, 1.0
    %v1817 = vrcp.pop %v1816
    %v1818 = vmul.f32 %v1816, %v1817
    %v1819 = vsub.f32 1.0, %v1818
    %v1820 = vmul.f32 %v1817, %v1819
    %v1821 = vadd.f32 %v1817, %v1820
    %vm1822 = vweird.f32 %v1816
    %vm1823 = vweird.f32 %v1817
    %vm1824 = vmor %vm1822, %vm1823
    %v1825 = vsel %vm1824, %v1817, %v1821
    %v1826 = vand.u32 2147483647, %v1816
    %vm1827 = vcmp.eq.f32.partialorder %v1826, 8.507059e+37
    %v1828 = vand.u32 %v1816, 2147483648
    %v1829 = vor.u32 1.1754944e-38, %v1828
    %v1830 = vsel %vm1827, %v1829, %v1825
    %v1831 = vmul.f32 1.0, %v1830
    %v1832 = vmul.f32 %v1811, %v1594
    %v1833 = vmul.f32 %v1792, %v1812
    %v1834 = vadd.f32 %v1832, %v1833
    %v1835 = vtanh.pop %v1834
    %v1836 = vmul.f32 %v1831, %v1835
    %s1837 = scalar_lea.vmem [#allocation15], 24
    %1838 = vst [vmem:[%s1837] sm:$0xff] %v1836
    %v1839 = vpack.c.bf16 %v1836, %v1836
    %v1840 = vpack.c.bf16 %v1834, %v1834
    %s1841 = scalar_lea.vmem [#allocation3], 16
    %v1842 = vld [vmem:[%s1841] sm:$0xf]
    %s1843 = scalar_lea.vmem [#allocation2], 32
    %v1844 = vld [vmem:[%s1843] sm:$0xff]
    %1845 = vmatpush.bf16.msra.mxu0 %v462
    %1846 = vmatpush.bf16.msra.mxu0 %v461
    %1847 = vmatpush.bf16.msra.mxu0 %v460
    %1848 = vmatpush.bf16.msra.mxu0 %v459
    %1849 = vmatpush.bf16.msra.mxu0 %v458
    %1850 = vmatpush.bf16.msra.mxu0 %v457
    %1851 = vmatpush.bf16.msra.mxu0 %v456
    %1852 = vmatpush.bf16.msra.mxu0 %v455
    %1853 = vmatmul.bf16.gmra.mxu0 %v1839
    %v1854 = vpop.f32.mrf.mxu0
    %v1855 = vadd.f32 0.0, %v1854
    %v1856 = vpop.f32.mrf.mxu0
    %1857 = vdwg.mxu0
    %v1858 = vadd.f32 %v1844, %v1855
    %1859 = vmatpush.bf16.msra.mxu0 %v524
    %1860 = vmatpush.bf16.msra.mxu0 %v523
    %1861 = vmatpush.bf16.msra.mxu0 %v522
    %1862 = vmatpush.bf16.msra.mxu0 %v521
    %1863 = vmatpush.bf16.msra.mxu0 %v520
    %1864 = vmatpush.bf16.msra.mxu0 %v519
    %1865 = vmatpush.bf16.msra.mxu0 %v518
    %1866 = vmatpush.bf16.msra.mxu0 %v517
    %1867 = vmatmul.bf16.gmra.mxu0 %v1840
    %v1868 = vpop.f32.mrf.mxu0
    %v1869 = vadd.f32 0.0, %v1868
    %v1870 = vpop.f32.mrf.mxu0
    %1871 = vdwg.mxu0
    %v1872 = vadd.f32 %v1858, %v1869
    %v1873 = vtanh.pop %v1872
    %v1874 = vpack.c.bf16 %v1873, %v1873
    %1875 = vmatpush.bf16.msra.mxu0 %v588
    %1876 = vmatpush.bf16.msra.mxu0 %v587
    %1877 = vmatpush.bf16.msra.mxu0 %v586
    %1878 = vmatpush.bf16.msra.mxu0 %v585
    %1879 = vmatpush.bf16.msra.mxu0 %v584
    %1880 = vmatpush.bf16.msra.mxu0 %v583
    %1881 = vmatpush.bf16.msra.mxu0 %v582
    %1882 = vmatpush.bf16.msra.mxu0 %v581
    %1883 = vmatmul.bf16.gmra.mxu0 %v1874
    %v1884 = vpop.f32.mrf.mxu0
    %v1885 = vadd.f32 %v416, %v1884
    %v1886 = vpop.f32.mrf.mxu0
    %1887 = vdwg.mxu0
    %1888 = vmax.xlane.f32.xlu0 %v1885
    %v1889 = vpop.xlane.xlu0 %1888
    %v1890 = vsub.f32 %v1885, %v1889
    %v1891 = vmul.f32 %v1890, 1.442695
    %v1892 = vpow.pop %v1891
    %1893 = vadd.xlane.f32.xlu0 %v1892
    %v1894 = vpop.xlane.xlu0 %1893
    %v1895 = vrcp.pop %v1894
    %v1896 = vmul.f32 %v1894, %v1895
    %v1897 = vsub.f32 2.0, %v1896
    %v1898 = vmul.f32 %v1895, %v1897
    %v1899 = vmul.f32 %v1892, %v1898
    %v1900 = vpack.c.bf16 %v1899, %v1899
    %s1901 = scalar_lea.vmem [#allocation16], 16
    %1902 = vst [vmem:[%s1901] sm:$0xf] %v1900
    %v1903 = vunpack.c.l.bf16 %v1842
    %v1904 = vmul.f32 %v1899, %v1903
    %v1905 = vpack.c.bf16 %v1904, %v1904
    %1906 = vmatpush.bf16.msra.mxu0 %v751
    %1907 = vmatpush.bf16.msra.mxu0 %v747
    %1908 = vmatpush.bf16.msra.mxu0 %v743
    %1909 = vmatpush.bf16.msra.mxu0 %v739
    %1910 = vmatpush.bf16.msra.mxu0 %v735
    %1911 = vmatpush.bf16.msra.mxu0 %v731
    %1912 = vmatpush.bf16.msra.mxu0 %v727
    %1913 = vmatpush.bf16.msra.mxu0 %v723
    %1914 = vmatmul.bf16.gmra.mxu0 %v1839
    %v1915 = vpop.f32.mrf.mxu0
    %v1916 = vadd.f32 0.0, %v1915
    %v1917 = vpop.f32.mrf.mxu0
    %1918 = vdwg.mxu0
    %1919 = vmatpush.bf16.msra.mxu0 %v752
    %1920 = vmatpush.bf16.msra.mxu0 %v748
    %1921 = vmatpush.bf16.msra.mxu0 %v744
    %1922 = vmatpush.bf16.msra.mxu0 %v740
    %1923 = vmatpush.bf16.msra.mxu0 %v736
    %1924 = vmatpush.bf16.msra.mxu0 %v732
    %1925 = vmatpush.bf16.msra.mxu0 %v728
    %1926 = vmatpush.bf16.msra.mxu0 %v724
    %1927 = vmatmul.bf16.gmra.mxu0 %v1839
    %v1928 = vpop.f32.mrf.mxu0
    %v1929 = vadd.f32 0.0, %v1928
    %v1930 = vpop.f32.mrf.mxu0
    %1931 = vdwg.mxu0
    %1932 = vmatpush.bf16.msra.mxu0 %v753
    %1933 = vmatpush.bf16.msra.mxu0 %v749
    %1934 = vmatpush.bf16.msra.mxu0 %v745
    %1935 = vmatpush.bf16.msra.mxu0 %v741
    %1936 = vmatpush.bf16.msra.mxu0 %v737
    %1937 = vmatpush.bf16.msra.mxu0 %v733
    %1938 = vmatpush.bf16.msra.mxu0 %v729
    %1939 = vmatpush.bf16.msra.mxu0 %v725
    %1940 = vmatmul.bf16.gmra.mxu0 %v1839
    %v1941 = vpop.f32.mrf.mxu0
    %v1942 = vadd.f32 0.0, %v1941
    %v1943 = vpop.f32.mrf.mxu0
    %1944 = vdwg.mxu0
    %1945 = vmatpush.bf16.msra.mxu0 %v754
    %1946 = vmatpush.bf16.msra.mxu0 %v750
    %1947 = vmatpush.bf16.msra.mxu0 %v746
    %1948 = vmatpush.bf16.msra.mxu0 %v742
    %1949 = vmatpush.bf16.msra.mxu0 %v738
    %1950 = vmatpush.bf16.msra.mxu0 %v734
    %1951 = vmatpush.bf16.msra.mxu0 %v730
    %1952 = vmatpush.bf16.msra.mxu0 %v726
    %1953 = vmatmul.bf16.gmra.mxu0 %v1839
    %v1954 = vpop.f32.mrf.mxu0
    %v1955 = vadd.f32 0.0, %v1954
    %v1956 = vpop.f32.mrf.mxu0
    %1957 = vdwg.mxu0
    %1958 = vmatpush.bf16.msra.mxu0 %v963
    %1959 = vmatpush.bf16.msra.mxu0 %v959
    %1960 = vmatpush.bf16.msra.mxu0 %v955
    %1961 = vmatpush.bf16.msra.mxu0 %v951
    %1962 = vmatpush.bf16.msra.mxu0 %v947
    %1963 = vmatpush.bf16.msra.mxu0 %v943
    %1964 = vmatpush.bf16.msra.mxu0 %v939
    %1965 = vmatpush.bf16.msra.mxu0 %v935
    %1966 = vmatmul.bf16.gmra.mxu0 %v1905
    %v1967 = vpop.f32.mrf.mxu0
    %v1968 = vadd.f32 %v1916, %v1967
    %v1969 = vpop.f32.mrf.mxu0
    %1970 = vdwg.mxu0
    %1971 = vmatpush.bf16.msra.mxu0 %v964
    %1972 = vmatpush.bf16.msra.mxu0 %v960
    %1973 = vmatpush.bf16.msra.mxu0 %v956
    %1974 = vmatpush.bf16.msra.mxu0 %v952
    %1975 = vmatpush.bf16.msra.mxu0 %v948
    %1976 = vmatpush.bf16.msra.mxu0 %v944
    %1977 = vmatpush.bf16.msra.mxu0 %v940
    %1978 = vmatpush.bf16.msra.mxu0 %v936
    %1979 = vmatmul.bf16.gmra.mxu0 %v1905
    %v1980 = vpop.f32.mrf.mxu0
    %v1981 = vadd.f32 %v1929, %v1980
    %v1982 = vpop.f32.mrf.mxu0
    %1983 = vdwg.mxu0
    %1984 = vmatpush.bf16.msra.mxu0 %v965
    %1985 = vmatpush.bf16.msra.mxu0 %v961
    %1986 = vmatpush.bf16.msra.mxu0 %v957
    %1987 = vmatpush.bf16.msra.mxu0 %v953
    %1988 = vmatpush.bf16.msra.mxu0 %v949
    %1989 = vmatpush.bf16.msra.mxu0 %v945
    %1990 = vmatpush.bf16.msra.mxu0 %v941
    %1991 = vmatpush.bf16.msra.mxu0 %v937
    %1992 = vmatmul.bf16.gmra.mxu0 %v1905
    %v1993 = vpop.f32.mrf.mxu0
    %v1994 = vadd.f32 %v1942, %v1993
    %v1995 = vpop.f32.mrf.mxu0
    %1996 = vdwg.mxu0
    %1997 = vmatpush.bf16.msra.mxu0 %v966
    %1998 = vmatpush.bf16.msra.mxu0 %v962
    %1999 = vmatpush.bf16.msra.mxu0 %v958
    %2000 = vmatpush.bf16.msra.mxu0 %v954
    %2001 = vmatpush.bf16.msra.mxu0 %v950
    %2002 = vmatpush.bf16.msra.mxu0 %v946
    %2003 = vmatpush.bf16.msra.mxu0 %v942
    %2004 = vmatpush.bf16.msra.mxu0 %v938
    %2005 = vmatmul.bf16.gmra.mxu0 %v1905
    %v2006 = vpop.f32.mrf.mxu0
    %v2007 = vadd.f32 %v1955, %v2006
    %v2008 = vpop.f32.mrf.mxu0
    %2009 = vdwg.mxu0
    %v2010 = vadd.f32 %v1968, %v405
    %v2011 = vadd.f32 %v1981, %v406
    %v2012 = vadd.f32 %v1994, %v407
    %v2013 = vadd.f32 %v2007, %v408
    %v2014 = vxor.u32 %v2010, 2147483648
    %v2015 = vmul.f32 %v2014, 1.442695
    %v2016 = vpow.pop %v2015
    %v2017 = vadd.f32 %v2016, 1.0
    %v2018 = vrcp.pop %v2017
    %v2019 = vmul.f32 %v2017, %v2018
    %v2020 = vsub.f32 1.0, %v2019
    %v2021 = vmul.f32 %v2018, %v2020
    %v2022 = vadd.f32 %v2018, %v2021
    %vm2023 = vweird.f32 %v2017
    %vm2024 = vweird.f32 %v2018
    %vm2025 = vmor %vm2023, %vm2024
    %v2026 = vsel %vm2025, %v2018, %v2022
    %v2027 = vand.u32 2147483647, %v2017
    %vm2028 = vcmp.eq.f32.partialorder %v2027, 8.507059e+37
    %v2029 = vand.u32 %v2017, 2147483648
    %v2030 = vor.u32 1.1754944e-38, %v2029
    %v2031 = vsel %vm2028, %v2030, %v2026
    %v2032 = vmul.f32 1.0, %v2031
    %v2033 = vxor.u32 %v2011, 2147483648
    %v2034 = vmul.f32 %v2033, 1.442695
    %v2035 = vpow.pop %v2034
    %v2036 = vadd.f32 %v2035, 1.0
    %v2037 = vrcp.pop %v2036
    %v2038 = vmul.f32 %v2036, %v2037
    %v2039 = vsub.f32 1.0, %v2038
    %v2040 = vmul.f32 %v2037, %v2039
    %v2041 = vadd.f32 %v2037, %v2040
    %vm2042 = vweird.f32 %v2036
    %vm2043 = vweird.f32 %v2037
    %vm2044 = vmor %vm2042, %vm2043
    %v2045 = vsel %vm2044, %v2037, %v2041
    %v2046 = vand.u32 2147483647, %v2036
    %vm2047 = vcmp.eq.f32.partialorder %v2046, 8.507059e+37
    %v2048 = vand.u32 %v2036, 2147483648
    %v2049 = vor.u32 1.1754944e-38, %v2048
    %v2050 = vsel %vm2047, %v2049, %v2045
    %v2051 = vmul.f32 1.0, %v2050
    %v2052 = vtanh.pop %v2012
    %v2053 = vxor.u32 %v2013, 2147483648
    %v2054 = vmul.f32 %v2053, 1.442695
    %v2055 = vpow.pop %v2054
    %v2056 = vadd.f32 %v2055, 1.0
    %v2057 = vrcp.pop %v2056
    %v2058 = vmul.f32 %v2056, %v2057
    %v2059 = vsub.f32 1.0, %v2058
    %v2060 = vmul.f32 %v2057, %v2059
    %v2061 = vadd.f32 %v2057, %v2060
    %vm2062 = vweird.f32 %v2056
    %vm2063 = vweird.f32 %v2057
    %vm2064 = vmor %vm2062, %vm2063
    %v2065 = vsel %vm2064, %v2057, %v2061
    %v2066 = vand.u32 2147483647, %v2056
    %vm2067 = vcmp.eq.f32.partialorder %v2066, 8.507059e+37
    %v2068 = vand.u32 %v2056, 2147483648
    %v2069 = vor.u32 1.1754944e-38, %v2068
    %v2070 = vsel %vm2067, %v2069, %v2065
    %v2071 = vmul.f32 1.0, %v2070
    %v2072 = vmul.f32 %v2051, %v1834
    %v2073 = vmul.f32 %v2032, %v2052
    %v2074 = vadd.f32 %v2072, %v2073
    %v2075 = vtanh.pop %v2074
    %v2076 = vmul.f32 %v2071, %v2075
    %s2077 = scalar_lea.vmem [#allocation15], 32
    %2078 = vst [vmem:[%s2077] sm:$0xff] %v2076
    %v2079 = vpack.c.bf16 %v2076, %v2076
    %v2080 = vpack.c.bf16 %v2074, %v2074
    %s2081 = scalar_lea.vmem [#allocation3], 20
    %v2082 = vld [vmem:[%s2081] sm:$0xf]
    %s2083 = scalar_lea.vmem [#allocation2], 40
    %v2084 = vld [vmem:[%s2083] sm:$0xff]
    %2085 = vmatpush.bf16.msra.mxu0 %v462
    %2086 = vmatpush.bf16.msra.mxu0 %v461
    %2087 = vmatpush.bf16.msra.mxu0 %v460
    %2088 = vmatpush.bf16.msra.mxu0 %v459
    %2089 = vmatpush.bf16.msra.mxu0 %v458
    %2090 = vmatpush.bf16.msra.mxu0 %v457
    %2091 = vmatpush.bf16.msra.mxu0 %v456
    %2092 = vmatpush.bf16.msra.mxu0 %v455
    %2093 = vmatmul.bf16.gmra.mxu0 %v2079
    %v2094 = vpop.f32.mrf.mxu0
    %v2095 = vadd.f32 0.0, %v2094
    %v2096 = vpop.f32.mrf.mxu0
    %2097 = vdwg.mxu0
    %v2098 = vadd.f32 %v2084, %v2095
    %2099 = vmatpush.bf16.msra.mxu0 %v524
    %2100 = vmatpush.bf16.msra.mxu0 %v523
    %2101 = vmatpush.bf16.msra.mxu0 %v522
    %2102 = vmatpush.bf16.msra.mxu0 %v521
    %2103 = vmatpush.bf16.msra.mxu0 %v520
    %2104 = vmatpush.bf16.msra.mxu0 %v519
    %2105 = vmatpush.bf16.msra.mxu0 %v518
    %2106 = vmatpush.bf16.msra.mxu0 %v517
    %2107 = vmatmul.bf16.gmra.mxu0 %v2080
    %v2108 = vpop.f32.mrf.mxu0
    %v2109 = vadd.f32 0.0, %v2108
    %v2110 = vpop.f32.mrf.mxu0
    %2111 = vdwg.mxu0
    %v2112 = vadd.f32 %v2098, %v2109
    %v2113 = vtanh.pop %v2112
    %v2114 = vpack.c.bf16 %v2113, %v2113
    %2115 = vmatpush.bf16.msra.mxu0 %v588
    %2116 = vmatpush.bf16.msra.mxu0 %v587
    %2117 = vmatpush.bf16.msra.mxu0 %v586
    %2118 = vmatpush.bf16.msra.mxu0 %v585
    %2119 = vmatpush.bf16.msra.mxu0 %v584
    %2120 = vmatpush.bf16.msra.mxu0 %v583
    %2121 = vmatpush.bf16.msra.mxu0 %v582
    %2122 = vmatpush.bf16.msra.mxu0 %v581
    %2123 = vmatmul.bf16.gmra.mxu0 %v2114
    %v2124 = vpop.f32.mrf.mxu0
    %v2125 = vadd.f32 %v416, %v2124
    %v2126 = vpop.f32.mrf.mxu0
    %2127 = vdwg.mxu0
    %2128 = vmax.xlane.f32.xlu0 %v2125
    %v2129 = vpop.xlane.xlu0 %2128
    %v2130 = vsub.f32 %v2125, %v2129
    %v2131 = vmul.f32 %v2130, 1.442695
    %v2132 = vpow.pop %v2131
    %2133 = vadd.xlane.f32.xlu0 %v2132
    %v2134 = vpop.xlane.xlu0 %2133
    %v2135 = vrcp.pop %v2134
    %v2136 = vmul.f32 %v2134, %v2135
    %v2137 = vsub.f32 2.0, %v2136
    %v2138 = vmul.f32 %v2135, %v2137
    %v2139 = vmul.f32 %v2132, %v2138
    %v2140 = vpack.c.bf16 %v2139, %v2139
    %s2141 = scalar_lea.vmem [#allocation16], 20
    %2142 = vst [vmem:[%s2141] sm:$0xf] %v2140
    %v2143 = vunpack.c.l.bf16 %v2082
    %v2144 = vmul.f32 %v2139, %v2143
    %v2145 = vpack.c.bf16 %v2144, %v2144
    %2146 = vmatpush.bf16.msra.mxu0 %v751
    %2147 = vmatpush.bf16.msra.mxu0 %v747
    %2148 = vmatpush.bf16.msra.mxu0 %v743
    %2149 = vmatpush.bf16.msra.mxu0 %v739
    %2150 = vmatpush.bf16.msra.mxu0 %v735
    %2151 = vmatpush.bf16.msra.mxu0 %v731
    %2152 = vmatpush.bf16.msra.mxu0 %v727
    %2153 = vmatpush.bf16.msra.mxu0 %v723
    %2154 = vmatmul.bf16.gmra.mxu0 %v2079
    %v2155 = vpop.f32.mrf.mxu0
    %v2156 = vadd.f32 0.0, %v2155
    %v2157 = vpop.f32.mrf.mxu0
    %2158 = vdwg.mxu0
    %2159 = vmatpush.bf16.msra.mxu0 %v752
    %2160 = vmatpush.bf16.msra.mxu0 %v748
    %2161 = vmatpush.bf16.msra.mxu0 %v744
    %2162 = vmatpush.bf16.msra.mxu0 %v740
    %2163 = vmatpush.bf16.msra.mxu0 %v736
    %2164 = vmatpush.bf16.msra.mxu0 %v732
    %2165 = vmatpush.bf16.msra.mxu0 %v728
    %2166 = vmatpush.bf16.msra.mxu0 %v724
    %2167 = vmatmul.bf16.gmra.mxu0 %v2079
    %v2168 = vpop.f32.mrf.mxu0
    %v2169 = vadd.f32 0.0, %v2168
    %v2170 = vpop.f32.mrf.mxu0
    %2171 = vdwg.mxu0
    %2172 = vmatpush.bf16.msra.mxu0 %v753
    %2173 = vmatpush.bf16.msra.mxu0 %v749
    %2174 = vmatpush.bf16.msra.mxu0 %v745
    %2175 = vmatpush.bf16.msra.mxu0 %v741
    %2176 = vmatpush.bf16.msra.mxu0 %v737
    %2177 = vmatpush.bf16.msra.mxu0 %v733
    %2178 = vmatpush.bf16.msra.mxu0 %v729
    %2179 = vmatpush.bf16.msra.mxu0 %v725
    %2180 = vmatmul.bf16.gmra.mxu0 %v2079
    %v2181 = vpop.f32.mrf.mxu0
    %v2182 = vadd.f32 0.0, %v2181
    %v2183 = vpop.f32.mrf.mxu0
    %2184 = vdwg.mxu0
    %2185 = vmatpush.bf16.msra.mxu0 %v754
    %2186 = vmatpush.bf16.msra.mxu0 %v750
    %2187 = vmatpush.bf16.msra.mxu0 %v746
    %2188 = vmatpush.bf16.msra.mxu0 %v742
    %2189 = vmatpush.bf16.msra.mxu0 %v738
    %2190 = vmatpush.bf16.msra.mxu0 %v734
    %2191 = vmatpush.bf16.msra.mxu0 %v730
    %2192 = vmatpush.bf16.msra.mxu0 %v726
    %2193 = vmatmul.bf16.gmra.mxu0 %v2079
    %v2194 = vpop.f32.mrf.mxu0
    %v2195 = vadd.f32 0.0, %v2194
    %v2196 = vpop.f32.mrf.mxu0
    %2197 = vdwg.mxu0
    %2198 = vmatpush.bf16.msra.mxu0 %v963
    %2199 = vmatpush.bf16.msra.mxu0 %v959
    %2200 = vmatpush.bf16.msra.mxu0 %v955
    %2201 = vmatpush.bf16.msra.mxu0 %v951
    %2202 = vmatpush.bf16.msra.mxu0 %v947
    %2203 = vmatpush.bf16.msra.mxu0 %v943
    %2204 = vmatpush.bf16.msra.mxu0 %v939
    %2205 = vmatpush.bf16.msra.mxu0 %v935
    %2206 = vmatmul.bf16.gmra.mxu0 %v2145
    %v2207 = vpop.f32.mrf.mxu0
    %v2208 = vadd.f32 %v2156, %v2207
    %v2209 = vpop.f32.mrf.mxu0
    %2210 = vdwg.mxu0
    %2211 = vmatpush.bf16.msra.mxu0 %v964
    %2212 = vmatpush.bf16.msra.mxu0 %v960
    %2213 = vmatpush.bf16.msra.mxu0 %v956
    %2214 = vmatpush.bf16.msra.mxu0 %v952
    %2215 = vmatpush.bf16.msra.mxu0 %v948
    %2216 = vmatpush.bf16.msra.mxu0 %v944
    %2217 = vmatpush.bf16.msra.mxu0 %v940
    %2218 = vmatpush.bf16.msra.mxu0 %v936
    %2219 = vmatmul.bf16.gmra.mxu0 %v2145
    %v2220 = vpop.f32.mrf.mxu0
    %v2221 = vadd.f32 %v2169, %v2220
    %v2222 = vpop.f32.mrf.mxu0
    %2223 = vdwg.mxu0
    %2224 = vmatpush.bf16.msra.mxu0 %v965
    %2225 = vmatpush.bf16.msra.mxu0 %v961
    %2226 = vmatpush.bf16.msra.mxu0 %v957
    %2227 = vmatpush.bf16.msra.mxu0 %v953
    %2228 = vmatpush.bf16.msra.mxu0 %v949
    %2229 = vmatpush.bf16.msra.mxu0 %v945
    %2230 = vmatpush.bf16.msra.mxu0 %v941
    %2231 = vmatpush.bf16.msra.mxu0 %v937
    %2232 = vmatmul.bf16.gmra.mxu0 %v2145
    %v2233 = vpop.f32.mrf.mxu0
    %v2234 = vadd.f32 %v2182, %v2233
    %v2235 = vpop.f32.mrf.mxu0
    %2236 = vdwg.mxu0
    %2237 = vmatpush.bf16.msra.mxu0 %v966
    %2238 = vmatpush.bf16.msra.mxu0 %v962
    %2239 = vmatpush.bf16.msra.mxu0 %v958
    %2240 = vmatpush.bf16.msra.mxu0 %v954
    %2241 = vmatpush.bf16.msra.mxu0 %v950
    %2242 = vmatpush.bf16.msra.mxu0 %v946
    %2243 = vmatpush.bf16.msra.mxu0 %v942
    %2244 = vmatpush.bf16.msra.mxu0 %v938
    %2245 = vmatmul.bf16.gmra.mxu0 %v2145
    %v2246 = vpop.f32.mrf.mxu0
    %v2247 = vadd.f32 %v2195, %v2246
    %v2248 = vpop.f32.mrf.mxu0
    %2249 = vdwg.mxu0
    %v2250 = vadd.f32 %v2208, %v405
    %v2251 = vadd.f32 %v2221, %v406
    %v2252 = vadd.f32 %v2234, %v407
    %v2253 = vadd.f32 %v2247, %v408
    %v2254 = vxor.u32 %v2250, 2147483648
    %v2255 = vmul.f32 %v2254, 1.442695
    %v2256 = vpow.pop %v2255
    %v2257 = vadd.f32 %v2256, 1.0
    %v2258 = vrcp.pop %v2257
    %v2259 = vmul.f32 %v2257, %v2258
    %v2260 = vsub.f32 1.0, %v2259
    %v2261 = vmul.f32 %v2258, %v2260
    %v2262 = vadd.f32 %v2258, %v2261
    %vm2263 = vweird.f32 %v2257
    %vm2264 = vweird.f32 %v2258
    %vm2265 = vmor %vm2263, %vm2264
    %v2266 = vsel %vm2265, %v2258, %v2262
    %v2267 = vand.u32 2147483647, %v2257
    %vm2268 = vcmp.eq.f32.partialorder %v2267, 8.507059e+37
    %v2269 = vand.u32 %v2257, 2147483648
    %v2270 = vor.u32 1.1754944e-38, %v2269
    %v2271 = vsel %vm2268, %v2270, %v2266
    %v2272 = vmul.f32 1.0, %v2271
    %v2273 = vxor.u32 %v2251, 2147483648
    %v2274 = vmul.f32 %v2273, 1.442695
    %v2275 = vpow.pop %v2274
    %v2276 = vadd.f32 %v2275, 1.0
    %v2277 = vrcp.pop %v2276
    %v2278 = vmul.f32 %v2276, %v2277
    %v2279 = vsub.f32 1.0, %v2278
    %v2280 = vmul.f32 %v2277, %v2279
    %v2281 = vadd.f32 %v2277, %v2280
    %vm2282 = vweird.f32 %v2276
    %vm2283 = vweird.f32 %v2277
    %vm2284 = vmor %vm2282, %vm2283
    %v2285 = vsel %vm2284, %v2277, %v2281
    %v2286 = vand.u32 2147483647, %v2276
    %vm2287 = vcmp.eq.f32.partialorder %v2286, 8.507059e+37
    %v2288 = vand.u32 %v2276, 2147483648
    %v2289 = vor.u32 1.1754944e-38, %v2288
    %v2290 = vsel %vm2287, %v2289, %v2285
    %v2291 = vmul.f32 1.0, %v2290
    %v2292 = vtanh.pop %v2252
    %v2293 = vxor.u32 %v2253, 2147483648
    %v2294 = vmul.f32 %v2293, 1.442695
    %v2295 = vpow.pop %v2294
    %v2296 = vadd.f32 %v2295, 1.0
    %v2297 = vrcp.pop %v2296
    %v2298 = vmul.f32 %v2296, %v2297
    %v2299 = vsub.f32 1.0, %v2298
    %v2300 = vmul.f32 %v2297, %v2299
    %v2301 = vadd.f32 %v2297, %v2300
    %vm2302 = vweird.f32 %v2296
    %vm2303 = vweird.f32 %v2297
    %vm2304 = vmor %vm2302, %vm2303
    %v2305 = vsel %vm2304, %v2297, %v2301
    %v2306 = vand.u32 2147483647, %v2296
    %vm2307 = vcmp.eq.f32.partialorder %v2306, 8.507059e+37
    %v2308 = vand.u32 %v2296, 2147483648
    %v2309 = vor.u32 1.1754944e-38, %v2308
    %v2310 = vsel %vm2307, %v2309, %v2305
    %v2311 = vmul.f32 1.0, %v2310
    %v2312 = vmul.f32 %v2291, %v2074
    %v2313 = vmul.f32 %v2272, %v2292
    %v2314 = vadd.f32 %v2312, %v2313
    %v2315 = vtanh.pop %v2314
    %v2316 = vmul.f32 %v2311, %v2315
    %s2317 = scalar_lea.vmem [#allocation15], 40
    %2318 = vst [vmem:[%s2317] sm:$0xff] %v2316
    %v2319 = vpack.c.bf16 %v2316, %v2316
    %v2320 = vpack.c.bf16 %v2314, %v2314
    %s2321 = scalar_lea.vmem [#allocation3], 24
    %v2322 = vld [vmem:[%s2321] sm:$0xf]
    %s2323 = scalar_lea.vmem [#allocation2], 48
    %v2324 = vld [vmem:[%s2323] sm:$0xff]
    %2325 = vmatpush.bf16.msra.mxu0 %v462
    %2326 = vmatpush.bf16.msra.mxu0 %v461
    %2327 = vmatpush.bf16.msra.mxu0 %v460
    %2328 = vmatpush.bf16.msra.mxu0 %v459
    %2329 = vmatpush.bf16.msra.mxu0 %v458
    %2330 = vmatpush.bf16.msra.mxu0 %v457
    %2331 = vmatpush.bf16.msra.mxu0 %v456
    %2332 = vmatpush.bf16.msra.mxu0 %v455
    %2333 = vmatmul.bf16.gmra.mxu0 %v2319
    %v2334 = vpop.f32.mrf.mxu0
    %v2335 = vadd.f32 0.0, %v2334
    %v2336 = vpop.f32.mrf.mxu0
    %2337 = vdwg.mxu0
    %v2338 = vadd.f32 %v2324, %v2335
    %2339 = vmatpush.bf16.msra.mxu0 %v524
    %2340 = vmatpush.bf16.msra.mxu0 %v523
    %2341 = vmatpush.bf16.msra.mxu0 %v522
    %2342 = vmatpush.bf16.msra.mxu0 %v521
    %2343 = vmatpush.bf16.msra.mxu0 %v520
    %2344 = vmatpush.bf16.msra.mxu0 %v519
    %2345 = vmatpush.bf16.msra.mxu0 %v518
    %2346 = vmatpush.bf16.msra.mxu0 %v517
    %2347 = vmatmul.bf16.gmra.mxu0 %v2320
    %v2348 = vpop.f32.mrf.mxu0
    %v2349 = vadd.f32 0.0, %v2348
    %v2350 = vpop.f32.mrf.mxu0
    %2351 = vdwg.mxu0
    %v2352 = vadd.f32 %v2338, %v2349
    %v2353 = vtanh.pop %v2352
    %v2354 = vpack.c.bf16 %v2353, %v2353
    %2355 = vmatpush.bf16.msra.mxu0 %v588
    %2356 = vmatpush.bf16.msra.mxu0 %v587
    %2357 = vmatpush.bf16.msra.mxu0 %v586
    %2358 = vmatpush.bf16.msra.mxu0 %v585
    %2359 = vmatpush.bf16.msra.mxu0 %v584
    %2360 = vmatpush.bf16.msra.mxu0 %v583
    %2361 = vmatpush.bf16.msra.mxu0 %v582
    %2362 = vmatpush.bf16.msra.mxu0 %v581
    %2363 = vmatmul.bf16.gmra.mxu0 %v2354
    %v2364 = vpop.f32.mrf.mxu0
    %v2365 = vadd.f32 %v416, %v2364
    %v2366 = vpop.f32.mrf.mxu0
    %2367 = vdwg.mxu0
    %2368 = vmax.xlane.f32.xlu0 %v2365
    %v2369 = vpop.xlane.xlu0 %2368
    %v2370 = vsub.f32 %v2365, %v2369
    %v2371 = vmul.f32 %v2370, 1.442695
    %v2372 = vpow.pop %v2371
    %2373 = vadd.xlane.f32.xlu0 %v2372
    %v2374 = vpop.xlane.xlu0 %2373
    %v2375 = vrcp.pop %v2374
    %v2376 = vmul.f32 %v2374, %v2375
    %v2377 = vsub.f32 2.0, %v2376
    %v2378 = vmul.f32 %v2375, %v2377
    %v2379 = vmul.f32 %v2372, %v2378
    %v2380 = vpack.c.bf16 %v2379, %v2379
    %s2381 = scalar_lea.vmem [#allocation16], 24
    %2382 = vst [vmem:[%s2381] sm:$0xf] %v2380
    %v2383 = vunpack.c.l.bf16 %v2322
    %v2384 = vmul.f32 %v2379, %v2383
    %v2385 = vpack.c.bf16 %v2384, %v2384
    %2386 = vmatpush.bf16.msra.mxu0 %v751
    %2387 = vmatpush.bf16.msra.mxu0 %v747
    %2388 = vmatpush.bf16.msra.mxu0 %v743
    %2389 = vmatpush.bf16.msra.mxu0 %v739
    %2390 = vmatpush.bf16.msra.mxu0 %v735
    %2391 = vmatpush.bf16.msra.mxu0 %v731
    %2392 = vmatpush.bf16.msra.mxu0 %v727
    %2393 = vmatpush.bf16.msra.mxu0 %v723
    %2394 = vmatmul.bf16.gmra.mxu0 %v2319
    %v2395 = vpop.f32.mrf.mxu0
    %v2396 = vadd.f32 0.0, %v2395
    %v2397 = vpop.f32.mrf.mxu0
    %2398 = vdwg.mxu0
    %2399 = vmatpush.bf16.msra.mxu0 %v752
    %2400 = vmatpush.bf16.msra.mxu0 %v748
    %2401 = vmatpush.bf16.msra.mxu0 %v744
    %2402 = vmatpush.bf16.msra.mxu0 %v740
    %2403 = vmatpush.bf16.msra.mxu0 %v736
    %2404 = vmatpush.bf16.msra.mxu0 %v732
    %2405 = vmatpush.bf16.msra.mxu0 %v728
    %2406 = vmatpush.bf16.msra.mxu0 %v724
    %2407 = vmatmul.bf16.gmra.mxu0 %v2319
    %v2408 = vpop.f32.mrf.mxu0
    %v2409 = vadd.f32 0.0, %v2408
    %v2410 = vpop.f32.mrf.mxu0
    %2411 = vdwg.mxu0
    %2412 = vmatpush.bf16.msra.mxu0 %v753
    %2413 = vmatpush.bf16.msra.mxu0 %v749
    %2414 = vmatpush.bf16.msra.mxu0 %v745
    %2415 = vmatpush.bf16.msra.mxu0 %v741
    %2416 = vmatpush.bf16.msra.mxu0 %v737
    %2417 = vmatpush.bf16.msra.mxu0 %v733
    %2418 = vmatpush.bf16.msra.mxu0 %v729
    %2419 = vmatpush.bf16.msra.mxu0 %v725
    %2420 = vmatmul.bf16.gmra.mxu0 %v2319
    %v2421 = vpop.f32.mrf.mxu0
    %v2422 = vadd.f32 0.0, %v2421
    %v2423 = vpop.f32.mrf.mxu0
    %2424 = vdwg.mxu0
    %2425 = vmatpush.bf16.msra.mxu0 %v754
    %2426 = vmatpush.bf16.msra.mxu0 %v750
    %2427 = vmatpush.bf16.msra.mxu0 %v746
    %2428 = vmatpush.bf16.msra.mxu0 %v742
    %2429 = vmatpush.bf16.msra.mxu0 %v738
    %2430 = vmatpush.bf16.msra.mxu0 %v734
    %2431 = vmatpush.bf16.msra.mxu0 %v730
    %2432 = vmatpush.bf16.msra.mxu0 %v726
    %2433 = vmatmul.bf16.gmra.mxu0 %v2319
    %v2434 = vpop.f32.mrf.mxu0
    %v2435 = vadd.f32 0.0, %v2434
    %v2436 = vpop.f32.mrf.mxu0
    %2437 = vdwg.mxu0
    %2438 = vmatpush.bf16.msra.mxu0 %v963
    %2439 = vmatpush.bf16.msra.mxu0 %v959
    %2440 = vmatpush.bf16.msra.mxu0 %v955
    %2441 = vmatpush.bf16.msra.mxu0 %v951
    %2442 = vmatpush.bf16.msra.mxu0 %v947
    %2443 = vmatpush.bf16.msra.mxu0 %v943
    %2444 = vmatpush.bf16.msra.mxu0 %v939
    %2445 = vmatpush.bf16.msra.mxu0 %v935
    %2446 = vmatmul.bf16.gmra.mxu0 %v2385
    %v2447 = vpop.f32.mrf.mxu0
    %v2448 = vadd.f32 %v2396, %v2447
    %v2449 = vpop.f32.mrf.mxu0
    %2450 = vdwg.mxu0
    %2451 = vmatpush.bf16.msra.mxu0 %v964
    %2452 = vmatpush.bf16.msra.mxu0 %v960
    %2453 = vmatpush.bf16.msra.mxu0 %v956
    %2454 = vmatpush.bf16.msra.mxu0 %v952
    %2455 = vmatpush.bf16.msra.mxu0 %v948
    %2456 = vmatpush.bf16.msra.mxu0 %v944
    %2457 = vmatpush.bf16.msra.mxu0 %v940
    %2458 = vmatpush.bf16.msra.mxu0 %v936
    %2459 = vmatmul.bf16.gmra.mxu0 %v2385
    %v2460 = vpop.f32.mrf.mxu0
    %v2461 = vadd.f32 %v2409, %v2460
    %v2462 = vpop.f32.mrf.mxu0
    %2463 = vdwg.mxu0
    %2464 = vmatpush.bf16.msra.mxu0 %v965
    %2465 = vmatpush.bf16.msra.mxu0 %v961
    %2466 = vmatpush.bf16.msra.mxu0 %v957
    %2467 = vmatpush.bf16.msra.mxu0 %v953
    %2468 = vmatpush.bf16.msra.mxu0 %v949
    %2469 = vmatpush.bf16.msra.mxu0 %v945
    %2470 = vmatpush.bf16.msra.mxu0 %v941
    %2471 = vmatpush.bf16.msra.mxu0 %v937
    %2472 = vmatmul.bf16.gmra.mxu0 %v2385
    %v2473 = vpop.f32.mrf.mxu0
    %v2474 = vadd.f32 %v2422, %v2473
    %v2475 = vpop.f32.mrf.mxu0
    %2476 = vdwg.mxu0
    %2477 = vmatpush.bf16.msra.mxu0 %v966
    %2478 = vmatpush.bf16.msra.mxu0 %v962
    %2479 = vmatpush.bf16.msra.mxu0 %v958
    %2480 = vmatpush.bf16.msra.mxu0 %v954
    %2481 = vmatpush.bf16.msra.mxu0 %v950
    %2482 = vmatpush.bf16.msra.mxu0 %v946
    %2483 = vmatpush.bf16.msra.mxu0 %v942
    %2484 = vmatpush.bf16.msra.mxu0 %v938
    %2485 = vmatmul.bf16.gmra.mxu0 %v2385
    %v2486 = vpop.f32.mrf.mxu0
    %v2487 = vadd.f32 %v2435, %v2486
    %v2488 = vpop.f32.mrf.mxu0
    %2489 = vdwg.mxu0
    %v2490 = vadd.f32 %v2448, %v405
    %v2491 = vadd.f32 %v2461, %v406
    %v2492 = vadd.f32 %v2474, %v407
    %v2493 = vadd.f32 %v2487, %v408
    %v2494 = vxor.u32 %v2490, 2147483648
    %v2495 = vmul.f32 %v2494, 1.442695
    %v2496 = vpow.pop %v2495
    %v2497 = vadd.f32 %v2496, 1.0
    %v2498 = vrcp.pop %v2497
    %v2499 = vmul.f32 %v2497, %v2498
    %v2500 = vsub.f32 1.0, %v2499
    %v2501 = vmul.f32 %v2498, %v2500
    %v2502 = vadd.f32 %v2498, %v2501
    %vm2503 = vweird.f32 %v2497
    %vm2504 = vweird.f32 %v2498
    %vm2505 = vmor %vm2503, %vm2504
    %v2506 = vsel %vm2505, %v2498, %v2502
    %v2507 = vand.u32 2147483647, %v2497
    %vm2508 = vcmp.eq.f32.partialorder %v2507, 8.507059e+37
    %v2509 = vand.u32 %v2497, 2147483648
    %v2510 = vor.u32 1.1754944e-38, %v2509
    %v2511 = vsel %vm2508, %v2510, %v2506
    %v2512 = vmul.f32 1.0, %v2511
    %v2513 = vxor.u32 %v2491, 2147483648
    %v2514 = vmul.f32 %v2513, 1.442695
    %v2515 = vpow.pop %v2514
    %v2516 = vadd.f32 %v2515, 1.0
    %v2517 = vrcp.pop %v2516
    %v2518 = vmul.f32 %v2516, %v2517
    %v2519 = vsub.f32 1.0, %v2518
    %v2520 = vmul.f32 %v2517, %v2519
    %v2521 = vadd.f32 %v2517, %v2520
    %vm2522 = vweird.f32 %v2516
    %vm2523 = vweird.f32 %v2517
    %vm2524 = vmor %vm2522, %vm2523
    %v2525 = vsel %vm2524, %v2517, %v2521
    %v2526 = vand.u32 2147483647, %v2516
    %vm2527 = vcmp.eq.f32.partialorder %v2526, 8.507059e+37
    %v2528 = vand.u32 %v2516, 2147483648
    %v2529 = vor.u32 1.1754944e-38, %v2528
    %v2530 = vsel %vm2527, %v2529, %v2525
    %v2531 = vmul.f32 1.0, %v2530
    %v2532 = vtanh.pop %v2492
    %v2533 = vxor.u32 %v2493, 2147483648
    %v2534 = vmul.f32 %v2533, 1.442695
    %v2535 = vpow.pop %v2534
    %v2536 = vadd.f32 %v2535, 1.0
    %v2537 = vrcp.pop %v2536
    %v2538 = vmul.f32 %v2536, %v2537
    %v2539 = vsub.f32 1.0, %v2538
    %v2540 = vmul.f32 %v2537, %v2539
    %v2541 = vadd.f32 %v2537, %v2540
    %vm2542 = vweird.f32 %v2536
    %vm2543 = vweird.f32 %v2537
    %vm2544 = vmor %vm2542, %vm2543
    %v2545 = vsel %vm2544, %v2537, %v2541
    %v2546 = vand.u32 2147483647, %v2536
    %vm2547 = vcmp.eq.f32.partialorder %v2546, 8.507059e+37
    %v2548 = vand.u32 %v2536, 2147483648
    %v2549 = vor.u32 1.1754944e-38, %v2548
    %v2550 = vsel %vm2547, %v2549, %v2545
    %v2551 = vmul.f32 1.0, %v2550
    %v2552 = vmul.f32 %v2531, %v2314
    %v2553 = vmul.f32 %v2512, %v2532
    %v2554 = vadd.f32 %v2552, %v2553
    %v2555 = vtanh.pop %v2554
    %v2556 = vmul.f32 %v2551, %v2555
    %s2557 = scalar_lea.vmem [#allocation15], 48
    %2558 = vst [vmem:[%s2557] sm:$0xff] %v2556
    %v2559 = vpack.c.bf16 %v2556, %v2556
    %v2560 = vpack.c.bf16 %v2554, %v2554
    %s2561 = scalar_lea.vmem [#allocation3], 28
    %v2562 = vld [vmem:[%s2561] sm:$0xf]
    %s2563 = scalar_lea.vmem [#allocation2], 56
    %v2564 = vld [vmem:[%s2563] sm:$0xff]
    %2565 = vmatpush.bf16.msra.mxu0 %v462
    %2566 = vmatpush.bf16.msra.mxu0 %v461
    %2567 = vmatpush.bf16.msra.mxu0 %v460
    %2568 = vmatpush.bf16.msra.mxu0 %v459
    %2569 = vmatpush.bf16.msra.mxu0 %v458
    %2570 = vmatpush.bf16.msra.mxu0 %v457
    %2571 = vmatpush.bf16.msra.mxu0 %v456
    %2572 = vmatpush.bf16.msra.mxu0 %v455
    %2573 = vmatmul.bf16.gmra.mxu0 %v2559
    %v2574 = vpop.f32.mrf.mxu0
    %v2575 = vadd.f32 0.0, %v2574
    %v2576 = vpop.f32.mrf.mxu0
    %2577 = vdwg.mxu0
    %v2578 = vadd.f32 %v2564, %v2575
    %2579 = vmatpush.bf16.msra.mxu0 %v524
    %2580 = vmatpush.bf16.msra.mxu0 %v523
    %2581 = vmatpush.bf16.msra.mxu0 %v522
    %2582 = vmatpush.bf16.msra.mxu0 %v521
    %2583 = vmatpush.bf16.msra.mxu0 %v520
    %2584 = vmatpush.bf16.msra.mxu0 %v519
    %2585 = vmatpush.bf16.msra.mxu0 %v518
    %2586 = vmatpush.bf16.msra.mxu0 %v517
    %2587 = vmatmul.bf16.gmra.mxu0 %v2560
    %v2588 = vpop.f32.mrf.mxu0
    %v2589 = vadd.f32 0.0, %v2588
    %v2590 = vpop.f32.mrf.mxu0
    %2591 = vdwg.mxu0
    %v2592 = vadd.f32 %v2578, %v2589
    %v2593 = vtanh.pop %v2592
    %v2594 = vpack.c.bf16 %v2593, %v2593
    %2595 = vmatpush.bf16.msra.mxu0 %v588
    %2596 = vmatpush.bf16.msra.mxu0 %v587
    %2597 = vmatpush.bf16.msra.mxu0 %v586
    %2598 = vmatpush.bf16.msra.mxu0 %v585
    %2599 = vmatpush.bf16.msra.mxu0 %v584
    %2600 = vmatpush.bf16.msra.mxu0 %v583
    %2601 = vmatpush.bf16.msra.mxu0 %v582
    %2602 = vmatpush.bf16.msra.mxu0 %v581
    %2603 = vmatmul.bf16.gmra.mxu0 %v2594
    %v2604 = vpop.f32.mrf.mxu0
    %v2605 = vadd.f32 %v416, %v2604
    %v2606 = vpop.f32.mrf.mxu0
    %2607 = vdwg.mxu0
    %2608 = vmax.xlane.f32.xlu0 %v2605
    %v2609 = vpop.xlane.xlu0 %2608
    %v2610 = vsub.f32 %v2605, %v2609
    %v2611 = vmul.f32 %v2610, 1.442695
    %v2612 = vpow.pop %v2611
    %2613 = vadd.xlane.f32.xlu0 %v2612
    %v2614 = vpop.xlane.xlu0 %2613
    %v2615 = vrcp.pop %v2614
    %v2616 = vmul.f32 %v2614, %v2615
    %v2617 = vsub.f32 2.0, %v2616
    %v2618 = vmul.f32 %v2615, %v2617
    %v2619 = vmul.f32 %v2612, %v2618
    %v2620 = vpack.c.bf16 %v2619, %v2619
    %s2621 = scalar_lea.vmem [#allocation16], 28
    %2622 = vst [vmem:[%s2621] sm:$0xf] %v2620
    %v2623 = vunpack.c.l.bf16 %v2562
    %v2624 = vmul.f32 %v2619, %v2623
    %v2625 = vpack.c.bf16 %v2624, %v2624
    %2626 = vmatpush.bf16.msra.mxu0 %v751
    %2627 = vmatpush.bf16.msra.mxu0 %v747
    %2628 = vmatpush.bf16.msra.mxu0 %v743
    %2629 = vmatpush.bf16.msra.mxu0 %v739
    %2630 = vmatpush.bf16.msra.mxu0 %v735
    %2631 = vmatpush.bf16.msra.mxu0 %v731
    %2632 = vmatpush.bf16.msra.mxu0 %v727
    %2633 = vmatpush.bf16.msra.mxu0 %v723
    %2634 = vmatmul.bf16.gmra.mxu0 %v2559
    %v2635 = vpop.f32.mrf.mxu0
    %v2636 = vadd.f32 0.0, %v2635
    %v2637 = vpop.f32.mrf.mxu0
    %2638 = vdwg.mxu0
    %2639 = vmatpush.bf16.msra.mxu0 %v752
    %2640 = vmatpush.bf16.msra.mxu0 %v748
    %2641 = vmatpush.bf16.msra.mxu0 %v744
    %2642 = vmatpush.bf16.msra.mxu0 %v740
    %2643 = vmatpush.bf16.msra.mxu0 %v736
    %2644 = vmatpush.bf16.msra.mxu0 %v732
    %2645 = vmatpush.bf16.msra.mxu0 %v728
    %2646 = vmatpush.bf16.msra.mxu0 %v724
    %2647 = vmatmul.bf16.gmra.mxu0 %v2559
    %v2648 = vpop.f32.mrf.mxu0
    %v2649 = vadd.f32 0.0, %v2648
    %v2650 = vpop.f32.mrf.mxu0
    %2651 = vdwg.mxu0
    %2652 = vmatpush.bf16.msra.mxu0 %v753
    %2653 = vmatpush.bf16.msra.mxu0 %v749
    %2654 = vmatpush.bf16.msra.mxu0 %v745
    %2655 = vmatpush.bf16.msra.mxu0 %v741
    %2656 = vmatpush.bf16.msra.mxu0 %v737
    %2657 = vmatpush.bf16.msra.mxu0 %v733
    %2658 = vmatpush.bf16.msra.mxu0 %v729
    %2659 = vmatpush.bf16.msra.mxu0 %v725
    %2660 = vmatmul.bf16.gmra.mxu0 %v2559
    %v2661 = vpop.f32.mrf.mxu0
    %v2662 = vadd.f32 0.0, %v2661
    %v2663 = vpop.f32.mrf.mxu0
    %2664 = vdwg.mxu0
    %2665 = vmatpush.bf16.msra.mxu0 %v754
    %2666 = vmatpush.bf16.msra.mxu0 %v750
    %2667 = vmatpush.bf16.msra.mxu0 %v746
    %2668 = vmatpush.bf16.msra.mxu0 %v742
    %2669 = vmatpush.bf16.msra.mxu0 %v738
    %2670 = vmatpush.bf16.msra.mxu0 %v734
    %2671 = vmatpush.bf16.msra.mxu0 %v730
    %2672 = vmatpush.bf16.msra.mxu0 %v726
    %2673 = vmatmul.bf16.gmra.mxu0 %v2559
    %v2674 = vpop.f32.mrf.mxu0
    %v2675 = vadd.f32 0.0, %v2674
    %v2676 = vpop.f32.mrf.mxu0
    %2677 = vdwg.mxu0
    %2678 = vmatpush.bf16.msra.mxu0 %v963
    %2679 = vmatpush.bf16.msra.mxu0 %v959
    %2680 = vmatpush.bf16.msra.mxu0 %v955
    %2681 = vmatpush.bf16.msra.mxu0 %v951
    %2682 = vmatpush.bf16.msra.mxu0 %v947
    %2683 = vmatpush.bf16.msra.mxu0 %v943
    %2684 = vmatpush.bf16.msra.mxu0 %v939
    %2685 = vmatpush.bf16.msra.mxu0 %v935
    %2686 = vmatmul.bf16.gmra.mxu0 %v2625
    %v2687 = vpop.f32.mrf.mxu0
    %v2688 = vadd.f32 %v2636, %v2687
    %v2689 = vpop.f32.mrf.mxu0
    %2690 = vdwg.mxu0
    %2691 = vmatpush.bf16.msra.mxu0 %v964
    %2692 = vmatpush.bf16.msra.mxu0 %v960
    %2693 = vmatpush.bf16.msra.mxu0 %v956
    %2694 = vmatpush.bf16.msra.mxu0 %v952
    %2695 = vmatpush.bf16.msra.mxu0 %v948
    %2696 = vmatpush.bf16.msra.mxu0 %v944
    %2697 = vmatpush.bf16.msra.mxu0 %v940
    %2698 = vmatpush.bf16.msra.mxu0 %v936
    %2699 = vmatmul.bf16.gmra.mxu0 %v2625
    %v2700 = vpop.f32.mrf.mxu0
    %v2701 = vadd.f32 %v2649, %v2700
    %v2702 = vpop.f32.mrf.mxu0
    %2703 = vdwg.mxu0
    %2704 = vmatpush.bf16.msra.mxu0 %v965
    %2705 = vmatpush.bf16.msra.mxu0 %v961
    %2706 = vmatpush.bf16.msra.mxu0 %v957
    %2707 = vmatpush.bf16.msra.mxu0 %v953
    %2708 = vmatpush.bf16.msra.mxu0 %v949
    %2709 = vmatpush.bf16.msra.mxu0 %v945
    %2710 = vmatpush.bf16.msra.mxu0 %v941
    %2711 = vmatpush.bf16.msra.mxu0 %v937
    %2712 = vmatmul.bf16.gmra.mxu0 %v2625
    %v2713 = vpop.f32.mrf.mxu0
    %v2714 = vadd.f32 %v2662, %v2713
    %v2715 = vpop.f32.mrf.mxu0
    %2716 = vdwg.mxu0
    %2717 = vmatpush.bf16.msra.mxu0 %v966
    %2718 = vmatpush.bf16.msra.mxu0 %v962
    %2719 = vmatpush.bf16.msra.mxu0 %v958
    %2720 = vmatpush.bf16.msra.mxu0 %v954
    %2721 = vmatpush.bf16.msra.mxu0 %v950
    %2722 = vmatpush.bf16.msra.mxu0 %v946
    %2723 = vmatpush.bf16.msra.mxu0 %v942
    %2724 = vmatpush.bf16.msra.mxu0 %v938
    %2725 = vmatmul.bf16.gmra.mxu0 %v2625
    %v2726 = vpop.f32.mrf.mxu0
    %v2727 = vadd.f32 %v2675, %v2726
    %v2728 = vpop.f32.mrf.mxu0
    %2729 = vdwg.mxu0
    %v2730 = vadd.f32 %v2688, %v405
    %v2731 = vadd.f32 %v2701, %v406
    %v2732 = vadd.f32 %v2714, %v407
    %v2733 = vadd.f32 %v2727, %v408
    %v2734 = vxor.u32 %v2730, 2147483648
    %v2735 = vmul.f32 %v2734, 1.442695
    %v2736 = vpow.pop %v2735
    %v2737 = vadd.f32 %v2736, 1.0
    %v2738 = vrcp.pop %v2737
    %v2739 = vmul.f32 %v2737, %v2738
    %v2740 = vsub.f32 1.0, %v2739
    %v2741 = vmul.f32 %v2738, %v2740
    %v2742 = vadd.f32 %v2738, %v2741
    %vm2743 = vweird.f32 %v2737
    %vm2744 = vweird.f32 %v2738
    %vm2745 = vmor %vm2743, %vm2744
    %v2746 = vsel %vm2745, %v2738, %v2742
    %v2747 = vand.u32 2147483647, %v2737
    %vm2748 = vcmp.eq.f32.partialorder %v2747, 8.507059e+37
    %v2749 = vand.u32 %v2737, 2147483648
    %v2750 = vor.u32 1.1754944e-38, %v2749
    %v2751 = vsel %vm2748, %v2750, %v2746
    %v2752 = vmul.f32 1.0, %v2751
    %v2753 = vxor.u32 %v2731, 2147483648
    %v2754 = vmul.f32 %v2753, 1.442695
    %v2755 = vpow.pop %v2754
    %v2756 = vadd.f32 %v2755, 1.0
    %v2757 = vrcp.pop %v2756
    %v2758 = vmul.f32 %v2756, %v2757
    %v2759 = vsub.f32 1.0, %v2758
    %v2760 = vmul.f32 %v2757, %v2759
    %v2761 = vadd.f32 %v2757, %v2760
    %vm2762 = vweird.f32 %v2756
    %vm2763 = vweird.f32 %v2757
    %vm2764 = vmor %vm2762, %vm2763
    %v2765 = vsel %vm2764, %v2757, %v2761
    %v2766 = vand.u32 2147483647, %v2756
    %vm2767 = vcmp.eq.f32.partialorder %v2766, 8.507059e+37
    %v2768 = vand.u32 %v2756, 2147483648
    %v2769 = vor.u32 1.1754944e-38, %v2768
    %v2770 = vsel %vm2767, %v2769, %v2765
    %v2771 = vmul.f32 1.0, %v2770
    %v2772 = vtanh.pop %v2732
    %v2773 = vxor.u32 %v2733, 2147483648
    %v2774 = vmul.f32 %v2773, 1.442695
    %v2775 = vpow.pop %v2774
    %v2776 = vadd.f32 %v2775, 1.0
    %v2777 = vrcp.pop %v2776
    %v2778 = vmul.f32 %v2776, %v2777
    %v2779 = vsub.f32 1.0, %v2778
    %v2780 = vmul.f32 %v2777, %v2779
    %v2781 = vadd.f32 %v2777, %v2780
    %vm2782 = vweird.f32 %v2776
    %vm2783 = vweird.f32 %v2777
    %vm2784 = vmor %vm2782, %vm2783
    %v2785 = vsel %vm2784, %v2777, %v2781
    %v2786 = vand.u32 2147483647, %v2776
    %vm2787 = vcmp.eq.f32.partialorder %v2786, 8.507059e+37
    %v2788 = vand.u32 %v2776, 2147483648
    %v2789 = vor.u32 1.1754944e-38, %v2788
    %v2790 = vsel %vm2787, %v2789, %v2785
    %v2791 = vmul.f32 1.0, %v2790
    %v2792 = vmul.f32 %v2771, %v2554
    %v2793 = vmul.f32 %v2752, %v2772
    %v2794 = vadd.f32 %v2792, %v2793
    %v2795 = vtanh.pop %v2794
    %v2796 = vmul.f32 %v2791, %v2795
    %s2797 = scalar_lea.vmem [#allocation15], 56
    %2798 = vst [vmem:[%s2797] sm:$0xff] %v2796
    %2799 = vst [vmem:[#allocation18] sm:$0xff] %v2796
    %2800 = vst [vmem:[#allocation19] sm:$0xff] %v2794
    // Predicated region
    $region70: #{tpu_custom_call.1} parent=1 // pred_check
      _
    $region71: #{tpu_custom_call.1} parent=1 // pred_check_branch
      %2802 = sbr.rel (0) target = $region73
    $region72: #{tpu_custom_call.1} parent=1 // pred_region
      %2804 = vsyncadd [#allocation5], 0
      %s2805 = sshll.u32 [#allocation15], 4
      %s2806 = int_to_ptr.vmem [resolvable:$true] %s2805
      %s2807 = sshll.u32 %s9, 4
      %s2808 = int_to_ptr.hbm [resolvable:$true] %s2807
      %2813 = dma.vmem_to_hbm [thread:$0]  %s2806, 1024, %s2808, [#allocation5], 128, 128, 8
    $region73: #{tpu_custom_call.1} parent=1 // pred_fallthru
      _
    // Predicated region
    $region74: #{tpu_custom_call.1} parent=1 // pred_check
      _
    $region75: #{tpu_custom_call.1} parent=1 // pred_check_branch
      %2815 = sbr.rel (0) target = $region77
    $region76: #{tpu_custom_call.1} parent=1 // pred_region
      %2817 = vsyncadd [#allocation17], 0
      %s2818 = sshll.u32 [#allocation16], 4
      %s2819 = int_to_ptr.vmem [resolvable:$true] %s2818
      %s2820 = sshll.u32 %s10, 4
      %s2821 = int_to_ptr.hbm [resolvable:$true] %s2820
      %2826 = dma.vmem_to_hbm [thread:$0]  %s2819, 512, %s2821, [#allocation17], 64, 64, 4
    $region77: #{tpu_custom_call.1} parent=1 // pred_fallthru
      _
    // Predicated region
    $region78: #{tpu_custom_call.1} parent=1 // pred_check
      _
    $region79: #{tpu_custom_call.1} parent=1 // pred_check_branch
      %2828 = sbr.rel (0) target = $region81
    $region80: #{tpu_custom_call.1} parent=1 // pred_region
      %2830 = vsyncadd [#allocation17], 0
      %s2832 = sshll.u32 [#allocation18], 4
      %s2833 = int_to_ptr.vmem [resolvable:$true] %s2832
      %s2834 = sshll.u32 %s11, 4
      %s2835 = int_to_ptr.hbm [resolvable:$true] %s2834
      %2837 = dma.vmem_to_hbm [thread:$0]  %s2833, 128, %s2835, [#allocation17]
    $region81: #{tpu_custom_call.1} parent=1 // pred_fallthru
      _
    // Predicated region
    $region82: #{tpu_custom_call.1} parent=1 // pred_check
      _
    $region83: #{tpu_custom_call.1} parent=1 // pred_check_branch
      %2839 = sbr.rel (0) target = $region85
    $region84: #{tpu_custom_call.1} parent=1 // pred_region
      %2841 = vsyncadd [#allocation20], 0
      %s2843 = sshll.u32 [#allocation19], 4
      %s2844 = int_to_ptr.vmem [resolvable:$true] %s2843
      %s2845 = sshll.u32 %s12, 4
      %s2846 = int_to_ptr.hbm [resolvable:$true] %s2845
      %2848 = dma.vmem_to_hbm [thread:$0]  %s2844, 128, %s2846, [#allocation20]
    $region85: #{tpu_custom_call.1} parent=1 // pred_fallthru
      _
    // Predicated region
    $region86: #{tpu_custom_call.1} parent=1 // pred_check
      _
    $region87: #{tpu_custom_call.1} parent=1 // pred_check_branch
      %2850 = sbr.rel (0) target = $region89
    $region88: #{tpu_custom_call.1} parent=1 // pred_region
      %2852 = dma.done [#allocation5], 1024
    $region89: #{tpu_custom_call.1} parent=1 // pred_fallthru
      _
    // Predicated region
    $region90: #{tpu_custom_call.1} parent=1 // pred_check
      _
    $region91: #{tpu_custom_call.1} parent=1 // pred_check_branch
      %2854 = sbr.rel (0) target = $region93
    $region92: #{tpu_custom_call.1} parent=1 // pred_region
      %2856 = dma.done [#allocation17], 512
    $region93: #{tpu_custom_call.1} parent=1 // pred_fallthru
      _
    // Predicated region
    $region94: #{tpu_custom_call.1} parent=1 // pred_check
      _
    $region95: #{tpu_custom_call.1} parent=1 // pred_check_branch
      %2858 = sbr.rel (0) target = $region97
    $region96: #{tpu_custom_call.1} parent=1 // pred_region
      %2860 = dma.done [#allocation17], 128
    $region97: #{tpu_custom_call.1} parent=1 // pred_fallthru
      _
    // Predicated region
    $region98: #{tpu_custom_call.1} parent=1 // pred_check
      _
    $region99: #{tpu_custom_call.1} parent=1 // pred_check_branch
      %2862 = sbr.rel (0) target = $region101
    $region100: #{tpu_custom_call.1} parent=1 // pred_region
      %2864 = dma.done [#allocation20], 128
    $region101: #{tpu_custom_call.1} parent=1 // pred_fallthru
      _
    %2865 = vsyncpa [#allocation4], 1
    %2866 = vsyncpa [#allocation7], 1
    %2867 = vsyncpa [#allocation10], 1
    %2868 = vsyncpa [#allocation13], 1
    %2869 = vsyncpa [#allocation5], 1
    %2870 = vsyncpa [#allocation17], 1
    %2871 = vsyncpa [#allocation20], 1

</llo_original>
